<compile_context>
chip_gen: v6e
topology: v6e:2x2x1
jax: 0.10.0
libtpu: 0.0.40
codegen_flags: <defaults>
</compile_context>

<pallas_src>
import functools

import jax
import jax.numpy as jnp
from jax.experimental import pallas as pl
from jax.experimental.pallas import tpu as pltpu


# --------------------------------------------------------------------------
# Fused MeshConv (+ MResConv residual doubling + ReLU) kernel
# --------------------------------------------------------------------------
def _meshconv_kernel(x_ref, n_ref, w_ref, y_ref):
    # x_ref: (E, C_in)        bf16  edge features of this batch element
    # n_ref: (4, E, C_in)     bf16  GeMM neighbour features n1..n4
    # w_ref: (5, C_in, C_out) bf16  MeshConv weight, one (C_in, C_out) slice per
    #                               symmetric feature [x, n1+n3, n2+n4, |n1-n3|, |n2-n4|]
    # y_ref: (E, C_out)       f32   relu(2 * conv(x))
    x = x_ref[...]
    n1 = n_ref[0]
    n2 = n_ref[1]
    n3 = n_ref[2]
    n4 = n_ref[3]

    # Symmetric MeshConv features built in-kernel (VPU; slack next to the MXU).
    f1 = n1 + n3
    f2 = n2 + n4
    f3 = jnp.abs(n1 - n3)
    f4 = jnp.abs(n2 - n4)

    # Five K-slice dots accumulated in f32 on the MXU -- equivalent to one
    # (E, 5*C_in) x (5*C_in, C_out) matmul without an unaligned lane concat.
    acc = jnp.dot(x, w_ref[0], preferred_element_type=jnp.float32)
    acc += jnp.dot(f1, w_ref[1], preferred_element_type=jnp.float32)
    acc += jnp.dot(f2, w_ref[2], preferred_element_type=jnp.float32)
    acc += jnp.dot(f3, w_ref[3], preferred_element_type=jnp.float32)
    acc += jnp.dot(f4, w_ref[4], preferred_element_type=jnp.float32)

    # MResConv with 0 res-blocks: x = conv0(x); x += skip -> 2*conv0(x); relu.
    # norm='none' (Identity) + the module's outer F.relu are no-ops after this.
    y_ref[...] = jnp.maximum(2.0 * acc, 0.0).astype(y_ref.dtype)


def mesh_conv_layer(x_ec, gemm, w):
    """One MResConv(ki, k_{i+1}, 0) + ReLU layer.

    x_ec: (B, E, C_in) f32 edge-major activations
    gemm: (B, E, 4) int32 GeMM neighbour ids (indices into [0, E))
    w:    (5, C_out, C_in) f32 MeshConv weight (bias=False, as in MeshCNN MResConv)
    returns y_ec: (B, E, C_out) f32
    """
    B, E, C_in = x_ec.shape
    C_out = w.shape[1]

    # bf16 matmul operands (MXU-native).  Cast BEFORE the gather so the gathered
    # slab is produced directly in bf16 (no extra cast pass over it).
    x_bf = x_ec.astype(jnp.bfloat16)

    # GeMM neighbour gather along the edge (major) axis, laid out neighbour-major
    # so the kernel slices whole (E, C_in) planes: n[b, j, e, :] = x[b, gemm[b, e, j], :]
    # TODO(synk): real MeshCNN GeMM rows include the edge itself first and use -1
    # padding for boundary edges; padded entries would need masking here.
    idx = jnp.swapaxes(gemm, 1, 2)                              # (B, 4, E)
    n_bf = jax.vmap(lambda xb, ib: xb[ib])(x_bf, idx)           # (B, 4, E, C_in)

    # (5, C_out, C_in) -> (5, C_in, C_out) so w[j] right-multiplies feature j.
    w_bf = jnp.transpose(w, (0, 2, 1)).astype(jnp.bfloat16)

    y = pl.pallas_call(
        _meshconv_kernel,
        grid=(B,),
        in_specs=[
            pl.BlockSpec((None, E, C_in), lambda b: (b, 0, 0)),
            pl.BlockSpec((None, 4, E, C_in), lambda b: (b, 0, 0, 0)),
            pl.BlockSpec((5, C_in, C_out), lambda b: (0, 0, 0)),
        ],
        out_specs=pl.BlockSpec((None, E, C_out), lambda b: (b, 0, 0)),
        out_shape=jax.ShapeDtypeStruct((B, E, C_out), jnp.float32),
        compiler_params=pltpu.CompilerParams(
            dimension_semantics=("parallel",)),   # 2nd TensorCore on v7x
    )(x_bf, n_bf, w_bf)
    return y


# --------------------------------------------------------------------------
# MeshPool (approximation)
# --------------------------------------------------------------------------
def mesh_pool_topk(y_ec, target):
    # TODO(synk): real MeshCNN MeshPool does topology-aware edge collapse
    # (priority queue + union-find rebuild of the mesh/GeMM); no clean Pallas
    # equivalent -- approximated by keeping the `target` edges with the largest
    # feature L2 norm (order preserving).
    scores = jnp.sum(jnp.square(y_ec), axis=-1)                 # fuses into top_k prologue
    _, idx = jax.lax.top_k(scores, target)                      # (B, target)
    idx = jnp.sort(idx, axis=-1)
    # Edge-major layout -> compaction is a fast major-axis row gather.
    return jax.vmap(lambda yb, ib: yb[ib])(y_ec, idx)           # (B, target, C)


# --------------------------------------------------------------------------
# Global avg + max pooling over remaining edges
# --------------------------------------------------------------------------
def global_pool_both(x_ec):
    # AvgPool1d(E) + MaxPool1d(E) over all remaining edges, concatenated.
    return jnp.concatenate([jnp.mean(x_ec, axis=1), jnp.max(x_ec, axis=1)], axis=-1)


# --------------------------------------------------------------------------
# Full forward
# --------------------------------------------------------------------------
def mesh_cnn_forward(x, gemms, weights, pool_res):
    """x: (B, C, E) channel-major (PyTorch layout).  `gemms` plays the role of the
    `mesh` argument: GeMM neighbour tables per resolution level."""
    x_ec = jnp.transpose(x, (0, 2, 1))                     # edge-major interchange layout
    for w, gemm, target in zip(weights, gemms, pool_res):
        y_ec = mesh_conv_layer(x_ec, gemm, w)              # fused Pallas conv layer
        x_ec = mesh_pool_topk(y_ec, target)                # MeshPool approximation
    return global_pool_both(x_ec)                          # (B, 2*C_last)


if __name__ == "__main__":
    opt = dict(nf0=5, conv_res=[16, 32, 32], input_res=512,
               pool_res=[384, 256, 128], norm='none', num_groups=16,
               nresblocks=0, global_pool_type='both')
    k = [opt['nf0']] + opt['conv_res']            # [5, 16, 32, 32]
    res = [opt['input_res']] + opt['pool_res']    # [512, 384, 256, 128]
    B = 2

    key = jax.random.PRNGKey(0)
    keys = jax.random.split(key, 1 + 2 * len(opt['conv_res']))

    x = jax.random.normal(keys[0], (B, k[0], res[0]), jnp.float32)   # (B, C, E)

    weights, gemms = [], []
    for i in range(len(opt['conv_res'])):
        fan_in = 5 * k[i]
        w = jax.random.normal(keys[1 + 2 * i], (5, k[i + 1], k[i]),
                              jnp.float32) / jnp.sqrt(jnp.float32(fan_in))
        weights.append(w)
        gemms.append(jax.random.randint(keys[2 + 2 * i], (B, res[i], 4),
                                        0, res[i], dtype=jnp.int32))

    pool_res = tuple(opt['pool_res'])
    fwd = jax.jit(functools.partial(mesh_cnn_forward, pool_res=pool_res))

    out = jax.block_until_ready(fwd(x, gemms, weights))
    feat_dim = k[-1] * (2 if opt['global_pool_type'] == 'both' else 1)
    assert out.shape == (B, feat_dim), out.shape
    assert bool(jnp.all(jnp.isfinite(out)))
    print("KERNEL_OK")
</pallas_src>

<mosaic_0001>
module attributes {stable_mosaic.version = 11 : i64} {
  func.func @_meshconv_kernel(%arg0: i32, %arg1: memref<1x512x5xbf16, #tpu.memory_space<vmem>>, %arg2: memref<1x4x512x5xbf16, #tpu.memory_space<vmem>>, %arg3: memref<5x5x16xbf16, #tpu.memory_space<vmem>>, %arg4: memref<1x512x16xf32, #tpu.memory_space<vmem>>) attributes {dimension_semantics = [#tpu.dimension_semantics<parallel>], iteration_bounds = array<i64: 2>, scalar_prefetch = 0 : i64, scratch_operands = 0 : i64, tpu.core_type = #tpu.core_type<tc>, window_params = [{transform_indices = @transform_0, window_bounds = array<i64: 1, 512, 5>}, {transform_indices = @transform_1, window_bounds = array<i64: 1, 4, 512, 5>}, {pipeline_mode = #tpu.pipeline_mode<synchronous>, transform_indices = @transform_2, window_bounds = array<i64: 5, 5, 16>}, {transform_indices = @transform_3, window_bounds = array<i64: 1, 512, 16>}]} {
    %c0 = arith.constant 0 : index
    %c0_0 = arith.constant 0 : index
    %c0_1 = arith.constant 0 : index
    %0 = vector.load %arg1[%c0, %c0_0, %c0_1] : memref<1x512x5xbf16, #tpu.memory_space<vmem>>, vector<1x512x5xbf16>
    %1 = vector.shape_cast %0 : vector<1x512x5xbf16> to vector<512x5xbf16>
    %c0_2 = arith.constant 0 : index
    %c0_3 = arith.constant 0 : index
    %c0_4 = arith.constant 0 : index
    %c0_5 = arith.constant 0 : index
    %2 = vector.load %arg2[%c0_2, %c0_3, %c0_4, %c0_5] : memref<1x4x512x5xbf16, #tpu.memory_space<vmem>>, vector<1x1x512x5xbf16>
    %3 = vector.shape_cast %2 : vector<1x1x512x5xbf16> to vector<512x5xbf16>
    %c0_6 = arith.constant 0 : index
    %c1 = arith.constant 1 : index
    %c0_7 = arith.constant 0 : index
    %c0_8 = arith.constant 0 : index
    %4 = vector.load %arg2[%c0_6, %c1, %c0_7, %c0_8] : memref<1x4x512x5xbf16, #tpu.memory_space<vmem>>, vector<1x1x512x5xbf16>
    %5 = vector.shape_cast %4 : vector<1x1x512x5xbf16> to vector<512x5xbf16>
    %c0_9 = arith.constant 0 : index
    %c2 = arith.constant 2 : index
    %c0_10 = arith.constant 0 : index
    %c0_11 = arith.constant 0 : index
    %6 = vector.load %arg2[%c0_9, %c2, %c0_10, %c0_11] : memref<1x4x512x5xbf16, #tpu.memory_space<vmem>>, vector<1x1x512x5xbf16>
    %7 = vector.shape_cast %6 : vector<1x1x512x5xbf16> to vector<512x5xbf16>
    %c0_12 = arith.constant 0 : index
    %c3 = arith.constant 3 : index
    %c0_13 = arith.constant 0 : index
    %c0_14 = arith.constant 0 : index
    %8 = vector.load %arg2[%c0_12, %c3, %c0_13, %c0_14] : memref<1x4x512x5xbf16, #tpu.memory_space<vmem>>, vector<1x1x512x5xbf16>
    %9 = vector.shape_cast %8 : vector<1x1x512x5xbf16> to vector<512x5xbf16>
    %10 = arith.addf %3, %7 : vector<512x5xbf16>
    %11 = arith.addf %5, %9 : vector<512x5xbf16>
    %12 = arith.subf %3, %7 : vector<512x5xbf16>
    %13 = math.absf %12 : vector<512x5xbf16>
    %14 = arith.subf %5, %9 : vector<512x5xbf16>
    %15 = math.absf %14 : vector<512x5xbf16>
    %c0_15 = arith.constant 0 : index
    %c0_16 = arith.constant 0 : index
    %c0_17 = arith.constant 0 : index
    %16 = vector.load %arg3[%c0_15, %c0_16, %c0_17] : memref<5x5x16xbf16, #tpu.memory_space<vmem>>, vector<1x5x16xbf16>
    %17 = vector.shape_cast %16 : vector<1x5x16xbf16> to vector<5x16xbf16>
    %cst = arith.constant dense<0.000000e+00> : vector<512x16xf32>
    %18 = tpu.matmul %1, %17, %cst {dimension_numbers = #tpu.dot_dimension_numbers<[1], [0], [0], [1], [0, 0, 1, 1], [], []>} : vector<512x5xbf16>, vector<5x16xbf16>, vector<512x16xf32> -> vector<512x16xf32>
    %c1_18 = arith.constant 1 : index
    %c0_19 = arith.constant 0 : index
    %c0_20 = arith.constant 0 : index
    %19 = vector.load %arg3[%c1_18, %c0_19, %c0_20] : memref<5x5x16xbf16, #tpu.memory_space<vmem>>, vector<1x5x16xbf16>
    %20 = vector.shape_cast %19 : vector<1x5x16xbf16> to vector<5x16xbf16>
    %cst_21 = arith.constant dense<0.000000e+00> : vector<512x16xf32>
    %21 = tpu.matmul %10, %20, %cst_21 {dimension_numbers = #tpu.dot_dimension_numbers<[1], [0], [0], [1], [0, 0, 1, 1], [], []>} : vector<512x5xbf16>, vector<5x16xbf16>, vector<512x16xf32> -> vector<512x16xf32>
    %22 = arith.addf %18, %21 : vector<512x16xf32>
    %c2_22 = arith.constant 2 : index
    %c0_23 = arith.constant 0 : index
    %c0_24 = arith.constant 0 : index
    %23 = vector.load %arg3[%c2_22, %c0_23, %c0_24] : memref<5x5x16xbf16, #tpu.memory_space<vmem>>, vector<1x5x16xbf16>
    %24 = vector.shape_cast %23 : vector<1x5x16xbf16> to vector<5x16xbf16>
    %cst_25 = arith.constant dense<0.000000e+00> : vector<512x16xf32>
    %25 = tpu.matmul %11, %24, %cst_25 {dimension_numbers = #tpu.dot_dimension_numbers<[1], [0], [0], [1], [0, 0, 1, 1], [], []>} : vector<512x5xbf16>, vector<5x16xbf16>, vector<512x16xf32> -> vector<512x16xf32>
    %26 = arith.addf %22, %25 : vector<512x16xf32>
    %c3_26 = arith.constant 3 : index
    %c0_27 = arith.constant 0 : index
    %c0_28 = arith.constant 0 : index
    %27 = vector.load %arg3[%c3_26, %c0_27, %c0_28] : memref<5x5x16xbf16, #tpu.memory_space<vmem>>, vector<1x5x16xbf16>
    %28 = vector.shape_cast %27 : vector<1x5x16xbf16> to vector<5x16xbf16>
    %cst_29 = arith.constant dense<0.000000e+00> : vector<512x16xf32>
    %29 = tpu.matmul %13, %28, %cst_29 {dimension_numbers = #tpu.dot_dimension_numbers<[1], [0], [0], [1], [0, 0, 1, 1], [], []>} : vector<512x5xbf16>, vector<5x16xbf16>, vector<512x16xf32> -> vector<512x16xf32>
    %30 = arith.addf %26, %29 : vector<512x16xf32>
    %c4 = arith.constant 4 : index
    %c0_30 = arith.constant 0 : index
    %c0_31 = arith.constant 0 : index
    %31 = vector.load %arg3[%c4, %c0_30, %c0_31] : memref<5x5x16xbf16, #tpu.memory_space<vmem>>, vector<1x5x16xbf16>
    %32 = vector.shape_cast %31 : vector<1x5x16xbf16> to vector<5x16xbf16>
    %cst_32 = arith.constant dense<0.000000e+00> : vector<512x16xf32>
    %33 = tpu.matmul %15, %32, %cst_32 {dimension_numbers = #tpu.dot_dimension_numbers<[1], [0], [0], [1], [0, 0, 1, 1], [], []>} : vector<512x5xbf16>, vector<5x16xbf16>, vector<512x16xf32> -> vector<512x16xf32>
    %34 = arith.addf %30, %33 : vector<512x16xf32>
    %cst_33 = arith.constant 2.000000e+00 : f32
    %35 = vector.broadcast %cst_33 : f32 to vector<512x16xf32>
    %36 = arith.mulf %35, %34 : vector<512x16xf32>
    %cst_34 = arith.constant 0.000000e+00 : f32
    %37 = vector.broadcast %cst_34 : f32 to vector<512x16xf32>
    %38 = arith.maximumf %36, %37 : vector<512x16xf32>
    %c0_35 = arith.constant 0 : index
    %c0_36 = arith.constant 0 : index
    %c0_37 = arith.constant 0 : index
    %39 = vector.load %arg4[%c0_35, %c0_36, %c0_37] : memref<1x512x16xf32, #tpu.memory_space<vmem>>, vector<1x512x16xf32>
    %40 = vector.shape_cast %39 : vector<1x512x16xf32> to vector<512x16xf32>
    %41 = vector.shape_cast %38 : vector<512x16xf32> to vector<1x512x16xf32>
    tpu.vector_store %arg4[%c0_35, %c0_36, %c0_37], %41 {strides = array<i32>} : memref<1x512x16xf32, #tpu.memory_space<vmem>>, vector<1x512x16xf32>,
    return
  }
  func.func @transform_0(%arg0: i32) -> (i32, i32, i32) {
    %c0_i32 = arith.constant 0 : i32
    %c0_i32_0 = arith.constant 0 : i32
    %c0_i32_1 = arith.constant 0 : i32
    return %arg0, %c0_i32, %c0_i32_0 : i32, i32, i32
  }
  func.func @transform_1(%arg0: i32) -> (i32, i32, i32, i32) {
    %c0_i32 = arith.constant 0 : i32
    %c0_i32_0 = arith.constant 0 : i32
    %c0_i32_1 = arith.constant 0 : i32
    %c0_i32_2 = arith.constant 0 : i32
    return %arg0, %c0_i32, %c0_i32_0, %c0_i32_1 : i32, i32, i32, i32
  }
  func.func @transform_2(%arg0: i32) -> (i32, i32, i32) {
    %c0_i32 = arith.constant 0 : i32
    %c0_i32_0 = arith.constant 0 : i32
    %c0_i32_1 = arith.constant 0 : i32
    %c0_i32_2 = arith.constant 0 : i32
    return %c0_i32, %c0_i32_0, %c0_i32_1 : i32, i32, i32
  }
  func.func @transform_3(%arg0: i32) -> (i32, i32, i32) {
    %c0_i32 = arith.constant 0 : i32
    %c0_i32_0 = arith.constant 0 : i32
    %c0_i32_1 = arith.constant 0 : i32
    return %arg0, %c0_i32, %c0_i32_0 : i32, i32, i32
  }
}

module attributes {stable_mosaic.version = 11 : i64} {
  func.func @_meshconv_kernel(%arg0: i32, %arg1: memref<1x384x16xbf16, #tpu.memory_space<vmem>>, %arg2: memref<1x4x384x16xbf16, #tpu.memory_space<vmem>>, %arg3: memref<5x16x32xbf16, #tpu.memory_space<vmem>>, %arg4: memref<1x384x32xf32, #tpu.memory_space<vmem>>) attributes {dimension_semantics = [#tpu.dimension_semantics<parallel>], iteration_bounds = array<i64: 2>, scalar_prefetch = 0 : i64, scratch_operands = 0 : i64, tpu.core_type = #tpu.core_type<tc>, window_params = [{transform_indices = @transform_0, window_bounds = array<i64: 1, 384, 16>}, {transform_indices = @transform_1, window_bounds = array<i64: 1, 4, 384, 16>}, {pipeline_mode = #tpu.pipeline_mode<synchronous>, transform_indices = @transform_2, window_bounds = array<i64: 5, 16, 32>}, {transform_indices = @transform_3, window_bounds = array<i64: 1, 384, 32>}]} {
    %c0 = arith.constant 0 : index
    %c0_0 = arith.constant 0 : index
    %c0_1 = arith.constant 0 : index
    %0 = vector.load %arg1[%c0, %c0_0, %c0_1] : memref<1x384x16xbf16, #tpu.memory_space<vmem>>, vector<1x384x16xbf16>
    %1 = vector.shape_cast %0 : vector<1x384x16xbf16> to vector<384x16xbf16>
    %c0_2 = arith.constant 0 : index
    %c0_3 = arith.constant 0 : index
    %c0_4 = arith.constant 0 : index
    %c0_5 = arith.constant 0 : index
    %2 = vector.load %arg2[%c0_2, %c0_3, %c0_4, %c0_5] : memref<1x4x384x16xbf16, #tpu.memory_space<vmem>>, vector<1x1x384x16xbf16>
    %3 = vector.shape_cast %2 : vector<1x1x384x16xbf16> to vector<384x16xbf16>
    %c0_6 = arith.constant 0 : index
    %c1 = arith.constant 1 : index
    %c0_7 = arith.constant 0 : index
    %c0_8 = arith.constant 0 : index
    %4 = vector.load %arg2[%c0_6, %c1, %c0_7, %c0_8] : memref<1x4x384x16xbf16, #tpu.memory_space<vmem>>, vector<1x1x384x16xbf16>
    %5 = vector.shape_cast %4 : vector<1x1x384x16xbf16> to vector<384x16xbf16>
    %c0_9 = arith.constant 0 : index
    %c2 = arith.constant 2 : index
    %c0_10 = arith.constant 0 : index
    %c0_11 = arith.constant 0 : index
    %6 = vector.load %arg2[%c0_9, %c2, %c0_10, %c0_11] : memref<1x4x384x16xbf16, #tpu.memory_space<vmem>>, vector<1x1x384x16xbf16>
    %7 = vector.shape_cast %6 : vector<1x1x384x16xbf16> to vector<384x16xbf16>
    %c0_12 = arith.constant 0 : index
    %c3 = arith.constant 3 : index
    %c0_13 = arith.constant 0 : index
    %c0_14 = arith.constant 0 : index
    %8 = vector.load %arg2[%c0_12, %c3, %c0_13, %c0_14] : memref<1x4x384x16xbf16, #tpu.memory_space<vmem>>, vector<1x1x384x16xbf16>
    %9 = vector.shape_cast %8 : vector<1x1x384x16xbf16> to vector<384x16xbf16>
    %10 = arith.addf %3, %7 : vector<384x16xbf16>
    %11 = arith.addf %5, %9 : vector<384x16xbf16>
    %12 = arith.subf %3, %7 : vector<384x16xbf16>
    %13 = math.absf %12 : vector<384x16xbf16>
    %14 = arith.subf %5, %9 : vector<384x16xbf16>
    %15 = math.absf %14 : vector<384x16xbf16>
    %c0_15 = arith.constant 0 : index
    %c0_16 = arith.constant 0 : index
    %c0_17 = arith.constant 0 : index
    %16 = vector.load %arg3[%c0_15, %c0_16, %c0_17] : memref<5x16x32xbf16, #tpu.memory_space<vmem>>, vector<1x16x32xbf16>
    %17 = vector.shape_cast %16 : vector<1x16x32xbf16> to vector<16x32xbf16>
    %cst = arith.constant dense<0.000000e+00> : vector<384x32xf32>
    %18 = tpu.matmul %1, %17, %cst {dimension_numbers = #tpu.dot_dimension_numbers<[1], [0], [0], [1], [0, 0, 1, 1], [], []>} : vector<384x16xbf16>, vector<16x32xbf16>, vector<384x32xf32> -> vector<384x32xf32>
    %c1_18 = arith.constant 1 : index
    %c0_19 = arith.constant 0 : index
    %c0_20 = arith.constant 0 : index
    %19 = vector.load %arg3[%c1_18, %c0_19, %c0_20] : memref<5x16x32xbf16, #tpu.memory_space<vmem>>, vector<1x16x32xbf16>
    %20 = vector.shape_cast %19 : vector<1x16x32xbf16> to vector<16x32xbf16>
    %cst_21 = arith.constant dense<0.000000e+00> : vector<384x32xf32>
    %21 = tpu.matmul %10, %20, %cst_21 {dimension_numbers = #tpu.dot_dimension_numbers<[1], [0], [0], [1], [0, 0, 1, 1], [], []>} : vector<384x16xbf16>, vector<16x32xbf16>, vector<384x32xf32> -> vector<384x32xf32>
    %22 = arith.addf %18, %21 : vector<384x32xf32>
    %c2_22 = arith.constant 2 : index
    %c0_23 = arith.constant 0 : index
    %c0_24 = arith.constant 0 : index
    %23 = vector.load %arg3[%c2_22, %c0_23, %c0_24] : memref<5x16x32xbf16, #tpu.memory_space<vmem>>, vector<1x16x32xbf16>
    %24 = vector.shape_cast %23 : vector<1x16x32xbf16> to vector<16x32xbf16>
    %cst_25 = arith.constant dense<0.000000e+00> : vector<384x32xf32>
    %25 = tpu.matmul %11, %24, %cst_25 {dimension_numbers = #tpu.dot_dimension_numbers<[1], [0], [0], [1], [0, 0, 1, 1], [], []>} : vector<384x16xbf16>, vector<16x32xbf16>, vector<384x32xf32> -> vector<384x32xf32>
    %26 = arith.addf %22, %25 : vector<384x32xf32>
    %c3_26 = arith.constant 3 : index
    %c0_27 = arith.constant 0 : index
    %c0_28 = arith.constant 0 : index
    %27 = vector.load %arg3[%c3_26, %c0_27, %c0_28] : memref<5x16x32xbf16, #tpu.memory_space<vmem>>, vector<1x16x32xbf16>
    %28 = vector.shape_cast %27 : vector<1x16x32xbf16> to vector<16x32xbf16>
    %cst_29 = arith.constant dense<0.000000e+00> : vector<384x32xf32>
    %29 = tpu.matmul %13, %28, %cst_29 {dimension_numbers = #tpu.dot_dimension_numbers<[1], [0], [0], [1], [0, 0, 1, 1], [], []>} : vector<384x16xbf16>, vector<16x32xbf16>, vector<384x32xf32> -> vector<384x32xf32>
    %30 = arith.addf %26, %29 : vector<384x32xf32>
    %c4 = arith.constant 4 : index
    %c0_30 = arith.constant 0 : index
    %c0_31 = arith.constant 0 : index
    %31 = vector.load %arg3[%c4, %c0_30, %c0_31] : memref<5x16x32xbf16, #tpu.memory_space<vmem>>, vector<1x16x32xbf16>
    %32 = vector.shape_cast %31 : vector<1x16x32xbf16> to vector<16x32xbf16>
    %cst_32 = arith.constant dense<0.000000e+00> : vector<384x32xf32>
    %33 = tpu.matmul %15, %32, %cst_32 {dimension_numbers = #tpu.dot_dimension_numbers<[1], [0], [0], [1], [0, 0, 1, 1], [], []>} : vector<384x16xbf16>, vector<16x32xbf16>, vector<384x32xf32> -> vector<384x32xf32>
    %34 = arith.addf %30, %33 : vector<384x32xf32>
    %cst_33 = arith.constant 2.000000e+00 : f32
    %35 = vector.broadcast %cst_33 : f32 to vector<384x32xf32>
    %36 = arith.mulf %35, %34 : vector<384x32xf32>
    %cst_34 = arith.constant 0.000000e+00 : f32
    %37 = vector.broadcast %cst_34 : f32 to vector<384x32xf32>
    %38 = arith.maximumf %36, %37 : vector<384x32xf32>
    %c0_35 = arith.constant 0 : index
    %c0_36 = arith.constant 0 : index
    %c0_37 = arith.constant 0 : index
    %39 = vector.load %arg4[%c0_35, %c0_36, %c0_37] : memref<1x384x32xf32, #tpu.memory_space<vmem>>, vector<1x384x32xf32>
    %40 = vector.shape_cast %39 : vector<1x384x32xf32> to vector<384x32xf32>
    %41 = vector.shape_cast %38 : vector<384x32xf32> to vector<1x384x32xf32>
    tpu.vector_store %arg4[%c0_35, %c0_36, %c0_37], %41 {strides = array<i32>} : memref<1x384x32xf32, #tpu.memory_space<vmem>>, vector<1x384x32xf32>,
    return
  }
  func.func @transform_0(%arg0: i32) -> (i32, i32, i32) {
    %c0_i32 = arith.constant 0 : i32
    %c0_i32_0 = arith.constant 0 : i32
    %c0_i32_1 = arith.constant 0 : i32
    return %arg0, %c0_i32, %c0_i32_0 : i32, i32, i32
  }
  func.func @transform_1(%arg0: i32) -> (i32, i32, i32, i32) {
    %c0_i32 = arith.constant 0 : i32
    %c0_i32_0 = arith.constant 0 : i32
    %c0_i32_1 = arith.constant 0 : i32
    %c0_i32_2 = arith.constant 0 : i32
    return %arg0, %c0_i32, %c0_i32_0, %c0_i32_1 : i32, i32, i32, i32
  }
  func.func @transform_2(%arg0: i32) -> (i32, i32, i32) {
    %c0_i32 = arith.constant 0 : i32
    %c0_i32_0 = arith.constant 0 : i32
    %c0_i32_1 = arith.constant 0 : i32
    %c0_i32_2 = arith.constant 0 : i32
    return %c0_i32, %c0_i32_0, %c0_i32_1 : i32, i32, i32
  }
  func.func @transform_3(%arg0: i32) -> (i32, i32, i32) {
    %c0_i32 = arith.constant 0 : i32
    %c0_i32_0 = arith.constant 0 : i32
    %c0_i32_1 = arith.constant 0 : i32
    return %arg0, %c0_i32, %c0_i32_0 : i32, i32, i32
  }
}

module attributes {stable_mosaic.version = 11 : i64} {
  func.func @_meshconv_kernel(%arg0: i32, %arg1: memref<1x256x32xbf16, #tpu.memory_space<vmem>>, %arg2: memref<1x4x256x32xbf16, #tpu.memory_space<vmem>>, %arg3: memref<5x32x32xbf16, #tpu.memory_space<vmem>>, %arg4: memref<1x256x32xf32, #tpu.memory_space<vmem>>) attributes {dimension_semantics = [#tpu.dimension_semantics<parallel>], iteration_bounds = array<i64: 2>, scalar_prefetch = 0 : i64, scratch_operands = 0 : i64, tpu.core_type = #tpu.core_type<tc>, window_params = [{transform_indices = @transform_0, window_bounds = array<i64: 1, 256, 32>}, {transform_indices = @transform_1, window_bounds = array<i64: 1, 4, 256, 32>}, {pipeline_mode = #tpu.pipeline_mode<synchronous>, transform_indices = @transform_2, window_bounds = array<i64: 5, 32, 32>}, {transform_indices = @transform_3, window_bounds = array<i64: 1, 256, 32>}]} {
    %c0 = arith.constant 0 : index
    %c0_0 = arith.constant 0 : index
    %c0_1 = arith.constant 0 : index
    %0 = vector.load %arg1[%c0, %c0_0, %c0_1] : memref<1x256x32xbf16, #tpu.memory_space<vmem>>, vector<1x256x32xbf16>
    %1 = vector.shape_cast %0 : vector<1x256x32xbf16> to vector<256x32xbf16>
    %c0_2 = arith.constant 0 : index
    %c0_3 = arith.constant 0 : index
    %c0_4 = arith.constant 0 : index
    %c0_5 = arith.constant 0 : index
    %2 = vector.load %arg2[%c0_2, %c0_3, %c0_4, %c0_5] : memref<1x4x256x32xbf16, #tpu.memory_space<vmem>>, vector<1x1x256x32xbf16>
    %3 = vector.shape_cast %2 : vector<1x1x256x32xbf16> to vector<256x32xbf16>
    %c0_6 = arith.constant 0 : index
    %c1 = arith.constant 1 : index
    %c0_7 = arith.constant 0 : index
    %c0_8 = arith.constant 0 : index
    %4 = vector.load %arg2[%c0_6, %c1, %c0_7, %c0_8] : memref<1x4x256x32xbf16, #tpu.memory_space<vmem>>, vector<1x1x256x32xbf16>
    %5 = vector.shape_cast %4 : vector<1x1x256x32xbf16> to vector<256x32xbf16>
    %c0_9 = arith.constant 0 : index
    %c2 = arith.constant 2 : index
    %c0_10 = arith.constant 0 : index
    %c0_11 = arith.constant 0 : index
    %6 = vector.load %arg2[%c0_9, %c2, %c0_10, %c0_11] : memref<1x4x256x32xbf16, #tpu.memory_space<vmem>>, vector<1x1x256x32xbf16>
    %7 = vector.shape_cast %6 : vector<1x1x256x32xbf16> to vector<256x32xbf16>
    %c0_12 = arith.constant 0 : index
    %c3 = arith.constant 3 : index
    %c0_13 = arith.constant 0 : index
    %c0_14 = arith.constant 0 : index
    %8 = vector.load %arg2[%c0_12, %c3, %c0_13, %c0_14] : memref<1x4x256x32xbf16, #tpu.memory_space<vmem>>, vector<1x1x256x32xbf16>
    %9 = vector.shape_cast %8 : vector<1x1x256x32xbf16> to vector<256x32xbf16>
    %10 = arith.addf %3, %7 : vector<256x32xbf16>
    %11 = arith.addf %5, %9 : vector<256x32xbf16>
    %12 = arith.subf %3, %7 : vector<256x32xbf16>
    %13 = math.absf %12 : vector<256x32xbf16>
    %14 = arith.subf %5, %9 : vector<256x32xbf16>
    %15 = math.absf %14 : vector<256x32xbf16>
    %c0_15 = arith.constant 0 : index
    %c0_16 = arith.constant 0 : index
    %c0_17 = arith.constant 0 : index
    %16 = vector.load %arg3[%c0_15, %c0_16, %c0_17] : memref<5x32x32xbf16, #tpu.memory_space<vmem>>, vector<1x32x32xbf16>
    %17 = vector.shape_cast %16 : vector<1x32x32xbf16> to vector<32x32xbf16>
    %cst = arith.constant dense<0.000000e+00> : vector<256x32xf32>
    %18 = tpu.matmul %1, %17, %cst {dimension_numbers = #tpu.dot_dimension_numbers<[1], [0], [0], [1], [0, 0, 1, 1], [], []>} : vector<256x32xbf16>, vector<32x32xbf16>, vector<256x32xf32> -> vector<256x32xf32>
    %c1_18 = arith.constant 1 : index
    %c0_19 = arith.constant 0 : index
    %c0_20 = arith.constant 0 : index
    %19 = vector.load %arg3[%c1_18, %c0_19, %c0_20] : memref<5x32x32xbf16, #tpu.memory_space<vmem>>, vector<1x32x32xbf16>
    %20 = vector.shape_cast %19 : vector<1x32x32xbf16> to vector<32x32xbf16>
    %cst_21 = arith.constant dense<0.000000e+00> : vector<256x32xf32>
    %21 = tpu.matmul %10, %20, %cst_21 {dimension_numbers = #tpu.dot_dimension_numbers<[1], [0], [0], [1], [0, 0, 1, 1], [], []>} : vector<256x32xbf16>, vector<32x32xbf16>, vector<256x32xf32> -> vector<256x32xf32>
    %22 = arith.addf %18, %21 : vector<256x32xf32>
    %c2_22 = arith.constant 2 : index
    %c0_23 = arith.constant 0 : index
    %c0_24 = arith.constant 0 : index
    %23 = vector.load %arg3[%c2_22, %c0_23, %c0_24] : memref<5x32x32xbf16, #tpu.memory_space<vmem>>, vector<1x32x32xbf16>
    %24 = vector.shape_cast %23 : vector<1x32x32xbf16> to vector<32x32xbf16>
    %cst_25 = arith.constant dense<0.000000e+00> : vector<256x32xf32>
    %25 = tpu.matmul %11, %24, %cst_25 {dimension_numbers = #tpu.dot_dimension_numbers<[1], [0], [0], [1], [0, 0, 1, 1], [], []>} : vector<256x32xbf16>, vector<32x32xbf16>, vector<256x32xf32> -> vector<256x32xf32>
    %26 = arith.addf %22, %25 : vector<256x32xf32>
    %c3_26 = arith.constant 3 : index
    %c0_27 = arith.constant 0 : index
    %c0_28 = arith.constant 0 : index
    %27 = vector.load %arg3[%c3_26, %c0_27, %c0_28] : memref<5x32x32xbf16, #tpu.memory_space<vmem>>, vector<1x32x32xbf16>
    %28 = vector.shape_cast %27 : vector<1x32x32xbf16> to vector<32x32xbf16>
    %cst_29 = arith.constant dense<0.000000e+00> : vector<256x32xf32>
    %29 = tpu.matmul %13, %28, %cst_29 {dimension_numbers = #tpu.dot_dimension_numbers<[1], [0], [0], [1], [0, 0, 1, 1], [], []>} : vector<256x32xbf16>, vector<32x32xbf16>, vector<256x32xf32> -> vector<256x32xf32>
    %30 = arith.addf %26, %29 : vector<256x32xf32>
    %c4 = arith.constant 4 : index
    %c0_30 = arith.constant 0 : index
    %c0_31 = arith.constant 0 : index
    %31 = vector.load %arg3[%c4, %c0_30, %c0_31] : memref<5x32x32xbf16, #tpu.memory_space<vmem>>, vector<1x32x32xbf16>
    %32 = vector.shape_cast %31 : vector<1x32x32xbf16> to vector<32x32xbf16>
    %cst_32 = arith.constant dense<0.000000e+00> : vector<256x32xf32>
    %33 = tpu.matmul %15, %32, %cst_32 {dimension_numbers = #tpu.dot_dimension_numbers<[1], [0], [0], [1], [0, 0, 1, 1], [], []>} : vector<256x32xbf16>, vector<32x32xbf16>, vector<256x32xf32> -> vector<256x32xf32>
    %34 = arith.addf %30, %33 : vector<256x32xf32>
    %cst_33 = arith.constant 2.000000e+00 : f32
    %35 = vector.broadcast %cst_33 : f32 to vector<256x32xf32>
    %36 = arith.mulf %35, %34 : vector<256x32xf32>
    %cst_34 = arith.constant 0.000000e+00 : f32
    %37 = vector.broadcast %cst_34 : f32 to vector<256x32xf32>
    %38 = arith.maximumf %36, %37 : vector<256x32xf32>
    %c0_35 = arith.constant 0 : index
    %c0_36 = arith.constant 0 : index
    %c0_37 = arith.constant 0 : index
    %39 = vector.load %arg4[%c0_35, %c0_36, %c0_37] : memref<1x256x32xf32, #tpu.memory_space<vmem>>, vector<1x256x32xf32>
    %40 = vector.shape_cast %39 : vector<1x256x32xf32> to vector<256x32xf32>
    %41 = vector.shape_cast %38 : vector<256x32xf32> to vector<1x256x32xf32>
    tpu.vector_store %arg4[%c0_35, %c0_36, %c0_37], %41 {strides = array<i32>} : memref<1x256x32xf32, #tpu.memory_space<vmem>>, vector<1x256x32xf32>,
    return
  }
  func.func @transform_0(%arg0: i32) -> (i32, i32, i32) {
    %c0_i32 = arith.constant 0 : i32
    %c0_i32_0 = arith.constant 0 : i32
    %c0_i32_1 = arith.constant 0 : i32
    return %arg0, %c0_i32, %c0_i32_0 : i32, i32, i32
  }
  func.func @transform_1(%arg0: i32) -> (i32, i32, i32, i32) {
    %c0_i32 = arith.constant 0 : i32
    %c0_i32_0 = arith.constant 0 : i32
    %c0_i32_1 = arith.constant 0 : i32
    %c0_i32_2 = arith.constant 0 : i32
    return %arg0, %c0_i32, %c0_i32_0, %c0_i32_1 : i32, i32, i32, i32
  }
  func.func @transform_2(%arg0: i32) -> (i32, i32, i32) {
    %c0_i32 = arith.constant 0 : i32
    %c0_i32_0 = arith.constant 0 : i32
    %c0_i32_1 = arith.constant 0 : i32
    %c0_i32_2 = arith.constant 0 : i32
    return %c0_i32, %c0_i32_0, %c0_i32_1 : i32, i32, i32
  }
  func.func @transform_3(%arg0: i32) -> (i32, i32, i32) {
    %c0_i32 = arith.constant 0 : i32
    %c0_i32_0 = arith.constant 0 : i32
    %c0_i32_1 = arith.constant 0 : i32
    return %arg0, %c0_i32, %c0_i32_0 : i32, i32, i32
  }
}

</mosaic_0001>

<llo_original>
// kernel: mesh_cnn_forward.3
$region0: #{mesh_cnn_forward.3}
  #allocation0 [shape = 'u32[]', space=smem, size = 0x4, offset = 0x4, fixed_abs, tag = 'smem constant byte address 0x4 - core index']
  #allocation1 [shape = 'u32[144,128]{1,0:T(1,128)}', space=vmem, size = 0x12000, scoped, tag = 'internal scratch']
  %s0 = inlined_call_operand.vmem [shape: bf16[2,512,5], index: 0, kind: input, shape index: {}]
  %s1 = inlined_call_operand.vmem [shape: bf16[2,4,512,5], index: 1, kind: input, shape index: {}]
  %s2 = inlined_call_operand.vmem [shape: bf16[5,5,16], index: 2, kind: input, shape index: {}]
  %s3 = inlined_call_operand.vmem [shape: f32[2,512,16], index: 3, kind: output, shape index: {}]
  %s4 = sld [smem:[#allocation0]]
  $region45: #{mesh_cnn_forward.3} parent=0
    _
  %s6 = ssub.s32 1, %s4
  %s7 = scalar_select 0, %s6, %s4
  loop: start=0, step=1, limit=4
  $region2: #{mesh_cnn_forward.3} parent=0 // loop_pre_header
    _
  $region3: #{mesh_cnn_forward.3} parent=0 // loop_header
    %s9 = sphi 0, %s13
    %p10 = scmp.ge.s32.totalorder %s9, 4
    %s19 = sphi 0, %s21
    %s22 = sphi 0, %s19
    %s23 = sphi 0, %s22
    %s39 = sphi 0, %s23
    %s45 = sphi 0, %s47
    %s48 = sphi 0, %s45
    %s49 = sphi 0, %s48
    %s65 = sphi 0, %s49
    %s69 = sphi 0, %s69
    %s71 = sphi 0, %s69
    %s72 = sphi 0, %s71
    %s86 = sphi 0, %s72
    %s92 = sphi 0, %s94
    %s95 = sphi 0, %s92
    %s96 = sphi 0, %s95
    %s112 = sphi 0, %s96
  $region4: #{mesh_cnn_forward.3} parent=0 // loop_header_branch
    %12 = sbr.rel (%p10) target = $region8
  $region5: #{mesh_cnn_forward.3} parent=0 // loop_body
    %s14 = ssub.s32 %s9, 1
    %s15 = ssub.s32 %s9, 2
    %s16 = sadd.s32 %s9, 1
    %s17 = ssub.s32 %s9, %s16
    %p18 = scmp.eq.s32.totalorder %s17, 0
    %s20 = sadd.s32 %s19, 1
    %s21 = scalar_select %p18, %s19, %s20
    %p24 = pneg %p18
    %p25 = scmp.eq.s32.totalorder %s9, 1
    %p26 = por %p24, %p25
    %p27 = scmp.ne.s32.totalorder %s19, %s22
    %p28 = scmp.eq.s32.totalorder %s9, 0
    %p29 = por %p27, %p28
    %p30 = scmp.ne.s32.totalorder %s19, %s22
    %p31 = scmp.eq.s32.totalorder %s14, 1
    %p32 = por %p30, %p31
    %p33 = scmp.ne.s32.totalorder %s22, %s23
    %p34 = scmp.eq.s32.totalorder %s14, 0
    %p35 = por %p33, %p34
    %p36 = scmp.ne.s32.totalorder %s22, %s23
    %p37 = scmp.eq.s32.totalorder %s15, 1
    %p38 = por %p36, %p37
    %p40 = scmp.ne.s32.totalorder %s23, %s39
    %p41 = scmp.eq.s32.totalorder %s15, 0
    %p42 = por %p40, %p41
    %s43 = ssub.s32 %s9, %s16
    %p44 = scmp.eq.s32.totalorder %s43, 0
    %s46 = sadd.s32 %s45, 1
    %s47 = scalar_select %p44, %s45, %s46
    %p50 = pneg %p44
    %p51 = scmp.eq.s32.totalorder %s9, 1
    %p52 = por %p50, %p51
    %p53 = scmp.ne.s32.totalorder %s45, %s48
    %p54 = scmp.eq.s32.totalorder %s9, 0
    %p55 = por %p53, %p54
    %p56 = scmp.ne.s32.totalorder %s45, %s48
    %p57 = scmp.eq.s32.totalorder %s14, 1
    %p58 = por %p56, %p57
    %p59 = scmp.ne.s32.totalorder %s48, %s49
    %p60 = scmp.eq.s32.totalorder %s14, 0
    %p61 = por %p59, %p60
    %p62 = scmp.ne.s32.totalorder %s48, %s49
    %p63 = scmp.eq.s32.totalorder %s15, 1
    %p64 = por %p62, %p63
    %p66 = scmp.ne.s32.totalorder %s49, %s65
    %p67 = scmp.eq.s32.totalorder %s15, 0
    %p68 = por %p66, %p67
    %s70 = sadd.s32 %s69, 1
    %p73 = scmp.eq.s32.totalorder %s9, 1
    %p74 = scmp.ne.s32.totalorder %s69, %s71
    %p75 = scmp.eq.s32.totalorder %s9, 0
    %p76 = por %p74, %p75
    %p77 = scmp.ne.s32.totalorder %s69, %s71
    %p78 = scmp.eq.s32.totalorder %s14, 1
    %p79 = por %p77, %p78
    %p80 = scmp.ne.s32.totalorder %s71, %s72
    %p81 = scmp.eq.s32.totalorder %s14, 0
    %p82 = por %p80, %p81
    %p83 = scmp.ne.s32.totalorder %s71, %s72
    %p84 = scmp.eq.s32.totalorder %s15, 1
    %p85 = por %p83, %p84
    %p87 = scmp.ne.s32.totalorder %s72, %s86
    %p88 = scmp.eq.s32.totalorder %s15, 0
    %p89 = por %p87, %p88
    %s90 = ssub.s32 %s9, %s16
    %p91 = scmp.eq.s32.totalorder %s90, 0
    %s93 = sadd.s32 %s92, 1
    %s94 = scalar_select %p91, %s92, %s93
    %p97 = pneg %p91
    %p98 = scmp.eq.s32.totalorder %s9, 1
    %p99 = por %p97, %p98
    %p100 = scmp.ne.s32.totalorder %s92, %s95
    %p101 = scmp.eq.s32.totalorder %s9, 0
    %p102 = por %p100, %p101
    %p103 = scmp.ne.s32.totalorder %s92, %s95
    %p104 = scmp.eq.s32.totalorder %s14, 1
    %p105 = por %p103, %p104
    %p106 = scmp.ne.s32.totalorder %s95, %s96
    %p107 = scmp.eq.s32.totalorder %s14, 0
    %p108 = por %p106, %p107
    %p109 = scmp.ne.s32.totalorder %s95, %s96
    %p110 = scmp.eq.s32.totalorder %s15, 1
    %p111 = por %p109, %p110
    %p113 = scmp.ne.s32.totalorder %s96, %s112
    %p114 = scmp.eq.s32.totalorder %s15, 0
    %p115 = por %p113, %p114
    %p116 = scmp.le.s32.totalorder 1, %s9
    %p117 = scmp.lt.s32.totalorder %s9, 3
    %p118 = pnand %p116, %p117
    %p119 = pneg %p118
    // Predicated region
    $region9: #{mesh_cnn_forward.3} parent=5 // pred_check
      _
    $region10: #{mesh_cnn_forward.3} parent=5 // pred_check_branch
      %121 = sbr.rel (%p118) target = $region12
    $region11: #{mesh_cnn_forward.3} parent=5 // pred_region
      %s122 = ssub.s32 %s9, 1
      // Predicated region
      $region13: #{mesh_cnn_forward.3} parent=11 // pred_check
        %p123 = pneg %p82
      $region14: #{mesh_cnn_forward.3} parent=11 // pred_check_branch
        %125 = sbr.rel (%p123) target = $region16
      $region15: #{mesh_cnn_forward.3} parent=11 // pred_region
        _
      $region16: #{mesh_cnn_forward.3} parent=11 // pred_fallthru
        _
    $region12: #{mesh_cnn_forward.3} parent=5 // pred_fallthru
      _
    %p126 = scmp.lt.s32.totalorder %s9, 2
    // Predicated region
    $region17: #{mesh_cnn_forward.3} parent=5 // pred_check
      %p127 = pneg %p126
    $region18: #{mesh_cnn_forward.3} parent=5 // pred_check_branch
      %129 = sbr.rel (%p127) target = $region20
    $region19: #{mesh_cnn_forward.3} parent=5 // pred_region
      // Predicated region
      $region21: #{mesh_cnn_forward.3} parent=19 // pred_check
        %p130 = pneg %p29
      $region22: #{mesh_cnn_forward.3} parent=19 // pred_check_branch
        %132 = sbr.rel (%p130) target = $region24
      $region23: #{mesh_cnn_forward.3} parent=19 // pred_region
        %p133 = scmp.lt.s32.totalorder %s9, 1
        %s134 = scalar_select %p133, %s9, 1
        %s135 = smul.addr %s134, 64
        %s136 = smul.addr %s135, 4
        %s137 = scalar_lea.vmem %s0, %s136
      $region24: #{mesh_cnn_forward.3} parent=19 // pred_fallthru
        _
      // Predicated region
      $region25: #{mesh_cnn_forward.3} parent=19 // pred_check
        %p138 = pneg %p55
      $region26: #{mesh_cnn_forward.3} parent=19 // pred_check_branch
        %140 = sbr.rel (%p138) target = $region28
      $region27: #{mesh_cnn_forward.3} parent=19 // pred_region
        %p141 = scmp.lt.s32.totalorder %s9, 1
        %s142 = scalar_select %p141, %s9, 1
        %s143 = smul.addr %s142, 256
        %s144 = smul.addr %s143, 4
        %s145 = scalar_lea.vmem %s1, %s144
      $region28: #{mesh_cnn_forward.3} parent=19 // pred_fallthru
        _
    $region20: #{mesh_cnn_forward.3} parent=5 // pred_fallthru
      _
    %p146 = scmp.le.s32.totalorder 1, %s9
    %p147 = scmp.lt.s32.totalorder %s9, 3
    %p148 = pnand %p146, %p147
    %p149 = pneg %p148
    // Predicated region
    $region29: #{mesh_cnn_forward.3} parent=5 // pred_check
      _
    $region30: #{mesh_cnn_forward.3} parent=5 // pred_check_branch
      %151 = sbr.rel (%p148) target = $region32
    $region31: #{mesh_cnn_forward.3} parent=5 // pred_region
      %s152 = ssub.s32 %s9, 1
      %p153 = scmp.lt.s32.totalorder %s14, 1
      %s154 = scalar_select %p153, %s14, 1
      %s155 = smul.addr %s154, 64
      %s156 = smul.addr %s155, 4
      %s157 = scalar_lea.vmem %s0, %s156
      %p158 = pneg %p35
      %p159 = pneg %p32
      %p160 = scmp.lt.s32.totalorder %s14, 1
      %s161 = scalar_select %p160, %s14, 1
      %s162 = smul.addr %s161, 256
      %s163 = smul.addr %s162, 4
      %s164 = scalar_lea.vmem %s1, %s163
      %p165 = pneg %p61
      %p166 = pneg %p58
      %p167 = pneg %p82
      %p168 = pneg %p79
      %p169 = pneg %p108
      %p170 = pneg %p105
      %p171 = scmp.lt.s32.totalorder %s14, 1
      %s172 = scalar_select %p171, %s14, 1
      %s173 = smul.addr %s172, 64
      %s174 = smul.addr %s173, 8
      %s175 = scalar_lea.vmem %s3, %s174
      %p176 = scmp.lt.s32.totalorder %s14, 1
      %s177 = scalar_select %p176, %s14, 1
      %s178 = smul.addr %s177, 64
      %s179 = smul.addr %s178, 4
      %s180 = scalar_lea.vmem %s0, %s179
      %p181 = scmp.lt.s32.totalorder %s14, 1
      %s182 = scalar_select %p181, %s14, 1
      %s183 = smul.addr %s182, 256
      %s184 = smul.addr %s183, 4
      %s185 = scalar_lea.vmem %s1, %s184
      %p186 = scmp.lt.s32.totalorder %s14, 1
      %s187 = scalar_select %p186, %s14, 1
      %s188 = smul.addr %s187, 64
      %s189 = smul.addr %s188, 8
      %s190 = scalar_lea.vmem %s3, %s189
      %v192 = vld [vmem:[%s180] sm:$0xf]
      %v193 = vld [vmem:[%s180 + $0x4] sm:$0xf]
      %v194 = vld [vmem:[%s180 + $0x8] sm:$0xf]
      %v195 = vld [vmem:[%s180 + $0xc] sm:$0xf]
      %v196 = vld [vmem:[%s180 + $0x10] sm:$0xf]
      %v197 = vld [vmem:[%s180 + $0x14] sm:$0xf]
      %v198 = vld [vmem:[%s180 + $0x18] sm:$0xf]
      %v199 = vld [vmem:[%s180 + $0x1c] sm:$0xf]
      %v200 = vld [vmem:[%s180 + $0x20] sm:$0xf]
      %v201 = vld [vmem:[%s180 + $0x24] sm:$0xf]
      %v202 = vld [vmem:[%s180 + $0x28] sm:$0xf]
      %v203 = vld [vmem:[%s180 + $0x2c] sm:$0xf]
      %v204 = vld [vmem:[%s180 + $0x30] sm:$0xf]
      %v205 = vld [vmem:[%s180 + $0x34] sm:$0xf]
      %v206 = vld [vmem:[%s180 + $0x38] sm:$0xf]
      %v207 = vld [vmem:[%s180 + $0x3c] sm:$0xf]
      %v208 = vld [vmem:[%s180 + $0x40] sm:$0xf]
      %v209 = vld [vmem:[%s180 + $0x44] sm:$0xf]
      %v210 = vld [vmem:[%s180 + $0x48] sm:$0xf]
      %v211 = vld [vmem:[%s180 + $0x4c] sm:$0xf]
      %v212 = vld [vmem:[%s180 + $0x50] sm:$0xf]
      %v213 = vld [vmem:[%s180 + $0x54] sm:$0xf]
      %v214 = vld [vmem:[%s180 + $0x58] sm:$0xf]
      %v215 = vld [vmem:[%s180 + $0x5c] sm:$0xf]
      %v216 = vld [vmem:[%s180 + $0x60] sm:$0xf]
      %v217 = vld [vmem:[%s180 + $0x64] sm:$0xf]
      %v218 = vld [vmem:[%s180 + $0x68] sm:$0xf]
      %v219 = vld [vmem:[%s180 + $0x6c] sm:$0xf]
      %v220 = vld [vmem:[%s180 + $0x70] sm:$0xf]
      %v221 = vld [vmem:[%s180 + $0x74] sm:$0xf]
      %v222 = vld [vmem:[%s180 + $0x78] sm:$0xf]
      %v223 = vld [vmem:[%s180 + $0x7c] sm:$0xf]
      %v224 = vld [vmem:[%s180 + $0x80] sm:$0xf]
      %v225 = vld [vmem:[%s180 + $0x84] sm:$0xf]
      %v226 = vld [vmem:[%s180 + $0x88] sm:$0xf]
      %v227 = vld [vmem:[%s180 + $0x8c] sm:$0xf]
      %v228 = vld [vmem:[%s180 + $0x90] sm:$0xf]
      %v229 = vld [vmem:[%s180 + $0x94] sm:$0xf]
      %v230 = vld [vmem:[%s180 + $0x98] sm:$0xf]
      %v231 = vld [vmem:[%s180 + $0x9c] sm:$0xf]
      %v232 = vld [vmem:[%s180 + $0xa0] sm:$0xf]
      %v233 = vld [vmem:[%s180 + $0xa4] sm:$0xf]
      %v234 = vld [vmem:[%s180 + $0xa8] sm:$0xf]
      %v235 = vld [vmem:[%s180 + $0xac] sm:$0xf]
      %v236 = vld [vmem:[%s180 + $0xb0] sm:$0xf]
      %v237 = vld [vmem:[%s180 + $0xb4] sm:$0xf]
      %v238 = vld [vmem:[%s180 + $0xb8] sm:$0xf]
      %v239 = vld [vmem:[%s180 + $0xbc] sm:$0xf]
      %v240 = vld [vmem:[%s180 + $0xc0] sm:$0xf]
      %v241 = vld [vmem:[%s180 + $0xc4] sm:$0xf]
      %v242 = vld [vmem:[%s180 + $0xc8] sm:$0xf]
      %v243 = vld [vmem:[%s180 + $0xcc] sm:$0xf]
      %v244 = vld [vmem:[%s180 + $0xd0] sm:$0xf]
      %v245 = vld [vmem:[%s180 + $0xd4] sm:$0xf]
      %v246 = vld [vmem:[%s180 + $0xd8] sm:$0xf]
      %v247 = vld [vmem:[%s180 + $0xdc] sm:$0xf]
      %v248 = vld [vmem:[%s180 + $0xe0] sm:$0xf]
      %v249 = vld [vmem:[%s180 + $0xe4] sm:$0xf]
      %v250 = vld [vmem:[%s180 + $0xe8] sm:$0xf]
      %v251 = vld [vmem:[%s180 + $0xec] sm:$0xf]
      %v252 = vld [vmem:[%s180 + $0xf0] sm:$0xf]
      %v253 = vld [vmem:[%s180 + $0xf4] sm:$0xf]
      %v254 = vld [vmem:[%s180 + $0xf8] sm:$0xf]
      %v255 = vld [vmem:[%s180 + $0xfc] sm:$0xf]
      %v256 = vld [vmem:[%s185] sm:$0xf]
      %v257 = vld [vmem:[%s185 + $0x4] sm:$0xf]
      %v258 = vld [vmem:[%s185 + $0x8] sm:$0xf]
      %v259 = vld [vmem:[%s185 + $0xc] sm:$0xf]
      %v260 = vld [vmem:[%s185 + $0x10] sm:$0xf]
      %v261 = vld [vmem:[%s185 + $0x14] sm:$0xf]
      %v262 = vld [vmem:[%s185 + $0x18] sm:$0xf]
      %v263 = vld [vmem:[%s185 + $0x1c] sm:$0xf]
      %v264 = vld [vmem:[%s185 + $0x20] sm:$0xf]
      %v265 = vld [vmem:[%s185 + $0x24] sm:$0xf]
      %v266 = vld [vmem:[%s185 + $0x28] sm:$0xf]
      %v267 = vld [vmem:[%s185 + $0x2c] sm:$0xf]
      %v268 = vld [vmem:[%s185 + $0x30] sm:$0xf]
      %v269 = vld [vmem:[%s185 + $0x34] sm:$0xf]
      %v270 = vld [vmem:[%s185 + $0x38] sm:$0xf]
      %v271 = vld [vmem:[%s185 + $0x3c] sm:$0xf]
      %v272 = vld [vmem:[%s185 + $0x40] sm:$0xf]
      %v273 = vld [vmem:[%s185 + $0x44] sm:$0xf]
      %v274 = vld [vmem:[%s185 + $0x48] sm:$0xf]
      %v275 = vld [vmem:[%s185 + $0x4c] sm:$0xf]
      %v276 = vld [vmem:[%s185 + $0x50] sm:$0xf]
      %v277 = vld [vmem:[%s185 + $0x54] sm:$0xf]
      %v278 = vld [vmem:[%s185 + $0x58] sm:$0xf]
      %v279 = vld [vmem:[%s185 + $0x5c] sm:$0xf]
      %v280 = vld [vmem:[%s185 + $0x60] sm:$0xf]
      %v281 = vld [vmem:[%s185 + $0x64] sm:$0xf]
      %v282 = vld [vmem:[%s185 + $0x68] sm:$0xf]
      %v283 = vld [vmem:[%s185 + $0x6c] sm:$0xf]
      %v284 = vld [vmem:[%s185 + $0x70] sm:$0xf]
      %v285 = vld [vmem:[%s185 + $0x74] sm:$0xf]
      %v286 = vld [vmem:[%s185 + $0x78] sm:$0xf]
      %v287 = vld [vmem:[%s185 + $0x7c] sm:$0xf]
      %v288 = vld [vmem:[%s185 + $0x80] sm:$0xf]
      %v289 = vld [vmem:[%s185 + $0x84] sm:$0xf]
      %v290 = vld [vmem:[%s185 + $0x88] sm:$0xf]
      %v291 = vld [vmem:[%s185 + $0x8c] sm:$0xf]
      %v292 = vld [vmem:[%s185 + $0x90] sm:$0xf]
      %v293 = vld [vmem:[%s185 + $0x94] sm:$0xf]
      %v294 = vld [vmem:[%s185 + $0x98] sm:$0xf]
      %v295 = vld [vmem:[%s185 + $0x9c] sm:$0xf]
      %v296 = vld [vmem:[%s185 + $0xa0] sm:$0xf]
      %v297 = vld [vmem:[%s185 + $0xa4] sm:$0xf]
      %v298 = vld [vmem:[%s185 + $0xa8] sm:$0xf]
      %v299 = vld [vmem:[%s185 + $0xac] sm:$0xf]
      %v300 = vld [vmem:[%s185 + $0xb0] sm:$0xf]
      %v301 = vld [vmem:[%s185 + $0xb4] sm:$0xf]
      %v302 = vld [vmem:[%s185 + $0xb8] sm:$0xf]
      %v303 = vld [vmem:[%s185 + $0xbc] sm:$0xf]
      %v304 = vld [vmem:[%s185 + $0xc0] sm:$0xf]
      %v305 = vld [vmem:[%s185 + $0xc4] sm:$0xf]
      %v306 = vld [vmem:[%s185 + $0xc8] sm:$0xf]
      %v307 = vld [vmem:[%s185 + $0xcc] sm:$0xf]
      %v308 = vld [vmem:[%s185 + $0xd0] sm:$0xf]
      %v309 = vld [vmem:[%s185 + $0xd4] sm:$0xf]
      %v310 = vld [vmem:[%s185 + $0xd8] sm:$0xf]
      %v311 = vld [vmem:[%s185 + $0xdc] sm:$0xf]
      %v312 = vld [vmem:[%s185 + $0xe0] sm:$0xf]
      %v313 = vld [vmem:[%s185 + $0xe4] sm:$0xf]
      %v314 = vld [vmem:[%s185 + $0xe8] sm:$0xf]
      %v315 = vld [vmem:[%s185 + $0xec] sm:$0xf]
      %v316 = vld [vmem:[%s185 + $0xf0] sm:$0xf]
      %v317 = vld [vmem:[%s185 + $0xf4] sm:$0xf]
      %v318 = vld [vmem:[%s185 + $0xf8] sm:$0xf]
      %v319 = vld [vmem:[%s185 + $0xfc] sm:$0xf]
      %s320 = scalar_lea.vmem %s185, 256
      %v321 = vld [vmem:[%s320] sm:$0xf]
      %v322 = vld [vmem:[%s320 + $0x4] sm:$0xf]
      %v323 = vld [vmem:[%s320 + $0x8] sm:$0xf]
      %v324 = vld [vmem:[%s320 + $0xc] sm:$0xf]
      %v325 = vld [vmem:[%s320 + $0x10] sm:$0xf]
      %v326 = vld [vmem:[%s320 + $0x14] sm:$0xf]
      %v327 = vld [vmem:[%s320 + $0x18] sm:$0xf]
      %v328 = vld [vmem:[%s320 + $0x1c] sm:$0xf]
      %v329 = vld [vmem:[%s320 + $0x20] sm:$0xf]
      %v330 = vld [vmem:[%s320 + $0x24] sm:$0xf]
      %v331 = vld [vmem:[%s320 + $0x28] sm:$0xf]
      %v332 = vld [vmem:[%s320 + $0x2c] sm:$0xf]
      %v333 = vld [vmem:[%s320 + $0x30] sm:$0xf]
      %v334 = vld [vmem:[%s320 + $0x34] sm:$0xf]
      %v335 = vld [vmem:[%s320 + $0x38] sm:$0xf]
      %v336 = vld [vmem:[%s320 + $0x3c] sm:$0xf]
      %v337 = vld [vmem:[%s320 + $0x40] sm:$0xf]
      %v338 = vld [vmem:[%s320 + $0x44] sm:$0xf]
      %v339 = vld [vmem:[%s320 + $0x48] sm:$0xf]
      %v340 = vld [vmem:[%s320 + $0x4c] sm:$0xf]
      %v341 = vld [vmem:[%s320 + $0x50] sm:$0xf]
      %v342 = vld [vmem:[%s320 + $0x54] sm:$0xf]
      %v343 = vld [vmem:[%s320 + $0x58] sm:$0xf]
      %v344 = vld [vmem:[%s320 + $0x5c] sm:$0xf]
      %v345 = vld [vmem:[%s320 + $0x60] sm:$0xf]
      %v346 = vld [vmem:[%s320 + $0x64] sm:$0xf]
      %v347 = vld [vmem:[%s320 + $0x68] sm:$0xf]
      %v348 = vld [vmem:[%s320 + $0x6c] sm:$0xf]
      %v349 = vld [vmem:[%s320 + $0x70] sm:$0xf]
      %v350 = vld [vmem:[%s320 + $0x74] sm:$0xf]
      %v351 = vld [vmem:[%s320 + $0x78] sm:$0xf]
      %v352 = vld [vmem:[%s320 + $0x7c] sm:$0xf]
      %v353 = vld [vmem:[%s320 + $0x80] sm:$0xf]
      %v354 = vld [vmem:[%s320 + $0x84] sm:$0xf]
      %v355 = vld [vmem:[%s320 + $0x88] sm:$0xf]
      %v356 = vld [vmem:[%s320 + $0x8c] sm:$0xf]
      %v357 = vld [vmem:[%s320 + $0x90] sm:$0xf]
      %v358 = vld [vmem:[%s320 + $0x94] sm:$0xf]
      %v359 = vld [vmem:[%s320 + $0x98] sm:$0xf]
      %v360 = vld [vmem:[%s320 + $0x9c] sm:$0xf]
      %v361 = vld [vmem:[%s320 + $0xa0] sm:$0xf]
      %v362 = vld [vmem:[%s320 + $0xa4] sm:$0xf]
      %v363 = vld [vmem:[%s320 + $0xa8] sm:$0xf]
      %v364 = vld [vmem:[%s320 + $0xac] sm:$0xf]
      %v365 = vld [vmem:[%s320 + $0xb0] sm:$0xf]
      %v366 = vld [vmem:[%s320 + $0xb4] sm:$0xf]
      %v367 = vld [vmem:[%s320 + $0xb8] sm:$0xf]
      %v368 = vld [vmem:[%s320 + $0xbc] sm:$0xf]
      %v369 = vld [vmem:[%s320 + $0xc0] sm:$0xf]
      %v370 = vld [vmem:[%s320 + $0xc4] sm:$0xf]
      %v371 = vld [vmem:[%s320 + $0xc8] sm:$0xf]
      %v372 = vld [vmem:[%s320 + $0xcc] sm:$0xf]
      %v373 = vld [vmem:[%s320 + $0xd0] sm:$0xf]
      %v374 = vld [vmem:[%s320 + $0xd4] sm:$0xf]
      %v375 = vld [vmem:[%s320 + $0xd8] sm:$0xf]
      %v376 = vld [vmem:[%s320 + $0xdc] sm:$0xf]
      %v377 = vld [vmem:[%s320 + $0xe0] sm:$0xf]
      %v378 = vld [vmem:[%s320 + $0xe4] sm:$0xf]
      %v379 = vld [vmem:[%s320 + $0xe8] sm:$0xf]
      %v380 = vld [vmem:[%s320 + $0xec] sm:$0xf]
      %v381 = vld [vmem:[%s320 + $0xf0] sm:$0xf]
      %v382 = vld [vmem:[%s320 + $0xf4] sm:$0xf]
      %v383 = vld [vmem:[%s320 + $0xf8] sm:$0xf]
      %v384 = vld [vmem:[%s320 + $0xfc] sm:$0xf]
      %s385 = scalar_lea.vmem %s185, 512
      %v386 = vld [vmem:[%s385] sm:$0xf]
      %v387 = vld [vmem:[%s385 + $0x4] sm:$0xf]
      %v388 = vld [vmem:[%s385 + $0x8] sm:$0xf]
      %v389 = vld [vmem:[%s385 + $0xc] sm:$0xf]
      %v390 = vld [vmem:[%s385 + $0x10] sm:$0xf]
      %v391 = vld [vmem:[%s385 + $0x14] sm:$0xf]
      %v392 = vld [vmem:[%s385 + $0x18] sm:$0xf]
      %v393 = vld [vmem:[%s385 + $0x1c] sm:$0xf]
      %v394 = vld [vmem:[%s385 + $0x20] sm:$0xf]
      %v395 = vld [vmem:[%s385 + $0x24] sm:$0xf]
      %v396 = vld [vmem:[%s385 + $0x28] sm:$0xf]
      %v397 = vld [vmem:[%s385 + $0x2c] sm:$0xf]
      %v398 = vld [vmem:[%s385 + $0x30] sm:$0xf]
      %v399 = vld [vmem:[%s385 + $0x34] sm:$0xf]
      %v400 = vld [vmem:[%s385 + $0x38] sm:$0xf]
      %v401 = vld [vmem:[%s385 + $0x3c] sm:$0xf]
      %v402 = vld [vmem:[%s385 + $0x40] sm:$0xf]
      %v403 = vld [vmem:[%s385 + $0x44] sm:$0xf]
      %v404 = vld [vmem:[%s385 + $0x48] sm:$0xf]
      %v405 = vld [vmem:[%s385 + $0x4c] sm:$0xf]
      %v406 = vld [vmem:[%s385 + $0x50] sm:$0xf]
      %v407 = vld [vmem:[%s385 + $0x54] sm:$0xf]
      %v408 = vld [vmem:[%s385 + $0x58] sm:$0xf]
      %v409 = vld [vmem:[%s385 + $0x5c] sm:$0xf]
      %v410 = vld [vmem:[%s385 + $0x60] sm:$0xf]
      %v411 = vld [vmem:[%s385 + $0x64] sm:$0xf]
      %v412 = vld [vmem:[%s385 + $0x68] sm:$0xf]
      %v413 = vld [vmem:[%s385 + $0x6c] sm:$0xf]
      %v414 = vld [vmem:[%s385 + $0x70] sm:$0xf]
      %v415 = vld [vmem:[%s385 + $0x74] sm:$0xf]
      %v416 = vld [vmem:[%s385 + $0x78] sm:$0xf]
      %v417 = vld [vmem:[%s385 + $0x7c] sm:$0xf]
      %v418 = vld [vmem:[%s385 + $0x80] sm:$0xf]
      %v419 = vld [vmem:[%s385 + $0x84] sm:$0xf]
      %v420 = vld [vmem:[%s385 + $0x88] sm:$0xf]
      %v421 = vld [vmem:[%s385 + $0x8c] sm:$0xf]
      %v422 = vld [vmem:[%s385 + $0x90] sm:$0xf]
      %v423 = vld [vmem:[%s385 + $0x94] sm:$0xf]
      %v424 = vld [vmem:[%s385 + $0x98] sm:$0xf]
      %v425 = vld [vmem:[%s385 + $0x9c] sm:$0xf]
      %v426 = vld [vmem:[%s385 + $0xa0] sm:$0xf]
      %v427 = vld [vmem:[%s385 + $0xa4] sm:$0xf]
      %v428 = vld [vmem:[%s385 + $0xa8] sm:$0xf]
      %v429 = vld [vmem:[%s385 + $0xac] sm:$0xf]
      %v430 = vld [vmem:[%s385 + $0xb0] sm:$0xf]
      %v431 = vld [vmem:[%s385 + $0xb4] sm:$0xf]
      %v432 = vld [vmem:[%s385 + $0xb8] sm:$0xf]
      %v433 = vld [vmem:[%s385 + $0xbc] sm:$0xf]
      %v434 = vld [vmem:[%s385 + $0xc0] sm:$0xf]
      %v435 = vld [vmem:[%s385 + $0xc4] sm:$0xf]
      %v436 = vld [vmem:[%s385 + $0xc8] sm:$0xf]
      %v437 = vld [vmem:[%s385 + $0xcc] sm:$0xf]
      %v438 = vld [vmem:[%s385 + $0xd0] sm:$0xf]
      %v439 = vld [vmem:[%s385 + $0xd4] sm:$0xf]
      %v440 = vld [vmem:[%s385 + $0xd8] sm:$0xf]
      %v441 = vld [vmem:[%s385 + $0xdc] sm:$0xf]
      %v442 = vld [vmem:[%s385 + $0xe0] sm:$0xf]
      %v443 = vld [vmem:[%s385 + $0xe4] sm:$0xf]
      %v444 = vld [vmem:[%s385 + $0xe8] sm:$0xf]
      %v445 = vld [vmem:[%s385 + $0xec] sm:$0xf]
      %v446 = vld [vmem:[%s385 + $0xf0] sm:$0xf]
      %v447 = vld [vmem:[%s385 + $0xf4] sm:$0xf]
      %v448 = vld [vmem:[%s385 + $0xf8] sm:$0xf]
      %v449 = vld [vmem:[%s385 + $0xfc] sm:$0xf]
      %s450 = scalar_lea.vmem %s185, 768
      %v451 = vld [vmem:[%s450] sm:$0xf]
      %v452 = vld [vmem:[%s450 + $0x4] sm:$0xf]
      %v453 = vld [vmem:[%s450 + $0x8] sm:$0xf]
      %v454 = vld [vmem:[%s450 + $0xc] sm:$0xf]
      %v455 = vld [vmem:[%s450 + $0x10] sm:$0xf]
      %v456 = vld [vmem:[%s450 + $0x14] sm:$0xf]
      %v457 = vld [vmem:[%s450 + $0x18] sm:$0xf]
      %v458 = vld [vmem:[%s450 + $0x1c] sm:$0xf]
      %v459 = vld [vmem:[%s450 + $0x20] sm:$0xf]
      %v460 = vld [vmem:[%s450 + $0x24] sm:$0xf]
      %v461 = vld [vmem:[%s450 + $0x28] sm:$0xf]
      %v462 = vld [vmem:[%s450 + $0x2c] sm:$0xf]
      %v463 = vld [vmem:[%s450 + $0x30] sm:$0xf]
      %v464 = vld [vmem:[%s450 + $0x34] sm:$0xf]
      %v465 = vld [vmem:[%s450 + $0x38] sm:$0xf]
      %v466 = vld [vmem:[%s450 + $0x3c] sm:$0xf]
      %v467 = vld [vmem:[%s450 + $0x40] sm:$0xf]
      %v468 = vld [vmem:[%s450 + $0x44] sm:$0xf]
      %v469 = vld [vmem:[%s450 + $0x48] sm:$0xf]
      %v470 = vld [vmem:[%s450 + $0x4c] sm:$0xf]
      %v471 = vld [vmem:[%s450 + $0x50] sm:$0xf]
      %v472 = vld [vmem:[%s450 + $0x54] sm:$0xf]
      %v473 = vld [vmem:[%s450 + $0x58] sm:$0xf]
      %v474 = vld [vmem:[%s450 + $0x5c] sm:$0xf]
      %v475 = vld [vmem:[%s450 + $0x60] sm:$0xf]
      %v476 = vld [vmem:[%s450 + $0x64] sm:$0xf]
      %v477 = vld [vmem:[%s450 + $0x68] sm:$0xf]
      %v478 = vld [vmem:[%s450 + $0x6c] sm:$0xf]
      %v479 = vld [vmem:[%s450 + $0x70] sm:$0xf]
      %v480 = vld [vmem:[%s450 + $0x74] sm:$0xf]
      %v481 = vld [vmem:[%s450 + $0x78] sm:$0xf]
      %v482 = vld [vmem:[%s450 + $0x7c] sm:$0xf]
      %v483 = vld [vmem:[%s450 + $0x80] sm:$0xf]
      %v484 = vld [vmem:[%s450 + $0x84] sm:$0xf]
      %v485 = vld [vmem:[%s450 + $0x88] sm:$0xf]
      %v486 = vld [vmem:[%s450 + $0x8c] sm:$0xf]
      %v487 = vld [vmem:[%s450 + $0x90] sm:$0xf]
      %v488 = vld [vmem:[%s450 + $0x94] sm:$0xf]
      %v489 = vld [vmem:[%s450 + $0x98] sm:$0xf]
      %v490 = vld [vmem:[%s450 + $0x9c] sm:$0xf]
      %v491 = vld [vmem:[%s450 + $0xa0] sm:$0xf]
      %v492 = vld [vmem:[%s450 + $0xa4] sm:$0xf]
      %v493 = vld [vmem:[%s450 + $0xa8] sm:$0xf]
      %v494 = vld [vmem:[%s450 + $0xac] sm:$0xf]
      %v495 = vld [vmem:[%s450 + $0xb0] sm:$0xf]
      %v496 = vld [vmem:[%s450 + $0xb4] sm:$0xf]
      %v497 = vld [vmem:[%s450 + $0xb8] sm:$0xf]
      %v498 = vld [vmem:[%s450 + $0xbc] sm:$0xf]
      %v499 = vld [vmem:[%s450 + $0xc0] sm:$0xf]
      %v500 = vld [vmem:[%s450 + $0xc4] sm:$0xf]
      %v501 = vld [vmem:[%s450 + $0xc8] sm:$0xf]
      %v502 = vld [vmem:[%s450 + $0xcc] sm:$0xf]
      %v503 = vld [vmem:[%s450 + $0xd0] sm:$0xf]
      %v504 = vld [vmem:[%s450 + $0xd4] sm:$0xf]
      %v505 = vld [vmem:[%s450 + $0xd8] sm:$0xf]
      %v506 = vld [vmem:[%s450 + $0xdc] sm:$0xf]
      %v507 = vld [vmem:[%s450 + $0xe0] sm:$0xf]
      %v508 = vld [vmem:[%s450 + $0xe4] sm:$0xf]
      %v509 = vld [vmem:[%s450 + $0xe8] sm:$0xf]
      %v510 = vld [vmem:[%s450 + $0xec] sm:$0xf]
      %v511 = vld [vmem:[%s450 + $0xf0] sm:$0xf]
      %v512 = vld [vmem:[%s450 + $0xf4] sm:$0xf]
      %v513 = vld [vmem:[%s450 + $0xf8] sm:$0xf]
      %v514 = vld [vmem:[%s450 + $0xfc] sm:$0xf]
      %v515 = vadd.bf16 %v256, %v386
      %v516 = vadd.bf16 %v257, %v387
      %v517 = vadd.bf16 %v258, %v388
      %v518 = vadd.bf16 %v259, %v389
      %v519 = vadd.bf16 %v260, %v390
      %v520 = vadd.bf16 %v261, %v391
      %v521 = vadd.bf16 %v262, %v392
      %v522 = vadd.bf16 %v263, %v393
      %v523 = vadd.bf16 %v264, %v394
      %v524 = vadd.bf16 %v265, %v395
      %v525 = vadd.bf16 %v266, %v396
      %v526 = vadd.bf16 %v267, %v397
      %v527 = vadd.bf16 %v268, %v398
      %v528 = vadd.bf16 %v269, %v399
      %v529 = vadd.bf16 %v270, %v400
      %v530 = vadd.bf16 %v271, %v401
      %v531 = vadd.bf16 %v272, %v402
      %v532 = vadd.bf16 %v273, %v403
      %v533 = vadd.bf16 %v274, %v404
      %v534 = vadd.bf16 %v275, %v405
      %v535 = vadd.bf16 %v276, %v406
      %v536 = vadd.bf16 %v277, %v407
      %v537 = vadd.bf16 %v278, %v408
      %v538 = vadd.bf16 %v279, %v409
      %v539 = vadd.bf16 %v280, %v410
      %v540 = vadd.bf16 %v281, %v411
      %v541 = vadd.bf16 %v282, %v412
      %v542 = vadd.bf16 %v283, %v413
      %v543 = vadd.bf16 %v284, %v414
      %v544 = vadd.bf16 %v285, %v415
      %v545 = vadd.bf16 %v286, %v416
      %v546 = vadd.bf16 %v287, %v417
      %v547 = vadd.bf16 %v288, %v418
      %v548 = vadd.bf16 %v289, %v419
      %v549 = vadd.bf16 %v290, %v420
      %v550 = vadd.bf16 %v291, %v421
      %v551 = vadd.bf16 %v292, %v422
      %v552 = vadd.bf16 %v293, %v423
      %v553 = vadd.bf16 %v294, %v424
      %v554 = vadd.bf16 %v295, %v425
      %v555 = vadd.bf16 %v296, %v426
      %v556 = vadd.bf16 %v297, %v427
      %v557 = vadd.bf16 %v298, %v428
      %v558 = vadd.bf16 %v299, %v429
      %v559 = vadd.bf16 %v300, %v430
      %v560 = vadd.bf16 %v301, %v431
      %v561 = vadd.bf16 %v302, %v432
      %v562 = vadd.bf16 %v303, %v433
      %v563 = vadd.bf16 %v304, %v434
      %v564 = vadd.bf16 %v305, %v435
      %v565 = vadd.bf16 %v306, %v436
      %v566 = vadd.bf16 %v307, %v437
      %v567 = vadd.bf16 %v308, %v438
      %v568 = vadd.bf16 %v309, %v439
      %v569 = vadd.bf16 %v310, %v440
      %v570 = vadd.bf16 %v311, %v441
      %v571 = vadd.bf16 %v312, %v442
      %v572 = vadd.bf16 %v313, %v443
      %v573 = vadd.bf16 %v314, %v444
      %v574 = vadd.bf16 %v315, %v445
      %v575 = vadd.bf16 %v316, %v446
      %v576 = vadd.bf16 %v317, %v447
      %v577 = vadd.bf16 %v318, %v448
      %v578 = vadd.bf16 %v319, %v449
      %v579 = vadd.bf16 %v321, %v451
      %v580 = vadd.bf16 %v322, %v452
      %v581 = vadd.bf16 %v323, %v453
      %v582 = vadd.bf16 %v324, %v454
      %v583 = vadd.bf16 %v325, %v455
      %v584 = vadd.bf16 %v326, %v456
      %v585 = vadd.bf16 %v327, %v457
      %v586 = vadd.bf16 %v328, %v458
      %v587 = vadd.bf16 %v329, %v459
      %v588 = vadd.bf16 %v330, %v460
      %v589 = vadd.bf16 %v331, %v461
      %v590 = vadd.bf16 %v332, %v462
      %v591 = vadd.bf16 %v333, %v463
      %v592 = vadd.bf16 %v334, %v464
      %v593 = vadd.bf16 %v335, %v465
      %v594 = vadd.bf16 %v336, %v466
      %v595 = vadd.bf16 %v337, %v467
      %v596 = vadd.bf16 %v338, %v468
      %v597 = vadd.bf16 %v339, %v469
      %v598 = vadd.bf16 %v340, %v470
      %v599 = vadd.bf16 %v341, %v471
      %v600 = vadd.bf16 %v342, %v472
      %v601 = vadd.bf16 %v343, %v473
      %v602 = vadd.bf16 %v344, %v474
      %v603 = vadd.bf16 %v345, %v475
      %v604 = vadd.bf16 %v346, %v476
      %v605 = vadd.bf16 %v347, %v477
      %v606 = vadd.bf16 %v348, %v478
      %v607 = vadd.bf16 %v349, %v479
      %v608 = vadd.bf16 %v350, %v480
      %v609 = vadd.bf16 %v351, %v481
      %v610 = vadd.bf16 %v352, %v482
      %v611 = vadd.bf16 %v353, %v483
      %v612 = vadd.bf16 %v354, %v484
      %v613 = vadd.bf16 %v355, %v485
      %v614 = vadd.bf16 %v356, %v486
      %v615 = vadd.bf16 %v357, %v487
      %v616 = vadd.bf16 %v358, %v488
      %v617 = vadd.bf16 %v359, %v489
      %v618 = vadd.bf16 %v360, %v490
      %v619 = vadd.bf16 %v361, %v491
      %v620 = vadd.bf16 %v362, %v492
      %v621 = vadd.bf16 %v363, %v493
      %v622 = vadd.bf16 %v364, %v494
      %v623 = vadd.bf16 %v365, %v495
      %v624 = vadd.bf16 %v366, %v496
      %v625 = vadd.bf16 %v367, %v497
      %v626 = vadd.bf16 %v368, %v498
      %v627 = vadd.bf16 %v369, %v499
      %v628 = vadd.bf16 %v370, %v500
      %v629 = vadd.bf16 %v371, %v501
      %v630 = vadd.bf16 %v372, %v502
      %v631 = vadd.bf16 %v373, %v503
      %v632 = vadd.bf16 %v374, %v504
      %v633 = vadd.bf16 %v375, %v505
      %v634 = vadd.bf16 %v376, %v506
      %v635 = vadd.bf16 %v377, %v507
      %v636 = vadd.bf16 %v378, %v508
      %v637 = vadd.bf16 %v379, %v509
      %v638 = vadd.bf16 %v380, %v510
      %v639 = vadd.bf16 %v381, %v511
      %v640 = vadd.bf16 %v382, %v512
      %v641 = vadd.bf16 %v383, %v513
      %v642 = vadd.bf16 %v384, %v514
      %v643 = vsub.bf16 %v256, %v386
      %v644 = vsub.bf16 %v257, %v387
      %v645 = vsub.bf16 %v258, %v388
      %v646 = vsub.bf16 %v259, %v389
      %v647 = vsub.bf16 %v260, %v390
      %v648 = vsub.bf16 %v261, %v391
      %v649 = vsub.bf16 %v262, %v392
      %v650 = vsub.bf16 %v263, %v393
      %v651 = vsub.bf16 %v264, %v394
      %v652 = vsub.bf16 %v265, %v395
      %v653 = vsub.bf16 %v266, %v396
      %v654 = vsub.bf16 %v267, %v397
      %v655 = vsub.bf16 %v268, %v398
      %v656 = vsub.bf16 %v269, %v399
      %v657 = vsub.bf16 %v270, %v400
      %v658 = vsub.bf16 %v271, %v401
      %v659 = vsub.bf16 %v272, %v402
      %v660 = vsub.bf16 %v273, %v403
      %v661 = vsub.bf16 %v274, %v404
      %v662 = vsub.bf16 %v275, %v405
      %v663 = vsub.bf16 %v276, %v406
      %v664 = vsub.bf16 %v277, %v407
      %v665 = vsub.bf16 %v278, %v408
      %v666 = vsub.bf16 %v279, %v409
      %v667 = vsub.bf16 %v280, %v410
      %v668 = vsub.bf16 %v281, %v411
      %v669 = vsub.bf16 %v282, %v412
      %v670 = vsub.bf16 %v283, %v413
      %v671 = vsub.bf16 %v284, %v414
      %v672 = vsub.bf16 %v285, %v415
      %v673 = vsub.bf16 %v286, %v416
      %v674 = vsub.bf16 %v287, %v417
      %v675 = vsub.bf16 %v288, %v418
      %v676 = vsub.bf16 %v289, %v419
      %v677 = vsub.bf16 %v290, %v420
      %v678 = vsub.bf16 %v291, %v421
      %v679 = vsub.bf16 %v292, %v422
      %v680 = vsub.bf16 %v293, %v423
      %v681 = vsub.bf16 %v294, %v424
      %v682 = vsub.bf16 %v295, %v425
      %v683 = vsub.bf16 %v296, %v426
      %v684 = vsub.bf16 %v297, %v427
      %v685 = vsub.bf16 %v298, %v428
      %v686 = vsub.bf16 %v299, %v429
      %v687 = vsub.bf16 %v300, %v430
      %v688 = vsub.bf16 %v301, %v431
      %v689 = vsub.bf16 %v302, %v432
      %v690 = vsub.bf16 %v303, %v433
      %v691 = vsub.bf16 %v304, %v434
      %v692 = vsub.bf16 %v305, %v435
      %v693 = vsub.bf16 %v306, %v436
      %v694 = vsub.bf16 %v307, %v437
      %v695 = vsub.bf16 %v308, %v438
      %v696 = vsub.bf16 %v309, %v439
      %v697 = vsub.bf16 %v310, %v440
      %v698 = vsub.bf16 %v311, %v441
      %v699 = vsub.bf16 %v312, %v442
      %v700 = vsub.bf16 %v313, %v443
      %v701 = vsub.bf16 %v314, %v444
      %v702 = vsub.bf16 %v315, %v445
      %v703 = vsub.bf16 %v316, %v446
      %v704 = vsub.bf16 %v317, %v447
      %v705 = vsub.bf16 %v318, %v448
      %v706 = vsub.bf16 %v319, %v449
      %v707 = vand.u32 2147450879, %v643
      %v708 = vand.u32 2147450879, %v644
      %v709 = vand.u32 2147450879, %v645
      %v710 = vand.u32 2147450879, %v646
      %v711 = vand.u32 2147450879, %v647
      %v712 = vand.u32 2147450879, %v648
      %v713 = vand.u32 2147450879, %v649
      %v714 = vand.u32 2147450879, %v650
      %v715 = vand.u32 2147450879, %v651
      %v716 = vand.u32 2147450879, %v652
      %v717 = vand.u32 2147450879, %v653
      %v718 = vand.u32 2147450879, %v654
      %v719 = vand.u32 2147450879, %v655
      %v720 = vand.u32 2147450879, %v656
      %v721 = vand.u32 2147450879, %v657
      %v722 = vand.u32 2147450879, %v658
      %v723 = vand.u32 2147450879, %v659
      %v724 = vand.u32 2147450879, %v660
      %v725 = vand.u32 2147450879, %v661
      %v726 = vand.u32 2147450879, %v662
      %v727 = vand.u32 2147450879, %v663
      %v728 = vand.u32 2147450879, %v664
      %v729 = vand.u32 2147450879, %v665
      %v730 = vand.u32 2147450879, %v666
      %v731 = vand.u32 2147450879, %v667
      %v732 = vand.u32 2147450879, %v668
      %v733 = vand.u32 2147450879, %v669
      %v734 = vand.u32 2147450879, %v670
      %v735 = vand.u32 2147450879, %v671
      %v736 = vand.u32 2147450879, %v672
      %v737 = vand.u32 2147450879, %v673
      %v738 = vand.u32 2147450879, %v674
      %v739 = vand.u32 2147450879, %v675
      %v740 = vand.u32 2147450879, %v676
      %v741 = vand.u32 2147450879, %v677
      %v742 = vand.u32 2147450879, %v678
      %v743 = vand.u32 2147450879, %v679
      %v744 = vand.u32 2147450879, %v680
      %v745 = vand.u32 2147450879, %v681
      %v746 = vand.u32 2147450879, %v682
      %v747 = vand.u32 2147450879, %v683
      %v748 = vand.u32 2147450879, %v684
      %v749 = vand.u32 2147450879, %v685
      %v750 = vand.u32 2147450879, %v686
      %v751 = vand.u32 2147450879, %v687
      %v752 = vand.u32 2147450879, %v688
      %v753 = vand.u32 2147450879, %v689
      %v754 = vand.u32 2147450879, %v690
      %v755 = vand.u32 2147450879, %v691
      %v756 = vand.u32 2147450879, %v692
      %v757 = vand.u32 2147450879, %v693
      %v758 = vand.u32 2147450879, %v694
      %v759 = vand.u32 2147450879, %v695
      %v760 = vand.u32 2147450879, %v696
      %v761 = vand.u32 2147450879, %v697
      %v762 = vand.u32 2147450879, %v698
      %v763 = vand.u32 2147450879, %v699
      %v764 = vand.u32 2147450879, %v700
      %v765 = vand.u32 2147450879, %v701
      %v766 = vand.u32 2147450879, %v702
      %v767 = vand.u32 2147450879, %v703
      %v768 = vand.u32 2147450879, %v704
      %v769 = vand.u32 2147450879, %v705
      %v770 = vand.u32 2147450879, %v706
      %v771 = vsub.bf16 %v321, %v451
      %v772 = vsub.bf16 %v322, %v452
      %v773 = vsub.bf16 %v323, %v453
      %v774 = vsub.bf16 %v324, %v454
      %v775 = vsub.bf16 %v325, %v455
      %v776 = vsub.bf16 %v326, %v456
      %v777 = vsub.bf16 %v327, %v457
      %v778 = vsub.bf16 %v328, %v458
      %v779 = vsub.bf16 %v329, %v459
      %v780 = vsub.bf16 %v330, %v460
      %v781 = vsub.bf16 %v331, %v461
      %v782 = vsub.bf16 %v332, %v462
      %v783 = vsub.bf16 %v333, %v463
      %v784 = vsub.bf16 %v334, %v464
      %v785 = vsub.bf16 %v335, %v465
      %v786 = vsub.bf16 %v336, %v466
      %v787 = vsub.bf16 %v337, %v467
      %v788 = vsub.bf16 %v338, %v468
      %v789 = vsub.bf16 %v339, %v469
      %v790 = vsub.bf16 %v340, %v470
      %v791 = vsub.bf16 %v341, %v471
      %v792 = vsub.bf16 %v342, %v472
      %v793 = vsub.bf16 %v343, %v473
      %v794 = vsub.bf16 %v344, %v474
      %v795 = vsub.bf16 %v345, %v475
      %v796 = vsub.bf16 %v346, %v476
      %v797 = vsub.bf16 %v347, %v477
      %v798 = vsub.bf16 %v348, %v478
      %v799 = vsub.bf16 %v349, %v479
      %v800 = vsub.bf16 %v350, %v480
      %v801 = vsub.bf16 %v351, %v481
      %v802 = vsub.bf16 %v352, %v482
      %v803 = vsub.bf16 %v353, %v483
      %v804 = vsub.bf16 %v354, %v484
      %v805 = vsub.bf16 %v355, %v485
      %v806 = vsub.bf16 %v356, %v486
      %v807 = vsub.bf16 %v357, %v487
      %v808 = vsub.bf16 %v358, %v488
      %v809 = vsub.bf16 %v359, %v489
      %v810 = vsub.bf16 %v360, %v490
      %v811 = vsub.bf16 %v361, %v491
      %v812 = vsub.bf16 %v362, %v492
      %v813 = vsub.bf16 %v363, %v493
      %v814 = vsub.bf16 %v364, %v494
      %v815 = vsub.bf16 %v365, %v495
      %v816 = vsub.bf16 %v366, %v496
      %v817 = vsub.bf16 %v367, %v497
      %v818 = vsub.bf16 %v368, %v498
      %v819 = vsub.bf16 %v369, %v499
      %v820 = vsub.bf16 %v370, %v500
      %v821 = vsub.bf16 %v371, %v501
      %v822 = vsub.bf16 %v372, %v502
      %v823 = vsub.bf16 %v373, %v503
      %v824 = vsub.bf16 %v374, %v504
      %v825 = vsub.bf16 %v375, %v505
      %v826 = vsub.bf16 %v376, %v506
      %v827 = vsub.bf16 %v377, %v507
      %v828 = vsub.bf16 %v378, %v508
      %v829 = vsub.bf16 %v379, %v509
      %v830 = vsub.bf16 %v380, %v510
      %v831 = vsub.bf16 %v381, %v511
      %v832 = vsub.bf16 %v382, %v512
      %v833 = vsub.bf16 %v383, %v513
      %v834 = vsub.bf16 %v384, %v514
      %v835 = vand.u32 2147450879, %v771
      %v836 = vand.u32 2147450879, %v772
      %v837 = vand.u32 2147450879, %v773
      %v838 = vand.u32 2147450879, %v774
      %v839 = vand.u32 2147450879, %v775
      %v840 = vand.u32 2147450879, %v776
      %v841 = vand.u32 2147450879, %v777
      %v842 = vand.u32 2147450879, %v778
      %v843 = vand.u32 2147450879, %v779
      %v844 = vand.u32 2147450879, %v780
      %v845 = vand.u32 2147450879, %v781
      %v846 = vand.u32 2147450879, %v782
      %v847 = vand.u32 2147450879, %v783
      %v848 = vand.u32 2147450879, %v784
      %v849 = vand.u32 2147450879, %v785
      %v850 = vand.u32 2147450879, %v786
      %v851 = vand.u32 2147450879, %v787
      %v852 = vand.u32 2147450879, %v788
      %v853 = vand.u32 2147450879, %v789
      %v854 = vand.u32 2147450879, %v790
      %v855 = vand.u32 2147450879, %v791
      %v856 = vand.u32 2147450879, %v792
      %v857 = vand.u32 2147450879, %v793
      %v858 = vand.u32 2147450879, %v794
      %v859 = vand.u32 2147450879, %v795
      %v860 = vand.u32 2147450879, %v796
      %v861 = vand.u32 2147450879, %v797
      %v862 = vand.u32 2147450879, %v798
      %v863 = vand.u32 2147450879, %v799
      %v864 = vand.u32 2147450879, %v800
      %v865 = vand.u32 2147450879, %v801
      %v866 = vand.u32 2147450879, %v802
      %v867 = vand.u32 2147450879, %v803
      %v868 = vand.u32 2147450879, %v804
      %v869 = vand.u32 2147450879, %v805
      %v870 = vand.u32 2147450879, %v806
      %v871 = vand.u32 2147450879, %v807
      %v872 = vand.u32 2147450879, %v808
      %v873 = vand.u32 2147450879, %v809
      %v874 = vand.u32 2147450879, %v810
      %v875 = vand.u32 2147450879, %v811
      %v876 = vand.u32 2147450879, %v812
      %v877 = vand.u32 2147450879, %v813
      %v878 = vand.u32 2147450879, %v814
      %v879 = vand.u32 2147450879, %v815
      %v880 = vand.u32 2147450879, %v816
      %v881 = vand.u32 2147450879, %v817
      %v882 = vand.u32 2147450879, %v818
      %v883 = vand.u32 2147450879, %v819
      %v884 = vand.u32 2147450879, %v820
      %v885 = vand.u32 2147450879, %v821
      %v886 = vand.u32 2147450879, %v822
      %v887 = vand.u32 2147450879, %v823
      %v888 = vand.u32 2147450879, %v824
      %v889 = vand.u32 2147450879, %v825
      %v890 = vand.u32 2147450879, %v826
      %v891 = vand.u32 2147450879, %v827
      %v892 = vand.u32 2147450879, %v828
      %v893 = vand.u32 2147450879, %v829
      %v894 = vand.u32 2147450879, %v830
      %v895 = vand.u32 2147450879, %v831
      %v896 = vand.u32 2147450879, %v832
      %v897 = vand.u32 2147450879, %v833
      %v898 = vand.u32 2147450879, %v834
      %v899 = vld [vmem:[%s2] sm:$0x7]
      %s900 = scalar_lea.vmem %s2, 4
      %v901 = vld [vmem:[%s900] sm:$0x7]
      %v966 = vunpack.c.l.b16 %v515
      %v967 = vunpack.c.l.b16 %v516
      %v968 = vunpack.c.l.b16 %v517
      %v969 = vunpack.c.l.b16 %v518
      %v970 = vunpack.c.l.b16 %v519
      %v971 = vunpack.c.l.b16 %v520
      %v972 = vunpack.c.l.b16 %v521
      %v973 = vunpack.c.l.b16 %v522
      %v974 = vunpack.c.l.b16 %v523
      %v975 = vunpack.c.l.b16 %v524
      %v976 = vunpack.c.l.b16 %v525
      %v977 = vunpack.c.l.b16 %v526
      %v978 = vunpack.c.l.b16 %v527
      %v979 = vunpack.c.l.b16 %v528
      %v980 = vunpack.c.l.b16 %v529
      %v981 = vunpack.c.l.b16 %v530
      %v982 = vunpack.c.l.b16 %v531
      %v983 = vunpack.c.l.b16 %v532
      %v984 = vunpack.c.l.b16 %v533
      %v985 = vunpack.c.l.b16 %v534
      %v986 = vunpack.c.l.b16 %v535
      %v987 = vunpack.c.l.b16 %v536
      %v988 = vunpack.c.l.b16 %v537
      %v989 = vunpack.c.l.b16 %v538
      %v990 = vunpack.c.l.b16 %v539
      %v991 = vunpack.c.l.b16 %v540
      %v992 = vunpack.c.l.b16 %v541
      %v993 = vunpack.c.l.b16 %v542
      %v994 = vunpack.c.l.b16 %v543
      %v995 = vunpack.c.l.b16 %v544
      %v996 = vunpack.c.l.b16 %v545
      %v997 = vunpack.c.l.b16 %v546
      %v998 = vunpack.c.l.b16 %v547
      %v999 = vunpack.c.l.b16 %v548
      %v1000 = vunpack.c.l.b16 %v549
      %v1001 = vunpack.c.l.b16 %v550
      %v1002 = vunpack.c.l.b16 %v551
      %v1003 = vunpack.c.l.b16 %v552
      %v1004 = vunpack.c.l.b16 %v553
      %v1005 = vunpack.c.l.b16 %v554
      %v1006 = vunpack.c.l.b16 %v555
      %v1007 = vunpack.c.l.b16 %v556
      %v1008 = vunpack.c.l.b16 %v557
      %v1009 = vunpack.c.l.b16 %v558
      %v1010 = vunpack.c.l.b16 %v559
      %v1011 = vunpack.c.l.b16 %v560
      %v1012 = vunpack.c.l.b16 %v561
      %v1013 = vunpack.c.l.b16 %v562
      %v1014 = vunpack.c.l.b16 %v563
      %v1015 = vunpack.c.l.b16 %v564
      %v1016 = vunpack.c.l.b16 %v565
      %v1017 = vunpack.c.l.b16 %v566
      %v1018 = vunpack.c.l.b16 %v567
      %v1019 = vunpack.c.l.b16 %v568
      %v1020 = vunpack.c.l.b16 %v569
      %v1021 = vunpack.c.l.b16 %v570
      %v1022 = vunpack.c.l.b16 %v571
      %v1023 = vunpack.c.l.b16 %v572
      %v1024 = vunpack.c.l.b16 %v573
      %v1025 = vunpack.c.l.b16 %v574
      %v1026 = vunpack.c.l.b16 %v575
      %v1027 = vunpack.c.l.b16 %v576
      %v1028 = vunpack.c.l.b16 %v577
      %v1029 = vunpack.c.l.b16 %v578
      %v1030 = vpack.c.b16 %v967, %v966
      %v1031 = vpack.c.b16 %v969, %v968
      %v1032 = vpack.c.b16 %v971, %v970
      %v1033 = vpack.c.b16 %v973, %v972
      %v1034 = vpack.c.b16 %v975, %v974
      %v1035 = vpack.c.b16 %v977, %v976
      %v1036 = vpack.c.b16 %v979, %v978
      %v1037 = vpack.c.b16 %v981, %v980
      %v1038 = vpack.c.b16 %v983, %v982
      %v1039 = vpack.c.b16 %v985, %v984
      %v1040 = vpack.c.b16 %v987, %v986
      %v1041 = vpack.c.b16 %v989, %v988
      %v1042 = vpack.c.b16 %v991, %v990
      %v1043 = vpack.c.b16 %v993, %v992
      %v1044 = vpack.c.b16 %v995, %v994
      %v1045 = vpack.c.b16 %v997, %v996
      %v1046 = vpack.c.b16 %v999, %v998
      %v1047 = vpack.c.b16 %v1001, %v1000
      %v1048 = vpack.c.b16 %v1003, %v1002
      %v1049 = vpack.c.b16 %v1005, %v1004
      %v1050 = vpack.c.b16 %v1007, %v1006
      %v1051 = vpack.c.b16 %v1009, %v1008
      %v1052 = vpack.c.b16 %v1011, %v1010
      %v1053 = vpack.c.b16 %v1013, %v1012
      %v1054 = vpack.c.b16 %v1015, %v1014
      %v1055 = vpack.c.b16 %v1017, %v1016
      %v1056 = vpack.c.b16 %v1019, %v1018
      %v1057 = vpack.c.b16 %v1021, %v1020
      %v1058 = vpack.c.b16 %v1023, %v1022
      %v1059 = vpack.c.b16 %v1025, %v1024
      %v1060 = vpack.c.b16 %v1027, %v1026
      %v1061 = vpack.c.b16 %v1029, %v1028
      %vm1062 = vcmask 39936
      %v1064 = vsel %vm1062, %v1030, 0
      %v1067 = vsel %vm1062, %v1031, 0
      %v1070 = vsel %vm1062, %v1032, 0
      %v1073 = vsel %vm1062, %v1033, 0
      %v1076 = vsel %vm1062, %v1034, 0
      %v1079 = vsel %vm1062, %v1035, 0
      %v1082 = vsel %vm1062, %v1036, 0
      %v1085 = vsel %vm1062, %v1037, 0
      %v1088 = vsel %vm1062, %v1038, 0
      %v1091 = vsel %vm1062, %v1039, 0
      %v1094 = vsel %vm1062, %v1040, 0
      %v1097 = vsel %vm1062, %v1041, 0
      %v1100 = vsel %vm1062, %v1042, 0
      %v1103 = vsel %vm1062, %v1043, 0
      %v1106 = vsel %vm1062, %v1044, 0
      %v1109 = vsel %vm1062, %v1045, 0
      %v1112 = vsel %vm1062, %v1046, 0
      %v1115 = vsel %vm1062, %v1047, 0
      %v1118 = vsel %vm1062, %v1048, 0
      %v1121 = vsel %vm1062, %v1049, 0
      %v1124 = vsel %vm1062, %v1050, 0
      %v1127 = vsel %vm1062, %v1051, 0
      %v1130 = vsel %vm1062, %v1052, 0
      %v1133 = vsel %vm1062, %v1053, 0
      %v1136 = vsel %vm1062, %v1054, 0
      %v1139 = vsel %vm1062, %v1055, 0
      %v1142 = vsel %vm1062, %v1056, 0
      %v1145 = vsel %vm1062, %v1057, 0
      %v1148 = vsel %vm1062, %v1058, 0
      %v1151 = vsel %vm1062, %v1059, 0
      %v1154 = vsel %vm1062, %v1060, 0
      %v1157 = vsel %vm1062, %v1061, 0
      %vm1159 = vcmask 1041408
      %vm1160 = vcmask 1042432
      %v1161 = vsel %vm1159, 4294967295, 65535
      %v1162 = vsel %vm1160, %v1161, 0
      %v1164 = vand.u32 %v901, %v1162
      %1166 = vmatprep.subr.bf16.mxu0 0
      %1167 = vmatpush1.bf16.msra.mxu0 0
      %1168 = vmatprep.subr.bf16.mxu0 0
      %1169 = vmatpush1.bf16.msra.mxu0 0
      %1170 = vmatprep.subr.bf16.mxu0 0
      %1171 = vmatpush1.bf16.msra.mxu0 0
      %1172 = vmatprep.subr.bf16.mxu0 0
      %1173 = vmatpush1.bf16.msra.mxu0 0
      %1174 = vmatprep.subr.bf16.mxu0 0
      %1175 = vmatpush1.bf16.msra.mxu0 0
      %1176 = vmatprep.subr.bf16.mxu0 0
      %1177 = vmatpush1.bf16.msra.mxu0 0
      %1178 = vmatprep.subr.bf16.mxu0 0
      %1179 = vmatpush1.bf16.msra.mxu0 0
      %1180 = vmatprep.subr.bf16.mxu0 0
      %1181 = vmatpush1.bf16.msra.mxu0 %v1164
      %1182 = vmatprep.subr.bf16.mxu0 0
      %1183 = vmatpush2.bf16.msra.mxu0 0
      %1184 = vmatprep.subr.bf16.mxu0 0
      %1185 = vmatpush2.bf16.msra.mxu0 0
      %1186 = vmatprep.subr.bf16.mxu0 0
      %1187 = vmatpush2.bf16.msra.mxu0 0
      %1188 = vmatprep.subr.bf16.mxu0 0
      %1189 = vmatpush2.bf16.msra.mxu0 0
      %1190 = vmatprep.subr.bf16.mxu0 0
      %1191 = vmatpush2.bf16.msra.mxu0 0
      %1192 = vmatprep.subr.bf16.mxu0 0
      %1193 = vmatpush2.bf16.msra.mxu0 0
      %1194 = vmatprep.subr.bf16.mxu0 0
      %1195 = vmatpush2.bf16.msra.mxu0 0
      %1196 = vmatprep.subr.bf16.mxu0 0
      %1197 = vmatpush2.bf16.msra.mxu0 0
      %1198 = vmatprep.mubr.bf16.mxu0 0
      %1199 = vmatmul.mubr.bf16.gmra.mxu0 %v1064
      %v1200 = vpop.f32.mrf.mxu0
      %v1201 = vadd.f32 0.0, %v1200
      %v1202 = vpop.f32.mrf.mxu0
      %v1203 = vpop.f32.mrf.mxu0
      %v1204 = vadd.f32 0.0, %v1203
      %v1205 = vpop.f32.mrf.mxu0
      %1206 = vmatprep.mubr.bf16.mxu0 0
      %1207 = vmatmul.mubr.bf16.gmra.mxu0 %v1067
      %v1208 = vpop.f32.mrf.mxu0
      %v1209 = vadd.f32 0.0, %v1208
      %v1210 = vpop.f32.mrf.mxu0
      %v1211 = vpop.f32.mrf.mxu0
      %v1212 = vadd.f32 0.0, %v1211
      %v1213 = vpop.f32.mrf.mxu0
      %1214 = vmatprep.mubr.bf16.mxu0 0
      %1215 = vmatmul.mubr.bf16.gmra.mxu0 %v1070
      %v1216 = vpop.f32.mrf.mxu0
      %v1217 = vadd.f32 0.0, %v1216
      %v1218 = vpop.f32.mrf.mxu0
      %v1219 = vpop.f32.mrf.mxu0
      %v1220 = vadd.f32 0.0, %v1219
      %v1221 = vpop.f32.mrf.mxu0
      %1222 = vmatprep.mubr.bf16.mxu0 0
      %1223 = vmatmul.mubr.bf16.gmra.mxu0 %v1073
      %v1224 = vpop.f32.mrf.mxu0
      %v1225 = vadd.f32 0.0, %v1224
      %v1226 = vpop.f32.mrf.mxu0
      %v1227 = vpop.f32.mrf.mxu0
      %v1228 = vadd.f32 0.0, %v1227
      %v1229 = vpop.f32.mrf.mxu0
      %1230 = vmatprep.mubr.bf16.mxu0 0
      %1231 = vmatmul.mubr.bf16.gmra.mxu0 %v1076
      %v1232 = vpop.f32.mrf.mxu0
      %v1233 = vadd.f32 0.0, %v1232
      %v1234 = vpop.f32.mrf.mxu0
      %v1235 = vpop.f32.mrf.mxu0
      %v1236 = vadd.f32 0.0, %v1235
      %v1237 = vpop.f32.mrf.mxu0
      %1238 = vmatprep.mubr.bf16.mxu0 0
      %1239 = vmatmul.mubr.bf16.gmra.mxu0 %v1079
      %v1240 = vpop.f32.mrf.mxu0
      %v1241 = vadd.f32 0.0, %v1240
      %v1242 = vpop.f32.mrf.mxu0
      %v1243 = vpop.f32.mrf.mxu0
      %v1244 = vadd.f32 0.0, %v1243
      %v1245 = vpop.f32.mrf.mxu0
      %1246 = vmatprep.mubr.bf16.mxu0 0
      %1247 = vmatmul.mubr.bf16.gmra.mxu0 %v1082
      %v1248 = vpop.f32.mrf.mxu0
      %v1249 = vadd.f32 0.0, %v1248
      %v1250 = vpop.f32.mrf.mxu0
      %v1251 = vpop.f32.mrf.mxu0
      %v1252 = vadd.f32 0.0, %v1251
      %v1253 = vpop.f32.mrf.mxu0
      %1254 = vmatprep.mubr.bf16.mxu0 0
      %1255 = vmatmul.mubr.bf16.gmra.mxu0 %v1085
      %v1256 = vpop.f32.mrf.mxu0
      %v1257 = vadd.f32 0.0, %v1256
      %v1258 = vpop.f32.mrf.mxu0
      %v1259 = vpop.f32.mrf.mxu0
      %v1260 = vadd.f32 0.0, %v1259
      %v1261 = vpop.f32.mrf.mxu0
      %1262 = vmatprep.mubr.bf16.mxu0 0
      %1263 = vmatmul.mubr.bf16.gmra.mxu0 %v1088
      %v1264 = vpop.f32.mrf.mxu0
      %v1265 = vadd.f32 0.0, %v1264
      %v1266 = vpop.f32.mrf.mxu0
      %v1267 = vpop.f32.mrf.mxu0
      %v1268 = vadd.f32 0.0, %v1267
      %v1269 = vpop.f32.mrf.mxu0
      %1270 = vmatprep.mubr.bf16.mxu0 0
      %1271 = vmatmul.mubr.bf16.gmra.mxu0 %v1091
      %v1272 = vpop.f32.mrf.mxu0
      %v1273 = vadd.f32 0.0, %v1272
      %v1274 = vpop.f32.mrf.mxu0
      %v1275 = vpop.f32.mrf.mxu0
      %v1276 = vadd.f32 0.0, %v1275
      %v1277 = vpop.f32.mrf.mxu0
      %1278 = vmatprep.mubr.bf16.mxu0 0
      %1279 = vmatmul.mubr.bf16.gmra.mxu0 %v1094
      %v1280 = vpop.f32.mrf.mxu0
      %v1281 = vadd.f32 0.0, %v1280
      %v1282 = vpop.f32.mrf.mxu0
      %v1283 = vpop.f32.mrf.mxu0
      %v1284 = vadd.f32 0.0, %v1283
      %v1285 = vpop.f32.mrf.mxu0
      %1286 = vmatprep.mubr.bf16.mxu0 0
      %1287 = vmatmul.mubr.bf16.gmra.mxu0 %v1097
      %v1288 = vpop.f32.mrf.mxu0
      %v1289 = vadd.f32 0.0, %v1288
      %v1290 = vpop.f32.mrf.mxu0
      %v1291 = vpop.f32.mrf.mxu0
      %v1292 = vadd.f32 0.0, %v1291
      %v1293 = vpop.f32.mrf.mxu0
      %1294 = vmatprep.mubr.bf16.mxu0 0
      %1295 = vmatmul.mubr.bf16.gmra.mxu0 %v1100
      %v1296 = vpop.f32.mrf.mxu0
      %v1297 = vadd.f32 0.0, %v1296
      %v1298 = vpop.f32.mrf.mxu0
      %v1299 = vpop.f32.mrf.mxu0
      %v1300 = vadd.f32 0.0, %v1299
      %v1301 = vpop.f32.mrf.mxu0
      %1302 = vmatprep.mubr.bf16.mxu0 0
      %1303 = vmatmul.mubr.bf16.gmra.mxu0 %v1103
      %v1304 = vpop.f32.mrf.mxu0
      %v1305 = vadd.f32 0.0, %v1304
      %v1306 = vpop.f32.mrf.mxu0
      %v1307 = vpop.f32.mrf.mxu0
      %v1308 = vadd.f32 0.0, %v1307
      %v1309 = vpop.f32.mrf.mxu0
      %1310 = vmatprep.mubr.bf16.mxu0 0
      %1311 = vmatmul.mubr.bf16.gmra.mxu0 %v1106
      %v1312 = vpop.f32.mrf.mxu0
      %v1313 = vadd.f32 0.0, %v1312
      %v1314 = vpop.f32.mrf.mxu0
      %v1315 = vpop.f32.mrf.mxu0
      %v1316 = vadd.f32 0.0, %v1315
      %v1317 = vpop.f32.mrf.mxu0
      %1318 = vmatprep.mubr.bf16.mxu0 0
      %1319 = vmatmul.mubr.bf16.gmra.mxu0 %v1109
      %v1320 = vpop.f32.mrf.mxu0
      %v1321 = vadd.f32 0.0, %v1320
      %v1322 = vpop.f32.mrf.mxu0
      %v1323 = vpop.f32.mrf.mxu0
      %v1324 = vadd.f32 0.0, %v1323
      %v1325 = vpop.f32.mrf.mxu0
      %1326 = vmatprep.mubr.bf16.mxu0 0
      %1327 = vmatmul.mubr.bf16.gmra.mxu0 %v1112
      %v1328 = vpop.f32.mrf.mxu0
      %v1329 = vadd.f32 0.0, %v1328
      %v1330 = vpop.f32.mrf.mxu0
      %v1331 = vpop.f32.mrf.mxu0
      %v1332 = vadd.f32 0.0, %v1331
      %v1333 = vpop.f32.mrf.mxu0
      %1334 = vmatprep.mubr.bf16.mxu0 0
      %1335 = vmatmul.mubr.bf16.gmra.mxu0 %v1115
      %v1336 = vpop.f32.mrf.mxu0
      %v1337 = vadd.f32 0.0, %v1336
      %v1338 = vpop.f32.mrf.mxu0
      %v1339 = vpop.f32.mrf.mxu0
      %v1340 = vadd.f32 0.0, %v1339
      %v1341 = vpop.f32.mrf.mxu0
      %1342 = vmatprep.mubr.bf16.mxu0 0
      %1343 = vmatmul.mubr.bf16.gmra.mxu0 %v1118
      %v1344 = vpop.f32.mrf.mxu0
      %v1345 = vadd.f32 0.0, %v1344
      %v1346 = vpop.f32.mrf.mxu0
      %v1347 = vpop.f32.mrf.mxu0
      %v1348 = vadd.f32 0.0, %v1347
      %v1349 = vpop.f32.mrf.mxu0
      %1350 = vmatprep.mubr.bf16.mxu0 0
      %1351 = vmatmul.mubr.bf16.gmra.mxu0 %v1121
      %v1352 = vpop.f32.mrf.mxu0
      %v1353 = vadd.f32 0.0, %v1352
      %v1354 = vpop.f32.mrf.mxu0
      %v1355 = vpop.f32.mrf.mxu0
      %v1356 = vadd.f32 0.0, %v1355
      %v1357 = vpop.f32.mrf.mxu0
      %1358 = vmatprep.mubr.bf16.mxu0 0
      %1359 = vmatmul.mubr.bf16.gmra.mxu0 %v1124
      %v1360 = vpop.f32.mrf.mxu0
      %v1361 = vadd.f32 0.0, %v1360
      %v1362 = vpop.f32.mrf.mxu0
      %v1363 = vpop.f32.mrf.mxu0
      %v1364 = vadd.f32 0.0, %v1363
      %v1365 = vpop.f32.mrf.mxu0
      %1366 = vmatprep.mubr.bf16.mxu0 0
      %1367 = vmatmul.mubr.bf16.gmra.mxu0 %v1127
      %v1368 = vpop.f32.mrf.mxu0
      %v1369 = vadd.f32 0.0, %v1368
      %v1370 = vpop.f32.mrf.mxu0
      %v1371 = vpop.f32.mrf.mxu0
      %v1372 = vadd.f32 0.0, %v1371
      %v1373 = vpop.f32.mrf.mxu0
      %1374 = vmatprep.mubr.bf16.mxu0 0
      %1375 = vmatmul.mubr.bf16.gmra.mxu0 %v1130
      %v1376 = vpop.f32.mrf.mxu0
      %v1377 = vadd.f32 0.0, %v1376
      %v1378 = vpop.f32.mrf.mxu0
      %v1379 = vpop.f32.mrf.mxu0
      %v1380 = vadd.f32 0.0, %v1379
      %v1381 = vpop.f32.mrf.mxu0
      %1382 = vmatprep.mubr.bf16.mxu0 0
      %1383 = vmatmul.mubr.bf16.gmra.mxu0 %v1133
      %v1384 = vpop.f32.mrf.mxu0
      %v1385 = vadd.f32 0.0, %v1384
      %v1386 = vpop.f32.mrf.mxu0
      %v1387 = vpop.f32.mrf.mxu0
      %v1388 = vadd.f32 0.0, %v1387
      %v1389 = vpop.f32.mrf.mxu0
      %1390 = vmatprep.mubr.bf16.mxu0 0
      %1391 = vmatmul.mubr.bf16.gmra.mxu0 %v1136
      %v1392 = vpop.f32.mrf.mxu0
      %v1393 = vadd.f32 0.0, %v1392
      %v1394 = vpop.f32.mrf.mxu0
      %v1395 = vpop.f32.mrf.mxu0
      %v1396 = vadd.f32 0.0, %v1395
      %v1397 = vpop.f32.mrf.mxu0
      %1398 = vmatprep.mubr.bf16.mxu0 0
      %1399 = vmatmul.mubr.bf16.gmra.mxu0 %v1139
      %v1400 = vpop.f32.mrf.mxu0
      %v1401 = vadd.f32 0.0, %v1400
      %v1402 = vpop.f32.mrf.mxu0
      %v1403 = vpop.f32.mrf.mxu0
      %v1404 = vadd.f32 0.0, %v1403
      %v1405 = vpop.f32.mrf.mxu0
      %1406 = vmatprep.mubr.bf16.mxu0 0
      %1407 = vmatmul.mubr.bf16.gmra.mxu0 %v1142
      %v1408 = vpop.f32.mrf.mxu0
      %v1409 = vadd.f32 0.0, %v1408
      %v1410 = vpop.f32.mrf.mxu0
      %v1411 = vpop.f32.mrf.mxu0
      %v1412 = vadd.f32 0.0, %v1411
      %v1413 = vpop.f32.mrf.mxu0
      %1414 = vmatprep.mubr.bf16.mxu0 0
      %1415 = vmatmul.mubr.bf16.gmra.mxu0 %v1145
      %v1416 = vpop.f32.mrf.mxu0
      %v1417 = vadd.f32 0.0, %v1416
      %v1418 = vpop.f32.mrf.mxu0
      %v1419 = vpop.f32.mrf.mxu0
      %v1420 = vadd.f32 0.0, %v1419
      %v1421 = vpop.f32.mrf.mxu0
      %1422 = vmatprep.mubr.bf16.mxu0 0
      %1423 = vmatmul.mubr.bf16.gmra.mxu0 %v1148
      %v1424 = vpop.f32.mrf.mxu0
      %v1425 = vadd.f32 0.0, %v1424
      %v1426 = vpop.f32.mrf.mxu0
      %v1427 = vpop.f32.mrf.mxu0
      %v1428 = vadd.f32 0.0, %v1427
      %v1429 = vpop.f32.mrf.mxu0
      %1430 = vmatprep.mubr.bf16.mxu0 0
      %1431 = vmatmul.mubr.bf16.gmra.mxu0 %v1151
      %v1432 = vpop.f32.mrf.mxu0
      %v1433 = vadd.f32 0.0, %v1432
      %v1434 = vpop.f32.mrf.mxu0
      %v1435 = vpop.f32.mrf.mxu0
      %v1436 = vadd.f32 0.0, %v1435
      %v1437 = vpop.f32.mrf.mxu0
      %1438 = vmatprep.mubr.bf16.mxu0 0
      %1439 = vmatmul.mubr.bf16.gmra.mxu0 %v1154
      %v1440 = vpop.f32.mrf.mxu0
      %v1441 = vadd.f32 0.0, %v1440
      %v1442 = vpop.f32.mrf.mxu0
      %v1443 = vpop.f32.mrf.mxu0
      %v1444 = vadd.f32 0.0, %v1443
      %v1445 = vpop.f32.mrf.mxu0
      %1446 = vmatprep.mubr.bf16.mxu0 0
      %1447 = vmatmul.mubr.bf16.gmra.mxu0 %v1157
      %v1448 = vpop.f32.mrf.mxu0
      %v1449 = vadd.f32 0.0, %v1448
      %v1450 = vpop.f32.mrf.mxu0
      %v1451 = vpop.f32.mrf.mxu0
      %v1452 = vadd.f32 0.0, %v1451
      %v1453 = vpop.f32.mrf.mxu0
      %1454 = vdwg.mxu0
      %v1519 = vunpack.c.l.b16 %v192
      %v1520 = vunpack.c.l.b16 %v193
      %v1521 = vunpack.c.l.b16 %v194
      %v1522 = vunpack.c.l.b16 %v195
      %v1523 = vunpack.c.l.b16 %v196
      %v1524 = vunpack.c.l.b16 %v197
      %v1525 = vunpack.c.l.b16 %v198
      %v1526 = vunpack.c.l.b16 %v199
      %v1527 = vunpack.c.l.b16 %v200
      %v1528 = vunpack.c.l.b16 %v201
      %v1529 = vunpack.c.l.b16 %v202
      %v1530 = vunpack.c.l.b16 %v203
      %v1531 = vunpack.c.l.b16 %v204
      %v1532 = vunpack.c.l.b16 %v205
      %v1533 = vunpack.c.l.b16 %v206
      %v1534 = vunpack.c.l.b16 %v207
      %v1535 = vunpack.c.l.b16 %v208
      %v1536 = vunpack.c.l.b16 %v209
      %v1537 = vunpack.c.l.b16 %v210
      %v1538 = vunpack.c.l.b16 %v211
      %v1539 = vunpack.c.l.b16 %v212
      %v1540 = vunpack.c.l.b16 %v213
      %v1541 = vunpack.c.l.b16 %v214
      %v1542 = vunpack.c.l.b16 %v215
      %v1543 = vunpack.c.l.b16 %v216
      %v1544 = vunpack.c.l.b16 %v217
      %v1545 = vunpack.c.l.b16 %v218
      %v1546 = vunpack.c.l.b16 %v219
      %v1547 = vunpack.c.l.b16 %v220
      %v1548 = vunpack.c.l.b16 %v221
      %v1549 = vunpack.c.l.b16 %v222
      %v1550 = vunpack.c.l.b16 %v223
      %v1551 = vunpack.c.l.b16 %v224
      %v1552 = vunpack.c.l.b16 %v225
      %v1553 = vunpack.c.l.b16 %v226
      %v1554 = vunpack.c.l.b16 %v227
      %v1555 = vunpack.c.l.b16 %v228
      %v1556 = vunpack.c.l.b16 %v229
      %v1557 = vunpack.c.l.b16 %v230
      %v1558 = vunpack.c.l.b16 %v231
      %v1559 = vunpack.c.l.b16 %v232
      %v1560 = vunpack.c.l.b16 %v233
      %v1561 = vunpack.c.l.b16 %v234
      %v1562 = vunpack.c.l.b16 %v235
      %v1563 = vunpack.c.l.b16 %v236
      %v1564 = vunpack.c.l.b16 %v237
      %v1565 = vunpack.c.l.b16 %v238
      %v1566 = vunpack.c.l.b16 %v239
      %v1567 = vunpack.c.l.b16 %v240
      %v1568 = vunpack.c.l.b16 %v241
      %v1569 = vunpack.c.l.b16 %v242
      %v1570 = vunpack.c.l.b16 %v243
      %v1571 = vunpack.c.l.b16 %v244
      %v1572 = vunpack.c.l.b16 %v245
      %v1573 = vunpack.c.l.b16 %v246
      %v1574 = vunpack.c.l.b16 %v247
      %v1575 = vunpack.c.l.b16 %v248
      %v1576 = vunpack.c.l.b16 %v249
      %v1577 = vunpack.c.l.b16 %v250
      %v1578 = vunpack.c.l.b16 %v251
      %v1579 = vunpack.c.l.b16 %v252
      %v1580 = vunpack.c.l.b16 %v253
      %v1581 = vunpack.c.l.b16 %v254
      %v1582 = vunpack.c.l.b16 %v255
      %v1583 = vpack.c.b16 %v1520, %v1519
      %v1584 = vpack.c.b16 %v1522, %v1521
      %v1585 = vpack.c.b16 %v1524, %v1523
      %v1586 = vpack.c.b16 %v1526, %v1525
      %v1587 = vpack.c.b16 %v1528, %v1527
      %v1588 = vpack.c.b16 %v1530, %v1529
      %v1589 = vpack.c.b16 %v1532, %v1531
      %v1590 = vpack.c.b16 %v1534, %v1533
      %v1591 = vpack.c.b16 %v1536, %v1535
      %v1592 = vpack.c.b16 %v1538, %v1537
      %v1593 = vpack.c.b16 %v1540, %v1539
      %v1594 = vpack.c.b16 %v1542, %v1541
      %v1595 = vpack.c.b16 %v1544, %v1543
      %v1596 = vpack.c.b16 %v1546, %v1545
      %v1597 = vpack.c.b16 %v1548, %v1547
      %v1598 = vpack.c.b16 %v1550, %v1549
      %v1599 = vpack.c.b16 %v1552, %v1551
      %v1600 = vpack.c.b16 %v1554, %v1553
      %v1601 = vpack.c.b16 %v1556, %v1555
      %v1602 = vpack.c.b16 %v1558, %v1557
      %v1603 = vpack.c.b16 %v1560, %v1559
      %v1604 = vpack.c.b16 %v1562, %v1561
      %v1605 = vpack.c.b16 %v1564, %v1563
      %v1606 = vpack.c.b16 %v1566, %v1565
      %v1607 = vpack.c.b16 %v1568, %v1567
      %v1608 = vpack.c.b16 %v1570, %v1569
      %v1609 = vpack.c.b16 %v1572, %v1571
      %v1610 = vpack.c.b16 %v1574, %v1573
      %v1611 = vpack.c.b16 %v1576, %v1575
      %v1612 = vpack.c.b16 %v1578, %v1577
      %v1613 = vpack.c.b16 %v1580, %v1579
      %v1614 = vpack.c.b16 %v1582, %v1581
      %v1616 = vsel %vm1062, %v1583, 0
      %v1619 = vsel %vm1062, %v1584, 0
      %v1622 = vsel %vm1062, %v1585, 0
      %v1625 = vsel %vm1062, %v1586, 0
      %v1628 = vsel %vm1062, %v1587, 0
      %v1631 = vsel %vm1062, %v1588, 0
      %v1634 = vsel %vm1062, %v1589, 0
      %v1637 = vsel %vm1062, %v1590, 0
      %v1640 = vsel %vm1062, %v1591, 0
      %v1643 = vsel %vm1062, %v1592, 0
      %v1646 = vsel %vm1062, %v1593, 0
      %v1649 = vsel %vm1062, %v1594, 0
      %v1652 = vsel %vm1062, %v1595, 0
      %v1655 = vsel %vm1062, %v1596, 0
      %v1658 = vsel %vm1062, %v1597, 0
      %v1661 = vsel %vm1062, %v1598, 0
      %v1664 = vsel %vm1062, %v1599, 0
      %v1667 = vsel %vm1062, %v1600, 0
      %v1670 = vsel %vm1062, %v1601, 0
      %v1673 = vsel %vm1062, %v1602, 0
      %v1676 = vsel %vm1062, %v1603, 0
      %v1679 = vsel %vm1062, %v1604, 0
      %v1682 = vsel %vm1062, %v1605, 0
      %v1685 = vsel %vm1062, %v1606, 0
      %v1688 = vsel %vm1062, %v1607, 0
      %v1691 = vsel %vm1062, %v1608, 0
      %v1694 = vsel %vm1062, %v1609, 0
      %v1697 = vsel %vm1062, %v1610, 0
      %v1700 = vsel %vm1062, %v1611, 0
      %v1703 = vsel %vm1062, %v1612, 0
      %v1706 = vsel %vm1062, %v1613, 0
      %v1709 = vsel %vm1062, %v1614, 0
      %v1712 = vand.u32 %v899, %v1162
      %1714 = vmatprep.subr.bf16.mxu0 0
      %1715 = vmatpush1.bf16.msra.mxu0 0
      %1716 = vmatprep.subr.bf16.mxu0 0
      %1717 = vmatpush1.bf16.msra.mxu0 0
      %1718 = vmatprep.subr.bf16.mxu0 0
      %1719 = vmatpush1.bf16.msra.mxu0 0
      %1720 = vmatprep.subr.bf16.mxu0 0
      %1721 = vmatpush1.bf16.msra.mxu0 0
      %1722 = vmatprep.subr.bf16.mxu0 0
      %1723 = vmatpush1.bf16.msra.mxu0 0
      %1724 = vmatprep.subr.bf16.mxu0 0
      %1725 = vmatpush1.bf16.msra.mxu0 0
      %1726 = vmatprep.subr.bf16.mxu0 0
      %1727 = vmatpush1.bf16.msra.mxu0 0
      %1728 = vmatprep.subr.bf16.mxu0 0
      %1729 = vmatpush1.bf16.msra.mxu0 %v1712
      %1730 = vmatprep.subr.bf16.mxu0 0
      %1731 = vmatpush2.bf16.msra.mxu0 0
      %1732 = vmatprep.subr.bf16.mxu0 0
      %1733 = vmatpush2.bf16.msra.mxu0 0
      %1734 = vmatprep.subr.bf16.mxu0 0
      %1735 = vmatpush2.bf16.msra.mxu0 0
      %1736 = vmatprep.subr.bf16.mxu0 0
      %1737 = vmatpush2.bf16.msra.mxu0 0
      %1738 = vmatprep.subr.bf16.mxu0 0
      %1739 = vmatpush2.bf16.msra.mxu0 0
      %1740 = vmatprep.subr.bf16.mxu0 0
      %1741 = vmatpush2.bf16.msra.mxu0 0
      %1742 = vmatprep.subr.bf16.mxu0 0
      %1743 = vmatpush2.bf16.msra.mxu0 0
      %1744 = vmatprep.subr.bf16.mxu0 0
      %1745 = vmatpush2.bf16.msra.mxu0 0
      %1746 = vmatprep.mubr.bf16.mxu0 0
      %1747 = vmatmul.mubr.bf16.gmra.mxu0 %v1616
      %v1748 = vpop.f32.mrf.mxu0
      %v1749 = vadd.f32 %v1201, %v1748
      %v1750 = vpop.f32.mrf.mxu0
      %v1751 = vpop.f32.mrf.mxu0
      %v1752 = vadd.f32 %v1204, %v1751
      %v1753 = vpop.f32.mrf.mxu0
      %1754 = vmatprep.mubr.bf16.mxu0 0
      %1755 = vmatmul.mubr.bf16.gmra.mxu0 %v1619
      %v1756 = vpop.f32.mrf.mxu0
      %v1757 = vadd.f32 %v1209, %v1756
      %v1758 = vpop.f32.mrf.mxu0
      %v1759 = vpop.f32.mrf.mxu0
      %v1760 = vadd.f32 %v1212, %v1759
      %v1761 = vpop.f32.mrf.mxu0
      %1762 = vmatprep.mubr.bf16.mxu0 0
      %1763 = vmatmul.mubr.bf16.gmra.mxu0 %v1622
      %v1764 = vpop.f32.mrf.mxu0
      %v1765 = vadd.f32 %v1217, %v1764
      %v1766 = vpop.f32.mrf.mxu0
      %v1767 = vpop.f32.mrf.mxu0
      %v1768 = vadd.f32 %v1220, %v1767
      %v1769 = vpop.f32.mrf.mxu0
      %1770 = vmatprep.mubr.bf16.mxu0 0
      %1771 = vmatmul.mubr.bf16.gmra.mxu0 %v1625
      %v1772 = vpop.f32.mrf.mxu0
      %v1773 = vadd.f32 %v1225, %v1772
      %v1774 = vpop.f32.mrf.mxu0
      %v1775 = vpop.f32.mrf.mxu0
      %v1776 = vadd.f32 %v1228, %v1775
      %v1777 = vpop.f32.mrf.mxu0
      %1778 = vmatprep.mubr.bf16.mxu0 0
      %1779 = vmatmul.mubr.bf16.gmra.mxu0 %v1628
      %v1780 = vpop.f32.mrf.mxu0
      %v1781 = vadd.f32 %v1233, %v1780
      %v1782 = vpop.f32.mrf.mxu0
      %v1783 = vpop.f32.mrf.mxu0
      %v1784 = vadd.f32 %v1236, %v1783
      %v1785 = vpop.f32.mrf.mxu0
      %1786 = vmatprep.mubr.bf16.mxu0 0
      %1787 = vmatmul.mubr.bf16.gmra.mxu0 %v1631
      %v1788 = vpop.f32.mrf.mxu0
      %v1789 = vadd.f32 %v1241, %v1788
      %v1790 = vpop.f32.mrf.mxu0
      %v1791 = vpop.f32.mrf.mxu0
      %v1792 = vadd.f32 %v1244, %v1791
      %v1793 = vpop.f32.mrf.mxu0
      %1794 = vmatprep.mubr.bf16.mxu0 0
      %1795 = vmatmul.mubr.bf16.gmra.mxu0 %v1634
      %v1796 = vpop.f32.mrf.mxu0
      %v1797 = vadd.f32 %v1249, %v1796
      %v1798 = vpop.f32.mrf.mxu0
      %v1799 = vpop.f32.mrf.mxu0
      %v1800 = vadd.f32 %v1252, %v1799
      %v1801 = vpop.f32.mrf.mxu0
      %1802 = vmatprep.mubr.bf16.mxu0 0
      %1803 = vmatmul.mubr.bf16.gmra.mxu0 %v1637
      %v1804 = vpop.f32.mrf.mxu0
      %v1805 = vadd.f32 %v1257, %v1804
      %v1806 = vpop.f32.mrf.mxu0
      %v1807 = vpop.f32.mrf.mxu0
      %v1808 = vadd.f32 %v1260, %v1807
      %v1809 = vpop.f32.mrf.mxu0
      %1810 = vmatprep.mubr.bf16.mxu0 0
      %1811 = vmatmul.mubr.bf16.gmra.mxu0 %v1640
      %v1812 = vpop.f32.mrf.mxu0
      %v1813 = vadd.f32 %v1265, %v1812
      %v1814 = vpop.f32.mrf.mxu0
      %v1815 = vpop.f32.mrf.mxu0
      %v1816 = vadd.f32 %v1268, %v1815
      %v1817 = vpop.f32.mrf.mxu0
      %1818 = vmatprep.mubr.bf16.mxu0 0
      %1819 = vmatmul.mubr.bf16.gmra.mxu0 %v1643
      %v1820 = vpop.f32.mrf.mxu0
      %v1821 = vadd.f32 %v1273, %v1820
      %v1822 = vpop.f32.mrf.mxu0
      %v1823 = vpop.f32.mrf.mxu0
      %v1824 = vadd.f32 %v1276, %v1823
      %v1825 = vpop.f32.mrf.mxu0
      %1826 = vmatprep.mubr.bf16.mxu0 0
      %1827 = vmatmul.mubr.bf16.gmra.mxu0 %v1646
      %v1828 = vpop.f32.mrf.mxu0
      %v1829 = vadd.f32 %v1281, %v1828
      %v1830 = vpop.f32.mrf.mxu0
      %v1831 = vpop.f32.mrf.mxu0
      %v1832 = vadd.f32 %v1284, %v1831
      %v1833 = vpop.f32.mrf.mxu0
      %1834 = vmatprep.mubr.bf16.mxu0 0
      %1835 = vmatmul.mubr.bf16.gmra.mxu0 %v1649
      %v1836 = vpop.f32.mrf.mxu0
      %v1837 = vadd.f32 %v1289, %v1836
      %v1838 = vpop.f32.mrf.mxu0
      %v1839 = vpop.f32.mrf.mxu0
      %v1840 = vadd.f32 %v1292, %v1839
      %v1841 = vpop.f32.mrf.mxu0
      %1842 = vmatprep.mubr.bf16.mxu0 0
      %1843 = vmatmul.mubr.bf16.gmra.mxu0 %v1652
      %v1844 = vpop.f32.mrf.mxu0
      %v1845 = vadd.f32 %v1297, %v1844
      %v1846 = vpop.f32.mrf.mxu0
      %v1847 = vpop.f32.mrf.mxu0
      %v1848 = vadd.f32 %v1300, %v1847
      %v1849 = vpop.f32.mrf.mxu0
      %1850 = vmatprep.mubr.bf16.mxu0 0
      %1851 = vmatmul.mubr.bf16.gmra.mxu0 %v1655
      %v1852 = vpop.f32.mrf.mxu0
      %v1853 = vadd.f32 %v1305, %v1852
      %v1854 = vpop.f32.mrf.mxu0
      %v1855 = vpop.f32.mrf.mxu0
      %v1856 = vadd.f32 %v1308, %v1855
      %v1857 = vpop.f32.mrf.mxu0
      %1858 = vmatprep.mubr.bf16.mxu0 0
      %1859 = vmatmul.mubr.bf16.gmra.mxu0 %v1658
      %v1860 = vpop.f32.mrf.mxu0
      %v1861 = vadd.f32 %v1313, %v1860
      %v1862 = vpop.f32.mrf.mxu0
      %v1863 = vpop.f32.mrf.mxu0
      %v1864 = vadd.f32 %v1316, %v1863
      %v1865 = vpop.f32.mrf.mxu0
      %1866 = vmatprep.mubr.bf16.mxu0 0
      %1867 = vmatmul.mubr.bf16.gmra.mxu0 %v1661
      %v1868 = vpop.f32.mrf.mxu0
      %v1869 = vadd.f32 %v1321, %v1868
      %v1870 = vpop.f32.mrf.mxu0
      %v1871 = vpop.f32.mrf.mxu0
      %v1872 = vadd.f32 %v1324, %v1871
      %v1873 = vpop.f32.mrf.mxu0
      %1874 = vmatprep.mubr.bf16.mxu0 0
      %1875 = vmatmul.mubr.bf16.gmra.mxu0 %v1664
      %v1876 = vpop.f32.mrf.mxu0
      %v1877 = vadd.f32 %v1329, %v1876
      %v1878 = vpop.f32.mrf.mxu0
      %v1879 = vpop.f32.mrf.mxu0
      %v1880 = vadd.f32 %v1332, %v1879
      %v1881 = vpop.f32.mrf.mxu0
      %1882 = vmatprep.mubr.bf16.mxu0 0
      %1883 = vmatmul.mubr.bf16.gmra.mxu0 %v1667
      %v1884 = vpop.f32.mrf.mxu0
      %v1885 = vadd.f32 %v1337, %v1884
      %v1886 = vpop.f32.mrf.mxu0
      %v1887 = vpop.f32.mrf.mxu0
      %v1888 = vadd.f32 %v1340, %v1887
      %v1889 = vpop.f32.mrf.mxu0
      %1890 = vmatprep.mubr.bf16.mxu0 0
      %1891 = vmatmul.mubr.bf16.gmra.mxu0 %v1670
      %v1892 = vpop.f32.mrf.mxu0
      %v1893 = vadd.f32 %v1345, %v1892
      %v1894 = vpop.f32.mrf.mxu0
      %v1895 = vpop.f32.mrf.mxu0
      %v1896 = vadd.f32 %v1348, %v1895
      %v1897 = vpop.f32.mrf.mxu0
      %1898 = vmatprep.mubr.bf16.mxu0 0
      %1899 = vmatmul.mubr.bf16.gmra.mxu0 %v1673
      %v1900 = vpop.f32.mrf.mxu0
      %v1901 = vadd.f32 %v1353, %v1900
      %v1902 = vpop.f32.mrf.mxu0
      %v1903 = vpop.f32.mrf.mxu0
      %v1904 = vadd.f32 %v1356, %v1903
      %v1905 = vpop.f32.mrf.mxu0
      %1906 = vmatprep.mubr.bf16.mxu0 0
      %1907 = vmatmul.mubr.bf16.gmra.mxu0 %v1676
      %v1908 = vpop.f32.mrf.mxu0
      %v1909 = vadd.f32 %v1361, %v1908
      %v1910 = vpop.f32.mrf.mxu0
      %v1911 = vpop.f32.mrf.mxu0
      %v1912 = vadd.f32 %v1364, %v1911
      %v1913 = vpop.f32.mrf.mxu0
      %1914 = vmatprep.mubr.bf16.mxu0 0
      %1915 = vmatmul.mubr.bf16.gmra.mxu0 %v1679
      %v1916 = vpop.f32.mrf.mxu0
      %v1917 = vadd.f32 %v1369, %v1916
      %v1918 = vpop.f32.mrf.mxu0
      %v1919 = vpop.f32.mrf.mxu0
      %v1920 = vadd.f32 %v1372, %v1919
      %v1921 = vpop.f32.mrf.mxu0
      %1922 = vmatprep.mubr.bf16.mxu0 0
      %1923 = vmatmul.mubr.bf16.gmra.mxu0 %v1682
      %v1924 = vpop.f32.mrf.mxu0
      %v1925 = vadd.f32 %v1377, %v1924
      %v1926 = vpop.f32.mrf.mxu0
      %v1927 = vpop.f32.mrf.mxu0
      %v1928 = vadd.f32 %v1380, %v1927
      %v1929 = vpop.f32.mrf.mxu0
      %1930 = vmatprep.mubr.bf16.mxu0 0
      %1931 = vmatmul.mubr.bf16.gmra.mxu0 %v1685
      %v1932 = vpop.f32.mrf.mxu0
      %v1933 = vadd.f32 %v1385, %v1932
      %v1934 = vpop.f32.mrf.mxu0
      %v1935 = vpop.f32.mrf.mxu0
      %v1936 = vadd.f32 %v1388, %v1935
      %v1937 = vpop.f32.mrf.mxu0
      %1938 = vmatprep.mubr.bf16.mxu0 0
      %1939 = vmatmul.mubr.bf16.gmra.mxu0 %v1688
      %v1940 = vpop.f32.mrf.mxu0
      %v1941 = vadd.f32 %v1393, %v1940
      %v1942 = vpop.f32.mrf.mxu0
      %v1943 = vpop.f32.mrf.mxu0
      %v1944 = vadd.f32 %v1396, %v1943
      %v1945 = vpop.f32.mrf.mxu0
      %1946 = vmatprep.mubr.bf16.mxu0 0
      %1947 = vmatmul.mubr.bf16.gmra.mxu0 %v1691
      %v1948 = vpop.f32.mrf.mxu0
      %v1949 = vadd.f32 %v1401, %v1948
      %v1950 = vpop.f32.mrf.mxu0
      %v1951 = vpop.f32.mrf.mxu0
      %v1952 = vadd.f32 %v1404, %v1951
      %v1953 = vpop.f32.mrf.mxu0
      %1954 = vmatprep.mubr.bf16.mxu0 0
      %1955 = vmatmul.mubr.bf16.gmra.mxu0 %v1694
      %v1956 = vpop.f32.mrf.mxu0
      %v1957 = vadd.f32 %v1409, %v1956
      %v1958 = vpop.f32.mrf.mxu0
      %v1959 = vpop.f32.mrf.mxu0
      %v1960 = vadd.f32 %v1412, %v1959
      %v1961 = vpop.f32.mrf.mxu0
      %1962 = vmatprep.mubr.bf16.mxu0 0
      %1963 = vmatmul.mubr.bf16.gmra.mxu0 %v1697
      %v1964 = vpop.f32.mrf.mxu0
      %v1965 = vadd.f32 %v1417, %v1964
      %v1966 = vpop.f32.mrf.mxu0
      %v1967 = vpop.f32.mrf.mxu0
      %v1968 = vadd.f32 %v1420, %v1967
      %v1969 = vpop.f32.mrf.mxu0
      %1970 = vmatprep.mubr.bf16.mxu0 0
      %1971 = vmatmul.mubr.bf16.gmra.mxu0 %v1700
      %v1972 = vpop.f32.mrf.mxu0
      %v1973 = vadd.f32 %v1425, %v1972
      %v1974 = vpop.f32.mrf.mxu0
      %v1975 = vpop.f32.mrf.mxu0
      %v1976 = vadd.f32 %v1428, %v1975
      %v1977 = vpop.f32.mrf.mxu0
      %1978 = vmatprep.mubr.bf16.mxu0 0
      %1979 = vmatmul.mubr.bf16.gmra.mxu0 %v1703
      %v1980 = vpop.f32.mrf.mxu0
      %v1981 = vadd.f32 %v1433, %v1980
      %v1982 = vpop.f32.mrf.mxu0
      %v1983 = vpop.f32.mrf.mxu0
      %v1984 = vadd.f32 %v1436, %v1983
      %v1985 = vpop.f32.mrf.mxu0
      %1986 = vmatprep.mubr.bf16.mxu0 0
      %1987 = vmatmul.mubr.bf16.gmra.mxu0 %v1706
      %v1988 = vpop.f32.mrf.mxu0
      %v1989 = vadd.f32 %v1441, %v1988
      %v1990 = vpop.f32.mrf.mxu0
      %v1991 = vpop.f32.mrf.mxu0
      %v1992 = vadd.f32 %v1444, %v1991
      %v1993 = vpop.f32.mrf.mxu0
      %1994 = vmatprep.mubr.bf16.mxu0 0
      %1995 = vmatmul.mubr.bf16.gmra.mxu0 %v1709
      %v1996 = vpop.f32.mrf.mxu0
      %v1997 = vadd.f32 %v1449, %v1996
      %v1998 = vpop.f32.mrf.mxu0
      %v1999 = vpop.f32.mrf.mxu0
      %v2000 = vadd.f32 %v1452, %v1999
      %v2001 = vpop.f32.mrf.mxu0
      %2002 = vdwg.mxu0
      %s2003 = scalar_lea.vmem %s2, 8
      %v2004 = vld [vmem:[%s2003] sm:$0x7]
      %v2069 = vunpack.c.l.b16 %v579
      %v2070 = vunpack.c.l.b16 %v580
      %v2071 = vunpack.c.l.b16 %v581
      %v2072 = vunpack.c.l.b16 %v582
      %v2073 = vunpack.c.l.b16 %v583
      %v2074 = vunpack.c.l.b16 %v584
      %v2075 = vunpack.c.l.b16 %v585
      %v2076 = vunpack.c.l.b16 %v586
      %v2077 = vunpack.c.l.b16 %v587
      %v2078 = vunpack.c.l.b16 %v588
      %v2079 = vunpack.c.l.b16 %v589
      %v2080 = vunpack.c.l.b16 %v590
      %v2081 = vunpack.c.l.b16 %v591
      %v2082 = vunpack.c.l.b16 %v592
      %v2083 = vunpack.c.l.b16 %v593
      %v2084 = vunpack.c.l.b16 %v594
      %v2085 = vunpack.c.l.b16 %v595
      %v2086 = vunpack.c.l.b16 %v596
      %v2087 = vunpack.c.l.b16 %v597
      %v2088 = vunpack.c.l.b16 %v598
      %v2089 = vunpack.c.l.b16 %v599
      %v2090 = vunpack.c.l.b16 %v600
      %v2091 = vunpack.c.l.b16 %v601
      %v2092 = vunpack.c.l.b16 %v602
      %v2093 = vunpack.c.l.b16 %v603
      %v2094 = vunpack.c.l.b16 %v604
      %v2095 = vunpack.c.l.b16 %v605
      %v2096 = vunpack.c.l.b16 %v606
      %v2097 = vunpack.c.l.b16 %v607
      %v2098 = vunpack.c.l.b16 %v608
      %v2099 = vunpack.c.l.b16 %v609
      %v2100 = vunpack.c.l.b16 %v610
      %v2101 = vunpack.c.l.b16 %v611
      %v2102 = vunpack.c.l.b16 %v612
      %v2103 = vunpack.c.l.b16 %v613
      %v2104 = vunpack.c.l.b16 %v614
      %v2105 = vunpack.c.l.b16 %v615
      %v2106 = vunpack.c.l.b16 %v616
      %v2107 = vunpack.c.l.b16 %v617
      %v2108 = vunpack.c.l.b16 %v618
      %v2109 = vunpack.c.l.b16 %v619
      %v2110 = vunpack.c.l.b16 %v620
      %v2111 = vunpack.c.l.b16 %v621
      %v2112 = vunpack.c.l.b16 %v622
      %v2113 = vunpack.c.l.b16 %v623
      %v2114 = vunpack.c.l.b16 %v624
      %v2115 = vunpack.c.l.b16 %v625
      %v2116 = vunpack.c.l.b16 %v626
      %v2117 = vunpack.c.l.b16 %v627
      %v2118 = vunpack.c.l.b16 %v628
      %v2119 = vunpack.c.l.b16 %v629
      %v2120 = vunpack.c.l.b16 %v630
      %v2121 = vunpack.c.l.b16 %v631
      %v2122 = vunpack.c.l.b16 %v632
      %v2123 = vunpack.c.l.b16 %v633
      %v2124 = vunpack.c.l.b16 %v634
      %v2125 = vunpack.c.l.b16 %v635
      %v2126 = vunpack.c.l.b16 %v636
      %v2127 = vunpack.c.l.b16 %v637
      %v2128 = vunpack.c.l.b16 %v638
      %v2129 = vunpack.c.l.b16 %v639
      %v2130 = vunpack.c.l.b16 %v640
      %v2131 = vunpack.c.l.b16 %v641
      %v2132 = vunpack.c.l.b16 %v642
      %v2133 = vpack.c.b16 %v2070, %v2069
      %v2134 = vpack.c.b16 %v2072, %v2071
      %v2135 = vpack.c.b16 %v2074, %v2073
      %v2136 = vpack.c.b16 %v2076, %v2075
      %v2137 = vpack.c.b16 %v2078, %v2077
      %v2138 = vpack.c.b16 %v2080, %v2079
      %v2139 = vpack.c.b16 %v2082, %v2081
      %v2140 = vpack.c.b16 %v2084, %v2083
      %v2141 = vpack.c.b16 %v2086, %v2085
      %v2142 = vpack.c.b16 %v2088, %v2087
      %v2143 = vpack.c.b16 %v2090, %v2089
      %v2144 = vpack.c.b16 %v2092, %v2091
      %v2145 = vpack.c.b16 %v2094, %v2093
      %v2146 = vpack.c.b16 %v2096, %v2095
      %v2147 = vpack.c.b16 %v2098, %v2097
      %v2148 = vpack.c.b16 %v2100, %v2099
      %v2149 = vpack.c.b16 %v2102, %v2101
      %v2150 = vpack.c.b16 %v2104, %v2103
      %v2151 = vpack.c.b16 %v2106, %v2105
      %v2152 = vpack.c.b16 %v2108, %v2107
      %v2153 = vpack.c.b16 %v2110, %v2109
      %v2154 = vpack.c.b16 %v2112, %v2111
      %v2155 = vpack.c.b16 %v2114, %v2113
      %v2156 = vpack.c.b16 %v2116, %v2115
      %v2157 = vpack.c.b16 %v2118, %v2117
      %v2158 = vpack.c.b16 %v2120, %v2119
      %v2159 = vpack.c.b16 %v2122, %v2121
      %v2160 = vpack.c.b16 %v2124, %v2123
      %v2161 = vpack.c.b16 %v2126, %v2125
      %v2162 = vpack.c.b16 %v2128, %v2127
      %v2163 = vpack.c.b16 %v2130, %v2129
      %v2164 = vpack.c.b16 %v2132, %v2131
      %v2166 = vsel %vm1062, %v2133, 0
      %v2169 = vsel %vm1062, %v2134, 0
      %v2172 = vsel %vm1062, %v2135, 0
      %v2175 = vsel %vm1062, %v2136, 0
      %v2178 = vsel %vm1062, %v2137, 0
      %v2181 = vsel %vm1062, %v2138, 0
      %v2184 = vsel %vm1062, %v2139, 0
      %v2187 = vsel %vm1062, %v2140, 0
      %v2190 = vsel %vm1062, %v2141, 0
      %v2193 = vsel %vm1062, %v2142, 0
      %v2196 = vsel %vm1062, %v2143, 0
      %v2199 = vsel %vm1062, %v2144, 0
      %v2202 = vsel %vm1062, %v2145, 0
      %v2205 = vsel %vm1062, %v2146, 0
      %v2208 = vsel %vm1062, %v2147, 0
      %v2211 = vsel %vm1062, %v2148, 0
      %v2214 = vsel %vm1062, %v2149, 0
      %v2217 = vsel %vm1062, %v2150, 0
      %v2220 = vsel %vm1062, %v2151, 0
      %v2223 = vsel %vm1062, %v2152, 0
      %v2226 = vsel %vm1062, %v2153, 0
      %v2229 = vsel %vm1062, %v2154, 0
      %v2232 = vsel %vm1062, %v2155, 0
      %v2235 = vsel %vm1062, %v2156, 0
      %v2238 = vsel %vm1062, %v2157, 0
      %v2241 = vsel %vm1062, %v2158, 0
      %v2244 = vsel %vm1062, %v2159, 0
      %v2247 = vsel %vm1062, %v2160, 0
      %v2250 = vsel %vm1062, %v2161, 0
      %v2253 = vsel %vm1062, %v2162, 0
      %v2256 = vsel %vm1062, %v2163, 0
      %v2259 = vsel %vm1062, %v2164, 0
      %v2262 = vand.u32 %v2004, %v1162
      %2264 = vmatprep.subr.bf16.mxu0 0
      %2265 = vmatpush1.bf16.msra.mxu0 0
      %2266 = vmatprep.subr.bf16.mxu0 0
      %2267 = vmatpush1.bf16.msra.mxu0 0
      %2268 = vmatprep.subr.bf16.mxu0 0
      %2269 = vmatpush1.bf16.msra.mxu0 0
      %2270 = vmatprep.subr.bf16.mxu0 0
      %2271 = vmatpush1.bf16.msra.mxu0 0
      %2272 = vmatprep.subr.bf16.mxu0 0
      %2273 = vmatpush1.bf16.msra.mxu0 0
      %2274 = vmatprep.subr.bf16.mxu0 0
      %2275 = vmatpush1.bf16.msra.mxu0 0
      %2276 = vmatprep.subr.bf16.mxu0 0
      %2277 = vmatpush1.bf16.msra.mxu0 0
      %2278 = vmatprep.subr.bf16.mxu0 0
      %2279 = vmatpush1.bf16.msra.mxu0 %v2262
      %2280 = vmatprep.subr.bf16.mxu0 0
      %2281 = vmatpush2.bf16.msra.mxu0 0
      %2282 = vmatprep.subr.bf16.mxu0 0
      %2283 = vmatpush2.bf16.msra.mxu0 0
      %2284 = vmatprep.subr.bf16.mxu0 0
      %2285 = vmatpush2.bf16.msra.mxu0 0
      %2286 = vmatprep.subr.bf16.mxu0 0
      %2287 = vmatpush2.bf16.msra.mxu0 0
      %2288 = vmatprep.subr.bf16.mxu0 0
      %2289 = vmatpush2.bf16.msra.mxu0 0
      %2290 = vmatprep.subr.bf16.mxu0 0
      %2291 = vmatpush2.bf16.msra.mxu0 0
      %2292 = vmatprep.subr.bf16.mxu0 0
      %2293 = vmatpush2.bf16.msra.mxu0 0
      %2294 = vmatprep.subr.bf16.mxu0 0
      %2295 = vmatpush2.bf16.msra.mxu0 0
      %2296 = vmatprep.mubr.bf16.mxu0 0
      %2297 = vmatmul.mubr.bf16.gmra.mxu0 %v2166
      %v2298 = vpop.f32.mrf.mxu0
      %v2299 = vadd.f32 0.0, %v2298
      %v2300 = vpop.f32.mrf.mxu0
      %v2301 = vpop.f32.mrf.mxu0
      %v2302 = vadd.f32 0.0, %v2301
      %v2303 = vpop.f32.mrf.mxu0
      %2304 = vmatprep.mubr.bf16.mxu0 0
      %2305 = vmatmul.mubr.bf16.gmra.mxu0 %v2169
      %v2306 = vpop.f32.mrf.mxu0
      %v2307 = vadd.f32 0.0, %v2306
      %v2308 = vpop.f32.mrf.mxu0
      %v2309 = vpop.f32.mrf.mxu0
      %v2310 = vadd.f32 0.0, %v2309
      %v2311 = vpop.f32.mrf.mxu0
      %2312 = vmatprep.mubr.bf16.mxu0 0
      %2313 = vmatmul.mubr.bf16.gmra.mxu0 %v2172
      %v2314 = vpop.f32.mrf.mxu0
      %v2315 = vadd.f32 0.0, %v2314
      %v2316 = vpop.f32.mrf.mxu0
      %v2317 = vpop.f32.mrf.mxu0
      %v2318 = vadd.f32 0.0, %v2317
      %v2319 = vpop.f32.mrf.mxu0
      %2320 = vmatprep.mubr.bf16.mxu0 0
      %2321 = vmatmul.mubr.bf16.gmra.mxu0 %v2175
      %v2322 = vpop.f32.mrf.mxu0
      %v2323 = vadd.f32 0.0, %v2322
      %v2324 = vpop.f32.mrf.mxu0
      %v2325 = vpop.f32.mrf.mxu0
      %v2326 = vadd.f32 0.0, %v2325
      %v2327 = vpop.f32.mrf.mxu0
      %2328 = vmatprep.mubr.bf16.mxu0 0
      %2329 = vmatmul.mubr.bf16.gmra.mxu0 %v2178
      %v2330 = vpop.f32.mrf.mxu0
      %v2331 = vadd.f32 0.0, %v2330
      %v2332 = vpop.f32.mrf.mxu0
      %v2333 = vpop.f32.mrf.mxu0
      %v2334 = vadd.f32 0.0, %v2333
      %v2335 = vpop.f32.mrf.mxu0
      %2336 = vmatprep.mubr.bf16.mxu0 0
      %2337 = vmatmul.mubr.bf16.gmra.mxu0 %v2181
      %v2338 = vpop.f32.mrf.mxu0
      %v2339 = vadd.f32 0.0, %v2338
      %v2340 = vpop.f32.mrf.mxu0
      %v2341 = vpop.f32.mrf.mxu0
      %v2342 = vadd.f32 0.0, %v2341
      %v2343 = vpop.f32.mrf.mxu0
      %2344 = vmatprep.mubr.bf16.mxu0 0
      %2345 = vmatmul.mubr.bf16.gmra.mxu0 %v2184
      %v2346 = vpop.f32.mrf.mxu0
      %v2347 = vadd.f32 0.0, %v2346
      %v2348 = vpop.f32.mrf.mxu0
      %v2349 = vpop.f32.mrf.mxu0
      %v2350 = vadd.f32 0.0, %v2349
      %v2351 = vpop.f32.mrf.mxu0
      %2352 = vmatprep.mubr.bf16.mxu0 0
      %2353 = vmatmul.mubr.bf16.gmra.mxu0 %v2187
      %v2354 = vpop.f32.mrf.mxu0
      %v2355 = vadd.f32 0.0, %v2354
      %v2356 = vpop.f32.mrf.mxu0
      %v2357 = vpop.f32.mrf.mxu0
      %v2358 = vadd.f32 0.0, %v2357
      %v2359 = vpop.f32.mrf.mxu0
      %2360 = vmatprep.mubr.bf16.mxu0 0
      %2361 = vmatmul.mubr.bf16.gmra.mxu0 %v2190
      %v2362 = vpop.f32.mrf.mxu0
      %v2363 = vadd.f32 0.0, %v2362
      %v2364 = vpop.f32.mrf.mxu0
      %v2365 = vpop.f32.mrf.mxu0
      %v2366 = vadd.f32 0.0, %v2365
      %v2367 = vpop.f32.mrf.mxu0
      %2368 = vmatprep.mubr.bf16.mxu0 0
      %2369 = vmatmul.mubr.bf16.gmra.mxu0 %v2193
      %v2370 = vpop.f32.mrf.mxu0
      %v2371 = vadd.f32 0.0, %v2370
      %v2372 = vpop.f32.mrf.mxu0
      %v2373 = vpop.f32.mrf.mxu0
      %v2374 = vadd.f32 0.0, %v2373
      %v2375 = vpop.f32.mrf.mxu0
      %2376 = vmatprep.mubr.bf16.mxu0 0
      %2377 = vmatmul.mubr.bf16.gmra.mxu0 %v2196
      %v2378 = vpop.f32.mrf.mxu0
      %v2379 = vadd.f32 0.0, %v2378
      %v2380 = vpop.f32.mrf.mxu0
      %v2381 = vpop.f32.mrf.mxu0
      %v2382 = vadd.f32 0.0, %v2381
      %v2383 = vpop.f32.mrf.mxu0
      %2384 = vmatprep.mubr.bf16.mxu0 0
      %2385 = vmatmul.mubr.bf16.gmra.mxu0 %v2199
      %v2386 = vpop.f32.mrf.mxu0
      %v2387 = vadd.f32 0.0, %v2386
      %v2388 = vpop.f32.mrf.mxu0
      %v2389 = vpop.f32.mrf.mxu0
      %v2390 = vadd.f32 0.0, %v2389
      %v2391 = vpop.f32.mrf.mxu0
      %2392 = vmatprep.mubr.bf16.mxu0 0
      %2393 = vmatmul.mubr.bf16.gmra.mxu0 %v2202
      %v2394 = vpop.f32.mrf.mxu0
      %v2395 = vadd.f32 0.0, %v2394
      %v2396 = vpop.f32.mrf.mxu0
      %v2397 = vpop.f32.mrf.mxu0
      %v2398 = vadd.f32 0.0, %v2397
      %v2399 = vpop.f32.mrf.mxu0
      %2400 = vmatprep.mubr.bf16.mxu0 0
      %2401 = vmatmul.mubr.bf16.gmra.mxu0 %v2205
      %v2402 = vpop.f32.mrf.mxu0
      %v2403 = vadd.f32 0.0, %v2402
      %v2404 = vpop.f32.mrf.mxu0
      %v2405 = vpop.f32.mrf.mxu0
      %v2406 = vadd.f32 0.0, %v2405
      %v2407 = vpop.f32.mrf.mxu0
      %2408 = vmatprep.mubr.bf16.mxu0 0
      %2409 = vmatmul.mubr.bf16.gmra.mxu0 %v2208
      %v2410 = vpop.f32.mrf.mxu0
      %v2411 = vadd.f32 0.0, %v2410
      %v2412 = vpop.f32.mrf.mxu0
      %v2413 = vpop.f32.mrf.mxu0
      %v2414 = vadd.f32 0.0, %v2413
      %v2415 = vpop.f32.mrf.mxu0
      %2416 = vmatprep.mubr.bf16.mxu0 0
      %2417 = vmatmul.mubr.bf16.gmra.mxu0 %v2211
      %v2418 = vpop.f32.mrf.mxu0
      %v2419 = vadd.f32 0.0, %v2418
      %v2420 = vpop.f32.mrf.mxu0
      %v2421 = vpop.f32.mrf.mxu0
      %v2422 = vadd.f32 0.0, %v2421
      %v2423 = vpop.f32.mrf.mxu0
      %2424 = vmatprep.mubr.bf16.mxu0 0
      %2425 = vmatmul.mubr.bf16.gmra.mxu0 %v2214
      %v2426 = vpop.f32.mrf.mxu0
      %v2427 = vadd.f32 0.0, %v2426
      %v2428 = vpop.f32.mrf.mxu0
      %v2429 = vpop.f32.mrf.mxu0
      %v2430 = vadd.f32 0.0, %v2429
      %v2431 = vpop.f32.mrf.mxu0
      %2432 = vmatprep.mubr.bf16.mxu0 0
      %2433 = vmatmul.mubr.bf16.gmra.mxu0 %v2217
      %v2434 = vpop.f32.mrf.mxu0
      %v2435 = vadd.f32 0.0, %v2434
      %v2436 = vpop.f32.mrf.mxu0
      %v2437 = vpop.f32.mrf.mxu0
      %v2438 = vadd.f32 0.0, %v2437
      %v2439 = vpop.f32.mrf.mxu0
      %2440 = vmatprep.mubr.bf16.mxu0 0
      %2441 = vmatmul.mubr.bf16.gmra.mxu0 %v2220
      %v2442 = vpop.f32.mrf.mxu0
      %v2443 = vadd.f32 0.0, %v2442
      %v2444 = vpop.f32.mrf.mxu0
      %v2445 = vpop.f32.mrf.mxu0
      %v2446 = vadd.f32 0.0, %v2445
      %v2447 = vpop.f32.mrf.mxu0
      %2448 = vmatprep.mubr.bf16.mxu0 0
      %2449 = vmatmul.mubr.bf16.gmra.mxu0 %v2223
      %v2450 = vpop.f32.mrf.mxu0
      %v2451 = vadd.f32 0.0, %v2450
      %v2452 = vpop.f32.mrf.mxu0
      %v2453 = vpop.f32.mrf.mxu0
      %v2454 = vadd.f32 0.0, %v2453
      %v2455 = vpop.f32.mrf.mxu0
      %2456 = vmatprep.mubr.bf16.mxu0 0
      %2457 = vmatmul.mubr.bf16.gmra.mxu0 %v2226
      %v2458 = vpop.f32.mrf.mxu0
      %v2459 = vadd.f32 0.0, %v2458
      %v2460 = vpop.f32.mrf.mxu0
      %v2461 = vpop.f32.mrf.mxu0
      %v2462 = vadd.f32 0.0, %v2461
      %v2463 = vpop.f32.mrf.mxu0
      %2464 = vmatprep.mubr.bf16.mxu0 0
      %2465 = vmatmul.mubr.bf16.gmra.mxu0 %v2229
      %v2466 = vpop.f32.mrf.mxu0
      %v2467 = vadd.f32 0.0, %v2466
      %v2468 = vpop.f32.mrf.mxu0
      %v2469 = vpop.f32.mrf.mxu0
      %v2470 = vadd.f32 0.0, %v2469
      %v2471 = vpop.f32.mrf.mxu0
      %2472 = vmatprep.mubr.bf16.mxu0 0
      %2473 = vmatmul.mubr.bf16.gmra.mxu0 %v2232
      %v2474 = vpop.f32.mrf.mxu0
      %v2475 = vadd.f32 0.0, %v2474
      %v2476 = vpop.f32.mrf.mxu0
      %v2477 = vpop.f32.mrf.mxu0
      %v2478 = vadd.f32 0.0, %v2477
      %v2479 = vpop.f32.mrf.mxu0
      %2480 = vmatprep.mubr.bf16.mxu0 0
      %2481 = vmatmul.mubr.bf16.gmra.mxu0 %v2235
      %v2482 = vpop.f32.mrf.mxu0
      %v2483 = vadd.f32 0.0, %v2482
      %v2484 = vpop.f32.mrf.mxu0
      %v2485 = vpop.f32.mrf.mxu0
      %v2486 = vadd.f32 0.0, %v2485
      %v2487 = vpop.f32.mrf.mxu0
      %2488 = vmatprep.mubr.bf16.mxu0 0
      %2489 = vmatmul.mubr.bf16.gmra.mxu0 %v2238
      %v2490 = vpop.f32.mrf.mxu0
      %v2491 = vadd.f32 0.0, %v2490
      %v2492 = vpop.f32.mrf.mxu0
      %v2493 = vpop.f32.mrf.mxu0
      %v2494 = vadd.f32 0.0, %v2493
      %v2495 = vpop.f32.mrf.mxu0
      %2496 = vmatprep.mubr.bf16.mxu0 0
      %2497 = vmatmul.mubr.bf16.gmra.mxu0 %v2241
      %v2498 = vpop.f32.mrf.mxu0
      %v2499 = vadd.f32 0.0, %v2498
      %v2500 = vpop.f32.mrf.mxu0
      %v2501 = vpop.f32.mrf.mxu0
      %v2502 = vadd.f32 0.0, %v2501
      %v2503 = vpop.f32.mrf.mxu0
      %2504 = vmatprep.mubr.bf16.mxu0 0
      %2505 = vmatmul.mubr.bf16.gmra.mxu0 %v2244
      %v2506 = vpop.f32.mrf.mxu0
      %v2507 = vadd.f32 0.0, %v2506
      %v2508 = vpop.f32.mrf.mxu0
      %v2509 = vpop.f32.mrf.mxu0
      %v2510 = vadd.f32 0.0, %v2509
      %v2511 = vpop.f32.mrf.mxu0
      %2512 = vmatprep.mubr.bf16.mxu0 0
      %2513 = vmatmul.mubr.bf16.gmra.mxu0 %v2247
      %v2514 = vpop.f32.mrf.mxu0
      %v2515 = vadd.f32 0.0, %v2514
      %v2516 = vpop.f32.mrf.mxu0
      %v2517 = vpop.f32.mrf.mxu0
      %v2518 = vadd.f32 0.0, %v2517
      %v2519 = vpop.f32.mrf.mxu0
      %2520 = vmatprep.mubr.bf16.mxu0 0
      %2521 = vmatmul.mubr.bf16.gmra.mxu0 %v2250
      %v2522 = vpop.f32.mrf.mxu0
      %v2523 = vadd.f32 0.0, %v2522
      %v2524 = vpop.f32.mrf.mxu0
      %v2525 = vpop.f32.mrf.mxu0
      %v2526 = vadd.f32 0.0, %v2525
      %v2527 = vpop.f32.mrf.mxu0
      %2528 = vmatprep.mubr.bf16.mxu0 0
      %2529 = vmatmul.mubr.bf16.gmra.mxu0 %v2253
      %v2530 = vpop.f32.mrf.mxu0
      %v2531 = vadd.f32 0.0, %v2530
      %v2532 = vpop.f32.mrf.mxu0
      %v2533 = vpop.f32.mrf.mxu0
      %v2534 = vadd.f32 0.0, %v2533
      %v2535 = vpop.f32.mrf.mxu0
      %2536 = vmatprep.mubr.bf16.mxu0 0
      %2537 = vmatmul.mubr.bf16.gmra.mxu0 %v2256
      %v2538 = vpop.f32.mrf.mxu0
      %v2539 = vadd.f32 0.0, %v2538
      %v2540 = vpop.f32.mrf.mxu0
      %v2541 = vpop.f32.mrf.mxu0
      %v2542 = vadd.f32 0.0, %v2541
      %v2543 = vpop.f32.mrf.mxu0
      %2544 = vmatprep.mubr.bf16.mxu0 0
      %2545 = vmatmul.mubr.bf16.gmra.mxu0 %v2259
      %v2546 = vpop.f32.mrf.mxu0
      %v2547 = vadd.f32 0.0, %v2546
      %v2548 = vpop.f32.mrf.mxu0
      %v2549 = vpop.f32.mrf.mxu0
      %v2550 = vadd.f32 0.0, %v2549
      %v2551 = vpop.f32.mrf.mxu0
      %2552 = vdwg.mxu0
      %v2553 = vadd.f32 %v1749, %v2299
      %v2554 = vadd.f32 %v1752, %v2302
      %v2555 = vadd.f32 %v1757, %v2307
      %v2556 = vadd.f32 %v1760, %v2310
      %v2557 = vadd.f32 %v1765, %v2315
      %v2558 = vadd.f32 %v1768, %v2318
      %v2559 = vadd.f32 %v1773, %v2323
      %v2560 = vadd.f32 %v1776, %v2326
      %v2561 = vadd.f32 %v1781, %v2331
      %v2562 = vadd.f32 %v1784, %v2334
      %v2563 = vadd.f32 %v1789, %v2339
      %v2564 = vadd.f32 %v1792, %v2342
      %v2565 = vadd.f32 %v1797, %v2347
      %v2566 = vadd.f32 %v1800, %v2350
      %v2567 = vadd.f32 %v1805, %v2355
      %v2568 = vadd.f32 %v1808, %v2358
      %v2569 = vadd.f32 %v1813, %v2363
      %v2570 = vadd.f32 %v1816, %v2366
      %v2571 = vadd.f32 %v1821, %v2371
      %v2572 = vadd.f32 %v1824, %v2374
      %v2573 = vadd.f32 %v1829, %v2379
      %v2574 = vadd.f32 %v1832, %v2382
      %v2575 = vadd.f32 %v1837, %v2387
      %v2576 = vadd.f32 %v1840, %v2390
      %v2577 = vadd.f32 %v1845, %v2395
      %v2578 = vadd.f32 %v1848, %v2398
      %v2579 = vadd.f32 %v1853, %v2403
      %v2580 = vadd.f32 %v1856, %v2406
      %v2581 = vadd.f32 %v1861, %v2411
      %v2582 = vadd.f32 %v1864, %v2414
      %v2583 = vadd.f32 %v1869, %v2419
      %v2584 = vadd.f32 %v1872, %v2422
      %v2585 = vadd.f32 %v1877, %v2427
      %v2586 = vadd.f32 %v1880, %v2430
      %v2587 = vadd.f32 %v1885, %v2435
      %v2588 = vadd.f32 %v1888, %v2438
      %v2589 = vadd.f32 %v1893, %v2443
      %v2590 = vadd.f32 %v1896, %v2446
      %v2591 = vadd.f32 %v1901, %v2451
      %v2592 = vadd.f32 %v1904, %v2454
      %v2593 = vadd.f32 %v1909, %v2459
      %v2594 = vadd.f32 %v1912, %v2462
      %v2595 = vadd.f32 %v1917, %v2467
      %v2596 = vadd.f32 %v1920, %v2470
      %v2597 = vadd.f32 %v1925, %v2475
      %v2598 = vadd.f32 %v1928, %v2478
      %v2599 = vadd.f32 %v1933, %v2483
      %v2600 = vadd.f32 %v1936, %v2486
      %v2601 = vadd.f32 %v1941, %v2491
      %v2602 = vadd.f32 %v1944, %v2494
      %v2603 = vadd.f32 %v1949, %v2499
      %v2604 = vadd.f32 %v1952, %v2502
      %v2605 = vadd.f32 %v1957, %v2507
      %v2606 = vadd.f32 %v1960, %v2510
      %v2607 = vadd.f32 %v1965, %v2515
      %v2608 = vadd.f32 %v1968, %v2518
      %v2609 = vadd.f32 %v1973, %v2523
      %v2610 = vadd.f32 %v1976, %v2526
      %v2611 = vadd.f32 %v1981, %v2531
      %v2612 = vadd.f32 %v1984, %v2534
      %v2613 = vadd.f32 %v1989, %v2539
      %v2614 = vadd.f32 %v1992, %v2542
      %v2615 = vadd.f32 %v1997, %v2547
      %v2616 = vadd.f32 %v2000, %v2550
      %s2617 = scalar_lea.vmem %s2, 12
      %v2618 = vld [vmem:[%s2617] sm:$0x7]
      %v2683 = vunpack.c.l.b16 %v707
      %v2684 = vunpack.c.l.b16 %v708
      %v2685 = vunpack.c.l.b16 %v709
      %v2686 = vunpack.c.l.b16 %v710
      %v2687 = vunpack.c.l.b16 %v711
      %v2688 = vunpack.c.l.b16 %v712
      %v2689 = vunpack.c.l.b16 %v713
      %v2690 = vunpack.c.l.b16 %v714
      %v2691 = vunpack.c.l.b16 %v715
      %v2692 = vunpack.c.l.b16 %v716
      %v2693 = vunpack.c.l.b16 %v717
      %v2694 = vunpack.c.l.b16 %v718
      %v2695 = vunpack.c.l.b16 %v719
      %v2696 = vunpack.c.l.b16 %v720
      %v2697 = vunpack.c.l.b16 %v721
      %v2698 = vunpack.c.l.b16 %v722
      %v2699 = vunpack.c.l.b16 %v723
      %v2700 = vunpack.c.l.b16 %v724
      %v2701 = vunpack.c.l.b16 %v725
      %v2702 = vunpack.c.l.b16 %v726
      %v2703 = vunpack.c.l.b16 %v727
      %v2704 = vunpack.c.l.b16 %v728
      %v2705 = vunpack.c.l.b16 %v729
      %v2706 = vunpack.c.l.b16 %v730
      %v2707 = vunpack.c.l.b16 %v731
      %v2708 = vunpack.c.l.b16 %v732
      %v2709 = vunpack.c.l.b16 %v733
      %v2710 = vunpack.c.l.b16 %v734
      %v2711 = vunpack.c.l.b16 %v735
      %v2712 = vunpack.c.l.b16 %v736
      %v2713 = vunpack.c.l.b16 %v737
      %v2714 = vunpack.c.l.b16 %v738
      %v2715 = vunpack.c.l.b16 %v739
      %v2716 = vunpack.c.l.b16 %v740
      %v2717 = vunpack.c.l.b16 %v741
      %v2718 = vunpack.c.l.b16 %v742
      %v2719 = vunpack.c.l.b16 %v743
      %v2720 = vunpack.c.l.b16 %v744
      %v2721 = vunpack.c.l.b16 %v745
      %v2722 = vunpack.c.l.b16 %v746
      %v2723 = vunpack.c.l.b16 %v747
      %v2724 = vunpack.c.l.b16 %v748
      %v2725 = vunpack.c.l.b16 %v749
      %v2726 = vunpack.c.l.b16 %v750
      %v2727 = vunpack.c.l.b16 %v751
      %v2728 = vunpack.c.l.b16 %v752
      %v2729 = vunpack.c.l.b16 %v753
      %v2730 = vunpack.c.l.b16 %v754
      %v2731 = vunpack.c.l.b16 %v755
      %v2732 = vunpack.c.l.b16 %v756
      %v2733 = vunpack.c.l.b16 %v757
      %v2734 = vunpack.c.l.b16 %v758
      %v2735 = vunpack.c.l.b16 %v759
      %v2736 = vunpack.c.l.b16 %v760
      %v2737 = vunpack.c.l.b16 %v761
      %v2738 = vunpack.c.l.b16 %v762
      %v2739 = vunpack.c.l.b16 %v763
      %v2740 = vunpack.c.l.b16 %v764
      %v2741 = vunpack.c.l.b16 %v765
      %v2742 = vunpack.c.l.b16 %v766
      %v2743 = vunpack.c.l.b16 %v767
      %v2744 = vunpack.c.l.b16 %v768
      %v2745 = vunpack.c.l.b16 %v769
      %v2746 = vunpack.c.l.b16 %v770
      %v2747 = vpack.c.b16 %v2684, %v2683
      %v2748 = vpack.c.b16 %v2686, %v2685
      %v2749 = vpack.c.b16 %v2688, %v2687
      %v2750 = vpack.c.b16 %v2690, %v2689
      %v2751 = vpack.c.b16 %v2692, %v2691
      %v2752 = vpack.c.b16 %v2694, %v2693
      %v2753 = vpack.c.b16 %v2696, %v2695
      %v2754 = vpack.c.b16 %v2698, %v2697
      %v2755 = vpack.c.b16 %v2700, %v2699
      %v2756 = vpack.c.b16 %v2702, %v2701
      %v2757 = vpack.c.b16 %v2704, %v2703
      %v2758 = vpack.c.b16 %v2706, %v2705
      %v2759 = vpack.c.b16 %v2708, %v2707
      %v2760 = vpack.c.b16 %v2710, %v2709
      %v2761 = vpack.c.b16 %v2712, %v2711
      %v2762 = vpack.c.b16 %v2714, %v2713
      %v2763 = vpack.c.b16 %v2716, %v2715
      %v2764 = vpack.c.b16 %v2718, %v2717
      %v2765 = vpack.c.b16 %v2720, %v2719
      %v2766 = vpack.c.b16 %v2722, %v2721
      %v2767 = vpack.c.b16 %v2724, %v2723
      %v2768 = vpack.c.b16 %v2726, %v2725
      %v2769 = vpack.c.b16 %v2728, %v2727
      %v2770 = vpack.c.b16 %v2730, %v2729
      %v2771 = vpack.c.b16 %v2732, %v2731
      %v2772 = vpack.c.b16 %v2734, %v2733
      %v2773 = vpack.c.b16 %v2736, %v2735
      %v2774 = vpack.c.b16 %v2738, %v2737
      %v2775 = vpack.c.b16 %v2740, %v2739
      %v2776 = vpack.c.b16 %v2742, %v2741
      %v2777 = vpack.c.b16 %v2744, %v2743
      %v2778 = vpack.c.b16 %v2746, %v2745
      %v2780 = vsel %vm1062, %v2747, 0
      %v2783 = vsel %vm1062, %v2748, 0
      %v2786 = vsel %vm1062, %v2749, 0
      %v2789 = vsel %vm1062, %v2750, 0
      %v2792 = vsel %vm1062, %v2751, 0
      %v2795 = vsel %vm1062, %v2752, 0
      %v2798 = vsel %vm1062, %v2753, 0
      %v2801 = vsel %vm1062, %v2754, 0
      %v2804 = vsel %vm1062, %v2755, 0
      %v2807 = vsel %vm1062, %v2756, 0
      %v2810 = vsel %vm1062, %v2757, 0
      %v2813 = vsel %vm1062, %v2758, 0
      %v2816 = vsel %vm1062, %v2759, 0
      %v2819 = vsel %vm1062, %v2760, 0
      %v2822 = vsel %vm1062, %v2761, 0
      %v2825 = vsel %vm1062, %v2762, 0
      %v2828 = vsel %vm1062, %v2763, 0
      %v2831 = vsel %vm1062, %v2764, 0
      %v2834 = vsel %vm1062, %v2765, 0
      %v2837 = vsel %vm1062, %v2766, 0
      %v2840 = vsel %vm1062, %v2767, 0
      %v2843 = vsel %vm1062, %v2768, 0
      %v2846 = vsel %vm1062, %v2769, 0
      %v2849 = vsel %vm1062, %v2770, 0
      %v2852 = vsel %vm1062, %v2771, 0
      %v2855 = vsel %vm1062, %v2772, 0
      %v2858 = vsel %vm1062, %v2773, 0
      %v2861 = vsel %vm1062, %v2774, 0
      %v2864 = vsel %vm1062, %v2775, 0
      %v2867 = vsel %vm1062, %v2776, 0
      %v2870 = vsel %vm1062, %v2777, 0
      %v2873 = vsel %vm1062, %v2778, 0
      %v2876 = vand.u32 %v2618, %v1162
      %2878 = vmatprep.subr.bf16.mxu0 0
      %2879 = vmatpush1.bf16.msra.mxu0 0
      %2880 = vmatprep.subr.bf16.mxu0 0
      %2881 = vmatpush1.bf16.msra.mxu0 0
      %2882 = vmatprep.subr.bf16.mxu0 0
      %2883 = vmatpush1.bf16.msra.mxu0 0
      %2884 = vmatprep.subr.bf16.mxu0 0
      %2885 = vmatpush1.bf16.msra.mxu0 0
      %2886 = vmatprep.subr.bf16.mxu0 0
      %2887 = vmatpush1.bf16.msra.mxu0 0
      %2888 = vmatprep.subr.bf16.mxu0 0
      %2889 = vmatpush1.bf16.msra.mxu0 0
      %2890 = vmatprep.subr.bf16.mxu0 0
      %2891 = vmatpush1.bf16.msra.mxu0 0
      %2892 = vmatprep.subr.bf16.mxu0 0
      %2893 = vmatpush1.bf16.msra.mxu0 %v2876
      %2894 = vmatprep.subr.bf16.mxu0 0
      %2895 = vmatpush2.bf16.msra.mxu0 0
      %2896 = vmatprep.subr.bf16.mxu0 0
      %2897 = vmatpush2.bf16.msra.mxu0 0
      %2898 = vmatprep.subr.bf16.mxu0 0
      %2899 = vmatpush2.bf16.msra.mxu0 0
      %2900 = vmatprep.subr.bf16.mxu0 0
      %2901 = vmatpush2.bf16.msra.mxu0 0
      %2902 = vmatprep.subr.bf16.mxu0 0
      %2903 = vmatpush2.bf16.msra.mxu0 0
      %2904 = vmatprep.subr.bf16.mxu0 0
      %2905 = vmatpush2.bf16.msra.mxu0 0
      %2906 = vmatprep.subr.bf16.mxu0 0
      %2907 = vmatpush2.bf16.msra.mxu0 0
      %2908 = vmatprep.subr.bf16.mxu0 0
      %2909 = vmatpush2.bf16.msra.mxu0 0
      %2910 = vmatprep.mubr.bf16.mxu0 0
      %2911 = vmatmul.mubr.bf16.gmra.mxu0 %v2780
      %v2912 = vpop.f32.mrf.mxu0
      %v2913 = vadd.f32 0.0, %v2912
      %v2914 = vpop.f32.mrf.mxu0
      %v2915 = vpop.f32.mrf.mxu0
      %v2916 = vadd.f32 0.0, %v2915
      %v2917 = vpop.f32.mrf.mxu0
      %2918 = vmatprep.mubr.bf16.mxu0 0
      %2919 = vmatmul.mubr.bf16.gmra.mxu0 %v2783
      %v2920 = vpop.f32.mrf.mxu0
      %v2921 = vadd.f32 0.0, %v2920
      %v2922 = vpop.f32.mrf.mxu0
      %v2923 = vpop.f32.mrf.mxu0
      %v2924 = vadd.f32 0.0, %v2923
      %v2925 = vpop.f32.mrf.mxu0
      %2926 = vmatprep.mubr.bf16.mxu0 0
      %2927 = vmatmul.mubr.bf16.gmra.mxu0 %v2786
      %v2928 = vpop.f32.mrf.mxu0
      %v2929 = vadd.f32 0.0, %v2928
      %v2930 = vpop.f32.mrf.mxu0
      %v2931 = vpop.f32.mrf.mxu0
      %v2932 = vadd.f32 0.0, %v2931
      %v2933 = vpop.f32.mrf.mxu0
      %2934 = vmatprep.mubr.bf16.mxu0 0
      %2935 = vmatmul.mubr.bf16.gmra.mxu0 %v2789
      %v2936 = vpop.f32.mrf.mxu0
      %v2937 = vadd.f32 0.0, %v2936
      %v2938 = vpop.f32.mrf.mxu0
      %v2939 = vpop.f32.mrf.mxu0
      %v2940 = vadd.f32 0.0, %v2939
      %v2941 = vpop.f32.mrf.mxu0
      %2942 = vmatprep.mubr.bf16.mxu0 0
      %2943 = vmatmul.mubr.bf16.gmra.mxu0 %v2792
      %v2944 = vpop.f32.mrf.mxu0
      %v2945 = vadd.f32 0.0, %v2944
      %v2946 = vpop.f32.mrf.mxu0
      %v2947 = vpop.f32.mrf.mxu0
      %v2948 = vadd.f32 0.0, %v2947
      %v2949 = vpop.f32.mrf.mxu0
      %2950 = vmatprep.mubr.bf16.mxu0 0
      %2951 = vmatmul.mubr.bf16.gmra.mxu0 %v2795
      %v2952 = vpop.f32.mrf.mxu0
      %v2953 = vadd.f32 0.0, %v2952
      %v2954 = vpop.f32.mrf.mxu0
      %v2955 = vpop.f32.mrf.mxu0
      %v2956 = vadd.f32 0.0, %v2955
      %v2957 = vpop.f32.mrf.mxu0
      %2958 = vmatprep.mubr.bf16.mxu0 0
      %2959 = vmatmul.mubr.bf16.gmra.mxu0 %v2798
      %v2960 = vpop.f32.mrf.mxu0
      %v2961 = vadd.f32 0.0, %v2960
      %v2962 = vpop.f32.mrf.mxu0
      %v2963 = vpop.f32.mrf.mxu0
      %v2964 = vadd.f32 0.0, %v2963
      %v2965 = vpop.f32.mrf.mxu0
      %2966 = vmatprep.mubr.bf16.mxu0 0
      %2967 = vmatmul.mubr.bf16.gmra.mxu0 %v2801
      %v2968 = vpop.f32.mrf.mxu0
      %v2969 = vadd.f32 0.0, %v2968
      %v2970 = vpop.f32.mrf.mxu0
      %v2971 = vpop.f32.mrf.mxu0
      %v2972 = vadd.f32 0.0, %v2971
      %v2973 = vpop.f32.mrf.mxu0
      %2974 = vmatprep.mubr.bf16.mxu0 0
      %2975 = vmatmul.mubr.bf16.gmra.mxu0 %v2804
      %v2976 = vpop.f32.mrf.mxu0
      %v2977 = vadd.f32 0.0, %v2976
      %v2978 = vpop.f32.mrf.mxu0
      %v2979 = vpop.f32.mrf.mxu0
      %v2980 = vadd.f32 0.0, %v2979
      %v2981 = vpop.f32.mrf.mxu0
      %2982 = vmatprep.mubr.bf16.mxu0 0
      %2983 = vmatmul.mubr.bf16.gmra.mxu0 %v2807
      %v2984 = vpop.f32.mrf.mxu0
      %v2985 = vadd.f32 0.0, %v2984
      %v2986 = vpop.f32.mrf.mxu0
      %v2987 = vpop.f32.mrf.mxu0
      %v2988 = vadd.f32 0.0, %v2987
      %v2989 = vpop.f32.mrf.mxu0
      %2990 = vmatprep.mubr.bf16.mxu0 0
      %2991 = vmatmul.mubr.bf16.gmra.mxu0 %v2810
      %v2992 = vpop.f32.mrf.mxu0
      %v2993 = vadd.f32 0.0, %v2992
      %v2994 = vpop.f32.mrf.mxu0
      %v2995 = vpop.f32.mrf.mxu0
      %v2996 = vadd.f32 0.0, %v2995
      %v2997 = vpop.f32.mrf.mxu0
      %2998 = vmatprep.mubr.bf16.mxu0 0
      %2999 = vmatmul.mubr.bf16.gmra.mxu0 %v2813
      %v3000 = vpop.f32.mrf.mxu0
      %v3001 = vadd.f32 0.0, %v3000
      %v3002 = vpop.f32.mrf.mxu0
      %v3003 = vpop.f32.mrf.mxu0
      %v3004 = vadd.f32 0.0, %v3003
      %v3005 = vpop.f32.mrf.mxu0
      %3006 = vmatprep.mubr.bf16.mxu0 0
      %3007 = vmatmul.mubr.bf16.gmra.mxu0 %v2816
      %v3008 = vpop.f32.mrf.mxu0
      %v3009 = vadd.f32 0.0, %v3008
      %v3010 = vpop.f32.mrf.mxu0
      %v3011 = vpop.f32.mrf.mxu0
      %v3012 = vadd.f32 0.0, %v3011
      %v3013 = vpop.f32.mrf.mxu0
      %3014 = vmatprep.mubr.bf16.mxu0 0
      %3015 = vmatmul.mubr.bf16.gmra.mxu0 %v2819
      %v3016 = vpop.f32.mrf.mxu0
      %v3017 = vadd.f32 0.0, %v3016
      %v3018 = vpop.f32.mrf.mxu0
      %v3019 = vpop.f32.mrf.mxu0
      %v3020 = vadd.f32 0.0, %v3019
      %v3021 = vpop.f32.mrf.mxu0
      %3022 = vmatprep.mubr.bf16.mxu0 0
      %3023 = vmatmul.mubr.bf16.gmra.mxu0 %v2822
      %v3024 = vpop.f32.mrf.mxu0
      %v3025 = vadd.f32 0.0, %v3024
      %v3026 = vpop.f32.mrf.mxu0
      %v3027 = vpop.f32.mrf.mxu0
      %v3028 = vadd.f32 0.0, %v3027
      %v3029 = vpop.f32.mrf.mxu0
      %3030 = vmatprep.mubr.bf16.mxu0 0
      %3031 = vmatmul.mubr.bf16.gmra.mxu0 %v2825
      %v3032 = vpop.f32.mrf.mxu0
      %v3033 = vadd.f32 0.0, %v3032
      %v3034 = vpop.f32.mrf.mxu0
      %v3035 = vpop.f32.mrf.mxu0
      %v3036 = vadd.f32 0.0, %v3035
      %v3037 = vpop.f32.mrf.mxu0
      %3038 = vmatprep.mubr.bf16.mxu0 0
      %3039 = vmatmul.mubr.bf16.gmra.mxu0 %v2828
      %v3040 = vpop.f32.mrf.mxu0
      %v3041 = vadd.f32 0.0, %v3040
      %v3042 = vpop.f32.mrf.mxu0
      %v3043 = vpop.f32.mrf.mxu0
      %v3044 = vadd.f32 0.0, %v3043
      %v3045 = vpop.f32.mrf.mxu0
      %3046 = vmatprep.mubr.bf16.mxu0 0
      %3047 = vmatmul.mubr.bf16.gmra.mxu0 %v2831
      %v3048 = vpop.f32.mrf.mxu0
      %v3049 = vadd.f32 0.0, %v3048
      %v3050 = vpop.f32.mrf.mxu0
      %v3051 = vpop.f32.mrf.mxu0
      %v3052 = vadd.f32 0.0, %v3051
      %v3053 = vpop.f32.mrf.mxu0
      %3054 = vmatprep.mubr.bf16.mxu0 0
      %3055 = vmatmul.mubr.bf16.gmra.mxu0 %v2834
      %v3056 = vpop.f32.mrf.mxu0
      %v3057 = vadd.f32 0.0, %v3056
      %v3058 = vpop.f32.mrf.mxu0
      %v3059 = vpop.f32.mrf.mxu0
      %v3060 = vadd.f32 0.0, %v3059
      %v3061 = vpop.f32.mrf.mxu0
      %3062 = vmatprep.mubr.bf16.mxu0 0
      %3063 = vmatmul.mubr.bf16.gmra.mxu0 %v2837
      %v3064 = vpop.f32.mrf.mxu0
      %v3065 = vadd.f32 0.0, %v3064
      %v3066 = vpop.f32.mrf.mxu0
      %v3067 = vpop.f32.mrf.mxu0
      %v3068 = vadd.f32 0.0, %v3067
      %v3069 = vpop.f32.mrf.mxu0
      %3070 = vmatprep.mubr.bf16.mxu0 0
      %3071 = vmatmul.mubr.bf16.gmra.mxu0 %v2840
      %v3072 = vpop.f32.mrf.mxu0
      %v3073 = vadd.f32 0.0, %v3072
      %v3074 = vpop.f32.mrf.mxu0
      %v3075 = vpop.f32.mrf.mxu0
      %v3076 = vadd.f32 0.0, %v3075
      %v3077 = vpop.f32.mrf.mxu0
      %3078 = vmatprep.mubr.bf16.mxu0 0
      %3079 = vmatmul.mubr.bf16.gmra.mxu0 %v2843
      %v3080 = vpop.f32.mrf.mxu0
      %v3081 = vadd.f32 0.0, %v3080
      %v3082 = vpop.f32.mrf.mxu0
      %v3083 = vpop.f32.mrf.mxu0
      %v3084 = vadd.f32 0.0, %v3083
      %v3085 = vpop.f32.mrf.mxu0
      %3086 = vmatprep.mubr.bf16.mxu0 0
      %3087 = vmatmul.mubr.bf16.gmra.mxu0 %v2846
      %v3088 = vpop.f32.mrf.mxu0
      %v3089 = vadd.f32 0.0, %v3088
      %v3090 = vpop.f32.mrf.mxu0
      %v3091 = vpop.f32.mrf.mxu0
      %v3092 = vadd.f32 0.0, %v3091
      %v3093 = vpop.f32.mrf.mxu0
      %3094 = vmatprep.mubr.bf16.mxu0 0
      %3095 = vmatmul.mubr.bf16.gmra.mxu0 %v2849
      %v3096 = vpop.f32.mrf.mxu0
      %v3097 = vadd.f32 0.0, %v3096
      %v3098 = vpop.f32.mrf.mxu0
      %v3099 = vpop.f32.mrf.mxu0
      %v3100 = vadd.f32 0.0, %v3099
      %v3101 = vpop.f32.mrf.mxu0
      %3102 = vmatprep.mubr.bf16.mxu0 0
      %3103 = vmatmul.mubr.bf16.gmra.mxu0 %v2852
      %v3104 = vpop.f32.mrf.mxu0
      %v3105 = vadd.f32 0.0, %v3104
      %v3106 = vpop.f32.mrf.mxu0
      %v3107 = vpop.f32.mrf.mxu0
      %v3108 = vadd.f32 0.0, %v3107
      %v3109 = vpop.f32.mrf.mxu0
      %3110 = vmatprep.mubr.bf16.mxu0 0
      %3111 = vmatmul.mubr.bf16.gmra.mxu0 %v2855
      %v3112 = vpop.f32.mrf.mxu0
      %v3113 = vadd.f32 0.0, %v3112
      %v3114 = vpop.f32.mrf.mxu0
      %v3115 = vpop.f32.mrf.mxu0
      %v3116 = vadd.f32 0.0, %v3115
      %v3117 = vpop.f32.mrf.mxu0
      %3118 = vmatprep.mubr.bf16.mxu0 0
      %3119 = vmatmul.mubr.bf16.gmra.mxu0 %v2858
      %v3120 = vpop.f32.mrf.mxu0
      %v3121 = vadd.f32 0.0, %v3120
      %v3122 = vpop.f32.mrf.mxu0
      %v3123 = vpop.f32.mrf.mxu0
      %v3124 = vadd.f32 0.0, %v3123
      %v3125 = vpop.f32.mrf.mxu0
      %3126 = vmatprep.mubr.bf16.mxu0 0
      %3127 = vmatmul.mubr.bf16.gmra.mxu0 %v2861
      %v3128 = vpop.f32.mrf.mxu0
      %v3129 = vadd.f32 0.0, %v3128
      %v3130 = vpop.f32.mrf.mxu0
      %v3131 = vpop.f32.mrf.mxu0
      %v3132 = vadd.f32 0.0, %v3131
      %v3133 = vpop.f32.mrf.mxu0
      %3134 = vmatprep.mubr.bf16.mxu0 0
      %3135 = vmatmul.mubr.bf16.gmra.mxu0 %v2864
      %v3136 = vpop.f32.mrf.mxu0
      %v3137 = vadd.f32 0.0, %v3136
      %v3138 = vpop.f32.mrf.mxu0
      %v3139 = vpop.f32.mrf.mxu0
      %v3140 = vadd.f32 0.0, %v3139
      %v3141 = vpop.f32.mrf.mxu0
      %3142 = vmatprep.mubr.bf16.mxu0 0
      %3143 = vmatmul.mubr.bf16.gmra.mxu0 %v2867
      %v3144 = vpop.f32.mrf.mxu0
      %v3145 = vadd.f32 0.0, %v3144
      %v3146 = vpop.f32.mrf.mxu0
      %v3147 = vpop.f32.mrf.mxu0
      %v3148 = vadd.f32 0.0, %v3147
      %v3149 = vpop.f32.mrf.mxu0
      %3150 = vmatprep.mubr.bf16.mxu0 0
      %3151 = vmatmul.mubr.bf16.gmra.mxu0 %v2870
      %v3152 = vpop.f32.mrf.mxu0
      %v3153 = vadd.f32 0.0, %v3152
      %v3154 = vpop.f32.mrf.mxu0
      %v3155 = vpop.f32.mrf.mxu0
      %v3156 = vadd.f32 0.0, %v3155
      %v3157 = vpop.f32.mrf.mxu0
      %3158 = vmatprep.mubr.bf16.mxu0 0
      %3159 = vmatmul.mubr.bf16.gmra.mxu0 %v2873
      %v3160 = vpop.f32.mrf.mxu0
      %v3161 = vadd.f32 0.0, %v3160
      %v3162 = vpop.f32.mrf.mxu0
      %v3163 = vpop.f32.mrf.mxu0
      %v3164 = vadd.f32 0.0, %v3163
      %v3165 = vpop.f32.mrf.mxu0
      %3166 = vdwg.mxu0
      %v3167 = vadd.f32 %v2553, %v2913
      %v3168 = vadd.f32 %v2554, %v2916
      %v3169 = vadd.f32 %v2555, %v2921
      %v3170 = vadd.f32 %v2556, %v2924
      %v3171 = vadd.f32 %v2557, %v2929
      %v3172 = vadd.f32 %v2558, %v2932
      %v3173 = vadd.f32 %v2559, %v2937
      %v3174 = vadd.f32 %v2560, %v2940
      %v3175 = vadd.f32 %v2561, %v2945
      %v3176 = vadd.f32 %v2562, %v2948
      %v3177 = vadd.f32 %v2563, %v2953
      %v3178 = vadd.f32 %v2564, %v2956
      %v3179 = vadd.f32 %v2565, %v2961
      %v3180 = vadd.f32 %v2566, %v2964
      %v3181 = vadd.f32 %v2567, %v2969
      %v3182 = vadd.f32 %v2568, %v2972
      %v3183 = vadd.f32 %v2569, %v2977
      %v3184 = vadd.f32 %v2570, %v2980
      %v3185 = vadd.f32 %v2571, %v2985
      %v3186 = vadd.f32 %v2572, %v2988
      %v3187 = vadd.f32 %v2573, %v2993
      %v3188 = vadd.f32 %v2574, %v2996
      %v3189 = vadd.f32 %v2575, %v3001
      %v3190 = vadd.f32 %v2576, %v3004
      %v3191 = vadd.f32 %v2577, %v3009
      %v3192 = vadd.f32 %v2578, %v3012
      %v3193 = vadd.f32 %v2579, %v3017
      %v3194 = vadd.f32 %v2580, %v3020
      %v3195 = vadd.f32 %v2581, %v3025
      %v3196 = vadd.f32 %v2582, %v3028
      %v3197 = vadd.f32 %v2583, %v3033
      %v3198 = vadd.f32 %v2584, %v3036
      %v3199 = vadd.f32 %v2585, %v3041
      %v3200 = vadd.f32 %v2586, %v3044
      %v3201 = vadd.f32 %v2587, %v3049
      %v3202 = vadd.f32 %v2588, %v3052
      %v3203 = vadd.f32 %v2589, %v3057
      %v3204 = vadd.f32 %v2590, %v3060
      %v3205 = vadd.f32 %v2591, %v3065
      %v3206 = vadd.f32 %v2592, %v3068
      %v3207 = vadd.f32 %v2593, %v3073
      %v3208 = vadd.f32 %v2594, %v3076
      %v3209 = vadd.f32 %v2595, %v3081
      %v3210 = vadd.f32 %v2596, %v3084
      %v3211 = vadd.f32 %v2597, %v3089
      %v3212 = vadd.f32 %v2598, %v3092
      %v3213 = vadd.f32 %v2599, %v3097
      %v3214 = vadd.f32 %v2600, %v3100
      %v3215 = vadd.f32 %v2601, %v3105
      %v3216 = vadd.f32 %v2602, %v3108
      %v3217 = vadd.f32 %v2603, %v3113
      %v3218 = vadd.f32 %v2604, %v3116
      %v3219 = vadd.f32 %v2605, %v3121
      %v3220 = vadd.f32 %v2606, %v3124
      %v3221 = vadd.f32 %v2607, %v3129
      %v3222 = vadd.f32 %v2608, %v3132
      %v3223 = vadd.f32 %v2609, %v3137
      %v3224 = vadd.f32 %v2610, %v3140
      %v3225 = vadd.f32 %v2611, %v3145
      %v3226 = vadd.f32 %v2612, %v3148
      %v3227 = vadd.f32 %v2613, %v3153
      %v3228 = vadd.f32 %v2614, %v3156
      %v3229 = vadd.f32 %v2615, %v3161
      %v3230 = vadd.f32 %v2616, %v3164
      %s3231 = scalar_lea.vmem %s2, 16
      %v3232 = vld [vmem:[%s3231] sm:$0x7]
      %v3297 = vunpack.c.l.b16 %v835
      %v3298 = vunpack.c.l.b16 %v836
      %v3299 = vunpack.c.l.b16 %v837
      %v3300 = vunpack.c.l.b16 %v838
      %v3301 = vunpack.c.l.b16 %v839
      %v3302 = vunpack.c.l.b16 %v840
      %v3303 = vunpack.c.l.b16 %v841
      %v3304 = vunpack.c.l.b16 %v842
      %v3305 = vunpack.c.l.b16 %v843
      %v3306 = vunpack.c.l.b16 %v844
      %v3307 = vunpack.c.l.b16 %v845
      %v3308 = vunpack.c.l.b16 %v846
      %v3309 = vunpack.c.l.b16 %v847
      %v3310 = vunpack.c.l.b16 %v848
      %v3311 = vunpack.c.l.b16 %v849
      %v3312 = vunpack.c.l.b16 %v850
      %v3313 = vunpack.c.l.b16 %v851
      %v3314 = vunpack.c.l.b16 %v852
      %v3315 = vunpack.c.l.b16 %v853
      %v3316 = vunpack.c.l.b16 %v854
      %v3317 = vunpack.c.l.b16 %v855
      %v3318 = vunpack.c.l.b16 %v856
      %v3319 = vunpack.c.l.b16 %v857
      %v3320 = vunpack.c.l.b16 %v858
      %v3321 = vunpack.c.l.b16 %v859
      %v3322 = vunpack.c.l.b16 %v860
      %v3323 = vunpack.c.l.b16 %v861
      %v3324 = vunpack.c.l.b16 %v862
      %v3325 = vunpack.c.l.b16 %v863
      %v3326 = vunpack.c.l.b16 %v864
      %v3327 = vunpack.c.l.b16 %v865
      %v3328 = vunpack.c.l.b16 %v866
      %v3329 = vunpack.c.l.b16 %v867
      %v3330 = vunpack.c.l.b16 %v868
      %v3331 = vunpack.c.l.b16 %v869
      %v3332 = vunpack.c.l.b16 %v870
      %v3333 = vunpack.c.l.b16 %v871
      %v3334 = vunpack.c.l.b16 %v872
      %v3335 = vunpack.c.l.b16 %v873
      %v3336 = vunpack.c.l.b16 %v874
      %v3337 = vunpack.c.l.b16 %v875
      %v3338 = vunpack.c.l.b16 %v876
      %v3339 = vunpack.c.l.b16 %v877
      %v3340 = vunpack.c.l.b16 %v878
      %v3341 = vunpack.c.l.b16 %v879
      %v3342 = vunpack.c.l.b16 %v880
      %v3343 = vunpack.c.l.b16 %v881
      %v3344 = vunpack.c.l.b16 %v882
      %v3345 = vunpack.c.l.b16 %v883
      %v3346 = vunpack.c.l.b16 %v884
      %v3347 = vunpack.c.l.b16 %v885
      %v3348 = vunpack.c.l.b16 %v886
      %v3349 = vunpack.c.l.b16 %v887
      %v3350 = vunpack.c.l.b16 %v888
      %v3351 = vunpack.c.l.b16 %v889
      %v3352 = vunpack.c.l.b16 %v890
      %v3353 = vunpack.c.l.b16 %v891
      %v3354 = vunpack.c.l.b16 %v892
      %v3355 = vunpack.c.l.b16 %v893
      %v3356 = vunpack.c.l.b16 %v894
      %v3357 = vunpack.c.l.b16 %v895
      %v3358 = vunpack.c.l.b16 %v896
      %v3359 = vunpack.c.l.b16 %v897
      %v3360 = vunpack.c.l.b16 %v898
      %v3361 = vpack.c.b16 %v3298, %v3297
      %v3362 = vpack.c.b16 %v3300, %v3299
      %v3363 = vpack.c.b16 %v3302, %v3301
      %v3364 = vpack.c.b16 %v3304, %v3303
      %v3365 = vpack.c.b16 %v3306, %v3305
      %v3366 = vpack.c.b16 %v3308, %v3307
      %v3367 = vpack.c.b16 %v3310, %v3309
      %v3368 = vpack.c.b16 %v3312, %v3311
      %v3369 = vpack.c.b16 %v3314, %v3313
      %v3370 = vpack.c.b16 %v3316, %v3315
      %v3371 = vpack.c.b16 %v3318, %v3317
      %v3372 = vpack.c.b16 %v3320, %v3319
      %v3373 = vpack.c.b16 %v3322, %v3321
      %v3374 = vpack.c.b16 %v3324, %v3323
      %v3375 = vpack.c.b16 %v3326, %v3325
      %v3376 = vpack.c.b16 %v3328, %v3327
      %v3377 = vpack.c.b16 %v3330, %v3329
      %v3378 = vpack.c.b16 %v3332, %v3331
      %v3379 = vpack.c.b16 %v3334, %v3333
      %v3380 = vpack.c.b16 %v3336, %v3335
      %v3381 = vpack.c.b16 %v3338, %v3337
      %v3382 = vpack.c.b16 %v3340, %v3339
      %v3383 = vpack.c.b16 %v3342, %v3341
      %v3384 = vpack.c.b16 %v3344, %v3343
      %v3385 = vpack.c.b16 %v3346, %v3345
      %v3386 = vpack.c.b16 %v3348, %v3347
      %v3387 = vpack.c.b16 %v3350, %v3349
      %v3388 = vpack.c.b16 %v3352, %v3351
      %v3389 = vpack.c.b16 %v3354, %v3353
      %v3390 = vpack.c.b16 %v3356, %v3355
      %v3391 = vpack.c.b16 %v3358, %v3357
      %v3392 = vpack.c.b16 %v3360, %v3359
      %v3394 = vsel %vm1062, %v3361, 0
      %v3397 = vsel %vm1062, %v3362, 0
      %v3400 = vsel %vm1062, %v3363, 0
      %v3403 = vsel %vm1062, %v3364, 0
      %v3406 = vsel %vm1062, %v3365, 0
      %v3409 = vsel %vm1062, %v3366, 0
      %v3412 = vsel %vm1062, %v3367, 0
      %v3415 = vsel %vm1062, %v3368, 0
      %v3418 = vsel %vm1062, %v3369, 0
      %v3421 = vsel %vm1062, %v3370, 0
      %v3424 = vsel %vm1062, %v3371, 0
      %v3427 = vsel %vm1062, %v3372, 0
      %v3430 = vsel %vm1062, %v3373, 0
      %v3433 = vsel %vm1062, %v3374, 0
      %v3436 = vsel %vm1062, %v3375, 0
      %v3439 = vsel %vm1062, %v3376, 0
      %v3442 = vsel %vm1062, %v3377, 0
      %v3445 = vsel %vm1062, %v3378, 0
      %v3448 = vsel %vm1062, %v3379, 0
      %v3451 = vsel %vm1062, %v3380, 0
      %v3454 = vsel %vm1062, %v3381, 0
      %v3457 = vsel %vm1062, %v3382, 0
      %v3460 = vsel %vm1062, %v3383, 0
      %v3463 = vsel %vm1062, %v3384, 0
      %v3466 = vsel %vm1062, %v3385, 0
      %v3469 = vsel %vm1062, %v3386, 0
      %v3472 = vsel %vm1062, %v3387, 0
      %v3475 = vsel %vm1062, %v3388, 0
      %v3478 = vsel %vm1062, %v3389, 0
      %v3481 = vsel %vm1062, %v3390, 0
      %v3484 = vsel %vm1062, %v3391, 0
      %v3487 = vsel %vm1062, %v3392, 0
      %v3490 = vand.u32 %v3232, %v1162
      %3492 = vmatprep.subr.bf16.mxu0 0
      %3493 = vmatpush1.bf16.msra.mxu0 0
      %3494 = vmatprep.subr.bf16.mxu0 0
      %3495 = vmatpush1.bf16.msra.mxu0 0
      %3496 = vmatprep.subr.bf16.mxu0 0
      %3497 = vmatpush1.bf16.msra.mxu0 0
      %3498 = vmatprep.subr.bf16.mxu0 0
      %3499 = vmatpush1.bf16.msra.mxu0 0
      %3500 = vmatprep.subr.bf16.mxu0 0
      %3501 = vmatpush1.bf16.msra.mxu0 0
      %3502 = vmatprep.subr.bf16.mxu0 0
      %3503 = vmatpush1.bf16.msra.mxu0 0
      %3504 = vmatprep.subr.bf16.mxu0 0
      %3505 = vmatpush1.bf16.msra.mxu0 0
      %3506 = vmatprep.subr.bf16.mxu0 0
      %3507 = vmatpush1.bf16.msra.mxu0 %v3490
      %3508 = vmatprep.subr.bf16.mxu0 0
      %3509 = vmatpush2.bf16.msra.mxu0 0
      %3510 = vmatprep.subr.bf16.mxu0 0
      %3511 = vmatpush2.bf16.msra.mxu0 0
      %3512 = vmatprep.subr.bf16.mxu0 0
      %3513 = vmatpush2.bf16.msra.mxu0 0
      %3514 = vmatprep.subr.bf16.mxu0 0
      %3515 = vmatpush2.bf16.msra.mxu0 0
      %3516 = vmatprep.subr.bf16.mxu0 0
      %3517 = vmatpush2.bf16.msra.mxu0 0
      %3518 = vmatprep.subr.bf16.mxu0 0
      %3519 = vmatpush2.bf16.msra.mxu0 0
      %3520 = vmatprep.subr.bf16.mxu0 0
      %3521 = vmatpush2.bf16.msra.mxu0 0
      %3522 = vmatprep.subr.bf16.mxu0 0
      %3523 = vmatpush2.bf16.msra.mxu0 0
      %3524 = vmatprep.mubr.bf16.mxu0 0
      %3525 = vmatmul.mubr.bf16.gmra.mxu0 %v3394
      %v3526 = vpop.f32.mrf.mxu0
      %v3527 = vadd.f32 0.0, %v3526
      %v3528 = vpop.f32.mrf.mxu0
      %v3529 = vpop.f32.mrf.mxu0
      %v3530 = vadd.f32 0.0, %v3529
      %v3531 = vpop.f32.mrf.mxu0
      %3532 = vmatprep.mubr.bf16.mxu0 0
      %3533 = vmatmul.mubr.bf16.gmra.mxu0 %v3397
      %v3534 = vpop.f32.mrf.mxu0
      %v3535 = vadd.f32 0.0, %v3534
      %v3536 = vpop.f32.mrf.mxu0
      %v3537 = vpop.f32.mrf.mxu0
      %v3538 = vadd.f32 0.0, %v3537
      %v3539 = vpop.f32.mrf.mxu0
      %3540 = vmatprep.mubr.bf16.mxu0 0
      %3541 = vmatmul.mubr.bf16.gmra.mxu0 %v3400
      %v3542 = vpop.f32.mrf.mxu0
      %v3543 = vadd.f32 0.0, %v3542
      %v3544 = vpop.f32.mrf.mxu0
      %v3545 = vpop.f32.mrf.mxu0
      %v3546 = vadd.f32 0.0, %v3545
      %v3547 = vpop.f32.mrf.mxu0
      %3548 = vmatprep.mubr.bf16.mxu0 0
      %3549 = vmatmul.mubr.bf16.gmra.mxu0 %v3403
      %v3550 = vpop.f32.mrf.mxu0
      %v3551 = vadd.f32 0.0, %v3550
      %v3552 = vpop.f32.mrf.mxu0
      %v3553 = vpop.f32.mrf.mxu0
      %v3554 = vadd.f32 0.0, %v3553
      %v3555 = vpop.f32.mrf.mxu0
      %3556 = vmatprep.mubr.bf16.mxu0 0
      %3557 = vmatmul.mubr.bf16.gmra.mxu0 %v3406
      %v3558 = vpop.f32.mrf.mxu0
      %v3559 = vadd.f32 0.0, %v3558
      %v3560 = vpop.f32.mrf.mxu0
      %v3561 = vpop.f32.mrf.mxu0
      %v3562 = vadd.f32 0.0, %v3561
      %v3563 = vpop.f32.mrf.mxu0
      %3564 = vmatprep.mubr.bf16.mxu0 0
      %3565 = vmatmul.mubr.bf16.gmra.mxu0 %v3409
      %v3566 = vpop.f32.mrf.mxu0
      %v3567 = vadd.f32 0.0, %v3566
      %v3568 = vpop.f32.mrf.mxu0
      %v3569 = vpop.f32.mrf.mxu0
      %v3570 = vadd.f32 0.0, %v3569
      %v3571 = vpop.f32.mrf.mxu0
      %3572 = vmatprep.mubr.bf16.mxu0 0
      %3573 = vmatmul.mubr.bf16.gmra.mxu0 %v3412
      %v3574 = vpop.f32.mrf.mxu0
      %v3575 = vadd.f32 0.0, %v3574
      %v3576 = vpop.f32.mrf.mxu0
      %v3577 = vpop.f32.mrf.mxu0
      %v3578 = vadd.f32 0.0, %v3577
      %v3579 = vpop.f32.mrf.mxu0
      %3580 = vmatprep.mubr.bf16.mxu0 0
      %3581 = vmatmul.mubr.bf16.gmra.mxu0 %v3415
      %v3582 = vpop.f32.mrf.mxu0
      %v3583 = vadd.f32 0.0, %v3582
      %v3584 = vpop.f32.mrf.mxu0
      %v3585 = vpop.f32.mrf.mxu0
      %v3586 = vadd.f32 0.0, %v3585
      %v3587 = vpop.f32.mrf.mxu0
      %3588 = vmatprep.mubr.bf16.mxu0 0
      %3589 = vmatmul.mubr.bf16.gmra.mxu0 %v3418
      %v3590 = vpop.f32.mrf.mxu0
      %v3591 = vadd.f32 0.0, %v3590
      %v3592 = vpop.f32.mrf.mxu0
      %v3593 = vpop.f32.mrf.mxu0
      %v3594 = vadd.f32 0.0, %v3593
      %v3595 = vpop.f32.mrf.mxu0
      %3596 = vmatprep.mubr.bf16.mxu0 0
      %3597 = vmatmul.mubr.bf16.gmra.mxu0 %v3421
      %v3598 = vpop.f32.mrf.mxu0
      %v3599 = vadd.f32 0.0, %v3598
      %v3600 = vpop.f32.mrf.mxu0
      %v3601 = vpop.f32.mrf.mxu0
      %v3602 = vadd.f32 0.0, %v3601
      %v3603 = vpop.f32.mrf.mxu0
      %3604 = vmatprep.mubr.bf16.mxu0 0
      %3605 = vmatmul.mubr.bf16.gmra.mxu0 %v3424
      %v3606 = vpop.f32.mrf.mxu0
      %v3607 = vadd.f32 0.0, %v3606
      %v3608 = vpop.f32.mrf.mxu0
      %v3609 = vpop.f32.mrf.mxu0
      %v3610 = vadd.f32 0.0, %v3609
      %v3611 = vpop.f32.mrf.mxu0
      %3612 = vmatprep.mubr.bf16.mxu0 0
      %3613 = vmatmul.mubr.bf16.gmra.mxu0 %v3427
      %v3614 = vpop.f32.mrf.mxu0
      %v3615 = vadd.f32 0.0, %v3614
      %v3616 = vpop.f32.mrf.mxu0
      %v3617 = vpop.f32.mrf.mxu0
      %v3618 = vadd.f32 0.0, %v3617
      %v3619 = vpop.f32.mrf.mxu0
      %3620 = vmatprep.mubr.bf16.mxu0 0
      %3621 = vmatmul.mubr.bf16.gmra.mxu0 %v3430
      %v3622 = vpop.f32.mrf.mxu0
      %v3623 = vadd.f32 0.0, %v3622
      %v3624 = vpop.f32.mrf.mxu0
      %v3625 = vpop.f32.mrf.mxu0
      %v3626 = vadd.f32 0.0, %v3625
      %v3627 = vpop.f32.mrf.mxu0
      %3628 = vmatprep.mubr.bf16.mxu0 0
      %3629 = vmatmul.mubr.bf16.gmra.mxu0 %v3433
      %v3630 = vpop.f32.mrf.mxu0
      %v3631 = vadd.f32 0.0, %v3630
      %v3632 = vpop.f32.mrf.mxu0
      %v3633 = vpop.f32.mrf.mxu0
      %v3634 = vadd.f32 0.0, %v3633
      %v3635 = vpop.f32.mrf.mxu0
      %3636 = vmatprep.mubr.bf16.mxu0 0
      %3637 = vmatmul.mubr.bf16.gmra.mxu0 %v3436
      %v3638 = vpop.f32.mrf.mxu0
      %v3639 = vadd.f32 0.0, %v3638
      %v3640 = vpop.f32.mrf.mxu0
      %v3641 = vpop.f32.mrf.mxu0
      %v3642 = vadd.f32 0.0, %v3641
      %v3643 = vpop.f32.mrf.mxu0
      %3644 = vmatprep.mubr.bf16.mxu0 0
      %3645 = vmatmul.mubr.bf16.gmra.mxu0 %v3439
      %v3646 = vpop.f32.mrf.mxu0
      %v3647 = vadd.f32 0.0, %v3646
      %v3648 = vpop.f32.mrf.mxu0
      %v3649 = vpop.f32.mrf.mxu0
      %v3650 = vadd.f32 0.0, %v3649
      %v3651 = vpop.f32.mrf.mxu0
      %3652 = vmatprep.mubr.bf16.mxu0 0
      %3653 = vmatmul.mubr.bf16.gmra.mxu0 %v3442
      %v3654 = vpop.f32.mrf.mxu0
      %v3655 = vadd.f32 0.0, %v3654
      %v3656 = vpop.f32.mrf.mxu0
      %v3657 = vpop.f32.mrf.mxu0
      %v3658 = vadd.f32 0.0, %v3657
      %v3659 = vpop.f32.mrf.mxu0
      %3660 = vmatprep.mubr.bf16.mxu0 0
      %3661 = vmatmul.mubr.bf16.gmra.mxu0 %v3445
      %v3662 = vpop.f32.mrf.mxu0
      %v3663 = vadd.f32 0.0, %v3662
      %v3664 = vpop.f32.mrf.mxu0
      %v3665 = vpop.f32.mrf.mxu0
      %v3666 = vadd.f32 0.0, %v3665
      %v3667 = vpop.f32.mrf.mxu0
      %3668 = vmatprep.mubr.bf16.mxu0 0
      %3669 = vmatmul.mubr.bf16.gmra.mxu0 %v3448
      %v3670 = vpop.f32.mrf.mxu0
      %v3671 = vadd.f32 0.0, %v3670
      %v3672 = vpop.f32.mrf.mxu0
      %v3673 = vpop.f32.mrf.mxu0
      %v3674 = vadd.f32 0.0, %v3673
      %v3675 = vpop.f32.mrf.mxu0
      %3676 = vmatprep.mubr.bf16.mxu0 0
      %3677 = vmatmul.mubr.bf16.gmra.mxu0 %v3451
      %v3678 = vpop.f32.mrf.mxu0
      %v3679 = vadd.f32 0.0, %v3678
      %v3680 = vpop.f32.mrf.mxu0
      %v3681 = vpop.f32.mrf.mxu0
      %v3682 = vadd.f32 0.0, %v3681
      %v3683 = vpop.f32.mrf.mxu0
      %3684 = vmatprep.mubr.bf16.mxu0 0
      %3685 = vmatmul.mubr.bf16.gmra.mxu0 %v3454
      %v3686 = vpop.f32.mrf.mxu0
      %v3687 = vadd.f32 0.0, %v3686
      %v3688 = vpop.f32.mrf.mxu0
      %v3689 = vpop.f32.mrf.mxu0
      %v3690 = vadd.f32 0.0, %v3689
      %v3691 = vpop.f32.mrf.mxu0
      %3692 = vmatprep.mubr.bf16.mxu0 0
      %3693 = vmatmul.mubr.bf16.gmra.mxu0 %v3457
      %v3694 = vpop.f32.mrf.mxu0
      %v3695 = vadd.f32 0.0, %v3694
      %v3696 = vpop.f32.mrf.mxu0
      %v3697 = vpop.f32.mrf.mxu0
      %v3698 = vadd.f32 0.0, %v3697
      %v3699 = vpop.f32.mrf.mxu0
      %3700 = vmatprep.mubr.bf16.mxu0 0
      %3701 = vmatmul.mubr.bf16.gmra.mxu0 %v3460
      %v3702 = vpop.f32.mrf.mxu0
      %v3703 = vadd.f32 0.0, %v3702
      %v3704 = vpop.f32.mrf.mxu0
      %v3705 = vpop.f32.mrf.mxu0
      %v3706 = vadd.f32 0.0, %v3705
      %v3707 = vpop.f32.mrf.mxu0
      %3708 = vmatprep.mubr.bf16.mxu0 0
      %3709 = vmatmul.mubr.bf16.gmra.mxu0 %v3463
      %v3710 = vpop.f32.mrf.mxu0
      %v3711 = vadd.f32 0.0, %v3710
      %v3712 = vpop.f32.mrf.mxu0
      %v3713 = vpop.f32.mrf.mxu0
      %v3714 = vadd.f32 0.0, %v3713
      %v3715 = vpop.f32.mrf.mxu0
      %3716 = vmatprep.mubr.bf16.mxu0 0
      %3717 = vmatmul.mubr.bf16.gmra.mxu0 %v3466
      %v3718 = vpop.f32.mrf.mxu0
      %v3719 = vadd.f32 0.0, %v3718
      %v3720 = vpop.f32.mrf.mxu0
      %v3721 = vpop.f32.mrf.mxu0
      %v3722 = vadd.f32 0.0, %v3721
      %v3723 = vpop.f32.mrf.mxu0
      %3724 = vmatprep.mubr.bf16.mxu0 0
      %3725 = vmatmul.mubr.bf16.gmra.mxu0 %v3469
      %v3726 = vpop.f32.mrf.mxu0
      %v3727 = vadd.f32 0.0, %v3726
      %v3728 = vpop.f32.mrf.mxu0
      %v3729 = vpop.f32.mrf.mxu0
      %v3730 = vadd.f32 0.0, %v3729
      %v3731 = vpop.f32.mrf.mxu0
      %3732 = vmatprep.mubr.bf16.mxu0 0
      %3733 = vmatmul.mubr.bf16.gmra.mxu0 %v3472
      %v3734 = vpop.f32.mrf.mxu0
      %v3735 = vadd.f32 0.0, %v3734
      %v3736 = vpop.f32.mrf.mxu0
      %v3737 = vpop.f32.mrf.mxu0
      %v3738 = vadd.f32 0.0, %v3737
      %v3739 = vpop.f32.mrf.mxu0
      %3740 = vmatprep.mubr.bf16.mxu0 0
      %3741 = vmatmul.mubr.bf16.gmra.mxu0 %v3475
      %v3742 = vpop.f32.mrf.mxu0
      %v3743 = vadd.f32 0.0, %v3742
      %v3744 = vpop.f32.mrf.mxu0
      %v3745 = vpop.f32.mrf.mxu0
      %v3746 = vadd.f32 0.0, %v3745
      %v3747 = vpop.f32.mrf.mxu0
      %3748 = vmatprep.mubr.bf16.mxu0 0
      %3749 = vmatmul.mubr.bf16.gmra.mxu0 %v3478
      %v3750 = vpop.f32.mrf.mxu0
      %v3751 = vadd.f32 0.0, %v3750
      %v3752 = vpop.f32.mrf.mxu0
      %v3753 = vpop.f32.mrf.mxu0
      %v3754 = vadd.f32 0.0, %v3753
      %v3755 = vpop.f32.mrf.mxu0
      %3756 = vmatprep.mubr.bf16.mxu0 0
      %3757 = vmatmul.mubr.bf16.gmra.mxu0 %v3481
      %v3758 = vpop.f32.mrf.mxu0
      %v3759 = vadd.f32 0.0, %v3758
      %v3760 = vpop.f32.mrf.mxu0
      %v3761 = vpop.f32.mrf.mxu0
      %v3762 = vadd.f32 0.0, %v3761
      %v3763 = vpop.f32.mrf.mxu0
      %3764 = vmatprep.mubr.bf16.mxu0 0
      %3765 = vmatmul.mubr.bf16.gmra.mxu0 %v3484
      %v3766 = vpop.f32.mrf.mxu0
      %v3767 = vadd.f32 0.0, %v3766
      %v3768 = vpop.f32.mrf.mxu0
      %v3769 = vpop.f32.mrf.mxu0
      %v3770 = vadd.f32 0.0, %v3769
      %v3771 = vpop.f32.mrf.mxu0
      %3772 = vmatprep.mubr.bf16.mxu0 0
      %3773 = vmatmul.mubr.bf16.gmra.mxu0 %v3487
      %v3774 = vpop.f32.mrf.mxu0
      %v3775 = vadd.f32 0.0, %v3774
      %v3776 = vpop.f32.mrf.mxu0
      %v3777 = vpop.f32.mrf.mxu0
      %v3778 = vadd.f32 0.0, %v3777
      %v3779 = vpop.f32.mrf.mxu0
      %3780 = vdwg.mxu0
      %v3781 = vadd.f32 %v3167, %v3527
      %v3782 = vadd.f32 %v3168, %v3530
      %v3783 = vadd.f32 %v3169, %v3535
      %v3784 = vadd.f32 %v3170, %v3538
      %v3785 = vadd.f32 %v3171, %v3543
      %v3786 = vadd.f32 %v3172, %v3546
      %v3787 = vadd.f32 %v3173, %v3551
      %v3788 = vadd.f32 %v3174, %v3554
      %v3789 = vadd.f32 %v3175, %v3559
      %v3790 = vadd.f32 %v3176, %v3562
      %v3791 = vadd.f32 %v3177, %v3567
      %v3792 = vadd.f32 %v3178, %v3570
      %v3793 = vadd.f32 %v3179, %v3575
      %v3794 = vadd.f32 %v3180, %v3578
      %v3795 = vadd.f32 %v3181, %v3583
      %v3796 = vadd.f32 %v3182, %v3586
      %v3797 = vadd.f32 %v3183, %v3591
      %v3798 = vadd.f32 %v3184, %v3594
      %v3799 = vadd.f32 %v3185, %v3599
      %v3800 = vadd.f32 %v3186, %v3602
      %v3801 = vadd.f32 %v3187, %v3607
      %v3802 = vadd.f32 %v3188, %v3610
      %v3803 = vadd.f32 %v3189, %v3615
      %v3804 = vadd.f32 %v3190, %v3618
      %v3805 = vadd.f32 %v3191, %v3623
      %v3806 = vadd.f32 %v3192, %v3626
      %v3807 = vadd.f32 %v3193, %v3631
      %v3808 = vadd.f32 %v3194, %v3634
      %v3809 = vadd.f32 %v3195, %v3639
      %v3810 = vadd.f32 %v3196, %v3642
      %v3811 = vadd.f32 %v3197, %v3647
      %v3812 = vadd.f32 %v3198, %v3650
      %v3813 = vadd.f32 %v3199, %v3655
      %v3814 = vadd.f32 %v3200, %v3658
      %v3815 = vadd.f32 %v3201, %v3663
      %v3816 = vadd.f32 %v3202, %v3666
      %v3817 = vadd.f32 %v3203, %v3671
      %v3818 = vadd.f32 %v3204, %v3674
      %v3819 = vadd.f32 %v3205, %v3679
      %v3820 = vadd.f32 %v3206, %v3682
      %v3821 = vadd.f32 %v3207, %v3687
      %v3822 = vadd.f32 %v3208, %v3690
      %v3823 = vadd.f32 %v3209, %v3695
      %v3824 = vadd.f32 %v3210, %v3698
      %v3825 = vadd.f32 %v3211, %v3703
      %v3826 = vadd.f32 %v3212, %v3706
      %v3827 = vadd.f32 %v3213, %v3711
      %v3828 = vadd.f32 %v3214, %v3714
      %v3829 = vadd.f32 %v3215, %v3719
      %v3830 = vadd.f32 %v3216, %v3722
      %v3831 = vadd.f32 %v3217, %v3727
      %v3832 = vadd.f32 %v3218, %v3730
      %v3833 = vadd.f32 %v3219, %v3735
      %v3834 = vadd.f32 %v3220, %v3738
      %v3835 = vadd.f32 %v3221, %v3743
      %v3836 = vadd.f32 %v3222, %v3746
      %v3837 = vadd.f32 %v3223, %v3751
      %v3838 = vadd.f32 %v3224, %v3754
      %v3839 = vadd.f32 %v3225, %v3759
      %v3840 = vadd.f32 %v3226, %v3762
      %v3841 = vadd.f32 %v3227, %v3767
      %v3842 = vadd.f32 %v3228, %v3770
      %v3843 = vadd.f32 %v3229, %v3775
      %v3844 = vadd.f32 %v3230, %v3778
      %v3845 = vmul.f32 %v3781, 2.0
      %v3846 = vmul.f32 %v3782, 2.0
      %v3847 = vmul.f32 %v3783, 2.0
      %v3848 = vmul.f32 %v3784, 2.0
      %v3849 = vmul.f32 %v3785, 2.0
      %v3850 = vmul.f32 %v3786, 2.0
      %v3851 = vmul.f32 %v3787, 2.0
      %v3852 = vmul.f32 %v3788, 2.0
      %v3853 = vmul.f32 %v3789, 2.0
      %v3854 = vmul.f32 %v3790, 2.0
      %v3855 = vmul.f32 %v3791, 2.0
      %v3856 = vmul.f32 %v3792, 2.0
      %v3857 = vmul.f32 %v3793, 2.0
      %v3858 = vmul.f32 %v3794, 2.0
      %v3859 = vmul.f32 %v3795, 2.0
      %v3860 = vmul.f32 %v3796, 2.0
      %v3861 = vmul.f32 %v3797, 2.0
      %v3862 = vmul.f32 %v3798, 2.0
      %v3863 = vmul.f32 %v3799, 2.0
      %v3864 = vmul.f32 %v3800, 2.0
      %v3865 = vmul.f32 %v3801, 2.0
      %v3866 = vmul.f32 %v3802, 2.0
      %v3867 = vmul.f32 %v3803, 2.0
      %v3868 = vmul.f32 %v3804, 2.0
      %v3869 = vmul.f32 %v3805, 2.0
      %v3870 = vmul.f32 %v3806, 2.0
      %v3871 = vmul.f32 %v3807, 2.0
      %v3872 = vmul.f32 %v3808, 2.0
      %v3873 = vmul.f32 %v3809, 2.0
      %v3874 = vmul.f32 %v3810, 2.0
      %v3875 = vmul.f32 %v3811, 2.0
      %v3876 = vmul.f32 %v3812, 2.0
      %v3877 = vmul.f32 %v3813, 2.0
      %v3878 = vmul.f32 %v3814, 2.0
      %v3879 = vmul.f32 %v3815, 2.0
      %v3880 = vmul.f32 %v3816, 2.0
      %v3881 = vmul.f32 %v3817, 2.0
      %v3882 = vmul.f32 %v3818, 2.0
      %v3883 = vmul.f32 %v3819, 2.0
      %v3884 = vmul.f32 %v3820, 2.0
      %v3885 = vmul.f32 %v3821, 2.0
      %v3886 = vmul.f32 %v3822, 2.0
      %v3887 = vmul.f32 %v3823, 2.0
      %v3888 = vmul.f32 %v3824, 2.0
      %v3889 = vmul.f32 %v3825, 2.0
      %v3890 = vmul.f32 %v3826, 2.0
      %v3891 = vmul.f32 %v3827, 2.0
      %v3892 = vmul.f32 %v3828, 2.0
      %v3893 = vmul.f32 %v3829, 2.0
      %v3894 = vmul.f32 %v3830, 2.0
      %v3895 = vmul.f32 %v3831, 2.0
      %v3896 = vmul.f32 %v3832, 2.0
      %v3897 = vmul.f32 %v3833, 2.0
      %v3898 = vmul.f32 %v3834, 2.0
      %v3899 = vmul.f32 %v3835, 2.0
      %v3900 = vmul.f32 %v3836, 2.0
      %v3901 = vmul.f32 %v3837, 2.0
      %v3902 = vmul.f32 %v3838, 2.0
      %v3903 = vmul.f32 %v3839, 2.0
      %v3904 = vmul.f32 %v3840, 2.0
      %v3905 = vmul.f32 %v3841, 2.0
      %v3906 = vmul.f32 %v3842, 2.0
      %v3907 = vmul.f32 %v3843, 2.0
      %v3908 = vmul.f32 %v3844, 2.0
      %v3909 = vmax.f32 %v3845, 0.0
      %v3910 = vmax.f32 %v3846, 0.0
      %v3911 = vmax.f32 %v3847, 0.0
      %v3912 = vmax.f32 %v3848, 0.0
      %v3913 = vmax.f32 %v3849, 0.0
      %v3914 = vmax.f32 %v3850, 0.0
      %v3915 = vmax.f32 %v3851, 0.0
      %v3916 = vmax.f32 %v3852, 0.0
      %v3917 = vmax.f32 %v3853, 0.0
      %v3918 = vmax.f32 %v3854, 0.0
      %v3919 = vmax.f32 %v3855, 0.0
      %v3920 = vmax.f32 %v3856, 0.0
      %v3921 = vmax.f32 %v3857, 0.0
      %v3922 = vmax.f32 %v3858, 0.0
      %v3923 = vmax.f32 %v3859, 0.0
      %v3924 = vmax.f32 %v3860, 0.0
      %v3925 = vmax.f32 %v3861, 0.0
      %v3926 = vmax.f32 %v3862, 0.0
      %v3927 = vmax.f32 %v3863, 0.0
      %v3928 = vmax.f32 %v3864, 0.0
      %v3929 = vmax.f32 %v3865, 0.0
      %v3930 = vmax.f32 %v3866, 0.0
      %v3931 = vmax.f32 %v3867, 0.0
      %v3932 = vmax.f32 %v3868, 0.0
      %v3933 = vmax.f32 %v3869, 0.0
      %v3934 = vmax.f32 %v3870, 0.0
      %v3935 = vmax.f32 %v3871, 0.0
      %v3936 = vmax.f32 %v3872, 0.0
      %v3937 = vmax.f32 %v3873, 0.0
      %v3938 = vmax.f32 %v3874, 0.0
      %v3939 = vmax.f32 %v3875, 0.0
      %v3940 = vmax.f32 %v3876, 0.0
      %v3941 = vmax.f32 %v3877, 0.0
      %v3942 = vmax.f32 %v3878, 0.0
      %v3943 = vmax.f32 %v3879, 0.0
      %v3944 = vmax.f32 %v3880, 0.0
      %v3945 = vmax.f32 %v3881, 0.0
      %v3946 = vmax.f32 %v3882, 0.0
      %v3947 = vmax.f32 %v3883, 0.0
      %v3948 = vmax.f32 %v3884, 0.0
      %v3949 = vmax.f32 %v3885, 0.0
      %v3950 = vmax.f32 %v3886, 0.0
      %v3951 = vmax.f32 %v3887, 0.0
      %v3952 = vmax.f32 %v3888, 0.0
      %v3953 = vmax.f32 %v3889, 0.0
      %v3954 = vmax.f32 %v3890, 0.0
      %v3955 = vmax.f32 %v3891, 0.0
      %v3956 = vmax.f32 %v3892, 0.0
      %v3957 = vmax.f32 %v3893, 0.0
      %v3958 = vmax.f32 %v3894, 0.0
      %v3959 = vmax.f32 %v3895, 0.0
      %v3960 = vmax.f32 %v3896, 0.0
      %v3961 = vmax.f32 %v3897, 0.0
      %v3962 = vmax.f32 %v3898, 0.0
      %v3963 = vmax.f32 %v3899, 0.0
      %v3964 = vmax.f32 %v3900, 0.0
      %v3965 = vmax.f32 %v3901, 0.0
      %v3966 = vmax.f32 %v3902, 0.0
      %v3967 = vmax.f32 %v3903, 0.0
      %v3968 = vmax.f32 %v3904, 0.0
      %v3969 = vmax.f32 %v3905, 0.0
      %v3970 = vmax.f32 %v3906, 0.0
      %v3971 = vmax.f32 %v3907, 0.0
      %v3972 = vmax.f32 %v3908, 0.0
      %vm3973 = vcmask 130048
      %3974 = vst.msk [vmem:[%s190] sm:$0xff] %vm3973, %v3909
      %3975 = vst.msk [vmem:[%s190 + $0x8] sm:$0xff] %vm3973, %v3910
      %3976 = vst.msk [vmem:[%s190 + $0x10] sm:$0xff] %vm3973, %v3911
      %3977 = vst.msk [vmem:[%s190 + $0x18] sm:$0xff] %vm3973, %v3912
      %3978 = vst.msk [vmem:[%s190 + $0x20] sm:$0xff] %vm3973, %v3913
      %3979 = vst.msk [vmem:[%s190 + $0x28] sm:$0xff] %vm3973, %v3914
      %3980 = vst.msk [vmem:[%s190 + $0x30] sm:$0xff] %vm3973, %v3915
      %3981 = vst.msk [vmem:[%s190 + $0x38] sm:$0xff] %vm3973, %v3916
      %3982 = vst.msk [vmem:[%s190 + $0x40] sm:$0xff] %vm3973, %v3917
      %3983 = vst.msk [vmem:[%s190 + $0x48] sm:$0xff] %vm3973, %v3918
      %3984 = vst.msk [vmem:[%s190 + $0x50] sm:$0xff] %vm3973, %v3919
      %3985 = vst.msk [vmem:[%s190 + $0x58] sm:$0xff] %vm3973, %v3920
      %3986 = vst.msk [vmem:[%s190 + $0x60] sm:$0xff] %vm3973, %v3921
      %3987 = vst.msk [vmem:[%s190 + $0x68] sm:$0xff] %vm3973, %v3922
      %3988 = vst.msk [vmem:[%s190 + $0x70] sm:$0xff] %vm3973, %v3923
      %3989 = vst.msk [vmem:[%s190 + $0x78] sm:$0xff] %vm3973, %v3924
      %3990 = vst.msk [vmem:[%s190 + $0x80] sm:$0xff] %vm3973, %v3925
      %3991 = vst.msk [vmem:[%s190 + $0x88] sm:$0xff] %vm3973, %v3926
      %3992 = vst.msk [vmem:[%s190 + $0x90] sm:$0xff] %vm3973, %v3927
      %3993 = vst.msk [vmem:[%s190 + $0x98] sm:$0xff] %vm3973, %v3928
      %3994 = vst.msk [vmem:[%s190 + $0xa0] sm:$0xff] %vm3973, %v3929
      %3995 = vst.msk [vmem:[%s190 + $0xa8] sm:$0xff] %vm3973, %v3930
      %3996 = vst.msk [vmem:[%s190 + $0xb0] sm:$0xff] %vm3973, %v3931
      %3997 = vst.msk [vmem:[%s190 + $0xb8] sm:$0xff] %vm3973, %v3932
      %3998 = vst.msk [vmem:[%s190 + $0xc0] sm:$0xff] %vm3973, %v3933
      %3999 = vst.msk [vmem:[%s190 + $0xc8] sm:$0xff] %vm3973, %v3934
      %4000 = vst.msk [vmem:[%s190 + $0xd0] sm:$0xff] %vm3973, %v3935
      %4001 = vst.msk [vmem:[%s190 + $0xd8] sm:$0xff] %vm3973, %v3936
      %4002 = vst.msk [vmem:[%s190 + $0xe0] sm:$0xff] %vm3973, %v3937
      %4003 = vst.msk [vmem:[%s190 + $0xe8] sm:$0xff] %vm3973, %v3938
      %4004 = vst.msk [vmem:[%s190 + $0xf0] sm:$0xff] %vm3973, %v3939
      %4005 = vst.msk [vmem:[%s190 + $0xf8] sm:$0xff] %vm3973, %v3940
      %4006 = vst.msk [vmem:[%s190 + $0x100] sm:$0xff] %vm3973, %v3941
      %4007 = vst.msk [vmem:[%s190 + $0x108] sm:$0xff] %vm3973, %v3942
      %4008 = vst.msk [vmem:[%s190 + $0x110] sm:$0xff] %vm3973, %v3943
      %4009 = vst.msk [vmem:[%s190 + $0x118] sm:$0xff] %vm3973, %v3944
      %4010 = vst.msk [vmem:[%s190 + $0x120] sm:$0xff] %vm3973, %v3945
      %4011 = vst.msk [vmem:[%s190 + $0x128] sm:$0xff] %vm3973, %v3946
      %4012 = vst.msk [vmem:[%s190 + $0x130] sm:$0xff] %vm3973, %v3947
      %4013 = vst.msk [vmem:[%s190 + $0x138] sm:$0xff] %vm3973, %v3948
      %4014 = vst.msk [vmem:[%s190 + $0x140] sm:$0xff] %vm3973, %v3949
      %4015 = vst.msk [vmem:[%s190 + $0x148] sm:$0xff] %vm3973, %v3950
      %4016 = vst.msk [vmem:[%s190 + $0x150] sm:$0xff] %vm3973, %v3951
      %4017 = vst.msk [vmem:[%s190 + $0x158] sm:$0xff] %vm3973, %v3952
      %4018 = vst.msk [vmem:[%s190 + $0x160] sm:$0xff] %vm3973, %v3953
      %4019 = vst.msk [vmem:[%s190 + $0x168] sm:$0xff] %vm3973, %v3954
      %4020 = vst.msk [vmem:[%s190 + $0x170] sm:$0xff] %vm3973, %v3955
      %4021 = vst.msk [vmem:[%s190 + $0x178] sm:$0xff] %vm3973, %v3956
      %4022 = vst.msk [vmem:[%s190 + $0x180] sm:$0xff] %vm3973, %v3957
      %4023 = vst.msk [vmem:[%s190 + $0x188] sm:$0xff] %vm3973, %v3958
      %4024 = vst.msk [vmem:[%s190 + $0x190] sm:$0xff] %vm3973, %v3959
      %4025 = vst.msk [vmem:[%s190 + $0x198] sm:$0xff] %vm3973, %v3960
      %4026 = vst.msk [vmem:[%s190 + $0x1a0] sm:$0xff] %vm3973, %v3961
      %4027 = vst.msk [vmem:[%s190 + $0x1a8] sm:$0xff] %vm3973, %v3962
      %4028 = vst.msk [vmem:[%s190 + $0x1b0] sm:$0xff] %vm3973, %v3963
      %4029 = vst.msk [vmem:[%s190 + $0x1b8] sm:$0xff] %vm3973, %v3964
      %4030 = vst.msk [vmem:[%s190 + $0x1c0] sm:$0xff] %vm3973, %v3965
      %4031 = vst.msk [vmem:[%s190 + $0x1c8] sm:$0xff] %vm3973, %v3966
      %4032 = vst.msk [vmem:[%s190 + $0x1d0] sm:$0xff] %vm3973, %v3967
      %4033 = vst.msk [vmem:[%s190 + $0x1d8] sm:$0xff] %vm3973, %v3968
      %4034 = vst.msk [vmem:[%s190 + $0x1e0] sm:$0xff] %vm3973, %v3969
      %4035 = vst.msk [vmem:[%s190 + $0x1e8] sm:$0xff] %vm3973, %v3970
      %4036 = vst.msk [vmem:[%s190 + $0x1f0] sm:$0xff] %vm3973, %v3971
      %4037 = vst.msk [vmem:[%s190 + $0x1f8] sm:$0xff] %vm3973, %v3972
      %p4038 = scmp.lt.s32.totalorder %s14, 1
      %s4039 = scalar_select %p4038, %s14, 1
      %s4040 = smul.addr %s4039, 64
      %s4041 = smul.addr %s4040, 8
      %s4042 = scalar_lea.vmem %s3, %s4041
      // Predicated region
      $region33: #{mesh_cnn_forward.3} parent=31 // pred_check
        %p4043 = pneg %p105
      $region34: #{mesh_cnn_forward.3} parent=31 // pred_check_branch
        %4045 = sbr.rel (%p4043) target = $region36
      $region35: #{mesh_cnn_forward.3} parent=31 // pred_region
        _
      $region36: #{mesh_cnn_forward.3} parent=31 // pred_fallthru
        _
    $region32: #{mesh_cnn_forward.3} parent=5 // pred_fallthru
      _
    %p4046 = scmp.le.s32.totalorder 2, %s9
    // Predicated region
    $region37: #{mesh_cnn_forward.3} parent=5 // pred_check
      %p4047 = pneg %p4046
    $region38: #{mesh_cnn_forward.3} parent=5 // pred_check_branch
      %4049 = sbr.rel (%p4047) target = $region40
    $region39: #{mesh_cnn_forward.3} parent=5 // pred_region
      %s4050 = ssub.s32 %s9, 2
      // Predicated region
      $region41: #{mesh_cnn_forward.3} parent=39 // pred_check
        %p4051 = pneg %p111
      $region42: #{mesh_cnn_forward.3} parent=39 // pred_check_branch
        %4053 = sbr.rel (%p4051) target = $region44
      $region43: #{mesh_cnn_forward.3} parent=39 // pred_region
        %p4054 = scmp.lt.s32.totalorder %s15, 1
        %s4055 = scalar_select %p4054, %s15, 1
        %s4056 = smul.addr %s4055, 64
        %s4057 = smul.addr %s4056, 8
        %s4058 = scalar_lea.vmem %s3, %s4057
      $region44: #{mesh_cnn_forward.3} parent=39 // pred_fallthru
        _
    $region40: #{mesh_cnn_forward.3} parent=5 // pred_fallthru
      _
  $region6: #{mesh_cnn_forward.3} parent=0 // loop_footer
    %s13 = sadd.s32 1, %s9
  $region7: #{mesh_cnn_forward.3} parent=0 // loop_footer_branch
    %8 = sbr.rel target = $region3
  $region8: #{mesh_cnn_forward.3} parent=0 // loop_exit
    _

// kernel: mesh_cnn_forward.4
$region0: #{mesh_cnn_forward.4}
  #allocation0 [shape = 'u32[]', space=smem, size = 0x4, offset = 0x4, fixed_abs, tag = 'smem constant byte address 0x4 - core index']
  #allocation1 [shape = 'u32[144,128]{1,0:T(1,128)}', space=vmem, size = 0x12000, scoped, tag = 'internal scratch']
  %s0 = inlined_call_operand.vmem [shape: bf16[2,384,16], index: 0, kind: input, shape index: {}]
  %s1 = inlined_call_operand.vmem [shape: bf16[2,4,384,16], index: 1, kind: input, shape index: {}]
  %s2 = inlined_call_operand.vmem [shape: bf16[5,16,32], index: 2, kind: input, shape index: {}]
  %s3 = inlined_call_operand.vmem [shape: f32[2,384,32], index: 3, kind: output, shape index: {}]
  %s4 = sld [smem:[#allocation0]]
  $region45: #{mesh_cnn_forward.4} parent=0
    _
  %s6 = ssub.s32 1, %s4
  %s7 = scalar_select 0, %s6, %s4
  loop: start=0, step=1, limit=4
  $region2: #{mesh_cnn_forward.4} parent=0 // loop_pre_header
    _
  $region3: #{mesh_cnn_forward.4} parent=0 // loop_header
    %s9 = sphi 0, %s13
    %p10 = scmp.ge.s32.totalorder %s9, 4
    %s19 = sphi 0, %s21
    %s22 = sphi 0, %s19
    %s23 = sphi 0, %s22
    %s39 = sphi 0, %s23
    %s45 = sphi 0, %s47
    %s48 = sphi 0, %s45
    %s49 = sphi 0, %s48
    %s65 = sphi 0, %s49
    %s69 = sphi 0, %s69
    %s71 = sphi 0, %s69
    %s72 = sphi 0, %s71
    %s86 = sphi 0, %s72
    %s92 = sphi 0, %s94
    %s95 = sphi 0, %s92
    %s96 = sphi 0, %s95
    %s112 = sphi 0, %s96
  $region4: #{mesh_cnn_forward.4} parent=0 // loop_header_branch
    %12 = sbr.rel (%p10) target = $region8
  $region5: #{mesh_cnn_forward.4} parent=0 // loop_body
    %s14 = ssub.s32 %s9, 1
    %s15 = ssub.s32 %s9, 2
    %s16 = sadd.s32 %s9, 1
    %s17 = ssub.s32 %s9, %s16
    %p18 = scmp.eq.s32.totalorder %s17, 0
    %s20 = sadd.s32 %s19, 1
    %s21 = scalar_select %p18, %s19, %s20
    %p24 = pneg %p18
    %p25 = scmp.eq.s32.totalorder %s9, 1
    %p26 = por %p24, %p25
    %p27 = scmp.ne.s32.totalorder %s19, %s22
    %p28 = scmp.eq.s32.totalorder %s9, 0
    %p29 = por %p27, %p28
    %p30 = scmp.ne.s32.totalorder %s19, %s22
    %p31 = scmp.eq.s32.totalorder %s14, 1
    %p32 = por %p30, %p31
    %p33 = scmp.ne.s32.totalorder %s22, %s23
    %p34 = scmp.eq.s32.totalorder %s14, 0
    %p35 = por %p33, %p34
    %p36 = scmp.ne.s32.totalorder %s22, %s23
    %p37 = scmp.eq.s32.totalorder %s15, 1
    %p38 = por %p36, %p37
    %p40 = scmp.ne.s32.totalorder %s23, %s39
    %p41 = scmp.eq.s32.totalorder %s15, 0
    %p42 = por %p40, %p41
    %s43 = ssub.s32 %s9, %s16
    %p44 = scmp.eq.s32.totalorder %s43, 0
    %s46 = sadd.s32 %s45, 1
    %s47 = scalar_select %p44, %s45, %s46
    %p50 = pneg %p44
    %p51 = scmp.eq.s32.totalorder %s9, 1
    %p52 = por %p50, %p51
    %p53 = scmp.ne.s32.totalorder %s45, %s48
    %p54 = scmp.eq.s32.totalorder %s9, 0
    %p55 = por %p53, %p54
    %p56 = scmp.ne.s32.totalorder %s45, %s48
    %p57 = scmp.eq.s32.totalorder %s14, 1
    %p58 = por %p56, %p57
    %p59 = scmp.ne.s32.totalorder %s48, %s49
    %p60 = scmp.eq.s32.totalorder %s14, 0
    %p61 = por %p59, %p60
    %p62 = scmp.ne.s32.totalorder %s48, %s49
    %p63 = scmp.eq.s32.totalorder %s15, 1
    %p64 = por %p62, %p63
    %p66 = scmp.ne.s32.totalorder %s49, %s65
    %p67 = scmp.eq.s32.totalorder %s15, 0
    %p68 = por %p66, %p67
    %s70 = sadd.s32 %s69, 1
    %p73 = scmp.eq.s32.totalorder %s9, 1
    %p74 = scmp.ne.s32.totalorder %s69, %s71
    %p75 = scmp.eq.s32.totalorder %s9, 0
    %p76 = por %p74, %p75
    %p77 = scmp.ne.s32.totalorder %s69, %s71
    %p78 = scmp.eq.s32.totalorder %s14, 1
    %p79 = por %p77, %p78
    %p80 = scmp.ne.s32.totalorder %s71, %s72
    %p81 = scmp.eq.s32.totalorder %s14, 0
    %p82 = por %p80, %p81
    %p83 = scmp.ne.s32.totalorder %s71, %s72
    %p84 = scmp.eq.s32.totalorder %s15, 1
    %p85 = por %p83, %p84
    %p87 = scmp.ne.s32.totalorder %s72, %s86
    %p88 = scmp.eq.s32.totalorder %s15, 0
    %p89 = por %p87, %p88
    %s90 = ssub.s32 %s9, %s16
    %p91 = scmp.eq.s32.totalorder %s90, 0
    %s93 = sadd.s32 %s92, 1
    %s94 = scalar_select %p91, %s92, %s93
    %p97 = pneg %p91
    %p98 = scmp.eq.s32.totalorder %s9, 1
    %p99 = por %p97, %p98
    %p100 = scmp.ne.s32.totalorder %s92, %s95
    %p101 = scmp.eq.s32.totalorder %s9, 0
    %p102 = por %p100, %p101
    %p103 = scmp.ne.s32.totalorder %s92, %s95
    %p104 = scmp.eq.s32.totalorder %s14, 1
    %p105 = por %p103, %p104
    %p106 = scmp.ne.s32.totalorder %s95, %s96
    %p107 = scmp.eq.s32.totalorder %s14, 0
    %p108 = por %p106, %p107
    %p109 = scmp.ne.s32.totalorder %s95, %s96
    %p110 = scmp.eq.s32.totalorder %s15, 1
    %p111 = por %p109, %p110
    %p113 = scmp.ne.s32.totalorder %s96, %s112
    %p114 = scmp.eq.s32.totalorder %s15, 0
    %p115 = por %p113, %p114
    %p116 = scmp.le.s32.totalorder 1, %s9
    %p117 = scmp.lt.s32.totalorder %s9, 3
    %p118 = pnand %p116, %p117
    %p119 = pneg %p118
    // Predicated region
    $region9: #{mesh_cnn_forward.4} parent=5 // pred_check
      _
    $region10: #{mesh_cnn_forward.4} parent=5 // pred_check_branch
      %121 = sbr.rel (%p118) target = $region12
    $region11: #{mesh_cnn_forward.4} parent=5 // pred_region
      %s122 = ssub.s32 %s9, 1
      // Predicated region
      $region13: #{mesh_cnn_forward.4} parent=11 // pred_check
        %p123 = pneg %p82
      $region14: #{mesh_cnn_forward.4} parent=11 // pred_check_branch
        %125 = sbr.rel (%p123) target = $region16
      $region15: #{mesh_cnn_forward.4} parent=11 // pred_region
        _
      $region16: #{mesh_cnn_forward.4} parent=11 // pred_fallthru
        _
    $region12: #{mesh_cnn_forward.4} parent=5 // pred_fallthru
      _
    %p126 = scmp.lt.s32.totalorder %s9, 2
    // Predicated region
    $region17: #{mesh_cnn_forward.4} parent=5 // pred_check
      %p127 = pneg %p126
    $region18: #{mesh_cnn_forward.4} parent=5 // pred_check_branch
      %129 = sbr.rel (%p127) target = $region20
    $region19: #{mesh_cnn_forward.4} parent=5 // pred_region
      // Predicated region
      $region21: #{mesh_cnn_forward.4} parent=19 // pred_check
        %p130 = pneg %p29
      $region22: #{mesh_cnn_forward.4} parent=19 // pred_check_branch
        %132 = sbr.rel (%p130) target = $region24
      $region23: #{mesh_cnn_forward.4} parent=19 // pred_region
        %p133 = scmp.lt.s32.totalorder %s9, 1
        %s134 = scalar_select %p133, %s9, 1
        %s135 = smul.addr %s134, 48
        %s136 = smul.addr %s135, 4
        %s137 = scalar_lea.vmem %s0, %s136
      $region24: #{mesh_cnn_forward.4} parent=19 // pred_fallthru
        _
      // Predicated region
      $region25: #{mesh_cnn_forward.4} parent=19 // pred_check
        %p138 = pneg %p55
      $region26: #{mesh_cnn_forward.4} parent=19 // pred_check_branch
        %140 = sbr.rel (%p138) target = $region28
      $region27: #{mesh_cnn_forward.4} parent=19 // pred_region
        %p141 = scmp.lt.s32.totalorder %s9, 1
        %s142 = scalar_select %p141, %s9, 1
        %s143 = smul.addr %s142, 192
        %s144 = smul.addr %s143, 4
        %s145 = scalar_lea.vmem %s1, %s144
      $region28: #{mesh_cnn_forward.4} parent=19 // pred_fallthru
        _
    $region20: #{mesh_cnn_forward.4} parent=5 // pred_fallthru
      _
    %p146 = scmp.le.s32.totalorder 1, %s9
    %p147 = scmp.lt.s32.totalorder %s9, 3
    %p148 = pnand %p146, %p147
    %p149 = pneg %p148
    // Predicated region
    $region29: #{mesh_cnn_forward.4} parent=5 // pred_check
      _
    $region30: #{mesh_cnn_forward.4} parent=5 // pred_check_branch
      %151 = sbr.rel (%p148) target = $region32
    $region31: #{mesh_cnn_forward.4} parent=5 // pred_region
      %s152 = ssub.s32 %s9, 1
      %p153 = scmp.lt.s32.totalorder %s14, 1
      %s154 = scalar_select %p153, %s14, 1
      %s155 = smul.addr %s154, 48
      %s156 = smul.addr %s155, 4
      %s157 = scalar_lea.vmem %s0, %s156
      %p158 = pneg %p35
      %p159 = pneg %p32
      %p160 = scmp.lt.s32.totalorder %s14, 1
      %s161 = scalar_select %p160, %s14, 1
      %s162 = smul.addr %s161, 192
      %s163 = smul.addr %s162, 4
      %s164 = scalar_lea.vmem %s1, %s163
      %p165 = pneg %p61
      %p166 = pneg %p58
      %p167 = pneg %p82
      %p168 = pneg %p79
      %p169 = pneg %p108
      %p170 = pneg %p105
      %p171 = scmp.lt.s32.totalorder %s14, 1
      %s172 = scalar_select %p171, %s14, 1
      %s173 = smul.addr %s172, 48
      %s174 = smul.addr %s173, 8
      %s175 = scalar_lea.vmem %s3, %s174
      %p176 = scmp.lt.s32.totalorder %s14, 1
      %s177 = scalar_select %p176, %s14, 1
      %s178 = smul.addr %s177, 48
      %s179 = smul.addr %s178, 4
      %s180 = scalar_lea.vmem %s0, %s179
      %p181 = scmp.lt.s32.totalorder %s14, 1
      %s182 = scalar_select %p181, %s14, 1
      %s183 = smul.addr %s182, 192
      %s184 = smul.addr %s183, 4
      %s185 = scalar_lea.vmem %s1, %s184
      %p186 = scmp.lt.s32.totalorder %s14, 1
      %s187 = scalar_select %p186, %s14, 1
      %s188 = smul.addr %s187, 48
      %s189 = smul.addr %s188, 8
      %s190 = scalar_lea.vmem %s3, %s189
      %v192 = vld [vmem:[%s180] sm:$0xf]
      %v193 = vld [vmem:[%s180 + $0x4] sm:$0xf]
      %v194 = vld [vmem:[%s180 + $0x8] sm:$0xf]
      %v195 = vld [vmem:[%s180 + $0xc] sm:$0xf]
      %v196 = vld [vmem:[%s180 + $0x10] sm:$0xf]
      %v197 = vld [vmem:[%s180 + $0x14] sm:$0xf]
      %v198 = vld [vmem:[%s180 + $0x18] sm:$0xf]
      %v199 = vld [vmem:[%s180 + $0x1c] sm:$0xf]
      %v200 = vld [vmem:[%s180 + $0x20] sm:$0xf]
      %v201 = vld [vmem:[%s180 + $0x24] sm:$0xf]
      %v202 = vld [vmem:[%s180 + $0x28] sm:$0xf]
      %v203 = vld [vmem:[%s180 + $0x2c] sm:$0xf]
      %v204 = vld [vmem:[%s180 + $0x30] sm:$0xf]
      %v205 = vld [vmem:[%s180 + $0x34] sm:$0xf]
      %v206 = vld [vmem:[%s180 + $0x38] sm:$0xf]
      %v207 = vld [vmem:[%s180 + $0x3c] sm:$0xf]
      %v208 = vld [vmem:[%s180 + $0x40] sm:$0xf]
      %v209 = vld [vmem:[%s180 + $0x44] sm:$0xf]
      %v210 = vld [vmem:[%s180 + $0x48] sm:$0xf]
      %v211 = vld [vmem:[%s180 + $0x4c] sm:$0xf]
      %v212 = vld [vmem:[%s180 + $0x50] sm:$0xf]
      %v213 = vld [vmem:[%s180 + $0x54] sm:$0xf]
      %v214 = vld [vmem:[%s180 + $0x58] sm:$0xf]
      %v215 = vld [vmem:[%s180 + $0x5c] sm:$0xf]
      %v216 = vld [vmem:[%s180 + $0x60] sm:$0xf]
      %v217 = vld [vmem:[%s180 + $0x64] sm:$0xf]
      %v218 = vld [vmem:[%s180 + $0x68] sm:$0xf]
      %v219 = vld [vmem:[%s180 + $0x6c] sm:$0xf]
      %v220 = vld [vmem:[%s180 + $0x70] sm:$0xf]
      %v221 = vld [vmem:[%s180 + $0x74] sm:$0xf]
      %v222 = vld [vmem:[%s180 + $0x78] sm:$0xf]
      %v223 = vld [vmem:[%s180 + $0x7c] sm:$0xf]
      %v224 = vld [vmem:[%s180 + $0x80] sm:$0xf]
      %v225 = vld [vmem:[%s180 + $0x84] sm:$0xf]
      %v226 = vld [vmem:[%s180 + $0x88] sm:$0xf]
      %v227 = vld [vmem:[%s180 + $0x8c] sm:$0xf]
      %v228 = vld [vmem:[%s180 + $0x90] sm:$0xf]
      %v229 = vld [vmem:[%s180 + $0x94] sm:$0xf]
      %v230 = vld [vmem:[%s180 + $0x98] sm:$0xf]
      %v231 = vld [vmem:[%s180 + $0x9c] sm:$0xf]
      %v232 = vld [vmem:[%s180 + $0xa0] sm:$0xf]
      %v233 = vld [vmem:[%s180 + $0xa4] sm:$0xf]
      %v234 = vld [vmem:[%s180 + $0xa8] sm:$0xf]
      %v235 = vld [vmem:[%s180 + $0xac] sm:$0xf]
      %v236 = vld [vmem:[%s180 + $0xb0] sm:$0xf]
      %v237 = vld [vmem:[%s180 + $0xb4] sm:$0xf]
      %v238 = vld [vmem:[%s180 + $0xb8] sm:$0xf]
      %v239 = vld [vmem:[%s180 + $0xbc] sm:$0xf]
      %v240 = vld [vmem:[%s185] sm:$0xf]
      %v241 = vld [vmem:[%s185 + $0x4] sm:$0xf]
      %v242 = vld [vmem:[%s185 + $0x8] sm:$0xf]
      %v243 = vld [vmem:[%s185 + $0xc] sm:$0xf]
      %v244 = vld [vmem:[%s185 + $0x10] sm:$0xf]
      %v245 = vld [vmem:[%s185 + $0x14] sm:$0xf]
      %v246 = vld [vmem:[%s185 + $0x18] sm:$0xf]
      %v247 = vld [vmem:[%s185 + $0x1c] sm:$0xf]
      %v248 = vld [vmem:[%s185 + $0x20] sm:$0xf]
      %v249 = vld [vmem:[%s185 + $0x24] sm:$0xf]
      %v250 = vld [vmem:[%s185 + $0x28] sm:$0xf]
      %v251 = vld [vmem:[%s185 + $0x2c] sm:$0xf]
      %v252 = vld [vmem:[%s185 + $0x30] sm:$0xf]
      %v253 = vld [vmem:[%s185 + $0x34] sm:$0xf]
      %v254 = vld [vmem:[%s185 + $0x38] sm:$0xf]
      %v255 = vld [vmem:[%s185 + $0x3c] sm:$0xf]
      %v256 = vld [vmem:[%s185 + $0x40] sm:$0xf]
      %v257 = vld [vmem:[%s185 + $0x44] sm:$0xf]
      %v258 = vld [vmem:[%s185 + $0x48] sm:$0xf]
      %v259 = vld [vmem:[%s185 + $0x4c] sm:$0xf]
      %v260 = vld [vmem:[%s185 + $0x50] sm:$0xf]
      %v261 = vld [vmem:[%s185 + $0x54] sm:$0xf]
      %v262 = vld [vmem:[%s185 + $0x58] sm:$0xf]
      %v263 = vld [vmem:[%s185 + $0x5c] sm:$0xf]
      %v264 = vld [vmem:[%s185 + $0x60] sm:$0xf]
      %v265 = vld [vmem:[%s185 + $0x64] sm:$0xf]
      %v266 = vld [vmem:[%s185 + $0x68] sm:$0xf]
      %v267 = vld [vmem:[%s185 + $0x6c] sm:$0xf]
      %v268 = vld [vmem:[%s185 + $0x70] sm:$0xf]
      %v269 = vld [vmem:[%s185 + $0x74] sm:$0xf]
      %v270 = vld [vmem:[%s185 + $0x78] sm:$0xf]
      %v271 = vld [vmem:[%s185 + $0x7c] sm:$0xf]
      %v272 = vld [vmem:[%s185 + $0x80] sm:$0xf]
      %v273 = vld [vmem:[%s185 + $0x84] sm:$0xf]
      %v274 = vld [vmem:[%s185 + $0x88] sm:$0xf]
      %v275 = vld [vmem:[%s185 + $0x8c] sm:$0xf]
      %v276 = vld [vmem:[%s185 + $0x90] sm:$0xf]
      %v277 = vld [vmem:[%s185 + $0x94] sm:$0xf]
      %v278 = vld [vmem:[%s185 + $0x98] sm:$0xf]
      %v279 = vld [vmem:[%s185 + $0x9c] sm:$0xf]
      %v280 = vld [vmem:[%s185 + $0xa0] sm:$0xf]
      %v281 = vld [vmem:[%s185 + $0xa4] sm:$0xf]
      %v282 = vld [vmem:[%s185 + $0xa8] sm:$0xf]
      %v283 = vld [vmem:[%s185 + $0xac] sm:$0xf]
      %v284 = vld [vmem:[%s185 + $0xb0] sm:$0xf]
      %v285 = vld [vmem:[%s185 + $0xb4] sm:$0xf]
      %v286 = vld [vmem:[%s185 + $0xb8] sm:$0xf]
      %v287 = vld [vmem:[%s185 + $0xbc] sm:$0xf]
      %s288 = scalar_lea.vmem %s185, 192
      %v289 = vld [vmem:[%s288] sm:$0xf]
      %v290 = vld [vmem:[%s288 + $0x4] sm:$0xf]
      %v291 = vld [vmem:[%s288 + $0x8] sm:$0xf]
      %v292 = vld [vmem:[%s288 + $0xc] sm:$0xf]
      %v293 = vld [vmem:[%s288 + $0x10] sm:$0xf]
      %v294 = vld [vmem:[%s288 + $0x14] sm:$0xf]
      %v295 = vld [vmem:[%s288 + $0x18] sm:$0xf]
      %v296 = vld [vmem:[%s288 + $0x1c] sm:$0xf]
      %v297 = vld [vmem:[%s288 + $0x20] sm:$0xf]
      %v298 = vld [vmem:[%s288 + $0x24] sm:$0xf]
      %v299 = vld [vmem:[%s288 + $0x28] sm:$0xf]
      %v300 = vld [vmem:[%s288 + $0x2c] sm:$0xf]
      %v301 = vld [vmem:[%s288 + $0x30] sm:$0xf]
      %v302 = vld [vmem:[%s288 + $0x34] sm:$0xf]
      %v303 = vld [vmem:[%s288 + $0x38] sm:$0xf]
      %v304 = vld [vmem:[%s288 + $0x3c] sm:$0xf]
      %v305 = vld [vmem:[%s288 + $0x40] sm:$0xf]
      %v306 = vld [vmem:[%s288 + $0x44] sm:$0xf]
      %v307 = vld [vmem:[%s288 + $0x48] sm:$0xf]
      %v308 = vld [vmem:[%s288 + $0x4c] sm:$0xf]
      %v309 = vld [vmem:[%s288 + $0x50] sm:$0xf]
      %v310 = vld [vmem:[%s288 + $0x54] sm:$0xf]
      %v311 = vld [vmem:[%s288 + $0x58] sm:$0xf]
      %v312 = vld [vmem:[%s288 + $0x5c] sm:$0xf]
      %v313 = vld [vmem:[%s288 + $0x60] sm:$0xf]
      %v314 = vld [vmem:[%s288 + $0x64] sm:$0xf]
      %v315 = vld [vmem:[%s288 + $0x68] sm:$0xf]
      %v316 = vld [vmem:[%s288 + $0x6c] sm:$0xf]
      %v317 = vld [vmem:[%s288 + $0x70] sm:$0xf]
      %v318 = vld [vmem:[%s288 + $0x74] sm:$0xf]
      %v319 = vld [vmem:[%s288 + $0x78] sm:$0xf]
      %v320 = vld [vmem:[%s288 + $0x7c] sm:$0xf]
      %v321 = vld [vmem:[%s288 + $0x80] sm:$0xf]
      %v322 = vld [vmem:[%s288 + $0x84] sm:$0xf]
      %v323 = vld [vmem:[%s288 + $0x88] sm:$0xf]
      %v324 = vld [vmem:[%s288 + $0x8c] sm:$0xf]
      %v325 = vld [vmem:[%s288 + $0x90] sm:$0xf]
      %v326 = vld [vmem:[%s288 + $0x94] sm:$0xf]
      %v327 = vld [vmem:[%s288 + $0x98] sm:$0xf]
      %v328 = vld [vmem:[%s288 + $0x9c] sm:$0xf]
      %v329 = vld [vmem:[%s288 + $0xa0] sm:$0xf]
      %v330 = vld [vmem:[%s288 + $0xa4] sm:$0xf]
      %v331 = vld [vmem:[%s288 + $0xa8] sm:$0xf]
      %v332 = vld [vmem:[%s288 + $0xac] sm:$0xf]
      %v333 = vld [vmem:[%s288 + $0xb0] sm:$0xf]
      %v334 = vld [vmem:[%s288 + $0xb4] sm:$0xf]
      %v335 = vld [vmem:[%s288 + $0xb8] sm:$0xf]
      %v336 = vld [vmem:[%s288 + $0xbc] sm:$0xf]
      %s337 = scalar_lea.vmem %s185, 384
      %v338 = vld [vmem:[%s337] sm:$0xf]
      %v339 = vld [vmem:[%s337 + $0x4] sm:$0xf]
      %v340 = vld [vmem:[%s337 + $0x8] sm:$0xf]
      %v341 = vld [vmem:[%s337 + $0xc] sm:$0xf]
      %v342 = vld [vmem:[%s337 + $0x10] sm:$0xf]
      %v343 = vld [vmem:[%s337 + $0x14] sm:$0xf]
      %v344 = vld [vmem:[%s337 + $0x18] sm:$0xf]
      %v345 = vld [vmem:[%s337 + $0x1c] sm:$0xf]
      %v346 = vld [vmem:[%s337 + $0x20] sm:$0xf]
      %v347 = vld [vmem:[%s337 + $0x24] sm:$0xf]
      %v348 = vld [vmem:[%s337 + $0x28] sm:$0xf]
      %v349 = vld [vmem:[%s337 + $0x2c] sm:$0xf]
      %v350 = vld [vmem:[%s337 + $0x30] sm:$0xf]
      %v351 = vld [vmem:[%s337 + $0x34] sm:$0xf]
      %v352 = vld [vmem:[%s337 + $0x38] sm:$0xf]
      %v353 = vld [vmem:[%s337 + $0x3c] sm:$0xf]
      %v354 = vld [vmem:[%s337 + $0x40] sm:$0xf]
      %v355 = vld [vmem:[%s337 + $0x44] sm:$0xf]
      %v356 = vld [vmem:[%s337 + $0x48] sm:$0xf]
      %v357 = vld [vmem:[%s337 + $0x4c] sm:$0xf]
      %v358 = vld [vmem:[%s337 + $0x50] sm:$0xf]
      %v359 = vld [vmem:[%s337 + $0x54] sm:$0xf]
      %v360 = vld [vmem:[%s337 + $0x58] sm:$0xf]
      %v361 = vld [vmem:[%s337 + $0x5c] sm:$0xf]
      %v362 = vld [vmem:[%s337 + $0x60] sm:$0xf]
      %v363 = vld [vmem:[%s337 + $0x64] sm:$0xf]
      %v364 = vld [vmem:[%s337 + $0x68] sm:$0xf]
      %v365 = vld [vmem:[%s337 + $0x6c] sm:$0xf]
      %v366 = vld [vmem:[%s337 + $0x70] sm:$0xf]
      %v367 = vld [vmem:[%s337 + $0x74] sm:$0xf]
      %v368 = vld [vmem:[%s337 + $0x78] sm:$0xf]
      %v369 = vld [vmem:[%s337 + $0x7c] sm:$0xf]
      %v370 = vld [vmem:[%s337 + $0x80] sm:$0xf]
      %v371 = vld [vmem:[%s337 + $0x84] sm:$0xf]
      %v372 = vld [vmem:[%s337 + $0x88] sm:$0xf]
      %v373 = vld [vmem:[%s337 + $0x8c] sm:$0xf]
      %v374 = vld [vmem:[%s337 + $0x90] sm:$0xf]
      %v375 = vld [vmem:[%s337 + $0x94] sm:$0xf]
      %v376 = vld [vmem:[%s337 + $0x98] sm:$0xf]
      %v377 = vld [vmem:[%s337 + $0x9c] sm:$0xf]
      %v378 = vld [vmem:[%s337 + $0xa0] sm:$0xf]
      %v379 = vld [vmem:[%s337 + $0xa4] sm:$0xf]
      %v380 = vld [vmem:[%s337 + $0xa8] sm:$0xf]
      %v381 = vld [vmem:[%s337 + $0xac] sm:$0xf]
      %v382 = vld [vmem:[%s337 + $0xb0] sm:$0xf]
      %v383 = vld [vmem:[%s337 + $0xb4] sm:$0xf]
      %v384 = vld [vmem:[%s337 + $0xb8] sm:$0xf]
      %v385 = vld [vmem:[%s337 + $0xbc] sm:$0xf]
      %s386 = scalar_lea.vmem %s185, 576
      %v387 = vld [vmem:[%s386] sm:$0xf]
      %v388 = vld [vmem:[%s386 + $0x4] sm:$0xf]
      %v389 = vld [vmem:[%s386 + $0x8] sm:$0xf]
      %v390 = vld [vmem:[%s386 + $0xc] sm:$0xf]
      %v391 = vld [vmem:[%s386 + $0x10] sm:$0xf]
      %v392 = vld [vmem:[%s386 + $0x14] sm:$0xf]
      %v393 = vld [vmem:[%s386 + $0x18] sm:$0xf]
      %v394 = vld [vmem:[%s386 + $0x1c] sm:$0xf]
      %v395 = vld [vmem:[%s386 + $0x20] sm:$0xf]
      %v396 = vld [vmem:[%s386 + $0x24] sm:$0xf]
      %v397 = vld [vmem:[%s386 + $0x28] sm:$0xf]
      %v398 = vld [vmem:[%s386 + $0x2c] sm:$0xf]
      %v399 = vld [vmem:[%s386 + $0x30] sm:$0xf]
      %v400 = vld [vmem:[%s386 + $0x34] sm:$0xf]
      %v401 = vld [vmem:[%s386 + $0x38] sm:$0xf]
      %v402 = vld [vmem:[%s386 + $0x3c] sm:$0xf]
      %v403 = vld [vmem:[%s386 + $0x40] sm:$0xf]
      %v404 = vld [vmem:[%s386 + $0x44] sm:$0xf]
      %v405 = vld [vmem:[%s386 + $0x48] sm:$0xf]
      %v406 = vld [vmem:[%s386 + $0x4c] sm:$0xf]
      %v407 = vld [vmem:[%s386 + $0x50] sm:$0xf]
      %v408 = vld [vmem:[%s386 + $0x54] sm:$0xf]
      %v409 = vld [vmem:[%s386 + $0x58] sm:$0xf]
      %v410 = vld [vmem:[%s386 + $0x5c] sm:$0xf]
      %v411 = vld [vmem:[%s386 + $0x60] sm:$0xf]
      %v412 = vld [vmem:[%s386 + $0x64] sm:$0xf]
      %v413 = vld [vmem:[%s386 + $0x68] sm:$0xf]
      %v414 = vld [vmem:[%s386 + $0x6c] sm:$0xf]
      %v415 = vld [vmem:[%s386 + $0x70] sm:$0xf]
      %v416 = vld [vmem:[%s386 + $0x74] sm:$0xf]
      %v417 = vld [vmem:[%s386 + $0x78] sm:$0xf]
      %v418 = vld [vmem:[%s386 + $0x7c] sm:$0xf]
      %v419 = vld [vmem:[%s386 + $0x80] sm:$0xf]
      %v420 = vld [vmem:[%s386 + $0x84] sm:$0xf]
      %v421 = vld [vmem:[%s386 + $0x88] sm:$0xf]
      %v422 = vld [vmem:[%s386 + $0x8c] sm:$0xf]
      %v423 = vld [vmem:[%s386 + $0x90] sm:$0xf]
      %v424 = vld [vmem:[%s386 + $0x94] sm:$0xf]
      %v425 = vld [vmem:[%s386 + $0x98] sm:$0xf]
      %v426 = vld [vmem:[%s386 + $0x9c] sm:$0xf]
      %v427 = vld [vmem:[%s386 + $0xa0] sm:$0xf]
      %v428 = vld [vmem:[%s386 + $0xa4] sm:$0xf]
      %v429 = vld [vmem:[%s386 + $0xa8] sm:$0xf]
      %v430 = vld [vmem:[%s386 + $0xac] sm:$0xf]
      %v431 = vld [vmem:[%s386 + $0xb0] sm:$0xf]
      %v432 = vld [vmem:[%s386 + $0xb4] sm:$0xf]
      %v433 = vld [vmem:[%s386 + $0xb8] sm:$0xf]
      %v434 = vld [vmem:[%s386 + $0xbc] sm:$0xf]
      %v435 = vadd.bf16 %v240, %v338
      %v436 = vadd.bf16 %v241, %v339
      %v437 = vadd.bf16 %v242, %v340
      %v438 = vadd.bf16 %v243, %v341
      %v439 = vadd.bf16 %v244, %v342
      %v440 = vadd.bf16 %v245, %v343
      %v441 = vadd.bf16 %v246, %v344
      %v442 = vadd.bf16 %v247, %v345
      %v443 = vadd.bf16 %v248, %v346
      %v444 = vadd.bf16 %v249, %v347
      %v445 = vadd.bf16 %v250, %v348
      %v446 = vadd.bf16 %v251, %v349
      %v447 = vadd.bf16 %v252, %v350
      %v448 = vadd.bf16 %v253, %v351
      %v449 = vadd.bf16 %v254, %v352
      %v450 = vadd.bf16 %v255, %v353
      %v451 = vadd.bf16 %v256, %v354
      %v452 = vadd.bf16 %v257, %v355
      %v453 = vadd.bf16 %v258, %v356
      %v454 = vadd.bf16 %v259, %v357
      %v455 = vadd.bf16 %v260, %v358
      %v456 = vadd.bf16 %v261, %v359
      %v457 = vadd.bf16 %v262, %v360
      %v458 = vadd.bf16 %v263, %v361
      %v459 = vadd.bf16 %v264, %v362
      %v460 = vadd.bf16 %v265, %v363
      %v461 = vadd.bf16 %v266, %v364
      %v462 = vadd.bf16 %v267, %v365
      %v463 = vadd.bf16 %v268, %v366
      %v464 = vadd.bf16 %v269, %v367
      %v465 = vadd.bf16 %v270, %v368
      %v466 = vadd.bf16 %v271, %v369
      %v467 = vadd.bf16 %v272, %v370
      %v468 = vadd.bf16 %v273, %v371
      %v469 = vadd.bf16 %v274, %v372
      %v470 = vadd.bf16 %v275, %v373
      %v471 = vadd.bf16 %v276, %v374
      %v472 = vadd.bf16 %v277, %v375
      %v473 = vadd.bf16 %v278, %v376
      %v474 = vadd.bf16 %v279, %v377
      %v475 = vadd.bf16 %v280, %v378
      %v476 = vadd.bf16 %v281, %v379
      %v477 = vadd.bf16 %v282, %v380
      %v478 = vadd.bf16 %v283, %v381
      %v479 = vadd.bf16 %v284, %v382
      %v480 = vadd.bf16 %v285, %v383
      %v481 = vadd.bf16 %v286, %v384
      %v482 = vadd.bf16 %v287, %v385
      %v483 = vadd.bf16 %v289, %v387
      %v484 = vadd.bf16 %v290, %v388
      %v485 = vadd.bf16 %v291, %v389
      %v486 = vadd.bf16 %v292, %v390
      %v487 = vadd.bf16 %v293, %v391
      %v488 = vadd.bf16 %v294, %v392
      %v489 = vadd.bf16 %v295, %v393
      %v490 = vadd.bf16 %v296, %v394
      %v491 = vadd.bf16 %v297, %v395
      %v492 = vadd.bf16 %v298, %v396
      %v493 = vadd.bf16 %v299, %v397
      %v494 = vadd.bf16 %v300, %v398
      %v495 = vadd.bf16 %v301, %v399
      %v496 = vadd.bf16 %v302, %v400
      %v497 = vadd.bf16 %v303, %v401
      %v498 = vadd.bf16 %v304, %v402
      %v499 = vadd.bf16 %v305, %v403
      %v500 = vadd.bf16 %v306, %v404
      %v501 = vadd.bf16 %v307, %v405
      %v502 = vadd.bf16 %v308, %v406
      %v503 = vadd.bf16 %v309, %v407
      %v504 = vadd.bf16 %v310, %v408
      %v505 = vadd.bf16 %v311, %v409
      %v506 = vadd.bf16 %v312, %v410
      %v507 = vadd.bf16 %v313, %v411
      %v508 = vadd.bf16 %v314, %v412
      %v509 = vadd.bf16 %v315, %v413
      %v510 = vadd.bf16 %v316, %v414
      %v511 = vadd.bf16 %v317, %v415
      %v512 = vadd.bf16 %v318, %v416
      %v513 = vadd.bf16 %v319, %v417
      %v514 = vadd.bf16 %v320, %v418
      %v515 = vadd.bf16 %v321, %v419
      %v516 = vadd.bf16 %v322, %v420
      %v517 = vadd.bf16 %v323, %v421
      %v518 = vadd.bf16 %v324, %v422
      %v519 = vadd.bf16 %v325, %v423
      %v520 = vadd.bf16 %v326, %v424
      %v521 = vadd.bf16 %v327, %v425
      %v522 = vadd.bf16 %v328, %v426
      %v523 = vadd.bf16 %v329, %v427
      %v524 = vadd.bf16 %v330, %v428
      %v525 = vadd.bf16 %v331, %v429
      %v526 = vadd.bf16 %v332, %v430
      %v527 = vadd.bf16 %v333, %v431
      %v528 = vadd.bf16 %v334, %v432
      %v529 = vadd.bf16 %v335, %v433
      %v530 = vadd.bf16 %v336, %v434
      %v531 = vsub.bf16 %v240, %v338
      %v532 = vsub.bf16 %v241, %v339
      %v533 = vsub.bf16 %v242, %v340
      %v534 = vsub.bf16 %v243, %v341
      %v535 = vsub.bf16 %v244, %v342
      %v536 = vsub.bf16 %v245, %v343
      %v537 = vsub.bf16 %v246, %v344
      %v538 = vsub.bf16 %v247, %v345
      %v539 = vsub.bf16 %v248, %v346
      %v540 = vsub.bf16 %v249, %v347
      %v541 = vsub.bf16 %v250, %v348
      %v542 = vsub.bf16 %v251, %v349
      %v543 = vsub.bf16 %v252, %v350
      %v544 = vsub.bf16 %v253, %v351
      %v545 = vsub.bf16 %v254, %v352
      %v546 = vsub.bf16 %v255, %v353
      %v547 = vsub.bf16 %v256, %v354
      %v548 = vsub.bf16 %v257, %v355
      %v549 = vsub.bf16 %v258, %v356
      %v550 = vsub.bf16 %v259, %v357
      %v551 = vsub.bf16 %v260, %v358
      %v552 = vsub.bf16 %v261, %v359
      %v553 = vsub.bf16 %v262, %v360
      %v554 = vsub.bf16 %v263, %v361
      %v555 = vsub.bf16 %v264, %v362
      %v556 = vsub.bf16 %v265, %v363
      %v557 = vsub.bf16 %v266, %v364
      %v558 = vsub.bf16 %v267, %v365
      %v559 = vsub.bf16 %v268, %v366
      %v560 = vsub.bf16 %v269, %v367
      %v561 = vsub.bf16 %v270, %v368
      %v562 = vsub.bf16 %v271, %v369
      %v563 = vsub.bf16 %v272, %v370
      %v564 = vsub.bf16 %v273, %v371
      %v565 = vsub.bf16 %v274, %v372
      %v566 = vsub.bf16 %v275, %v373
      %v567 = vsub.bf16 %v276, %v374
      %v568 = vsub.bf16 %v277, %v375
      %v569 = vsub.bf16 %v278, %v376
      %v570 = vsub.bf16 %v279, %v377
      %v571 = vsub.bf16 %v280, %v378
      %v572 = vsub.bf16 %v281, %v379
      %v573 = vsub.bf16 %v282, %v380
      %v574 = vsub.bf16 %v283, %v381
      %v575 = vsub.bf16 %v284, %v382
      %v576 = vsub.bf16 %v285, %v383
      %v577 = vsub.bf16 %v286, %v384
      %v578 = vsub.bf16 %v287, %v385
      %v579 = vand.u32 2147450879, %v531
      %v580 = vand.u32 2147450879, %v532
      %v581 = vand.u32 2147450879, %v533
      %v582 = vand.u32 2147450879, %v534
      %v583 = vand.u32 2147450879, %v535
      %v584 = vand.u32 2147450879, %v536
      %v585 = vand.u32 2147450879, %v537
      %v586 = vand.u32 2147450879, %v538
      %v587 = vand.u32 2147450879, %v539
      %v588 = vand.u32 2147450879, %v540
      %v589 = vand.u32 2147450879, %v541
      %v590 = vand.u32 2147450879, %v542
      %v591 = vand.u32 2147450879, %v543
      %v592 = vand.u32 2147450879, %v544
      %v593 = vand.u32 2147450879, %v545
      %v594 = vand.u32 2147450879, %v546
      %v595 = vand.u32 2147450879, %v547
      %v596 = vand.u32 2147450879, %v548
      %v597 = vand.u32 2147450879, %v549
      %v598 = vand.u32 2147450879, %v550
      %v599 = vand.u32 2147450879, %v551
      %v600 = vand.u32 2147450879, %v552
      %v601 = vand.u32 2147450879, %v553
      %v602 = vand.u32 2147450879, %v554
      %v603 = vand.u32 2147450879, %v555
      %v604 = vand.u32 2147450879, %v556
      %v605 = vand.u32 2147450879, %v557
      %v606 = vand.u32 2147450879, %v558
      %v607 = vand.u32 2147450879, %v559
      %v608 = vand.u32 2147450879, %v560
      %v609 = vand.u32 2147450879, %v561
      %v610 = vand.u32 2147450879, %v562
      %v611 = vand.u32 2147450879, %v563
      %v612 = vand.u32 2147450879, %v564
      %v613 = vand.u32 2147450879, %v565
      %v614 = vand.u32 2147450879, %v566
      %v615 = vand.u32 2147450879, %v567
      %v616 = vand.u32 2147450879, %v568
      %v617 = vand.u32 2147450879, %v569
      %v618 = vand.u32 2147450879, %v570
      %v619 = vand.u32 2147450879, %v571
      %v620 = vand.u32 2147450879, %v572
      %v621 = vand.u32 2147450879, %v573
      %v622 = vand.u32 2147450879, %v574
      %v623 = vand.u32 2147450879, %v575
      %v624 = vand.u32 2147450879, %v576
      %v625 = vand.u32 2147450879, %v577
      %v626 = vand.u32 2147450879, %v578
      %v627 = vsub.bf16 %v289, %v387
      %v628 = vsub.bf16 %v290, %v388
      %v629 = vsub.bf16 %v291, %v389
      %v630 = vsub.bf16 %v292, %v390
      %v631 = vsub.bf16 %v293, %v391
      %v632 = vsub.bf16 %v294, %v392
      %v633 = vsub.bf16 %v295, %v393
      %v634 = vsub.bf16 %v296, %v394
      %v635 = vsub.bf16 %v297, %v395
      %v636 = vsub.bf16 %v298, %v396
      %v637 = vsub.bf16 %v299, %v397
      %v638 = vsub.bf16 %v300, %v398
      %v639 = vsub.bf16 %v301, %v399
      %v640 = vsub.bf16 %v302, %v400
      %v641 = vsub.bf16 %v303, %v401
      %v642 = vsub.bf16 %v304, %v402
      %v643 = vsub.bf16 %v305, %v403
      %v644 = vsub.bf16 %v306, %v404
      %v645 = vsub.bf16 %v307, %v405
      %v646 = vsub.bf16 %v308, %v406
      %v647 = vsub.bf16 %v309, %v407
      %v648 = vsub.bf16 %v310, %v408
      %v649 = vsub.bf16 %v311, %v409
      %v650 = vsub.bf16 %v312, %v410
      %v651 = vsub.bf16 %v313, %v411
      %v652 = vsub.bf16 %v314, %v412
      %v653 = vsub.bf16 %v315, %v413
      %v654 = vsub.bf16 %v316, %v414
      %v655 = vsub.bf16 %v317, %v415
      %v656 = vsub.bf16 %v318, %v416
      %v657 = vsub.bf16 %v319, %v417
      %v658 = vsub.bf16 %v320, %v418
      %v659 = vsub.bf16 %v321, %v419
      %v660 = vsub.bf16 %v322, %v420
      %v661 = vsub.bf16 %v323, %v421
      %v662 = vsub.bf16 %v324, %v422
      %v663 = vsub.bf16 %v325, %v423
      %v664 = vsub.bf16 %v326, %v424
      %v665 = vsub.bf16 %v327, %v425
      %v666 = vsub.bf16 %v328, %v426
      %v667 = vsub.bf16 %v329, %v427
      %v668 = vsub.bf16 %v330, %v428
      %v669 = vsub.bf16 %v331, %v429
      %v670 = vsub.bf16 %v332, %v430
      %v671 = vsub.bf16 %v333, %v431
      %v672 = vsub.bf16 %v334, %v432
      %v673 = vsub.bf16 %v335, %v433
      %v674 = vsub.bf16 %v336, %v434
      %v675 = vand.u32 2147450879, %v627
      %v676 = vand.u32 2147450879, %v628
      %v677 = vand.u32 2147450879, %v629
      %v678 = vand.u32 2147450879, %v630
      %v679 = vand.u32 2147450879, %v631
      %v680 = vand.u32 2147450879, %v632
      %v681 = vand.u32 2147450879, %v633
      %v682 = vand.u32 2147450879, %v634
      %v683 = vand.u32 2147450879, %v635
      %v684 = vand.u32 2147450879, %v636
      %v685 = vand.u32 2147450879, %v637
      %v686 = vand.u32 2147450879, %v638
      %v687 = vand.u32 2147450879, %v639
      %v688 = vand.u32 2147450879, %v640
      %v689 = vand.u32 2147450879, %v641
      %v690 = vand.u32 2147450879, %v642
      %v691 = vand.u32 2147450879, %v643
      %v692 = vand.u32 2147450879, %v644
      %v693 = vand.u32 2147450879, %v645
      %v694 = vand.u32 2147450879, %v646
      %v695 = vand.u32 2147450879, %v647
      %v696 = vand.u32 2147450879, %v648
      %v697 = vand.u32 2147450879, %v649
      %v698 = vand.u32 2147450879, %v650
      %v699 = vand.u32 2147450879, %v651
      %v700 = vand.u32 2147450879, %v652
      %v701 = vand.u32 2147450879, %v653
      %v702 = vand.u32 2147450879, %v654
      %v703 = vand.u32 2147450879, %v655
      %v704 = vand.u32 2147450879, %v656
      %v705 = vand.u32 2147450879, %v657
      %v706 = vand.u32 2147450879, %v658
      %v707 = vand.u32 2147450879, %v659
      %v708 = vand.u32 2147450879, %v660
      %v709 = vand.u32 2147450879, %v661
      %v710 = vand.u32 2147450879, %v662
      %v711 = vand.u32 2147450879, %v663
      %v712 = vand.u32 2147450879, %v664
      %v713 = vand.u32 2147450879, %v665
      %v714 = vand.u32 2147450879, %v666
      %v715 = vand.u32 2147450879, %v667
      %v716 = vand.u32 2147450879, %v668
      %v717 = vand.u32 2147450879, %v669
      %v718 = vand.u32 2147450879, %v670
      %v719 = vand.u32 2147450879, %v671
      %v720 = vand.u32 2147450879, %v672
      %v721 = vand.u32 2147450879, %v673
      %v722 = vand.u32 2147450879, %v674
      %v723 = vld [vmem:[%s2] sm:$0xf]
      %v724 = vld [vmem:[%s2 + $0x4] sm:$0xf]
      %s725 = scalar_lea.vmem %s2, 8
      %v726 = vld [vmem:[%s725] sm:$0xf]
      %v727 = vld [vmem:[%s725 + $0x4] sm:$0xf]
      %v776 = vunpack.c.l.b16 %v435
      %v777 = vunpack.c.l.b16 %v436
      %v778 = vunpack.c.l.b16 %v437
      %v779 = vunpack.c.l.b16 %v438
      %v780 = vunpack.c.l.b16 %v439
      %v781 = vunpack.c.l.b16 %v440
      %v782 = vunpack.c.l.b16 %v441
      %v783 = vunpack.c.l.b16 %v442
      %v784 = vunpack.c.l.b16 %v443
      %v785 = vunpack.c.l.b16 %v444
      %v786 = vunpack.c.l.b16 %v445
      %v787 = vunpack.c.l.b16 %v446
      %v788 = vunpack.c.l.b16 %v447
      %v789 = vunpack.c.l.b16 %v448
      %v790 = vunpack.c.l.b16 %v449
      %v791 = vunpack.c.l.b16 %v450
      %v792 = vunpack.c.l.b16 %v451
      %v793 = vunpack.c.l.b16 %v452
      %v794 = vunpack.c.l.b16 %v453
      %v795 = vunpack.c.l.b16 %v454
      %v796 = vunpack.c.l.b16 %v455
      %v797 = vunpack.c.l.b16 %v456
      %v798 = vunpack.c.l.b16 %v457
      %v799 = vunpack.c.l.b16 %v458
      %v800 = vunpack.c.l.b16 %v459
      %v801 = vunpack.c.l.b16 %v460
      %v802 = vunpack.c.l.b16 %v461
      %v803 = vunpack.c.l.b16 %v462
      %v804 = vunpack.c.l.b16 %v463
      %v805 = vunpack.c.l.b16 %v464
      %v806 = vunpack.c.l.b16 %v465
      %v807 = vunpack.c.l.b16 %v466
      %v808 = vunpack.c.l.b16 %v467
      %v809 = vunpack.c.l.b16 %v468
      %v810 = vunpack.c.l.b16 %v469
      %v811 = vunpack.c.l.b16 %v470
      %v812 = vunpack.c.l.b16 %v471
      %v813 = vunpack.c.l.b16 %v472
      %v814 = vunpack.c.l.b16 %v473
      %v815 = vunpack.c.l.b16 %v474
      %v816 = vunpack.c.l.b16 %v475
      %v817 = vunpack.c.l.b16 %v476
      %v818 = vunpack.c.l.b16 %v477
      %v819 = vunpack.c.l.b16 %v478
      %v820 = vunpack.c.l.b16 %v479
      %v821 = vunpack.c.l.b16 %v480
      %v822 = vunpack.c.l.b16 %v481
      %v823 = vunpack.c.l.b16 %v482
      %v824 = vpack.c.b16 %v777, %v776
      %v825 = vpack.c.b16 %v779, %v778
      %v826 = vpack.c.b16 %v781, %v780
      %v827 = vpack.c.b16 %v783, %v782
      %v828 = vpack.c.b16 %v785, %v784
      %v829 = vpack.c.b16 %v787, %v786
      %v830 = vpack.c.b16 %v789, %v788
      %v831 = vpack.c.b16 %v791, %v790
      %v832 = vpack.c.b16 %v793, %v792
      %v833 = vpack.c.b16 %v795, %v794
      %v834 = vpack.c.b16 %v797, %v796
      %v835 = vpack.c.b16 %v799, %v798
      %v836 = vpack.c.b16 %v801, %v800
      %v837 = vpack.c.b16 %v803, %v802
      %v838 = vpack.c.b16 %v805, %v804
      %v839 = vpack.c.b16 %v807, %v806
      %v840 = vpack.c.b16 %v809, %v808
      %v841 = vpack.c.b16 %v811, %v810
      %v842 = vpack.c.b16 %v813, %v812
      %v843 = vpack.c.b16 %v815, %v814
      %v844 = vpack.c.b16 %v817, %v816
      %v845 = vpack.c.b16 %v819, %v818
      %v846 = vpack.c.b16 %v821, %v820
      %v847 = vpack.c.b16 %v823, %v822
      %v850 = vunpack.c.l.b16 %v726
      %v851 = vunpack.c.l.b16 %v727
      %v852 = vpack.c.b16 %v851, %v850
      %vm854 = vcmask 130048
      %v856 = vsel %vm854, %v824, 0
      %v859 = vsel %vm854, %v825, 0
      %v862 = vsel %vm854, %v826, 0
      %v865 = vsel %vm854, %v827, 0
      %v868 = vsel %vm854, %v828, 0
      %v871 = vsel %vm854, %v829, 0
      %v874 = vsel %vm854, %v830, 0
      %v877 = vsel %vm854, %v831, 0
      %v880 = vsel %vm854, %v832, 0
      %v883 = vsel %vm854, %v833, 0
      %v886 = vsel %vm854, %v834, 0
      %v889 = vsel %vm854, %v835, 0
      %v892 = vsel %vm854, %v836, 0
      %v895 = vsel %vm854, %v837, 0
      %v898 = vsel %vm854, %v838, 0
      %v901 = vsel %vm854, %v839, 0
      %v904 = vsel %vm854, %v840, 0
      %v907 = vsel %vm854, %v841, 0
      %v910 = vsel %vm854, %v842, 0
      %v913 = vsel %vm854, %v843, 0
      %v916 = vsel %vm854, %v844, 0
      %v919 = vsel %vm854, %v845, 0
      %v922 = vsel %vm854, %v846, 0
      %v925 = vsel %vm854, %v847, 0
      %927 = vmatprep.subr.bf16.mxu0 0
      %928 = vmatpush1.bf16.msra.mxu0 0
      %929 = vmatprep.subr.bf16.mxu0 0
      %930 = vmatpush1.bf16.msra.mxu0 0
      %931 = vmatprep.subr.bf16.mxu0 0
      %932 = vmatpush1.bf16.msra.mxu0 0
      %933 = vmatprep.subr.bf16.mxu0 0
      %934 = vmatpush1.bf16.msra.mxu0 0
      %935 = vmatprep.subr.bf16.mxu0 0
      %936 = vmatpush1.bf16.msra.mxu0 0
      %937 = vmatprep.subr.bf16.mxu0 0
      %938 = vmatpush1.bf16.msra.mxu0 0
      %939 = vmatprep.subr.bf16.mxu0 0
      %940 = vmatpush1.bf16.msra.mxu0 0
      %941 = vmatprep.subr.bf16.mxu0 0
      %942 = vmatpush1.bf16.msra.mxu0 %v852
      %943 = vmatprep.subr.bf16.mxu0 0
      %944 = vmatpush2.bf16.msra.mxu0 0
      %945 = vmatprep.subr.bf16.mxu0 0
      %946 = vmatpush2.bf16.msra.mxu0 0
      %947 = vmatprep.subr.bf16.mxu0 0
      %948 = vmatpush2.bf16.msra.mxu0 0
      %949 = vmatprep.subr.bf16.mxu0 0
      %950 = vmatpush2.bf16.msra.mxu0 0
      %951 = vmatprep.subr.bf16.mxu0 0
      %952 = vmatpush2.bf16.msra.mxu0 0
      %953 = vmatprep.subr.bf16.mxu0 0
      %954 = vmatpush2.bf16.msra.mxu0 0
      %955 = vmatprep.subr.bf16.mxu0 0
      %956 = vmatpush2.bf16.msra.mxu0 0
      %957 = vmatprep.subr.bf16.mxu0 0
      %958 = vmatpush2.bf16.msra.mxu0 0
      %959 = vmatprep.mubr.bf16.mxu0 0
      %960 = vmatmul.mubr.bf16.gmra.mxu0 %v856
      %v961 = vpop.f32.mrf.mxu0
      %v962 = vadd.f32 0.0, %v961
      %v963 = vpop.f32.mrf.mxu0
      %v964 = vpop.f32.mrf.mxu0
      %v965 = vadd.f32 0.0, %v964
      %v966 = vpop.f32.mrf.mxu0
      %967 = vmatprep.mubr.bf16.mxu0 0
      %968 = vmatmul.mubr.bf16.gmra.mxu0 %v859
      %v969 = vpop.f32.mrf.mxu0
      %v970 = vadd.f32 0.0, %v969
      %v971 = vpop.f32.mrf.mxu0
      %v972 = vpop.f32.mrf.mxu0
      %v973 = vadd.f32 0.0, %v972
      %v974 = vpop.f32.mrf.mxu0
      %975 = vmatprep.mubr.bf16.mxu0 0
      %976 = vmatmul.mubr.bf16.gmra.mxu0 %v862
      %v977 = vpop.f32.mrf.mxu0
      %v978 = vadd.f32 0.0, %v977
      %v979 = vpop.f32.mrf.mxu0
      %v980 = vpop.f32.mrf.mxu0
      %v981 = vadd.f32 0.0, %v980
      %v982 = vpop.f32.mrf.mxu0
      %983 = vmatprep.mubr.bf16.mxu0 0
      %984 = vmatmul.mubr.bf16.gmra.mxu0 %v865
      %v985 = vpop.f32.mrf.mxu0
      %v986 = vadd.f32 0.0, %v985
      %v987 = vpop.f32.mrf.mxu0
      %v988 = vpop.f32.mrf.mxu0
      %v989 = vadd.f32 0.0, %v988
      %v990 = vpop.f32.mrf.mxu0
      %991 = vmatprep.mubr.bf16.mxu0 0
      %992 = vmatmul.mubr.bf16.gmra.mxu0 %v868
      %v993 = vpop.f32.mrf.mxu0
      %v994 = vadd.f32 0.0, %v993
      %v995 = vpop.f32.mrf.mxu0
      %v996 = vpop.f32.mrf.mxu0
      %v997 = vadd.f32 0.0, %v996
      %v998 = vpop.f32.mrf.mxu0
      %999 = vmatprep.mubr.bf16.mxu0 0
      %1000 = vmatmul.mubr.bf16.gmra.mxu0 %v871
      %v1001 = vpop.f32.mrf.mxu0
      %v1002 = vadd.f32 0.0, %v1001
      %v1003 = vpop.f32.mrf.mxu0
      %v1004 = vpop.f32.mrf.mxu0
      %v1005 = vadd.f32 0.0, %v1004
      %v1006 = vpop.f32.mrf.mxu0
      %1007 = vmatprep.mubr.bf16.mxu0 0
      %1008 = vmatmul.mubr.bf16.gmra.mxu0 %v874
      %v1009 = vpop.f32.mrf.mxu0
      %v1010 = vadd.f32 0.0, %v1009
      %v1011 = vpop.f32.mrf.mxu0
      %v1012 = vpop.f32.mrf.mxu0
      %v1013 = vadd.f32 0.0, %v1012
      %v1014 = vpop.f32.mrf.mxu0
      %1015 = vmatprep.mubr.bf16.mxu0 0
      %1016 = vmatmul.mubr.bf16.gmra.mxu0 %v877
      %v1017 = vpop.f32.mrf.mxu0
      %v1018 = vadd.f32 0.0, %v1017
      %v1019 = vpop.f32.mrf.mxu0
      %v1020 = vpop.f32.mrf.mxu0
      %v1021 = vadd.f32 0.0, %v1020
      %v1022 = vpop.f32.mrf.mxu0
      %1023 = vmatprep.mubr.bf16.mxu0 0
      %1024 = vmatmul.mubr.bf16.gmra.mxu0 %v880
      %v1025 = vpop.f32.mrf.mxu0
      %v1026 = vadd.f32 0.0, %v1025
      %v1027 = vpop.f32.mrf.mxu0
      %v1028 = vpop.f32.mrf.mxu0
      %v1029 = vadd.f32 0.0, %v1028
      %v1030 = vpop.f32.mrf.mxu0
      %1031 = vmatprep.mubr.bf16.mxu0 0
      %1032 = vmatmul.mubr.bf16.gmra.mxu0 %v883
      %v1033 = vpop.f32.mrf.mxu0
      %v1034 = vadd.f32 0.0, %v1033
      %v1035 = vpop.f32.mrf.mxu0
      %v1036 = vpop.f32.mrf.mxu0
      %v1037 = vadd.f32 0.0, %v1036
      %v1038 = vpop.f32.mrf.mxu0
      %1039 = vmatprep.mubr.bf16.mxu0 0
      %1040 = vmatmul.mubr.bf16.gmra.mxu0 %v886
      %v1041 = vpop.f32.mrf.mxu0
      %v1042 = vadd.f32 0.0, %v1041
      %v1043 = vpop.f32.mrf.mxu0
      %v1044 = vpop.f32.mrf.mxu0
      %v1045 = vadd.f32 0.0, %v1044
      %v1046 = vpop.f32.mrf.mxu0
      %1047 = vmatprep.mubr.bf16.mxu0 0
      %1048 = vmatmul.mubr.bf16.gmra.mxu0 %v889
      %v1049 = vpop.f32.mrf.mxu0
      %v1050 = vadd.f32 0.0, %v1049
      %v1051 = vpop.f32.mrf.mxu0
      %v1052 = vpop.f32.mrf.mxu0
      %v1053 = vadd.f32 0.0, %v1052
      %v1054 = vpop.f32.mrf.mxu0
      %1055 = vmatprep.mubr.bf16.mxu0 0
      %1056 = vmatmul.mubr.bf16.gmra.mxu0 %v892
      %v1057 = vpop.f32.mrf.mxu0
      %v1058 = vadd.f32 0.0, %v1057
      %v1059 = vpop.f32.mrf.mxu0
      %v1060 = vpop.f32.mrf.mxu0
      %v1061 = vadd.f32 0.0, %v1060
      %v1062 = vpop.f32.mrf.mxu0
      %1063 = vmatprep.mubr.bf16.mxu0 0
      %1064 = vmatmul.mubr.bf16.gmra.mxu0 %v895
      %v1065 = vpop.f32.mrf.mxu0
      %v1066 = vadd.f32 0.0, %v1065
      %v1067 = vpop.f32.mrf.mxu0
      %v1068 = vpop.f32.mrf.mxu0
      %v1069 = vadd.f32 0.0, %v1068
      %v1070 = vpop.f32.mrf.mxu0
      %1071 = vmatprep.mubr.bf16.mxu0 0
      %1072 = vmatmul.mubr.bf16.gmra.mxu0 %v898
      %v1073 = vpop.f32.mrf.mxu0
      %v1074 = vadd.f32 0.0, %v1073
      %v1075 = vpop.f32.mrf.mxu0
      %v1076 = vpop.f32.mrf.mxu0
      %v1077 = vadd.f32 0.0, %v1076
      %v1078 = vpop.f32.mrf.mxu0
      %1079 = vmatprep.mubr.bf16.mxu0 0
      %1080 = vmatmul.mubr.bf16.gmra.mxu0 %v901
      %v1081 = vpop.f32.mrf.mxu0
      %v1082 = vadd.f32 0.0, %v1081
      %v1083 = vpop.f32.mrf.mxu0
      %v1084 = vpop.f32.mrf.mxu0
      %v1085 = vadd.f32 0.0, %v1084
      %v1086 = vpop.f32.mrf.mxu0
      %1087 = vmatprep.mubr.bf16.mxu0 0
      %1088 = vmatmul.mubr.bf16.gmra.mxu0 %v904
      %v1089 = vpop.f32.mrf.mxu0
      %v1090 = vadd.f32 0.0, %v1089
      %v1091 = vpop.f32.mrf.mxu0
      %v1092 = vpop.f32.mrf.mxu0
      %v1093 = vadd.f32 0.0, %v1092
      %v1094 = vpop.f32.mrf.mxu0
      %1095 = vmatprep.mubr.bf16.mxu0 0
      %1096 = vmatmul.mubr.bf16.gmra.mxu0 %v907
      %v1097 = vpop.f32.mrf.mxu0
      %v1098 = vadd.f32 0.0, %v1097
      %v1099 = vpop.f32.mrf.mxu0
      %v1100 = vpop.f32.mrf.mxu0
      %v1101 = vadd.f32 0.0, %v1100
      %v1102 = vpop.f32.mrf.mxu0
      %1103 = vmatprep.mubr.bf16.mxu0 0
      %1104 = vmatmul.mubr.bf16.gmra.mxu0 %v910
      %v1105 = vpop.f32.mrf.mxu0
      %v1106 = vadd.f32 0.0, %v1105
      %v1107 = vpop.f32.mrf.mxu0
      %v1108 = vpop.f32.mrf.mxu0
      %v1109 = vadd.f32 0.0, %v1108
      %v1110 = vpop.f32.mrf.mxu0
      %1111 = vmatprep.mubr.bf16.mxu0 0
      %1112 = vmatmul.mubr.bf16.gmra.mxu0 %v913
      %v1113 = vpop.f32.mrf.mxu0
      %v1114 = vadd.f32 0.0, %v1113
      %v1115 = vpop.f32.mrf.mxu0
      %v1116 = vpop.f32.mrf.mxu0
      %v1117 = vadd.f32 0.0, %v1116
      %v1118 = vpop.f32.mrf.mxu0
      %1119 = vmatprep.mubr.bf16.mxu0 0
      %1120 = vmatmul.mubr.bf16.gmra.mxu0 %v916
      %v1121 = vpop.f32.mrf.mxu0
      %v1122 = vadd.f32 0.0, %v1121
      %v1123 = vpop.f32.mrf.mxu0
      %v1124 = vpop.f32.mrf.mxu0
      %v1125 = vadd.f32 0.0, %v1124
      %v1126 = vpop.f32.mrf.mxu0
      %1127 = vmatprep.mubr.bf16.mxu0 0
      %1128 = vmatmul.mubr.bf16.gmra.mxu0 %v919
      %v1129 = vpop.f32.mrf.mxu0
      %v1130 = vadd.f32 0.0, %v1129
      %v1131 = vpop.f32.mrf.mxu0
      %v1132 = vpop.f32.mrf.mxu0
      %v1133 = vadd.f32 0.0, %v1132
      %v1134 = vpop.f32.mrf.mxu0
      %1135 = vmatprep.mubr.bf16.mxu0 0
      %1136 = vmatmul.mubr.bf16.gmra.mxu0 %v922
      %v1137 = vpop.f32.mrf.mxu0
      %v1138 = vadd.f32 0.0, %v1137
      %v1139 = vpop.f32.mrf.mxu0
      %v1140 = vpop.f32.mrf.mxu0
      %v1141 = vadd.f32 0.0, %v1140
      %v1142 = vpop.f32.mrf.mxu0
      %1143 = vmatprep.mubr.bf16.mxu0 0
      %1144 = vmatmul.mubr.bf16.gmra.mxu0 %v925
      %v1145 = vpop.f32.mrf.mxu0
      %v1146 = vadd.f32 0.0, %v1145
      %v1147 = vpop.f32.mrf.mxu0
      %v1148 = vpop.f32.mrf.mxu0
      %v1149 = vadd.f32 0.0, %v1148
      %v1150 = vpop.f32.mrf.mxu0
      %1151 = vdwg.mxu0
      %v1200 = vunpack.c.l.b16 %v192
      %v1201 = vunpack.c.l.b16 %v193
      %v1202 = vunpack.c.l.b16 %v194
      %v1203 = vunpack.c.l.b16 %v195
      %v1204 = vunpack.c.l.b16 %v196
      %v1205 = vunpack.c.l.b16 %v197
      %v1206 = vunpack.c.l.b16 %v198
      %v1207 = vunpack.c.l.b16 %v199
      %v1208 = vunpack.c.l.b16 %v200
      %v1209 = vunpack.c.l.b16 %v201
      %v1210 = vunpack.c.l.b16 %v202
      %v1211 = vunpack.c.l.b16 %v203
      %v1212 = vunpack.c.l.b16 %v204
      %v1213 = vunpack.c.l.b16 %v205
      %v1214 = vunpack.c.l.b16 %v206
      %v1215 = vunpack.c.l.b16 %v207
      %v1216 = vunpack.c.l.b16 %v208
      %v1217 = vunpack.c.l.b16 %v209
      %v1218 = vunpack.c.l.b16 %v210
      %v1219 = vunpack.c.l.b16 %v211
      %v1220 = vunpack.c.l.b16 %v212
      %v1221 = vunpack.c.l.b16 %v213
      %v1222 = vunpack.c.l.b16 %v214
      %v1223 = vunpack.c.l.b16 %v215
      %v1224 = vunpack.c.l.b16 %v216
      %v1225 = vunpack.c.l.b16 %v217
      %v1226 = vunpack.c.l.b16 %v218
      %v1227 = vunpack.c.l.b16 %v219
      %v1228 = vunpack.c.l.b16 %v220
      %v1229 = vunpack.c.l.b16 %v221
      %v1230 = vunpack.c.l.b16 %v222
      %v1231 = vunpack.c.l.b16 %v223
      %v1232 = vunpack.c.l.b16 %v224
      %v1233 = vunpack.c.l.b16 %v225
      %v1234 = vunpack.c.l.b16 %v226
      %v1235 = vunpack.c.l.b16 %v227
      %v1236 = vunpack.c.l.b16 %v228
      %v1237 = vunpack.c.l.b16 %v229
      %v1238 = vunpack.c.l.b16 %v230
      %v1239 = vunpack.c.l.b16 %v231
      %v1240 = vunpack.c.l.b16 %v232
      %v1241 = vunpack.c.l.b16 %v233
      %v1242 = vunpack.c.l.b16 %v234
      %v1243 = vunpack.c.l.b16 %v235
      %v1244 = vunpack.c.l.b16 %v236
      %v1245 = vunpack.c.l.b16 %v237
      %v1246 = vunpack.c.l.b16 %v238
      %v1247 = vunpack.c.l.b16 %v239
      %v1248 = vpack.c.b16 %v1201, %v1200
      %v1249 = vpack.c.b16 %v1203, %v1202
      %v1250 = vpack.c.b16 %v1205, %v1204
      %v1251 = vpack.c.b16 %v1207, %v1206
      %v1252 = vpack.c.b16 %v1209, %v1208
      %v1253 = vpack.c.b16 %v1211, %v1210
      %v1254 = vpack.c.b16 %v1213, %v1212
      %v1255 = vpack.c.b16 %v1215, %v1214
      %v1256 = vpack.c.b16 %v1217, %v1216
      %v1257 = vpack.c.b16 %v1219, %v1218
      %v1258 = vpack.c.b16 %v1221, %v1220
      %v1259 = vpack.c.b16 %v1223, %v1222
      %v1260 = vpack.c.b16 %v1225, %v1224
      %v1261 = vpack.c.b16 %v1227, %v1226
      %v1262 = vpack.c.b16 %v1229, %v1228
      %v1263 = vpack.c.b16 %v1231, %v1230
      %v1264 = vpack.c.b16 %v1233, %v1232
      %v1265 = vpack.c.b16 %v1235, %v1234
      %v1266 = vpack.c.b16 %v1237, %v1236
      %v1267 = vpack.c.b16 %v1239, %v1238
      %v1268 = vpack.c.b16 %v1241, %v1240
      %v1269 = vpack.c.b16 %v1243, %v1242
      %v1270 = vpack.c.b16 %v1245, %v1244
      %v1271 = vpack.c.b16 %v1247, %v1246
      %v1274 = vunpack.c.l.b16 %v723
      %v1275 = vunpack.c.l.b16 %v724
      %v1276 = vpack.c.b16 %v1275, %v1274
      %v1279 = vsel %vm854, %v1248, 0
      %v1282 = vsel %vm854, %v1249, 0
      %v1285 = vsel %vm854, %v1250, 0
      %v1288 = vsel %vm854, %v1251, 0
      %v1291 = vsel %vm854, %v1252, 0
      %v1294 = vsel %vm854, %v1253, 0
      %v1297 = vsel %vm854, %v1254, 0
      %v1300 = vsel %vm854, %v1255, 0
      %v1303 = vsel %vm854, %v1256, 0
      %v1306 = vsel %vm854, %v1257, 0
      %v1309 = vsel %vm854, %v1258, 0
      %v1312 = vsel %vm854, %v1259, 0
      %v1315 = vsel %vm854, %v1260, 0
      %v1318 = vsel %vm854, %v1261, 0
      %v1321 = vsel %vm854, %v1262, 0
      %v1324 = vsel %vm854, %v1263, 0
      %v1327 = vsel %vm854, %v1264, 0
      %v1330 = vsel %vm854, %v1265, 0
      %v1333 = vsel %vm854, %v1266, 0
      %v1336 = vsel %vm854, %v1267, 0
      %v1339 = vsel %vm854, %v1268, 0
      %v1342 = vsel %vm854, %v1269, 0
      %v1345 = vsel %vm854, %v1270, 0
      %v1348 = vsel %vm854, %v1271, 0
      %1350 = vmatprep.subr.bf16.mxu0 0
      %1351 = vmatpush1.bf16.msra.mxu0 0
      %1352 = vmatprep.subr.bf16.mxu0 0
      %1353 = vmatpush1.bf16.msra.mxu0 0
      %1354 = vmatprep.subr.bf16.mxu0 0
      %1355 = vmatpush1.bf16.msra.mxu0 0
      %1356 = vmatprep.subr.bf16.mxu0 0
      %1357 = vmatpush1.bf16.msra.mxu0 0
      %1358 = vmatprep.subr.bf16.mxu0 0
      %1359 = vmatpush1.bf16.msra.mxu0 0
      %1360 = vmatprep.subr.bf16.mxu0 0
      %1361 = vmatpush1.bf16.msra.mxu0 0
      %1362 = vmatprep.subr.bf16.mxu0 0
      %1363 = vmatpush1.bf16.msra.mxu0 0
      %1364 = vmatprep.subr.bf16.mxu0 0
      %1365 = vmatpush1.bf16.msra.mxu0 %v1276
      %1366 = vmatprep.subr.bf16.mxu0 0
      %1367 = vmatpush2.bf16.msra.mxu0 0
      %1368 = vmatprep.subr.bf16.mxu0 0
      %1369 = vmatpush2.bf16.msra.mxu0 0
      %1370 = vmatprep.subr.bf16.mxu0 0
      %1371 = vmatpush2.bf16.msra.mxu0 0
      %1372 = vmatprep.subr.bf16.mxu0 0
      %1373 = vmatpush2.bf16.msra.mxu0 0
      %1374 = vmatprep.subr.bf16.mxu0 0
      %1375 = vmatpush2.bf16.msra.mxu0 0
      %1376 = vmatprep.subr.bf16.mxu0 0
      %1377 = vmatpush2.bf16.msra.mxu0 0
      %1378 = vmatprep.subr.bf16.mxu0 0
      %1379 = vmatpush2.bf16.msra.mxu0 0
      %1380 = vmatprep.subr.bf16.mxu0 0
      %1381 = vmatpush2.bf16.msra.mxu0 0
      %1382 = vmatprep.mubr.bf16.mxu0 0
      %1383 = vmatmul.mubr.bf16.gmra.mxu0 %v1279
      %v1384 = vpop.f32.mrf.mxu0
      %v1385 = vadd.f32 %v962, %v1384
      %v1386 = vpop.f32.mrf.mxu0
      %v1387 = vpop.f32.mrf.mxu0
      %v1388 = vadd.f32 %v965, %v1387
      %v1389 = vpop.f32.mrf.mxu0
      %1390 = vmatprep.mubr.bf16.mxu0 0
      %1391 = vmatmul.mubr.bf16.gmra.mxu0 %v1282
      %v1392 = vpop.f32.mrf.mxu0
      %v1393 = vadd.f32 %v970, %v1392
      %v1394 = vpop.f32.mrf.mxu0
      %v1395 = vpop.f32.mrf.mxu0
      %v1396 = vadd.f32 %v973, %v1395
      %v1397 = vpop.f32.mrf.mxu0
      %1398 = vmatprep.mubr.bf16.mxu0 0
      %1399 = vmatmul.mubr.bf16.gmra.mxu0 %v1285
      %v1400 = vpop.f32.mrf.mxu0
      %v1401 = vadd.f32 %v978, %v1400
      %v1402 = vpop.f32.mrf.mxu0
      %v1403 = vpop.f32.mrf.mxu0
      %v1404 = vadd.f32 %v981, %v1403
      %v1405 = vpop.f32.mrf.mxu0
      %1406 = vmatprep.mubr.bf16.mxu0 0
      %1407 = vmatmul.mubr.bf16.gmra.mxu0 %v1288
      %v1408 = vpop.f32.mrf.mxu0
      %v1409 = vadd.f32 %v986, %v1408
      %v1410 = vpop.f32.mrf.mxu0
      %v1411 = vpop.f32.mrf.mxu0
      %v1412 = vadd.f32 %v989, %v1411
      %v1413 = vpop.f32.mrf.mxu0
      %1414 = vmatprep.mubr.bf16.mxu0 0
      %1415 = vmatmul.mubr.bf16.gmra.mxu0 %v1291
      %v1416 = vpop.f32.mrf.mxu0
      %v1417 = vadd.f32 %v994, %v1416
      %v1418 = vpop.f32.mrf.mxu0
      %v1419 = vpop.f32.mrf.mxu0
      %v1420 = vadd.f32 %v997, %v1419
      %v1421 = vpop.f32.mrf.mxu0
      %1422 = vmatprep.mubr.bf16.mxu0 0
      %1423 = vmatmul.mubr.bf16.gmra.mxu0 %v1294
      %v1424 = vpop.f32.mrf.mxu0
      %v1425 = vadd.f32 %v1002, %v1424
      %v1426 = vpop.f32.mrf.mxu0
      %v1427 = vpop.f32.mrf.mxu0
      %v1428 = vadd.f32 %v1005, %v1427
      %v1429 = vpop.f32.mrf.mxu0
      %1430 = vmatprep.mubr.bf16.mxu0 0
      %1431 = vmatmul.mubr.bf16.gmra.mxu0 %v1297
      %v1432 = vpop.f32.mrf.mxu0
      %v1433 = vadd.f32 %v1010, %v1432
      %v1434 = vpop.f32.mrf.mxu0
      %v1435 = vpop.f32.mrf.mxu0
      %v1436 = vadd.f32 %v1013, %v1435
      %v1437 = vpop.f32.mrf.mxu0
      %1438 = vmatprep.mubr.bf16.mxu0 0
      %1439 = vmatmul.mubr.bf16.gmra.mxu0 %v1300
      %v1440 = vpop.f32.mrf.mxu0
      %v1441 = vadd.f32 %v1018, %v1440
      %v1442 = vpop.f32.mrf.mxu0
      %v1443 = vpop.f32.mrf.mxu0
      %v1444 = vadd.f32 %v1021, %v1443
      %v1445 = vpop.f32.mrf.mxu0
      %1446 = vmatprep.mubr.bf16.mxu0 0
      %1447 = vmatmul.mubr.bf16.gmra.mxu0 %v1303
      %v1448 = vpop.f32.mrf.mxu0
      %v1449 = vadd.f32 %v1026, %v1448
      %v1450 = vpop.f32.mrf.mxu0
      %v1451 = vpop.f32.mrf.mxu0
      %v1452 = vadd.f32 %v1029, %v1451
      %v1453 = vpop.f32.mrf.mxu0
      %1454 = vmatprep.mubr.bf16.mxu0 0
      %1455 = vmatmul.mubr.bf16.gmra.mxu0 %v1306
      %v1456 = vpop.f32.mrf.mxu0
      %v1457 = vadd.f32 %v1034, %v1456
      %v1458 = vpop.f32.mrf.mxu0
      %v1459 = vpop.f32.mrf.mxu0
      %v1460 = vadd.f32 %v1037, %v1459
      %v1461 = vpop.f32.mrf.mxu0
      %1462 = vmatprep.mubr.bf16.mxu0 0
      %1463 = vmatmul.mubr.bf16.gmra.mxu0 %v1309
      %v1464 = vpop.f32.mrf.mxu0
      %v1465 = vadd.f32 %v1042, %v1464
      %v1466 = vpop.f32.mrf.mxu0
      %v1467 = vpop.f32.mrf.mxu0
      %v1468 = vadd.f32 %v1045, %v1467
      %v1469 = vpop.f32.mrf.mxu0
      %1470 = vmatprep.mubr.bf16.mxu0 0
      %1471 = vmatmul.mubr.bf16.gmra.mxu0 %v1312
      %v1472 = vpop.f32.mrf.mxu0
      %v1473 = vadd.f32 %v1050, %v1472
      %v1474 = vpop.f32.mrf.mxu0
      %v1475 = vpop.f32.mrf.mxu0
      %v1476 = vadd.f32 %v1053, %v1475
      %v1477 = vpop.f32.mrf.mxu0
      %1478 = vmatprep.mubr.bf16.mxu0 0
      %1479 = vmatmul.mubr.bf16.gmra.mxu0 %v1315
      %v1480 = vpop.f32.mrf.mxu0
      %v1481 = vadd.f32 %v1058, %v1480
      %v1482 = vpop.f32.mrf.mxu0
      %v1483 = vpop.f32.mrf.mxu0
      %v1484 = vadd.f32 %v1061, %v1483
      %v1485 = vpop.f32.mrf.mxu0
      %1486 = vmatprep.mubr.bf16.mxu0 0
      %1487 = vmatmul.mubr.bf16.gmra.mxu0 %v1318
      %v1488 = vpop.f32.mrf.mxu0
      %v1489 = vadd.f32 %v1066, %v1488
      %v1490 = vpop.f32.mrf.mxu0
      %v1491 = vpop.f32.mrf.mxu0
      %v1492 = vadd.f32 %v1069, %v1491
      %v1493 = vpop.f32.mrf.mxu0
      %1494 = vmatprep.mubr.bf16.mxu0 0
      %1495 = vmatmul.mubr.bf16.gmra.mxu0 %v1321
      %v1496 = vpop.f32.mrf.mxu0
      %v1497 = vadd.f32 %v1074, %v1496
      %v1498 = vpop.f32.mrf.mxu0
      %v1499 = vpop.f32.mrf.mxu0
      %v1500 = vadd.f32 %v1077, %v1499
      %v1501 = vpop.f32.mrf.mxu0
      %1502 = vmatprep.mubr.bf16.mxu0 0
      %1503 = vmatmul.mubr.bf16.gmra.mxu0 %v1324
      %v1504 = vpop.f32.mrf.mxu0
      %v1505 = vadd.f32 %v1082, %v1504
      %v1506 = vpop.f32.mrf.mxu0
      %v1507 = vpop.f32.mrf.mxu0
      %v1508 = vadd.f32 %v1085, %v1507
      %v1509 = vpop.f32.mrf.mxu0
      %1510 = vmatprep.mubr.bf16.mxu0 0
      %1511 = vmatmul.mubr.bf16.gmra.mxu0 %v1327
      %v1512 = vpop.f32.mrf.mxu0
      %v1513 = vadd.f32 %v1090, %v1512
      %v1514 = vpop.f32.mrf.mxu0
      %v1515 = vpop.f32.mrf.mxu0
      %v1516 = vadd.f32 %v1093, %v1515
      %v1517 = vpop.f32.mrf.mxu0
      %1518 = vmatprep.mubr.bf16.mxu0 0
      %1519 = vmatmul.mubr.bf16.gmra.mxu0 %v1330
      %v1520 = vpop.f32.mrf.mxu0
      %v1521 = vadd.f32 %v1098, %v1520
      %v1522 = vpop.f32.mrf.mxu0
      %v1523 = vpop.f32.mrf.mxu0
      %v1524 = vadd.f32 %v1101, %v1523
      %v1525 = vpop.f32.mrf.mxu0
      %1526 = vmatprep.mubr.bf16.mxu0 0
      %1527 = vmatmul.mubr.bf16.gmra.mxu0 %v1333
      %v1528 = vpop.f32.mrf.mxu0
      %v1529 = vadd.f32 %v1106, %v1528
      %v1530 = vpop.f32.mrf.mxu0
      %v1531 = vpop.f32.mrf.mxu0
      %v1532 = vadd.f32 %v1109, %v1531
      %v1533 = vpop.f32.mrf.mxu0
      %1534 = vmatprep.mubr.bf16.mxu0 0
      %1535 = vmatmul.mubr.bf16.gmra.mxu0 %v1336
      %v1536 = vpop.f32.mrf.mxu0
      %v1537 = vadd.f32 %v1114, %v1536
      %v1538 = vpop.f32.mrf.mxu0
      %v1539 = vpop.f32.mrf.mxu0
      %v1540 = vadd.f32 %v1117, %v1539
      %v1541 = vpop.f32.mrf.mxu0
      %1542 = vmatprep.mubr.bf16.mxu0 0
      %1543 = vmatmul.mubr.bf16.gmra.mxu0 %v1339
      %v1544 = vpop.f32.mrf.mxu0
      %v1545 = vadd.f32 %v1122, %v1544
      %v1546 = vpop.f32.mrf.mxu0
      %v1547 = vpop.f32.mrf.mxu0
      %v1548 = vadd.f32 %v1125, %v1547
      %v1549 = vpop.f32.mrf.mxu0
      %1550 = vmatprep.mubr.bf16.mxu0 0
      %1551 = vmatmul.mubr.bf16.gmra.mxu0 %v1342
      %v1552 = vpop.f32.mrf.mxu0
      %v1553 = vadd.f32 %v1130, %v1552
      %v1554 = vpop.f32.mrf.mxu0
      %v1555 = vpop.f32.mrf.mxu0
      %v1556 = vadd.f32 %v1133, %v1555
      %v1557 = vpop.f32.mrf.mxu0
      %1558 = vmatprep.mubr.bf16.mxu0 0
      %1559 = vmatmul.mubr.bf16.gmra.mxu0 %v1345
      %v1560 = vpop.f32.mrf.mxu0
      %v1561 = vadd.f32 %v1138, %v1560
      %v1562 = vpop.f32.mrf.mxu0
      %v1563 = vpop.f32.mrf.mxu0
      %v1564 = vadd.f32 %v1141, %v1563
      %v1565 = vpop.f32.mrf.mxu0
      %1566 = vmatprep.mubr.bf16.mxu0 0
      %1567 = vmatmul.mubr.bf16.gmra.mxu0 %v1348
      %v1568 = vpop.f32.mrf.mxu0
      %v1569 = vadd.f32 %v1146, %v1568
      %v1570 = vpop.f32.mrf.mxu0
      %v1571 = vpop.f32.mrf.mxu0
      %v1572 = vadd.f32 %v1149, %v1571
      %v1573 = vpop.f32.mrf.mxu0
      %1574 = vdwg.mxu0
      %s1575 = scalar_lea.vmem %s2, 16
      %v1576 = vld [vmem:[%s1575] sm:$0xf]
      %v1577 = vld [vmem:[%s1575 + $0x4] sm:$0xf]
      %v1626 = vunpack.c.l.b16 %v483
      %v1627 = vunpack.c.l.b16 %v484
      %v1628 = vunpack.c.l.b16 %v485
      %v1629 = vunpack.c.l.b16 %v486
      %v1630 = vunpack.c.l.b16 %v487
      %v1631 = vunpack.c.l.b16 %v488
      %v1632 = vunpack.c.l.b16 %v489
      %v1633 = vunpack.c.l.b16 %v490
      %v1634 = vunpack.c.l.b16 %v491
      %v1635 = vunpack.c.l.b16 %v492
      %v1636 = vunpack.c.l.b16 %v493
      %v1637 = vunpack.c.l.b16 %v494
      %v1638 = vunpack.c.l.b16 %v495
      %v1639 = vunpack.c.l.b16 %v496
      %v1640 = vunpack.c.l.b16 %v497
      %v1641 = vunpack.c.l.b16 %v498
      %v1642 = vunpack.c.l.b16 %v499
      %v1643 = vunpack.c.l.b16 %v500
      %v1644 = vunpack.c.l.b16 %v501
      %v1645 = vunpack.c.l.b16 %v502
      %v1646 = vunpack.c.l.b16 %v503
      %v1647 = vunpack.c.l.b16 %v504
      %v1648 = vunpack.c.l.b16 %v505
      %v1649 = vunpack.c.l.b16 %v506
      %v1650 = vunpack.c.l.b16 %v507
      %v1651 = vunpack.c.l.b16 %v508
      %v1652 = vunpack.c.l.b16 %v509
      %v1653 = vunpack.c.l.b16 %v510
      %v1654 = vunpack.c.l.b16 %v511
      %v1655 = vunpack.c.l.b16 %v512
      %v1656 = vunpack.c.l.b16 %v513
      %v1657 = vunpack.c.l.b16 %v514
      %v1658 = vunpack.c.l.b16 %v515
      %v1659 = vunpack.c.l.b16 %v516
      %v1660 = vunpack.c.l.b16 %v517
      %v1661 = vunpack.c.l.b16 %v518
      %v1662 = vunpack.c.l.b16 %v519
      %v1663 = vunpack.c.l.b16 %v520
      %v1664 = vunpack.c.l.b16 %v521
      %v1665 = vunpack.c.l.b16 %v522
      %v1666 = vunpack.c.l.b16 %v523
      %v1667 = vunpack.c.l.b16 %v524
      %v1668 = vunpack.c.l.b16 %v525
      %v1669 = vunpack.c.l.b16 %v526
      %v1670 = vunpack.c.l.b16 %v527
      %v1671 = vunpack.c.l.b16 %v528
      %v1672 = vunpack.c.l.b16 %v529
      %v1673 = vunpack.c.l.b16 %v530
      %v1674 = vpack.c.b16 %v1627, %v1626
      %v1675 = vpack.c.b16 %v1629, %v1628
      %v1676 = vpack.c.b16 %v1631, %v1630
      %v1677 = vpack.c.b16 %v1633, %v1632
      %v1678 = vpack.c.b16 %v1635, %v1634
      %v1679 = vpack.c.b16 %v1637, %v1636
      %v1680 = vpack.c.b16 %v1639, %v1638
      %v1681 = vpack.c.b16 %v1641, %v1640
      %v1682 = vpack.c.b16 %v1643, %v1642
      %v1683 = vpack.c.b16 %v1645, %v1644
      %v1684 = vpack.c.b16 %v1647, %v1646
      %v1685 = vpack.c.b16 %v1649, %v1648
      %v1686 = vpack.c.b16 %v1651, %v1650
      %v1687 = vpack.c.b16 %v1653, %v1652
      %v1688 = vpack.c.b16 %v1655, %v1654
      %v1689 = vpack.c.b16 %v1657, %v1656
      %v1690 = vpack.c.b16 %v1659, %v1658
      %v1691 = vpack.c.b16 %v1661, %v1660
      %v1692 = vpack.c.b16 %v1663, %v1662
      %v1693 = vpack.c.b16 %v1665, %v1664
      %v1694 = vpack.c.b16 %v1667, %v1666
      %v1695 = vpack.c.b16 %v1669, %v1668
      %v1696 = vpack.c.b16 %v1671, %v1670
      %v1697 = vpack.c.b16 %v1673, %v1672
      %v1700 = vunpack.c.l.b16 %v1576
      %v1701 = vunpack.c.l.b16 %v1577
      %v1702 = vpack.c.b16 %v1701, %v1700
      %v1705 = vsel %vm854, %v1674, 0
      %v1708 = vsel %vm854, %v1675, 0
      %v1711 = vsel %vm854, %v1676, 0
      %v1714 = vsel %vm854, %v1677, 0
      %v1717 = vsel %vm854, %v1678, 0
      %v1720 = vsel %vm854, %v1679, 0
      %v1723 = vsel %vm854, %v1680, 0
      %v1726 = vsel %vm854, %v1681, 0
      %v1729 = vsel %vm854, %v1682, 0
      %v1732 = vsel %vm854, %v1683, 0
      %v1735 = vsel %vm854, %v1684, 0
      %v1738 = vsel %vm854, %v1685, 0
      %v1741 = vsel %vm854, %v1686, 0
      %v1744 = vsel %vm854, %v1687, 0
      %v1747 = vsel %vm854, %v1688, 0
      %v1750 = vsel %vm854, %v1689, 0
      %v1753 = vsel %vm854, %v1690, 0
      %v1756 = vsel %vm854, %v1691, 0
      %v1759 = vsel %vm854, %v1692, 0
      %v1762 = vsel %vm854, %v1693, 0
      %v1765 = vsel %vm854, %v1694, 0
      %v1768 = vsel %vm854, %v1695, 0
      %v1771 = vsel %vm854, %v1696, 0
      %v1774 = vsel %vm854, %v1697, 0
      %1776 = vmatprep.subr.bf16.mxu0 0
      %1777 = vmatpush1.bf16.msra.mxu0 0
      %1778 = vmatprep.subr.bf16.mxu0 0
      %1779 = vmatpush1.bf16.msra.mxu0 0
      %1780 = vmatprep.subr.bf16.mxu0 0
      %1781 = vmatpush1.bf16.msra.mxu0 0
      %1782 = vmatprep.subr.bf16.mxu0 0
      %1783 = vmatpush1.bf16.msra.mxu0 0
      %1784 = vmatprep.subr.bf16.mxu0 0
      %1785 = vmatpush1.bf16.msra.mxu0 0
      %1786 = vmatprep.subr.bf16.mxu0 0
      %1787 = vmatpush1.bf16.msra.mxu0 0
      %1788 = vmatprep.subr.bf16.mxu0 0
      %1789 = vmatpush1.bf16.msra.mxu0 0
      %1790 = vmatprep.subr.bf16.mxu0 0
      %1791 = vmatpush1.bf16.msra.mxu0 %v1702
      %1792 = vmatprep.subr.bf16.mxu0 0
      %1793 = vmatpush2.bf16.msra.mxu0 0
      %1794 = vmatprep.subr.bf16.mxu0 0
      %1795 = vmatpush2.bf16.msra.mxu0 0
      %1796 = vmatprep.subr.bf16.mxu0 0
      %1797 = vmatpush2.bf16.msra.mxu0 0
      %1798 = vmatprep.subr.bf16.mxu0 0
      %1799 = vmatpush2.bf16.msra.mxu0 0
      %1800 = vmatprep.subr.bf16.mxu0 0
      %1801 = vmatpush2.bf16.msra.mxu0 0
      %1802 = vmatprep.subr.bf16.mxu0 0
      %1803 = vmatpush2.bf16.msra.mxu0 0
      %1804 = vmatprep.subr.bf16.mxu0 0
      %1805 = vmatpush2.bf16.msra.mxu0 0
      %1806 = vmatprep.subr.bf16.mxu0 0
      %1807 = vmatpush2.bf16.msra.mxu0 0
      %1808 = vmatprep.mubr.bf16.mxu0 0
      %1809 = vmatmul.mubr.bf16.gmra.mxu0 %v1705
      %v1810 = vpop.f32.mrf.mxu0
      %v1811 = vadd.f32 0.0, %v1810
      %v1812 = vpop.f32.mrf.mxu0
      %v1813 = vpop.f32.mrf.mxu0
      %v1814 = vadd.f32 0.0, %v1813
      %v1815 = vpop.f32.mrf.mxu0
      %1816 = vmatprep.mubr.bf16.mxu0 0
      %1817 = vmatmul.mubr.bf16.gmra.mxu0 %v1708
      %v1818 = vpop.f32.mrf.mxu0
      %v1819 = vadd.f32 0.0, %v1818
      %v1820 = vpop.f32.mrf.mxu0
      %v1821 = vpop.f32.mrf.mxu0
      %v1822 = vadd.f32 0.0, %v1821
      %v1823 = vpop.f32.mrf.mxu0
      %1824 = vmatprep.mubr.bf16.mxu0 0
      %1825 = vmatmul.mubr.bf16.gmra.mxu0 %v1711
      %v1826 = vpop.f32.mrf.mxu0
      %v1827 = vadd.f32 0.0, %v1826
      %v1828 = vpop.f32.mrf.mxu0
      %v1829 = vpop.f32.mrf.mxu0
      %v1830 = vadd.f32 0.0, %v1829
      %v1831 = vpop.f32.mrf.mxu0
      %1832 = vmatprep.mubr.bf16.mxu0 0
      %1833 = vmatmul.mubr.bf16.gmra.mxu0 %v1714
      %v1834 = vpop.f32.mrf.mxu0
      %v1835 = vadd.f32 0.0, %v1834
      %v1836 = vpop.f32.mrf.mxu0
      %v1837 = vpop.f32.mrf.mxu0
      %v1838 = vadd.f32 0.0, %v1837
      %v1839 = vpop.f32.mrf.mxu0
      %1840 = vmatprep.mubr.bf16.mxu0 0
      %1841 = vmatmul.mubr.bf16.gmra.mxu0 %v1717
      %v1842 = vpop.f32.mrf.mxu0
      %v1843 = vadd.f32 0.0, %v1842
      %v1844 = vpop.f32.mrf.mxu0
      %v1845 = vpop.f32.mrf.mxu0
      %v1846 = vadd.f32 0.0, %v1845
      %v1847 = vpop.f32.mrf.mxu0
      %1848 = vmatprep.mubr.bf16.mxu0 0
      %1849 = vmatmul.mubr.bf16.gmra.mxu0 %v1720
      %v1850 = vpop.f32.mrf.mxu0
      %v1851 = vadd.f32 0.0, %v1850
      %v1852 = vpop.f32.mrf.mxu0
      %v1853 = vpop.f32.mrf.mxu0
      %v1854 = vadd.f32 0.0, %v1853
      %v1855 = vpop.f32.mrf.mxu0
      %1856 = vmatprep.mubr.bf16.mxu0 0
      %1857 = vmatmul.mubr.bf16.gmra.mxu0 %v1723
      %v1858 = vpop.f32.mrf.mxu0
      %v1859 = vadd.f32 0.0, %v1858
      %v1860 = vpop.f32.mrf.mxu0
      %v1861 = vpop.f32.mrf.mxu0
      %v1862 = vadd.f32 0.0, %v1861
      %v1863 = vpop.f32.mrf.mxu0
      %1864 = vmatprep.mubr.bf16.mxu0 0
      %1865 = vmatmul.mubr.bf16.gmra.mxu0 %v1726
      %v1866 = vpop.f32.mrf.mxu0
      %v1867 = vadd.f32 0.0, %v1866
      %v1868 = vpop.f32.mrf.mxu0
      %v1869 = vpop.f32.mrf.mxu0
      %v1870 = vadd.f32 0.0, %v1869
      %v1871 = vpop.f32.mrf.mxu0
      %1872 = vmatprep.mubr.bf16.mxu0 0
      %1873 = vmatmul.mubr.bf16.gmra.mxu0 %v1729
      %v1874 = vpop.f32.mrf.mxu0
      %v1875 = vadd.f32 0.0, %v1874
      %v1876 = vpop.f32.mrf.mxu0
      %v1877 = vpop.f32.mrf.mxu0
      %v1878 = vadd.f32 0.0, %v1877
      %v1879 = vpop.f32.mrf.mxu0
      %1880 = vmatprep.mubr.bf16.mxu0 0
      %1881 = vmatmul.mubr.bf16.gmra.mxu0 %v1732
      %v1882 = vpop.f32.mrf.mxu0
      %v1883 = vadd.f32 0.0, %v1882
      %v1884 = vpop.f32.mrf.mxu0
      %v1885 = vpop.f32.mrf.mxu0
      %v1886 = vadd.f32 0.0, %v1885
      %v1887 = vpop.f32.mrf.mxu0
      %1888 = vmatprep.mubr.bf16.mxu0 0
      %1889 = vmatmul.mubr.bf16.gmra.mxu0 %v1735
      %v1890 = vpop.f32.mrf.mxu0
      %v1891 = vadd.f32 0.0, %v1890
      %v1892 = vpop.f32.mrf.mxu0
      %v1893 = vpop.f32.mrf.mxu0
      %v1894 = vadd.f32 0.0, %v1893
      %v1895 = vpop.f32.mrf.mxu0
      %1896 = vmatprep.mubr.bf16.mxu0 0
      %1897 = vmatmul.mubr.bf16.gmra.mxu0 %v1738
      %v1898 = vpop.f32.mrf.mxu0
      %v1899 = vadd.f32 0.0, %v1898
      %v1900 = vpop.f32.mrf.mxu0
      %v1901 = vpop.f32.mrf.mxu0
      %v1902 = vadd.f32 0.0, %v1901
      %v1903 = vpop.f32.mrf.mxu0
      %1904 = vmatprep.mubr.bf16.mxu0 0
      %1905 = vmatmul.mubr.bf16.gmra.mxu0 %v1741
      %v1906 = vpop.f32.mrf.mxu0
      %v1907 = vadd.f32 0.0, %v1906
      %v1908 = vpop.f32.mrf.mxu0
      %v1909 = vpop.f32.mrf.mxu0
      %v1910 = vadd.f32 0.0, %v1909
      %v1911 = vpop.f32.mrf.mxu0
      %1912 = vmatprep.mubr.bf16.mxu0 0
      %1913 = vmatmul.mubr.bf16.gmra.mxu0 %v1744
      %v1914 = vpop.f32.mrf.mxu0
      %v1915 = vadd.f32 0.0, %v1914
      %v1916 = vpop.f32.mrf.mxu0
      %v1917 = vpop.f32.mrf.mxu0
      %v1918 = vadd.f32 0.0, %v1917
      %v1919 = vpop.f32.mrf.mxu0
      %1920 = vmatprep.mubr.bf16.mxu0 0
      %1921 = vmatmul.mubr.bf16.gmra.mxu0 %v1747
      %v1922 = vpop.f32.mrf.mxu0
      %v1923 = vadd.f32 0.0, %v1922
      %v1924 = vpop.f32.mrf.mxu0
      %v1925 = vpop.f32.mrf.mxu0
      %v1926 = vadd.f32 0.0, %v1925
      %v1927 = vpop.f32.mrf.mxu0
      %1928 = vmatprep.mubr.bf16.mxu0 0
      %1929 = vmatmul.mubr.bf16.gmra.mxu0 %v1750
      %v1930 = vpop.f32.mrf.mxu0
      %v1931 = vadd.f32 0.0, %v1930
      %v1932 = vpop.f32.mrf.mxu0
      %v1933 = vpop.f32.mrf.mxu0
      %v1934 = vadd.f32 0.0, %v1933
      %v1935 = vpop.f32.mrf.mxu0
      %1936 = vmatprep.mubr.bf16.mxu0 0
      %1937 = vmatmul.mubr.bf16.gmra.mxu0 %v1753
      %v1938 = vpop.f32.mrf.mxu0
      %v1939 = vadd.f32 0.0, %v1938
      %v1940 = vpop.f32.mrf.mxu0
      %v1941 = vpop.f32.mrf.mxu0
      %v1942 = vadd.f32 0.0, %v1941
      %v1943 = vpop.f32.mrf.mxu0
      %1944 = vmatprep.mubr.bf16.mxu0 0
      %1945 = vmatmul.mubr.bf16.gmra.mxu0 %v1756
      %v1946 = vpop.f32.mrf.mxu0
      %v1947 = vadd.f32 0.0, %v1946
      %v1948 = vpop.f32.mrf.mxu0
      %v1949 = vpop.f32.mrf.mxu0
      %v1950 = vadd.f32 0.0, %v1949
      %v1951 = vpop.f32.mrf.mxu0
      %1952 = vmatprep.mubr.bf16.mxu0 0
      %1953 = vmatmul.mubr.bf16.gmra.mxu0 %v1759
      %v1954 = vpop.f32.mrf.mxu0
      %v1955 = vadd.f32 0.0, %v1954
      %v1956 = vpop.f32.mrf.mxu0
      %v1957 = vpop.f32.mrf.mxu0
      %v1958 = vadd.f32 0.0, %v1957
      %v1959 = vpop.f32.mrf.mxu0
      %1960 = vmatprep.mubr.bf16.mxu0 0
      %1961 = vmatmul.mubr.bf16.gmra.mxu0 %v1762
      %v1962 = vpop.f32.mrf.mxu0
      %v1963 = vadd.f32 0.0, %v1962
      %v1964 = vpop.f32.mrf.mxu0
      %v1965 = vpop.f32.mrf.mxu0
      %v1966 = vadd.f32 0.0, %v1965
      %v1967 = vpop.f32.mrf.mxu0
      %1968 = vmatprep.mubr.bf16.mxu0 0
      %1969 = vmatmul.mubr.bf16.gmra.mxu0 %v1765
      %v1970 = vpop.f32.mrf.mxu0
      %v1971 = vadd.f32 0.0, %v1970
      %v1972 = vpop.f32.mrf.mxu0
      %v1973 = vpop.f32.mrf.mxu0
      %v1974 = vadd.f32 0.0, %v1973
      %v1975 = vpop.f32.mrf.mxu0
      %1976 = vmatprep.mubr.bf16.mxu0 0
      %1977 = vmatmul.mubr.bf16.gmra.mxu0 %v1768
      %v1978 = vpop.f32.mrf.mxu0
      %v1979 = vadd.f32 0.0, %v1978
      %v1980 = vpop.f32.mrf.mxu0
      %v1981 = vpop.f32.mrf.mxu0
      %v1982 = vadd.f32 0.0, %v1981
      %v1983 = vpop.f32.mrf.mxu0
      %1984 = vmatprep.mubr.bf16.mxu0 0
      %1985 = vmatmul.mubr.bf16.gmra.mxu0 %v1771
      %v1986 = vpop.f32.mrf.mxu0
      %v1987 = vadd.f32 0.0, %v1986
      %v1988 = vpop.f32.mrf.mxu0
      %v1989 = vpop.f32.mrf.mxu0
      %v1990 = vadd.f32 0.0, %v1989
      %v1991 = vpop.f32.mrf.mxu0
      %1992 = vmatprep.mubr.bf16.mxu0 0
      %1993 = vmatmul.mubr.bf16.gmra.mxu0 %v1774
      %v1994 = vpop.f32.mrf.mxu0
      %v1995 = vadd.f32 0.0, %v1994
      %v1996 = vpop.f32.mrf.mxu0
      %v1997 = vpop.f32.mrf.mxu0
      %v1998 = vadd.f32 0.0, %v1997
      %v1999 = vpop.f32.mrf.mxu0
      %2000 = vdwg.mxu0
      %v2001 = vadd.f32 %v1385, %v1811
      %v2002 = vadd.f32 %v1388, %v1814
      %v2003 = vadd.f32 %v1393, %v1819
      %v2004 = vadd.f32 %v1396, %v1822
      %v2005 = vadd.f32 %v1401, %v1827
      %v2006 = vadd.f32 %v1404, %v1830
      %v2007 = vadd.f32 %v1409, %v1835
      %v2008 = vadd.f32 %v1412, %v1838
      %v2009 = vadd.f32 %v1417, %v1843
      %v2010 = vadd.f32 %v1420, %v1846
      %v2011 = vadd.f32 %v1425, %v1851
      %v2012 = vadd.f32 %v1428, %v1854
      %v2013 = vadd.f32 %v1433, %v1859
      %v2014 = vadd.f32 %v1436, %v1862
      %v2015 = vadd.f32 %v1441, %v1867
      %v2016 = vadd.f32 %v1444, %v1870
      %v2017 = vadd.f32 %v1449, %v1875
      %v2018 = vadd.f32 %v1452, %v1878
      %v2019 = vadd.f32 %v1457, %v1883
      %v2020 = vadd.f32 %v1460, %v1886
      %v2021 = vadd.f32 %v1465, %v1891
      %v2022 = vadd.f32 %v1468, %v1894
      %v2023 = vadd.f32 %v1473, %v1899
      %v2024 = vadd.f32 %v1476, %v1902
      %v2025 = vadd.f32 %v1481, %v1907
      %v2026 = vadd.f32 %v1484, %v1910
      %v2027 = vadd.f32 %v1489, %v1915
      %v2028 = vadd.f32 %v1492, %v1918
      %v2029 = vadd.f32 %v1497, %v1923
      %v2030 = vadd.f32 %v1500, %v1926
      %v2031 = vadd.f32 %v1505, %v1931
      %v2032 = vadd.f32 %v1508, %v1934
      %v2033 = vadd.f32 %v1513, %v1939
      %v2034 = vadd.f32 %v1516, %v1942
      %v2035 = vadd.f32 %v1521, %v1947
      %v2036 = vadd.f32 %v1524, %v1950
      %v2037 = vadd.f32 %v1529, %v1955
      %v2038 = vadd.f32 %v1532, %v1958
      %v2039 = vadd.f32 %v1537, %v1963
      %v2040 = vadd.f32 %v1540, %v1966
      %v2041 = vadd.f32 %v1545, %v1971
      %v2042 = vadd.f32 %v1548, %v1974
      %v2043 = vadd.f32 %v1553, %v1979
      %v2044 = vadd.f32 %v1556, %v1982
      %v2045 = vadd.f32 %v1561, %v1987
      %v2046 = vadd.f32 %v1564, %v1990
      %v2047 = vadd.f32 %v1569, %v1995
      %v2048 = vadd.f32 %v1572, %v1998
      %s2049 = scalar_lea.vmem %s2, 24
      %v2050 = vld [vmem:[%s2049] sm:$0xf]
      %v2051 = vld [vmem:[%s2049 + $0x4] sm:$0xf]
      %v2100 = vunpack.c.l.b16 %v579
      %v2101 = vunpack.c.l.b16 %v580
      %v2102 = vunpack.c.l.b16 %v581
      %v2103 = vunpack.c.l.b16 %v582
      %v2104 = vunpack.c.l.b16 %v583
      %v2105 = vunpack.c.l.b16 %v584
      %v2106 = vunpack.c.l.b16 %v585
      %v2107 = vunpack.c.l.b16 %v586
      %v2108 = vunpack.c.l.b16 %v587
      %v2109 = vunpack.c.l.b16 %v588
      %v2110 = vunpack.c.l.b16 %v589
      %v2111 = vunpack.c.l.b16 %v590
      %v2112 = vunpack.c.l.b16 %v591
      %v2113 = vunpack.c.l.b16 %v592
      %v2114 = vunpack.c.l.b16 %v593
      %v2115 = vunpack.c.l.b16 %v594
      %v2116 = vunpack.c.l.b16 %v595
      %v2117 = vunpack.c.l.b16 %v596
      %v2118 = vunpack.c.l.b16 %v597
      %v2119 = vunpack.c.l.b16 %v598
      %v2120 = vunpack.c.l.b16 %v599
      %v2121 = vunpack.c.l.b16 %v600
      %v2122 = vunpack.c.l.b16 %v601
      %v2123 = vunpack.c.l.b16 %v602
      %v2124 = vunpack.c.l.b16 %v603
      %v2125 = vunpack.c.l.b16 %v604
      %v2126 = vunpack.c.l.b16 %v605
      %v2127 = vunpack.c.l.b16 %v606
      %v2128 = vunpack.c.l.b16 %v607
      %v2129 = vunpack.c.l.b16 %v608
      %v2130 = vunpack.c.l.b16 %v609
      %v2131 = vunpack.c.l.b16 %v610
      %v2132 = vunpack.c.l.b16 %v611
      %v2133 = vunpack.c.l.b16 %v612
      %v2134 = vunpack.c.l.b16 %v613
      %v2135 = vunpack.c.l.b16 %v614
      %v2136 = vunpack.c.l.b16 %v615
      %v2137 = vunpack.c.l.b16 %v616
      %v2138 = vunpack.c.l.b16 %v617
      %v2139 = vunpack.c.l.b16 %v618
      %v2140 = vunpack.c.l.b16 %v619
      %v2141 = vunpack.c.l.b16 %v620
      %v2142 = vunpack.c.l.b16 %v621
      %v2143 = vunpack.c.l.b16 %v622
      %v2144 = vunpack.c.l.b16 %v623
      %v2145 = vunpack.c.l.b16 %v624
      %v2146 = vunpack.c.l.b16 %v625
      %v2147 = vunpack.c.l.b16 %v626
      %v2148 = vpack.c.b16 %v2101, %v2100
      %v2149 = vpack.c.b16 %v2103, %v2102
      %v2150 = vpack.c.b16 %v2105, %v2104
      %v2151 = vpack.c.b16 %v2107, %v2106
      %v2152 = vpack.c.b16 %v2109, %v2108
      %v2153 = vpack.c.b16 %v2111, %v2110
      %v2154 = vpack.c.b16 %v2113, %v2112
      %v2155 = vpack.c.b16 %v2115, %v2114
      %v2156 = vpack.c.b16 %v2117, %v2116
      %v2157 = vpack.c.b16 %v2119, %v2118
      %v2158 = vpack.c.b16 %v2121, %v2120
      %v2159 = vpack.c.b16 %v2123, %v2122
      %v2160 = vpack.c.b16 %v2125, %v2124
      %v2161 = vpack.c.b16 %v2127, %v2126
      %v2162 = vpack.c.b16 %v2129, %v2128
      %v2163 = vpack.c.b16 %v2131, %v2130
      %v2164 = vpack.c.b16 %v2133, %v2132
      %v2165 = vpack.c.b16 %v2135, %v2134
      %v2166 = vpack.c.b16 %v2137, %v2136
      %v2167 = vpack.c.b16 %v2139, %v2138
      %v2168 = vpack.c.b16 %v2141, %v2140
      %v2169 = vpack.c.b16 %v2143, %v2142
      %v2170 = vpack.c.b16 %v2145, %v2144
      %v2171 = vpack.c.b16 %v2147, %v2146
      %v2174 = vunpack.c.l.b16 %v2050
      %v2175 = vunpack.c.l.b16 %v2051
      %v2176 = vpack.c.b16 %v2175, %v2174
      %v2179 = vsel %vm854, %v2148, 0
      %v2182 = vsel %vm854, %v2149, 0
      %v2185 = vsel %vm854, %v2150, 0
      %v2188 = vsel %vm854, %v2151, 0
      %v2191 = vsel %vm854, %v2152, 0
      %v2194 = vsel %vm854, %v2153, 0
      %v2197 = vsel %vm854, %v2154, 0
      %v2200 = vsel %vm854, %v2155, 0
      %v2203 = vsel %vm854, %v2156, 0
      %v2206 = vsel %vm854, %v2157, 0
      %v2209 = vsel %vm854, %v2158, 0
      %v2212 = vsel %vm854, %v2159, 0
      %v2215 = vsel %vm854, %v2160, 0
      %v2218 = vsel %vm854, %v2161, 0
      %v2221 = vsel %vm854, %v2162, 0
      %v2224 = vsel %vm854, %v2163, 0
      %v2227 = vsel %vm854, %v2164, 0
      %v2230 = vsel %vm854, %v2165, 0
      %v2233 = vsel %vm854, %v2166, 0
      %v2236 = vsel %vm854, %v2167, 0
      %v2239 = vsel %vm854, %v2168, 0
      %v2242 = vsel %vm854, %v2169, 0
      %v2245 = vsel %vm854, %v2170, 0
      %v2248 = vsel %vm854, %v2171, 0
      %2250 = vmatprep.subr.bf16.mxu0 0
      %2251 = vmatpush1.bf16.msra.mxu0 0
      %2252 = vmatprep.subr.bf16.mxu0 0
      %2253 = vmatpush1.bf16.msra.mxu0 0
      %2254 = vmatprep.subr.bf16.mxu0 0
      %2255 = vmatpush1.bf16.msra.mxu0 0
      %2256 = vmatprep.subr.bf16.mxu0 0
      %2257 = vmatpush1.bf16.msra.mxu0 0
      %2258 = vmatprep.subr.bf16.mxu0 0
      %2259 = vmatpush1.bf16.msra.mxu0 0
      %2260 = vmatprep.subr.bf16.mxu0 0
      %2261 = vmatpush1.bf16.msra.mxu0 0
      %2262 = vmatprep.subr.bf16.mxu0 0
      %2263 = vmatpush1.bf16.msra.mxu0 0
      %2264 = vmatprep.subr.bf16.mxu0 0
      %2265 = vmatpush1.bf16.msra.mxu0 %v2176
      %2266 = vmatprep.subr.bf16.mxu0 0
      %2267 = vmatpush2.bf16.msra.mxu0 0
      %2268 = vmatprep.subr.bf16.mxu0 0
      %2269 = vmatpush2.bf16.msra.mxu0 0
      %2270 = vmatprep.subr.bf16.mxu0 0
      %2271 = vmatpush2.bf16.msra.mxu0 0
      %2272 = vmatprep.subr.bf16.mxu0 0
      %2273 = vmatpush2.bf16.msra.mxu0 0
      %2274 = vmatprep.subr.bf16.mxu0 0
      %2275 = vmatpush2.bf16.msra.mxu0 0
      %2276 = vmatprep.subr.bf16.mxu0 0
      %2277 = vmatpush2.bf16.msra.mxu0 0
      %2278 = vmatprep.subr.bf16.mxu0 0
      %2279 = vmatpush2.bf16.msra.mxu0 0
      %2280 = vmatprep.subr.bf16.mxu0 0
      %2281 = vmatpush2.bf16.msra.mxu0 0
      %2282 = vmatprep.mubr.bf16.mxu0 0
      %2283 = vmatmul.mubr.bf16.gmra.mxu0 %v2179
      %v2284 = vpop.f32.mrf.mxu0
      %v2285 = vadd.f32 0.0, %v2284
      %v2286 = vpop.f32.mrf.mxu0
      %v2287 = vpop.f32.mrf.mxu0
      %v2288 = vadd.f32 0.0, %v2287
      %v2289 = vpop.f32.mrf.mxu0
      %2290 = vmatprep.mubr.bf16.mxu0 0
      %2291 = vmatmul.mubr.bf16.gmra.mxu0 %v2182
      %v2292 = vpop.f32.mrf.mxu0
      %v2293 = vadd.f32 0.0, %v2292
      %v2294 = vpop.f32.mrf.mxu0
      %v2295 = vpop.f32.mrf.mxu0
      %v2296 = vadd.f32 0.0, %v2295
      %v2297 = vpop.f32.mrf.mxu0
      %2298 = vmatprep.mubr.bf16.mxu0 0
      %2299 = vmatmul.mubr.bf16.gmra.mxu0 %v2185
      %v2300 = vpop.f32.mrf.mxu0
      %v2301 = vadd.f32 0.0, %v2300
      %v2302 = vpop.f32.mrf.mxu0
      %v2303 = vpop.f32.mrf.mxu0
      %v2304 = vadd.f32 0.0, %v2303
      %v2305 = vpop.f32.mrf.mxu0
      %2306 = vmatprep.mubr.bf16.mxu0 0
      %2307 = vmatmul.mubr.bf16.gmra.mxu0 %v2188
      %v2308 = vpop.f32.mrf.mxu0
      %v2309 = vadd.f32 0.0, %v2308
      %v2310 = vpop.f32.mrf.mxu0
      %v2311 = vpop.f32.mrf.mxu0
      %v2312 = vadd.f32 0.0, %v2311
      %v2313 = vpop.f32.mrf.mxu0
      %2314 = vmatprep.mubr.bf16.mxu0 0
      %2315 = vmatmul.mubr.bf16.gmra.mxu0 %v2191
      %v2316 = vpop.f32.mrf.mxu0
      %v2317 = vadd.f32 0.0, %v2316
      %v2318 = vpop.f32.mrf.mxu0
      %v2319 = vpop.f32.mrf.mxu0
      %v2320 = vadd.f32 0.0, %v2319
      %v2321 = vpop.f32.mrf.mxu0
      %2322 = vmatprep.mubr.bf16.mxu0 0
      %2323 = vmatmul.mubr.bf16.gmra.mxu0 %v2194
      %v2324 = vpop.f32.mrf.mxu0
      %v2325 = vadd.f32 0.0, %v2324
      %v2326 = vpop.f32.mrf.mxu0
      %v2327 = vpop.f32.mrf.mxu0
      %v2328 = vadd.f32 0.0, %v2327
      %v2329 = vpop.f32.mrf.mxu0
      %2330 = vmatprep.mubr.bf16.mxu0 0
      %2331 = vmatmul.mubr.bf16.gmra.mxu0 %v2197
      %v2332 = vpop.f32.mrf.mxu0
      %v2333 = vadd.f32 0.0, %v2332
      %v2334 = vpop.f32.mrf.mxu0
      %v2335 = vpop.f32.mrf.mxu0
      %v2336 = vadd.f32 0.0, %v2335
      %v2337 = vpop.f32.mrf.mxu0
      %2338 = vmatprep.mubr.bf16.mxu0 0
      %2339 = vmatmul.mubr.bf16.gmra.mxu0 %v2200
      %v2340 = vpop.f32.mrf.mxu0
      %v2341 = vadd.f32 0.0, %v2340
      %v2342 = vpop.f32.mrf.mxu0
      %v2343 = vpop.f32.mrf.mxu0
      %v2344 = vadd.f32 0.0, %v2343
      %v2345 = vpop.f32.mrf.mxu0
      %2346 = vmatprep.mubr.bf16.mxu0 0
      %2347 = vmatmul.mubr.bf16.gmra.mxu0 %v2203
      %v2348 = vpop.f32.mrf.mxu0
      %v2349 = vadd.f32 0.0, %v2348
      %v2350 = vpop.f32.mrf.mxu0
      %v2351 = vpop.f32.mrf.mxu0
      %v2352 = vadd.f32 0.0, %v2351
      %v2353 = vpop.f32.mrf.mxu0
      %2354 = vmatprep.mubr.bf16.mxu0 0
      %2355 = vmatmul.mubr.bf16.gmra.mxu0 %v2206
      %v2356 = vpop.f32.mrf.mxu0
      %v2357 = vadd.f32 0.0, %v2356
      %v2358 = vpop.f32.mrf.mxu0
      %v2359 = vpop.f32.mrf.mxu0
      %v2360 = vadd.f32 0.0, %v2359
      %v2361 = vpop.f32.mrf.mxu0
      %2362 = vmatprep.mubr.bf16.mxu0 0
      %2363 = vmatmul.mubr.bf16.gmra.mxu0 %v2209
      %v2364 = vpop.f32.mrf.mxu0
      %v2365 = vadd.f32 0.0, %v2364
      %v2366 = vpop.f32.mrf.mxu0
      %v2367 = vpop.f32.mrf.mxu0
      %v2368 = vadd.f32 0.0, %v2367
      %v2369 = vpop.f32.mrf.mxu0
      %2370 = vmatprep.mubr.bf16.mxu0 0
      %2371 = vmatmul.mubr.bf16.gmra.mxu0 %v2212
      %v2372 = vpop.f32.mrf.mxu0
      %v2373 = vadd.f32 0.0, %v2372
      %v2374 = vpop.f32.mrf.mxu0
      %v2375 = vpop.f32.mrf.mxu0
      %v2376 = vadd.f32 0.0, %v2375
      %v2377 = vpop.f32.mrf.mxu0
      %2378 = vmatprep.mubr.bf16.mxu0 0
      %2379 = vmatmul.mubr.bf16.gmra.mxu0 %v2215
      %v2380 = vpop.f32.mrf.mxu0
      %v2381 = vadd.f32 0.0, %v2380
      %v2382 = vpop.f32.mrf.mxu0
      %v2383 = vpop.f32.mrf.mxu0
      %v2384 = vadd.f32 0.0, %v2383
      %v2385 = vpop.f32.mrf.mxu0
      %2386 = vmatprep.mubr.bf16.mxu0 0
      %2387 = vmatmul.mubr.bf16.gmra.mxu0 %v2218
      %v2388 = vpop.f32.mrf.mxu0
      %v2389 = vadd.f32 0.0, %v2388
      %v2390 = vpop.f32.mrf.mxu0
      %v2391 = vpop.f32.mrf.mxu0
      %v2392 = vadd.f32 0.0, %v2391
      %v2393 = vpop.f32.mrf.mxu0
      %2394 = vmatprep.mubr.bf16.mxu0 0
      %2395 = vmatmul.mubr.bf16.gmra.mxu0 %v2221
      %v2396 = vpop.f32.mrf.mxu0
      %v2397 = vadd.f32 0.0, %v2396
      %v2398 = vpop.f32.mrf.mxu0
      %v2399 = vpop.f32.mrf.mxu0
      %v2400 = vadd.f32 0.0, %v2399
      %v2401 = vpop.f32.mrf.mxu0
      %2402 = vmatprep.mubr.bf16.mxu0 0
      %2403 = vmatmul.mubr.bf16.gmra.mxu0 %v2224
      %v2404 = vpop.f32.mrf.mxu0
      %v2405 = vadd.f32 0.0, %v2404
      %v2406 = vpop.f32.mrf.mxu0
      %v2407 = vpop.f32.mrf.mxu0
      %v2408 = vadd.f32 0.0, %v2407
      %v2409 = vpop.f32.mrf.mxu0
      %2410 = vmatprep.mubr.bf16.mxu0 0
      %2411 = vmatmul.mubr.bf16.gmra.mxu0 %v2227
      %v2412 = vpop.f32.mrf.mxu0
      %v2413 = vadd.f32 0.0, %v2412
      %v2414 = vpop.f32.mrf.mxu0
      %v2415 = vpop.f32.mrf.mxu0
      %v2416 = vadd.f32 0.0, %v2415
      %v2417 = vpop.f32.mrf.mxu0
      %2418 = vmatprep.mubr.bf16.mxu0 0
      %2419 = vmatmul.mubr.bf16.gmra.mxu0 %v2230
      %v2420 = vpop.f32.mrf.mxu0
      %v2421 = vadd.f32 0.0, %v2420
      %v2422 = vpop.f32.mrf.mxu0
      %v2423 = vpop.f32.mrf.mxu0
      %v2424 = vadd.f32 0.0, %v2423
      %v2425 = vpop.f32.mrf.mxu0
      %2426 = vmatprep.mubr.bf16.mxu0 0
      %2427 = vmatmul.mubr.bf16.gmra.mxu0 %v2233
      %v2428 = vpop.f32.mrf.mxu0
      %v2429 = vadd.f32 0.0, %v2428
      %v2430 = vpop.f32.mrf.mxu0
      %v2431 = vpop.f32.mrf.mxu0
      %v2432 = vadd.f32 0.0, %v2431
      %v2433 = vpop.f32.mrf.mxu0
      %2434 = vmatprep.mubr.bf16.mxu0 0
      %2435 = vmatmul.mubr.bf16.gmra.mxu0 %v2236
      %v2436 = vpop.f32.mrf.mxu0
      %v2437 = vadd.f32 0.0, %v2436
      %v2438 = vpop.f32.mrf.mxu0
      %v2439 = vpop.f32.mrf.mxu0
      %v2440 = vadd.f32 0.0, %v2439
      %v2441 = vpop.f32.mrf.mxu0
      %2442 = vmatprep.mubr.bf16.mxu0 0
      %2443 = vmatmul.mubr.bf16.gmra.mxu0 %v2239
      %v2444 = vpop.f32.mrf.mxu0
      %v2445 = vadd.f32 0.0, %v2444
      %v2446 = vpop.f32.mrf.mxu0
      %v2447 = vpop.f32.mrf.mxu0
      %v2448 = vadd.f32 0.0, %v2447
      %v2449 = vpop.f32.mrf.mxu0
      %2450 = vmatprep.mubr.bf16.mxu0 0
      %2451 = vmatmul.mubr.bf16.gmra.mxu0 %v2242
      %v2452 = vpop.f32.mrf.mxu0
      %v2453 = vadd.f32 0.0, %v2452
      %v2454 = vpop.f32.mrf.mxu0
      %v2455 = vpop.f32.mrf.mxu0
      %v2456 = vadd.f32 0.0, %v2455
      %v2457 = vpop.f32.mrf.mxu0
      %2458 = vmatprep.mubr.bf16.mxu0 0
      %2459 = vmatmul.mubr.bf16.gmra.mxu0 %v2245
      %v2460 = vpop.f32.mrf.mxu0
      %v2461 = vadd.f32 0.0, %v2460
      %v2462 = vpop.f32.mrf.mxu0
      %v2463 = vpop.f32.mrf.mxu0
      %v2464 = vadd.f32 0.0, %v2463
      %v2465 = vpop.f32.mrf.mxu0
      %2466 = vmatprep.mubr.bf16.mxu0 0
      %2467 = vmatmul.mubr.bf16.gmra.mxu0 %v2248
      %v2468 = vpop.f32.mrf.mxu0
      %v2469 = vadd.f32 0.0, %v2468
      %v2470 = vpop.f32.mrf.mxu0
      %v2471 = vpop.f32.mrf.mxu0
      %v2472 = vadd.f32 0.0, %v2471
      %v2473 = vpop.f32.mrf.mxu0
      %2474 = vdwg.mxu0
      %v2475 = vadd.f32 %v2001, %v2285
      %v2476 = vadd.f32 %v2002, %v2288
      %v2477 = vadd.f32 %v2003, %v2293
      %v2478 = vadd.f32 %v2004, %v2296
      %v2479 = vadd.f32 %v2005, %v2301
      %v2480 = vadd.f32 %v2006, %v2304
      %v2481 = vadd.f32 %v2007, %v2309
      %v2482 = vadd.f32 %v2008, %v2312
      %v2483 = vadd.f32 %v2009, %v2317
      %v2484 = vadd.f32 %v2010, %v2320
      %v2485 = vadd.f32 %v2011, %v2325
      %v2486 = vadd.f32 %v2012, %v2328
      %v2487 = vadd.f32 %v2013, %v2333
      %v2488 = vadd.f32 %v2014, %v2336
      %v2489 = vadd.f32 %v2015, %v2341
      %v2490 = vadd.f32 %v2016, %v2344
      %v2491 = vadd.f32 %v2017, %v2349
      %v2492 = vadd.f32 %v2018, %v2352
      %v2493 = vadd.f32 %v2019, %v2357
      %v2494 = vadd.f32 %v2020, %v2360
      %v2495 = vadd.f32 %v2021, %v2365
      %v2496 = vadd.f32 %v2022, %v2368
      %v2497 = vadd.f32 %v2023, %v2373
      %v2498 = vadd.f32 %v2024, %v2376
      %v2499 = vadd.f32 %v2025, %v2381
      %v2500 = vadd.f32 %v2026, %v2384
      %v2501 = vadd.f32 %v2027, %v2389
      %v2502 = vadd.f32 %v2028, %v2392
      %v2503 = vadd.f32 %v2029, %v2397
      %v2504 = vadd.f32 %v2030, %v2400
      %v2505 = vadd.f32 %v2031, %v2405
      %v2506 = vadd.f32 %v2032, %v2408
      %v2507 = vadd.f32 %v2033, %v2413
      %v2508 = vadd.f32 %v2034, %v2416
      %v2509 = vadd.f32 %v2035, %v2421
      %v2510 = vadd.f32 %v2036, %v2424
      %v2511 = vadd.f32 %v2037, %v2429
      %v2512 = vadd.f32 %v2038, %v2432
      %v2513 = vadd.f32 %v2039, %v2437
      %v2514 = vadd.f32 %v2040, %v2440
      %v2515 = vadd.f32 %v2041, %v2445
      %v2516 = vadd.f32 %v2042, %v2448
      %v2517 = vadd.f32 %v2043, %v2453
      %v2518 = vadd.f32 %v2044, %v2456
      %v2519 = vadd.f32 %v2045, %v2461
      %v2520 = vadd.f32 %v2046, %v2464
      %v2521 = vadd.f32 %v2047, %v2469
      %v2522 = vadd.f32 %v2048, %v2472
      %s2523 = scalar_lea.vmem %s2, 32
      %v2524 = vld [vmem:[%s2523] sm:$0xf]
      %v2525 = vld [vmem:[%s2523 + $0x4] sm:$0xf]
      %v2574 = vunpack.c.l.b16 %v675
      %v2575 = vunpack.c.l.b16 %v676
      %v2576 = vunpack.c.l.b16 %v677
      %v2577 = vunpack.c.l.b16 %v678
      %v2578 = vunpack.c.l.b16 %v679
      %v2579 = vunpack.c.l.b16 %v680
      %v2580 = vunpack.c.l.b16 %v681
      %v2581 = vunpack.c.l.b16 %v682
      %v2582 = vunpack.c.l.b16 %v683
      %v2583 = vunpack.c.l.b16 %v684
      %v2584 = vunpack.c.l.b16 %v685
      %v2585 = vunpack.c.l.b16 %v686
      %v2586 = vunpack.c.l.b16 %v687
      %v2587 = vunpack.c.l.b16 %v688
      %v2588 = vunpack.c.l.b16 %v689
      %v2589 = vunpack.c.l.b16 %v690
      %v2590 = vunpack.c.l.b16 %v691
      %v2591 = vunpack.c.l.b16 %v692
      %v2592 = vunpack.c.l.b16 %v693
      %v2593 = vunpack.c.l.b16 %v694
      %v2594 = vunpack.c.l.b16 %v695
      %v2595 = vunpack.c.l.b16 %v696
      %v2596 = vunpack.c.l.b16 %v697
      %v2597 = vunpack.c.l.b16 %v698
      %v2598 = vunpack.c.l.b16 %v699
      %v2599 = vunpack.c.l.b16 %v700
      %v2600 = vunpack.c.l.b16 %v701
      %v2601 = vunpack.c.l.b16 %v702
      %v2602 = vunpack.c.l.b16 %v703
      %v2603 = vunpack.c.l.b16 %v704
      %v2604 = vunpack.c.l.b16 %v705
      %v2605 = vunpack.c.l.b16 %v706
      %v2606 = vunpack.c.l.b16 %v707
      %v2607 = vunpack.c.l.b16 %v708
      %v2608 = vunpack.c.l.b16 %v709
      %v2609 = vunpack.c.l.b16 %v710
      %v2610 = vunpack.c.l.b16 %v711
      %v2611 = vunpack.c.l.b16 %v712
      %v2612 = vunpack.c.l.b16 %v713
      %v2613 = vunpack.c.l.b16 %v714
      %v2614 = vunpack.c.l.b16 %v715
      %v2615 = vunpack.c.l.b16 %v716
      %v2616 = vunpack.c.l.b16 %v717
      %v2617 = vunpack.c.l.b16 %v718
      %v2618 = vunpack.c.l.b16 %v719
      %v2619 = vunpack.c.l.b16 %v720
      %v2620 = vunpack.c.l.b16 %v721
      %v2621 = vunpack.c.l.b16 %v722
      %v2622 = vpack.c.b16 %v2575, %v2574
      %v2623 = vpack.c.b16 %v2577, %v2576
      %v2624 = vpack.c.b16 %v2579, %v2578
      %v2625 = vpack.c.b16 %v2581, %v2580
      %v2626 = vpack.c.b16 %v2583, %v2582
      %v2627 = vpack.c.b16 %v2585, %v2584
      %v2628 = vpack.c.b16 %v2587, %v2586
      %v2629 = vpack.c.b16 %v2589, %v2588
      %v2630 = vpack.c.b16 %v2591, %v2590
      %v2631 = vpack.c.b16 %v2593, %v2592
      %v2632 = vpack.c.b16 %v2595, %v2594
      %v2633 = vpack.c.b16 %v2597, %v2596
      %v2634 = vpack.c.b16 %v2599, %v2598
      %v2635 = vpack.c.b16 %v2601, %v2600
      %v2636 = vpack.c.b16 %v2603, %v2602
      %v2637 = vpack.c.b16 %v2605, %v2604
      %v2638 = vpack.c.b16 %v2607, %v2606
      %v2639 = vpack.c.b16 %v2609, %v2608
      %v2640 = vpack.c.b16 %v2611, %v2610
      %v2641 = vpack.c.b16 %v2613, %v2612
      %v2642 = vpack.c.b16 %v2615, %v2614
      %v2643 = vpack.c.b16 %v2617, %v2616
      %v2644 = vpack.c.b16 %v2619, %v2618
      %v2645 = vpack.c.b16 %v2621, %v2620
      %v2648 = vunpack.c.l.b16 %v2524
      %v2649 = vunpack.c.l.b16 %v2525
      %v2650 = vpack.c.b16 %v2649, %v2648
      %v2653 = vsel %vm854, %v2622, 0
      %v2656 = vsel %vm854, %v2623, 0
      %v2659 = vsel %vm854, %v2624, 0
      %v2662 = vsel %vm854, %v2625, 0
      %v2665 = vsel %vm854, %v2626, 0
      %v2668 = vsel %vm854, %v2627, 0
      %v2671 = vsel %vm854, %v2628, 0
      %v2674 = vsel %vm854, %v2629, 0
      %v2677 = vsel %vm854, %v2630, 0
      %v2680 = vsel %vm854, %v2631, 0
      %v2683 = vsel %vm854, %v2632, 0
      %v2686 = vsel %vm854, %v2633, 0
      %v2689 = vsel %vm854, %v2634, 0
      %v2692 = vsel %vm854, %v2635, 0
      %v2695 = vsel %vm854, %v2636, 0
      %v2698 = vsel %vm854, %v2637, 0
      %v2701 = vsel %vm854, %v2638, 0
      %v2704 = vsel %vm854, %v2639, 0
      %v2707 = vsel %vm854, %v2640, 0
      %v2710 = vsel %vm854, %v2641, 0
      %v2713 = vsel %vm854, %v2642, 0
      %v2716 = vsel %vm854, %v2643, 0
      %v2719 = vsel %vm854, %v2644, 0
      %v2722 = vsel %vm854, %v2645, 0
      %2724 = vmatprep.subr.bf16.mxu0 0
      %2725 = vmatpush1.bf16.msra.mxu0 0
      %2726 = vmatprep.subr.bf16.mxu0 0
      %2727 = vmatpush1.bf16.msra.mxu0 0
      %2728 = vmatprep.subr.bf16.mxu0 0
      %2729 = vmatpush1.bf16.msra.mxu0 0
      %2730 = vmatprep.subr.bf16.mxu0 0
      %2731 = vmatpush1.bf16.msra.mxu0 0
      %2732 = vmatprep.subr.bf16.mxu0 0
      %2733 = vmatpush1.bf16.msra.mxu0 0
      %2734 = vmatprep.subr.bf16.mxu0 0
      %2735 = vmatpush1.bf16.msra.mxu0 0
      %2736 = vmatprep.subr.bf16.mxu0 0
      %2737 = vmatpush1.bf16.msra.mxu0 0
      %2738 = vmatprep.subr.bf16.mxu0 0
      %2739 = vmatpush1.bf16.msra.mxu0 %v2650
      %2740 = vmatprep.subr.bf16.mxu0 0
      %2741 = vmatpush2.bf16.msra.mxu0 0
      %2742 = vmatprep.subr.bf16.mxu0 0
      %2743 = vmatpush2.bf16.msra.mxu0 0
      %2744 = vmatprep.subr.bf16.mxu0 0
      %2745 = vmatpush2.bf16.msra.mxu0 0
      %2746 = vmatprep.subr.bf16.mxu0 0
      %2747 = vmatpush2.bf16.msra.mxu0 0
      %2748 = vmatprep.subr.bf16.mxu0 0
      %2749 = vmatpush2.bf16.msra.mxu0 0
      %2750 = vmatprep.subr.bf16.mxu0 0
      %2751 = vmatpush2.bf16.msra.mxu0 0
      %2752 = vmatprep.subr.bf16.mxu0 0
      %2753 = vmatpush2.bf16.msra.mxu0 0
      %2754 = vmatprep.subr.bf16.mxu0 0
      %2755 = vmatpush2.bf16.msra.mxu0 0
      %2756 = vmatprep.mubr.bf16.mxu0 0
      %2757 = vmatmul.mubr.bf16.gmra.mxu0 %v2653
      %v2758 = vpop.f32.mrf.mxu0
      %v2759 = vadd.f32 0.0, %v2758
      %v2760 = vpop.f32.mrf.mxu0
      %v2761 = vpop.f32.mrf.mxu0
      %v2762 = vadd.f32 0.0, %v2761
      %v2763 = vpop.f32.mrf.mxu0
      %2764 = vmatprep.mubr.bf16.mxu0 0
      %2765 = vmatmul.mubr.bf16.gmra.mxu0 %v2656
      %v2766 = vpop.f32.mrf.mxu0
      %v2767 = vadd.f32 0.0, %v2766
      %v2768 = vpop.f32.mrf.mxu0
      %v2769 = vpop.f32.mrf.mxu0
      %v2770 = vadd.f32 0.0, %v2769
      %v2771 = vpop.f32.mrf.mxu0
      %2772 = vmatprep.mubr.bf16.mxu0 0
      %2773 = vmatmul.mubr.bf16.gmra.mxu0 %v2659
      %v2774 = vpop.f32.mrf.mxu0
      %v2775 = vadd.f32 0.0, %v2774
      %v2776 = vpop.f32.mrf.mxu0
      %v2777 = vpop.f32.mrf.mxu0
      %v2778 = vadd.f32 0.0, %v2777
      %v2779 = vpop.f32.mrf.mxu0
      %2780 = vmatprep.mubr.bf16.mxu0 0
      %2781 = vmatmul.mubr.bf16.gmra.mxu0 %v2662
      %v2782 = vpop.f32.mrf.mxu0
      %v2783 = vadd.f32 0.0, %v2782
      %v2784 = vpop.f32.mrf.mxu0
      %v2785 = vpop.f32.mrf.mxu0
      %v2786 = vadd.f32 0.0, %v2785
      %v2787 = vpop.f32.mrf.mxu0
      %2788 = vmatprep.mubr.bf16.mxu0 0
      %2789 = vmatmul.mubr.bf16.gmra.mxu0 %v2665
      %v2790 = vpop.f32.mrf.mxu0
      %v2791 = vadd.f32 0.0, %v2790
      %v2792 = vpop.f32.mrf.mxu0
      %v2793 = vpop.f32.mrf.mxu0
      %v2794 = vadd.f32 0.0, %v2793
      %v2795 = vpop.f32.mrf.mxu0
      %2796 = vmatprep.mubr.bf16.mxu0 0
      %2797 = vmatmul.mubr.bf16.gmra.mxu0 %v2668
      %v2798 = vpop.f32.mrf.mxu0
      %v2799 = vadd.f32 0.0, %v2798
      %v2800 = vpop.f32.mrf.mxu0
      %v2801 = vpop.f32.mrf.mxu0
      %v2802 = vadd.f32 0.0, %v2801
      %v2803 = vpop.f32.mrf.mxu0
      %2804 = vmatprep.mubr.bf16.mxu0 0
      %2805 = vmatmul.mubr.bf16.gmra.mxu0 %v2671
      %v2806 = vpop.f32.mrf.mxu0
      %v2807 = vadd.f32 0.0, %v2806
      %v2808 = vpop.f32.mrf.mxu0
      %v2809 = vpop.f32.mrf.mxu0
      %v2810 = vadd.f32 0.0, %v2809
      %v2811 = vpop.f32.mrf.mxu0
      %2812 = vmatprep.mubr.bf16.mxu0 0
      %2813 = vmatmul.mubr.bf16.gmra.mxu0 %v2674
      %v2814 = vpop.f32.mrf.mxu0
      %v2815 = vadd.f32 0.0, %v2814
      %v2816 = vpop.f32.mrf.mxu0
      %v2817 = vpop.f32.mrf.mxu0
      %v2818 = vadd.f32 0.0, %v2817
      %v2819 = vpop.f32.mrf.mxu0
      %2820 = vmatprep.mubr.bf16.mxu0 0
      %2821 = vmatmul.mubr.bf16.gmra.mxu0 %v2677
      %v2822 = vpop.f32.mrf.mxu0
      %v2823 = vadd.f32 0.0, %v2822
      %v2824 = vpop.f32.mrf.mxu0
      %v2825 = vpop.f32.mrf.mxu0
      %v2826 = vadd.f32 0.0, %v2825
      %v2827 = vpop.f32.mrf.mxu0
      %2828 = vmatprep.mubr.bf16.mxu0 0
      %2829 = vmatmul.mubr.bf16.gmra.mxu0 %v2680
      %v2830 = vpop.f32.mrf.mxu0
      %v2831 = vadd.f32 0.0, %v2830
      %v2832 = vpop.f32.mrf.mxu0
      %v2833 = vpop.f32.mrf.mxu0
      %v2834 = vadd.f32 0.0, %v2833
      %v2835 = vpop.f32.mrf.mxu0
      %2836 = vmatprep.mubr.bf16.mxu0 0
      %2837 = vmatmul.mubr.bf16.gmra.mxu0 %v2683
      %v2838 = vpop.f32.mrf.mxu0
      %v2839 = vadd.f32 0.0, %v2838
      %v2840 = vpop.f32.mrf.mxu0
      %v2841 = vpop.f32.mrf.mxu0
      %v2842 = vadd.f32 0.0, %v2841
      %v2843 = vpop.f32.mrf.mxu0
      %2844 = vmatprep.mubr.bf16.mxu0 0
      %2845 = vmatmul.mubr.bf16.gmra.mxu0 %v2686
      %v2846 = vpop.f32.mrf.mxu0
      %v2847 = vadd.f32 0.0, %v2846
      %v2848 = vpop.f32.mrf.mxu0
      %v2849 = vpop.f32.mrf.mxu0
      %v2850 = vadd.f32 0.0, %v2849
      %v2851 = vpop.f32.mrf.mxu0
      %2852 = vmatprep.mubr.bf16.mxu0 0
      %2853 = vmatmul.mubr.bf16.gmra.mxu0 %v2689
      %v2854 = vpop.f32.mrf.mxu0
      %v2855 = vadd.f32 0.0, %v2854
      %v2856 = vpop.f32.mrf.mxu0
      %v2857 = vpop.f32.mrf.mxu0
      %v2858 = vadd.f32 0.0, %v2857
      %v2859 = vpop.f32.mrf.mxu0
      %2860 = vmatprep.mubr.bf16.mxu0 0
      %2861 = vmatmul.mubr.bf16.gmra.mxu0 %v2692
      %v2862 = vpop.f32.mrf.mxu0
      %v2863 = vadd.f32 0.0, %v2862
      %v2864 = vpop.f32.mrf.mxu0
      %v2865 = vpop.f32.mrf.mxu0
      %v2866 = vadd.f32 0.0, %v2865
      %v2867 = vpop.f32.mrf.mxu0
      %2868 = vmatprep.mubr.bf16.mxu0 0
      %2869 = vmatmul.mubr.bf16.gmra.mxu0 %v2695
      %v2870 = vpop.f32.mrf.mxu0
      %v2871 = vadd.f32 0.0, %v2870
      %v2872 = vpop.f32.mrf.mxu0
      %v2873 = vpop.f32.mrf.mxu0
      %v2874 = vadd.f32 0.0, %v2873
      %v2875 = vpop.f32.mrf.mxu0
      %2876 = vmatprep.mubr.bf16.mxu0 0
      %2877 = vmatmul.mubr.bf16.gmra.mxu0 %v2698
      %v2878 = vpop.f32.mrf.mxu0
      %v2879 = vadd.f32 0.0, %v2878
      %v2880 = vpop.f32.mrf.mxu0
      %v2881 = vpop.f32.mrf.mxu0
      %v2882 = vadd.f32 0.0, %v2881
      %v2883 = vpop.f32.mrf.mxu0
      %2884 = vmatprep.mubr.bf16.mxu0 0
      %2885 = vmatmul.mubr.bf16.gmra.mxu0 %v2701
      %v2886 = vpop.f32.mrf.mxu0
      %v2887 = vadd.f32 0.0, %v2886
      %v2888 = vpop.f32.mrf.mxu0
      %v2889 = vpop.f32.mrf.mxu0
      %v2890 = vadd.f32 0.0, %v2889
      %v2891 = vpop.f32.mrf.mxu0
      %2892 = vmatprep.mubr.bf16.mxu0 0
      %2893 = vmatmul.mubr.bf16.gmra.mxu0 %v2704
      %v2894 = vpop.f32.mrf.mxu0
      %v2895 = vadd.f32 0.0, %v2894
      %v2896 = vpop.f32.mrf.mxu0
      %v2897 = vpop.f32.mrf.mxu0
      %v2898 = vadd.f32 0.0, %v2897
      %v2899 = vpop.f32.mrf.mxu0
      %2900 = vmatprep.mubr.bf16.mxu0 0
      %2901 = vmatmul.mubr.bf16.gmra.mxu0 %v2707
      %v2902 = vpop.f32.mrf.mxu0
      %v2903 = vadd.f32 0.0, %v2902
      %v2904 = vpop.f32.mrf.mxu0
      %v2905 = vpop.f32.mrf.mxu0
      %v2906 = vadd.f32 0.0, %v2905
      %v2907 = vpop.f32.mrf.mxu0
      %2908 = vmatprep.mubr.bf16.mxu0 0
      %2909 = vmatmul.mubr.bf16.gmra.mxu0 %v2710
      %v2910 = vpop.f32.mrf.mxu0
      %v2911 = vadd.f32 0.0, %v2910
      %v2912 = vpop.f32.mrf.mxu0
      %v2913 = vpop.f32.mrf.mxu0
      %v2914 = vadd.f32 0.0, %v2913
      %v2915 = vpop.f32.mrf.mxu0
      %2916 = vmatprep.mubr.bf16.mxu0 0
      %2917 = vmatmul.mubr.bf16.gmra.mxu0 %v2713
      %v2918 = vpop.f32.mrf.mxu0
      %v2919 = vadd.f32 0.0, %v2918
      %v2920 = vpop.f32.mrf.mxu0
      %v2921 = vpop.f32.mrf.mxu0
      %v2922 = vadd.f32 0.0, %v2921
      %v2923 = vpop.f32.mrf.mxu0
      %2924 = vmatprep.mubr.bf16.mxu0 0
      %2925 = vmatmul.mubr.bf16.gmra.mxu0 %v2716
      %v2926 = vpop.f32.mrf.mxu0
      %v2927 = vadd.f32 0.0, %v2926
      %v2928 = vpop.f32.mrf.mxu0
      %v2929 = vpop.f32.mrf.mxu0
      %v2930 = vadd.f32 0.0, %v2929
      %v2931 = vpop.f32.mrf.mxu0
      %2932 = vmatprep.mubr.bf16.mxu0 0
      %2933 = vmatmul.mubr.bf16.gmra.mxu0 %v2719
      %v2934 = vpop.f32.mrf.mxu0
      %v2935 = vadd.f32 0.0, %v2934
      %v2936 = vpop.f32.mrf.mxu0
      %v2937 = vpop.f32.mrf.mxu0
      %v2938 = vadd.f32 0.0, %v2937
      %v2939 = vpop.f32.mrf.mxu0
      %2940 = vmatprep.mubr.bf16.mxu0 0
      %2941 = vmatmul.mubr.bf16.gmra.mxu0 %v2722
      %v2942 = vpop.f32.mrf.mxu0
      %v2943 = vadd.f32 0.0, %v2942
      %v2944 = vpop.f32.mrf.mxu0
      %v2945 = vpop.f32.mrf.mxu0
      %v2946 = vadd.f32 0.0, %v2945
      %v2947 = vpop.f32.mrf.mxu0
      %2948 = vdwg.mxu0
      %v2949 = vadd.f32 %v2475, %v2759
      %v2950 = vadd.f32 %v2476, %v2762
      %v2951 = vadd.f32 %v2477, %v2767
      %v2952 = vadd.f32 %v2478, %v2770
      %v2953 = vadd.f32 %v2479, %v2775
      %v2954 = vadd.f32 %v2480, %v2778
      %v2955 = vadd.f32 %v2481, %v2783
      %v2956 = vadd.f32 %v2482, %v2786
      %v2957 = vadd.f32 %v2483, %v2791
      %v2958 = vadd.f32 %v2484, %v2794
      %v2959 = vadd.f32 %v2485, %v2799
      %v2960 = vadd.f32 %v2486, %v2802
      %v2961 = vadd.f32 %v2487, %v2807
      %v2962 = vadd.f32 %v2488, %v2810
      %v2963 = vadd.f32 %v2489, %v2815
      %v2964 = vadd.f32 %v2490, %v2818
      %v2965 = vadd.f32 %v2491, %v2823
      %v2966 = vadd.f32 %v2492, %v2826
      %v2967 = vadd.f32 %v2493, %v2831
      %v2968 = vadd.f32 %v2494, %v2834
      %v2969 = vadd.f32 %v2495, %v2839
      %v2970 = vadd.f32 %v2496, %v2842
      %v2971 = vadd.f32 %v2497, %v2847
      %v2972 = vadd.f32 %v2498, %v2850
      %v2973 = vadd.f32 %v2499, %v2855
      %v2974 = vadd.f32 %v2500, %v2858
      %v2975 = vadd.f32 %v2501, %v2863
      %v2976 = vadd.f32 %v2502, %v2866
      %v2977 = vadd.f32 %v2503, %v2871
      %v2978 = vadd.f32 %v2504, %v2874
      %v2979 = vadd.f32 %v2505, %v2879
      %v2980 = vadd.f32 %v2506, %v2882
      %v2981 = vadd.f32 %v2507, %v2887
      %v2982 = vadd.f32 %v2508, %v2890
      %v2983 = vadd.f32 %v2509, %v2895
      %v2984 = vadd.f32 %v2510, %v2898
      %v2985 = vadd.f32 %v2511, %v2903
      %v2986 = vadd.f32 %v2512, %v2906
      %v2987 = vadd.f32 %v2513, %v2911
      %v2988 = vadd.f32 %v2514, %v2914
      %v2989 = vadd.f32 %v2515, %v2919
      %v2990 = vadd.f32 %v2516, %v2922
      %v2991 = vadd.f32 %v2517, %v2927
      %v2992 = vadd.f32 %v2518, %v2930
      %v2993 = vadd.f32 %v2519, %v2935
      %v2994 = vadd.f32 %v2520, %v2938
      %v2995 = vadd.f32 %v2521, %v2943
      %v2996 = vadd.f32 %v2522, %v2946
      %v2997 = vmul.f32 %v2949, 2.0
      %v2998 = vmul.f32 %v2950, 2.0
      %v2999 = vmul.f32 %v2951, 2.0
      %v3000 = vmul.f32 %v2952, 2.0
      %v3001 = vmul.f32 %v2953, 2.0
      %v3002 = vmul.f32 %v2954, 2.0
      %v3003 = vmul.f32 %v2955, 2.0
      %v3004 = vmul.f32 %v2956, 2.0
      %v3005 = vmul.f32 %v2957, 2.0
      %v3006 = vmul.f32 %v2958, 2.0
      %v3007 = vmul.f32 %v2959, 2.0
      %v3008 = vmul.f32 %v2960, 2.0
      %v3009 = vmul.f32 %v2961, 2.0
      %v3010 = vmul.f32 %v2962, 2.0
      %v3011 = vmul.f32 %v2963, 2.0
      %v3012 = vmul.f32 %v2964, 2.0
      %v3013 = vmul.f32 %v2965, 2.0
      %v3014 = vmul.f32 %v2966, 2.0
      %v3015 = vmul.f32 %v2967, 2.0
      %v3016 = vmul.f32 %v2968, 2.0
      %v3017 = vmul.f32 %v2969, 2.0
      %v3018 = vmul.f32 %v2970, 2.0
      %v3019 = vmul.f32 %v2971, 2.0
      %v3020 = vmul.f32 %v2972, 2.0
      %v3021 = vmul.f32 %v2973, 2.0
      %v3022 = vmul.f32 %v2974, 2.0
      %v3023 = vmul.f32 %v2975, 2.0
      %v3024 = vmul.f32 %v2976, 2.0
      %v3025 = vmul.f32 %v2977, 2.0
      %v3026 = vmul.f32 %v2978, 2.0
      %v3027 = vmul.f32 %v2979, 2.0
      %v3028 = vmul.f32 %v2980, 2.0
      %v3029 = vmul.f32 %v2981, 2.0
      %v3030 = vmul.f32 %v2982, 2.0
      %v3031 = vmul.f32 %v2983, 2.0
      %v3032 = vmul.f32 %v2984, 2.0
      %v3033 = vmul.f32 %v2985, 2.0
      %v3034 = vmul.f32 %v2986, 2.0
      %v3035 = vmul.f32 %v2987, 2.0
      %v3036 = vmul.f32 %v2988, 2.0
      %v3037 = vmul.f32 %v2989, 2.0
      %v3038 = vmul.f32 %v2990, 2.0
      %v3039 = vmul.f32 %v2991, 2.0
      %v3040 = vmul.f32 %v2992, 2.0
      %v3041 = vmul.f32 %v2993, 2.0
      %v3042 = vmul.f32 %v2994, 2.0
      %v3043 = vmul.f32 %v2995, 2.0
      %v3044 = vmul.f32 %v2996, 2.0
      %v3045 = vmax.f32 %v2997, 0.0
      %v3046 = vmax.f32 %v2998, 0.0
      %v3047 = vmax.f32 %v2999, 0.0
      %v3048 = vmax.f32 %v3000, 0.0
      %v3049 = vmax.f32 %v3001, 0.0
      %v3050 = vmax.f32 %v3002, 0.0
      %v3051 = vmax.f32 %v3003, 0.0
      %v3052 = vmax.f32 %v3004, 0.0
      %v3053 = vmax.f32 %v3005, 0.0
      %v3054 = vmax.f32 %v3006, 0.0
      %v3055 = vmax.f32 %v3007, 0.0
      %v3056 = vmax.f32 %v3008, 0.0
      %v3057 = vmax.f32 %v3009, 0.0
      %v3058 = vmax.f32 %v3010, 0.0
      %v3059 = vmax.f32 %v3011, 0.0
      %v3060 = vmax.f32 %v3012, 0.0
      %v3061 = vmax.f32 %v3013, 0.0
      %v3062 = vmax.f32 %v3014, 0.0
      %v3063 = vmax.f32 %v3015, 0.0
      %v3064 = vmax.f32 %v3016, 0.0
      %v3065 = vmax.f32 %v3017, 0.0
      %v3066 = vmax.f32 %v3018, 0.0
      %v3067 = vmax.f32 %v3019, 0.0
      %v3068 = vmax.f32 %v3020, 0.0
      %v3069 = vmax.f32 %v3021, 0.0
      %v3070 = vmax.f32 %v3022, 0.0
      %v3071 = vmax.f32 %v3023, 0.0
      %v3072 = vmax.f32 %v3024, 0.0
      %v3073 = vmax.f32 %v3025, 0.0
      %v3074 = vmax.f32 %v3026, 0.0
      %v3075 = vmax.f32 %v3027, 0.0
      %v3076 = vmax.f32 %v3028, 0.0
      %v3077 = vmax.f32 %v3029, 0.0
      %v3078 = vmax.f32 %v3030, 0.0
      %v3079 = vmax.f32 %v3031, 0.0
      %v3080 = vmax.f32 %v3032, 0.0
      %v3081 = vmax.f32 %v3033, 0.0
      %v3082 = vmax.f32 %v3034, 0.0
      %v3083 = vmax.f32 %v3035, 0.0
      %v3084 = vmax.f32 %v3036, 0.0
      %v3085 = vmax.f32 %v3037, 0.0
      %v3086 = vmax.f32 %v3038, 0.0
      %v3087 = vmax.f32 %v3039, 0.0
      %v3088 = vmax.f32 %v3040, 0.0
      %v3089 = vmax.f32 %v3041, 0.0
      %v3090 = vmax.f32 %v3042, 0.0
      %v3091 = vmax.f32 %v3043, 0.0
      %v3092 = vmax.f32 %v3044, 0.0
      %vm3093 = vcmask 261120
      %3094 = vst.msk [vmem:[%s190] sm:$0xff] %vm3093, %v3045
      %3095 = vst.msk [vmem:[%s190 + $0x8] sm:$0xff] %vm3093, %v3046
      %3096 = vst.msk [vmem:[%s190 + $0x10] sm:$0xff] %vm3093, %v3047
      %3097 = vst.msk [vmem:[%s190 + $0x18] sm:$0xff] %vm3093, %v3048
      %3098 = vst.msk [vmem:[%s190 + $0x20] sm:$0xff] %vm3093, %v3049
      %3099 = vst.msk [vmem:[%s190 + $0x28] sm:$0xff] %vm3093, %v3050
      %3100 = vst.msk [vmem:[%s190 + $0x30] sm:$0xff] %vm3093, %v3051
      %3101 = vst.msk [vmem:[%s190 + $0x38] sm:$0xff] %vm3093, %v3052
      %3102 = vst.msk [vmem:[%s190 + $0x40] sm:$0xff] %vm3093, %v3053
      %3103 = vst.msk [vmem:[%s190 + $0x48] sm:$0xff] %vm3093, %v3054
      %3104 = vst.msk [vmem:[%s190 + $0x50] sm:$0xff] %vm3093, %v3055
      %3105 = vst.msk [vmem:[%s190 + $0x58] sm:$0xff] %vm3093, %v3056
      %3106 = vst.msk [vmem:[%s190 + $0x60] sm:$0xff] %vm3093, %v3057
      %3107 = vst.msk [vmem:[%s190 + $0x68] sm:$0xff] %vm3093, %v3058
      %3108 = vst.msk [vmem:[%s190 + $0x70] sm:$0xff] %vm3093, %v3059
      %3109 = vst.msk [vmem:[%s190 + $0x78] sm:$0xff] %vm3093, %v3060
      %3110 = vst.msk [vmem:[%s190 + $0x80] sm:$0xff] %vm3093, %v3061
      %3111 = vst.msk [vmem:[%s190 + $0x88] sm:$0xff] %vm3093, %v3062
      %3112 = vst.msk [vmem:[%s190 + $0x90] sm:$0xff] %vm3093, %v3063
      %3113 = vst.msk [vmem:[%s190 + $0x98] sm:$0xff] %vm3093, %v3064
      %3114 = vst.msk [vmem:[%s190 + $0xa0] sm:$0xff] %vm3093, %v3065
      %3115 = vst.msk [vmem:[%s190 + $0xa8] sm:$0xff] %vm3093, %v3066
      %3116 = vst.msk [vmem:[%s190 + $0xb0] sm:$0xff] %vm3093, %v3067
      %3117 = vst.msk [vmem:[%s190 + $0xb8] sm:$0xff] %vm3093, %v3068
      %3118 = vst.msk [vmem:[%s190 + $0xc0] sm:$0xff] %vm3093, %v3069
      %3119 = vst.msk [vmem:[%s190 + $0xc8] sm:$0xff] %vm3093, %v3070
      %3120 = vst.msk [vmem:[%s190 + $0xd0] sm:$0xff] %vm3093, %v3071
      %3121 = vst.msk [vmem:[%s190 + $0xd8] sm:$0xff] %vm3093, %v3072
      %3122 = vst.msk [vmem:[%s190 + $0xe0] sm:$0xff] %vm3093, %v3073
      %3123 = vst.msk [vmem:[%s190 + $0xe8] sm:$0xff] %vm3093, %v3074
      %3124 = vst.msk [vmem:[%s190 + $0xf0] sm:$0xff] %vm3093, %v3075
      %3125 = vst.msk [vmem:[%s190 + $0xf8] sm:$0xff] %vm3093, %v3076
      %3126 = vst.msk [vmem:[%s190 + $0x100] sm:$0xff] %vm3093, %v3077
      %3127 = vst.msk [vmem:[%s190 + $0x108] sm:$0xff] %vm3093, %v3078
      %3128 = vst.msk [vmem:[%s190 + $0x110] sm:$0xff] %vm3093, %v3079
      %3129 = vst.msk [vmem:[%s190 + $0x118] sm:$0xff] %vm3093, %v3080
      %3130 = vst.msk [vmem:[%s190 + $0x120] sm:$0xff] %vm3093, %v3081
      %3131 = vst.msk [vmem:[%s190 + $0x128] sm:$0xff] %vm3093, %v3082
      %3132 = vst.msk [vmem:[%s190 + $0x130] sm:$0xff] %vm3093, %v3083
      %3133 = vst.msk [vmem:[%s190 + $0x138] sm:$0xff] %vm3093, %v3084
      %3134 = vst.msk [vmem:[%s190 + $0x140] sm:$0xff] %vm3093, %v3085
      %3135 = vst.msk [vmem:[%s190 + $0x148] sm:$0xff] %vm3093, %v3086
      %3136 = vst.msk [vmem:[%s190 + $0x150] sm:$0xff] %vm3093, %v3087
      %3137 = vst.msk [vmem:[%s190 + $0x158] sm:$0xff] %vm3093, %v3088
      %3138 = vst.msk [vmem:[%s190 + $0x160] sm:$0xff] %vm3093, %v3089
      %3139 = vst.msk [vmem:[%s190 + $0x168] sm:$0xff] %vm3093, %v3090
      %3140 = vst.msk [vmem:[%s190 + $0x170] sm:$0xff] %vm3093, %v3091
      %3141 = vst.msk [vmem:[%s190 + $0x178] sm:$0xff] %vm3093, %v3092
      %p3142 = scmp.lt.s32.totalorder %s14, 1
      %s3143 = scalar_select %p3142, %s14, 1
      %s3144 = smul.addr %s3143, 48
      %s3145 = smul.addr %s3144, 8
      %s3146 = scalar_lea.vmem %s3, %s3145
      // Predicated region
      $region33: #{mesh_cnn_forward.4} parent=31 // pred_check
        %p3147 = pneg %p105
      $region34: #{mesh_cnn_forward.4} parent=31 // pred_check_branch
        %3149 = sbr.rel (%p3147) target = $region36
      $region35: #{mesh_cnn_forward.4} parent=31 // pred_region
        _
      $region36: #{mesh_cnn_forward.4} parent=31 // pred_fallthru
        _
    $region32: #{mesh_cnn_forward.4} parent=5 // pred_fallthru
      _
    %p3150 = scmp.le.s32.totalorder 2, %s9
    // Predicated region
    $region37: #{mesh_cnn_forward.4} parent=5 // pred_check
      %p3151 = pneg %p3150
    $region38: #{mesh_cnn_forward.4} parent=5 // pred_check_branch
      %3153 = sbr.rel (%p3151) target = $region40
    $region39: #{mesh_cnn_forward.4} parent=5 // pred_region
      %s3154 = ssub.s32 %s9, 2
      // Predicated region
      $region41: #{mesh_cnn_forward.4} parent=39 // pred_check
        %p3155 = pneg %p111
      $region42: #{mesh_cnn_forward.4} parent=39 // pred_check_branch
        %3157 = sbr.rel (%p3155) target = $region44
      $region43: #{mesh_cnn_forward.4} parent=39 // pred_region
        %p3158 = scmp.lt.s32.totalorder %s15, 1
        %s3159 = scalar_select %p3158, %s15, 1
        %s3160 = smul.addr %s3159, 48
        %s3161 = smul.addr %s3160, 8
        %s3162 = scalar_lea.vmem %s3, %s3161
      $region44: #{mesh_cnn_forward.4} parent=39 // pred_fallthru
        _
    $region40: #{mesh_cnn_forward.4} parent=5 // pred_fallthru
      _
  $region6: #{mesh_cnn_forward.4} parent=0 // loop_footer
    %s13 = sadd.s32 1, %s9
  $region7: #{mesh_cnn_forward.4} parent=0 // loop_footer_branch
    %8 = sbr.rel target = $region3
  $region8: #{mesh_cnn_forward.4} parent=0 // loop_exit
    _

// kernel: mesh_cnn_forward.5
$region0: #{mesh_cnn_forward.5}
  #allocation0 [shape = 'u32[]', space=smem, size = 0x4, offset = 0x4, fixed_abs, tag = 'smem constant byte address 0x4 - core index']
  #allocation1 [shape = 'u32[144,128]{1,0:T(1,128)}', space=vmem, size = 0x12000, scoped, tag = 'internal scratch']
  %s0 = inlined_call_operand.vmem [shape: bf16[2,256,32], index: 0, kind: input, shape index: {}]
  %s1 = inlined_call_operand.vmem [shape: bf16[2,4,256,32], index: 1, kind: input, shape index: {}]
  %s2 = inlined_call_operand.vmem [shape: bf16[5,32,32], index: 2, kind: input, shape index: {}]
  %s3 = inlined_call_operand.vmem [shape: f32[2,256,32], index: 3, kind: output, shape index: {}]
  %s4 = sld [smem:[#allocation0]]
  $region45: #{mesh_cnn_forward.5} parent=0
    _
  %s6 = ssub.s32 1, %s4
  %s7 = scalar_select 0, %s6, %s4
  loop: start=0, step=1, limit=4
  $region2: #{mesh_cnn_forward.5} parent=0 // loop_pre_header
    _
  $region3: #{mesh_cnn_forward.5} parent=0 // loop_header
    %s9 = sphi 0, %s13
    %p10 = scmp.ge.s32.totalorder %s9, 4
    %s19 = sphi 0, %s21
    %s22 = sphi 0, %s19
    %s23 = sphi 0, %s22
    %s39 = sphi 0, %s23
    %s45 = sphi 0, %s47
    %s48 = sphi 0, %s45
    %s49 = sphi 0, %s48
    %s65 = sphi 0, %s49
    %s69 = sphi 0, %s69
    %s71 = sphi 0, %s69
    %s72 = sphi 0, %s71
    %s86 = sphi 0, %s72
    %s92 = sphi 0, %s94
    %s95 = sphi 0, %s92
    %s96 = sphi 0, %s95
    %s112 = sphi 0, %s96
  $region4: #{mesh_cnn_forward.5} parent=0 // loop_header_branch
    %12 = sbr.rel (%p10) target = $region8
  $region5: #{mesh_cnn_forward.5} parent=0 // loop_body
    %s14 = ssub.s32 %s9, 1
    %s15 = ssub.s32 %s9, 2
    %s16 = sadd.s32 %s9, 1
    %s17 = ssub.s32 %s9, %s16
    %p18 = scmp.eq.s32.totalorder %s17, 0
    %s20 = sadd.s32 %s19, 1
    %s21 = scalar_select %p18, %s19, %s20
    %p24 = pneg %p18
    %p25 = scmp.eq.s32.totalorder %s9, 1
    %p26 = por %p24, %p25
    %p27 = scmp.ne.s32.totalorder %s19, %s22
    %p28 = scmp.eq.s32.totalorder %s9, 0
    %p29 = por %p27, %p28
    %p30 = scmp.ne.s32.totalorder %s19, %s22
    %p31 = scmp.eq.s32.totalorder %s14, 1
    %p32 = por %p30, %p31
    %p33 = scmp.ne.s32.totalorder %s22, %s23
    %p34 = scmp.eq.s32.totalorder %s14, 0
    %p35 = por %p33, %p34
    %p36 = scmp.ne.s32.totalorder %s22, %s23
    %p37 = scmp.eq.s32.totalorder %s15, 1
    %p38 = por %p36, %p37
    %p40 = scmp.ne.s32.totalorder %s23, %s39
    %p41 = scmp.eq.s32.totalorder %s15, 0
    %p42 = por %p40, %p41
    %s43 = ssub.s32 %s9, %s16
    %p44 = scmp.eq.s32.totalorder %s43, 0
    %s46 = sadd.s32 %s45, 1
    %s47 = scalar_select %p44, %s45, %s46
    %p50 = pneg %p44
    %p51 = scmp.eq.s32.totalorder %s9, 1
    %p52 = por %p50, %p51
    %p53 = scmp.ne.s32.totalorder %s45, %s48
    %p54 = scmp.eq.s32.totalorder %s9, 0
    %p55 = por %p53, %p54
    %p56 = scmp.ne.s32.totalorder %s45, %s48
    %p57 = scmp.eq.s32.totalorder %s14, 1
    %p58 = por %p56, %p57
    %p59 = scmp.ne.s32.totalorder %s48, %s49
    %p60 = scmp.eq.s32.totalorder %s14, 0
    %p61 = por %p59, %p60
    %p62 = scmp.ne.s32.totalorder %s48, %s49
    %p63 = scmp.eq.s32.totalorder %s15, 1
    %p64 = por %p62, %p63
    %p66 = scmp.ne.s32.totalorder %s49, %s65
    %p67 = scmp.eq.s32.totalorder %s15, 0
    %p68 = por %p66, %p67
    %s70 = sadd.s32 %s69, 1
    %p73 = scmp.eq.s32.totalorder %s9, 1
    %p74 = scmp.ne.s32.totalorder %s69, %s71
    %p75 = scmp.eq.s32.totalorder %s9, 0
    %p76 = por %p74, %p75
    %p77 = scmp.ne.s32.totalorder %s69, %s71
    %p78 = scmp.eq.s32.totalorder %s14, 1
    %p79 = por %p77, %p78
    %p80 = scmp.ne.s32.totalorder %s71, %s72
    %p81 = scmp.eq.s32.totalorder %s14, 0
    %p82 = por %p80, %p81
    %p83 = scmp.ne.s32.totalorder %s71, %s72
    %p84 = scmp.eq.s32.totalorder %s15, 1
    %p85 = por %p83, %p84
    %p87 = scmp.ne.s32.totalorder %s72, %s86
    %p88 = scmp.eq.s32.totalorder %s15, 0
    %p89 = por %p87, %p88
    %s90 = ssub.s32 %s9, %s16
    %p91 = scmp.eq.s32.totalorder %s90, 0
    %s93 = sadd.s32 %s92, 1
    %s94 = scalar_select %p91, %s92, %s93
    %p97 = pneg %p91
    %p98 = scmp.eq.s32.totalorder %s9, 1
    %p99 = por %p97, %p98
    %p100 = scmp.ne.s32.totalorder %s92, %s95
    %p101 = scmp.eq.s32.totalorder %s9, 0
    %p102 = por %p100, %p101
    %p103 = scmp.ne.s32.totalorder %s92, %s95
    %p104 = scmp.eq.s32.totalorder %s14, 1
    %p105 = por %p103, %p104
    %p106 = scmp.ne.s32.totalorder %s95, %s96
    %p107 = scmp.eq.s32.totalorder %s14, 0
    %p108 = por %p106, %p107
    %p109 = scmp.ne.s32.totalorder %s95, %s96
    %p110 = scmp.eq.s32.totalorder %s15, 1
    %p111 = por %p109, %p110
    %p113 = scmp.ne.s32.totalorder %s96, %s112
    %p114 = scmp.eq.s32.totalorder %s15, 0
    %p115 = por %p113, %p114
    %p116 = scmp.le.s32.totalorder 1, %s9
    %p117 = scmp.lt.s32.totalorder %s9, 3
    %p118 = pnand %p116, %p117
    %p119 = pneg %p118
    // Predicated region
    $region9: #{mesh_cnn_forward.5} parent=5 // pred_check
      _
    $region10: #{mesh_cnn_forward.5} parent=5 // pred_check_branch
      %121 = sbr.rel (%p118) target = $region12
    $region11: #{mesh_cnn_forward.5} parent=5 // pred_region
      %s122 = ssub.s32 %s9, 1
      // Predicated region
      $region13: #{mesh_cnn_forward.5} parent=11 // pred_check
        %p123 = pneg %p82
      $region14: #{mesh_cnn_forward.5} parent=11 // pred_check_branch
        %125 = sbr.rel (%p123) target = $region16
      $region15: #{mesh_cnn_forward.5} parent=11 // pred_region
        _
      $region16: #{mesh_cnn_forward.5} parent=11 // pred_fallthru
        _
    $region12: #{mesh_cnn_forward.5} parent=5 // pred_fallthru
      _
    %p126 = scmp.lt.s32.totalorder %s9, 2
    // Predicated region
    $region17: #{mesh_cnn_forward.5} parent=5 // pred_check
      %p127 = pneg %p126
    $region18: #{mesh_cnn_forward.5} parent=5 // pred_check_branch
      %129 = sbr.rel (%p127) target = $region20
    $region19: #{mesh_cnn_forward.5} parent=5 // pred_region
      // Predicated region
      $region21: #{mesh_cnn_forward.5} parent=19 // pred_check
        %p130 = pneg %p29
      $region22: #{mesh_cnn_forward.5} parent=19 // pred_check_branch
        %132 = sbr.rel (%p130) target = $region24
      $region23: #{mesh_cnn_forward.5} parent=19 // pred_region
        %p133 = scmp.lt.s32.totalorder %s9, 1
        %s134 = scalar_select %p133, %s9, 1
        %s135 = smul.addr %s134, 32
        %s136 = smul.addr %s135, 4
        %s137 = scalar_lea.vmem %s0, %s136
      $region24: #{mesh_cnn_forward.5} parent=19 // pred_fallthru
        _
      // Predicated region
      $region25: #{mesh_cnn_forward.5} parent=19 // pred_check
        %p138 = pneg %p55
      $region26: #{mesh_cnn_forward.5} parent=19 // pred_check_branch
        %140 = sbr.rel (%p138) target = $region28
      $region27: #{mesh_cnn_forward.5} parent=19 // pred_region
        %p141 = scmp.lt.s32.totalorder %s9, 1
        %s142 = scalar_select %p141, %s9, 1
        %s143 = smul.addr %s142, 128
        %s144 = smul.addr %s143, 4
        %s145 = scalar_lea.vmem %s1, %s144
      $region28: #{mesh_cnn_forward.5} parent=19 // pred_fallthru
        _
    $region20: #{mesh_cnn_forward.5} parent=5 // pred_fallthru
      _
    %p146 = scmp.le.s32.totalorder 1, %s9
    %p147 = scmp.lt.s32.totalorder %s9, 3
    %p148 = pnand %p146, %p147
    %p149 = pneg %p148
    // Predicated region
    $region29: #{mesh_cnn_forward.5} parent=5 // pred_check
      _
    $region30: #{mesh_cnn_forward.5} parent=5 // pred_check_branch
      %151 = sbr.rel (%p148) target = $region32
    $region31: #{mesh_cnn_forward.5} parent=5 // pred_region
      %s152 = ssub.s32 %s9, 1
      %p153 = scmp.lt.s32.totalorder %s14, 1
      %s154 = scalar_select %p153, %s14, 1
      %s155 = smul.addr %s154, 32
      %s156 = smul.addr %s155, 4
      %s157 = scalar_lea.vmem %s0, %s156
      %p158 = pneg %p35
      %p159 = pneg %p32
      %p160 = scmp.lt.s32.totalorder %s14, 1
      %s161 = scalar_select %p160, %s14, 1
      %s162 = smul.addr %s161, 128
      %s163 = smul.addr %s162, 4
      %s164 = scalar_lea.vmem %s1, %s163
      %p165 = pneg %p61
      %p166 = pneg %p58
      %p167 = pneg %p82
      %p168 = pneg %p79
      %p169 = pneg %p108
      %p170 = pneg %p105
      %p171 = scmp.lt.s32.totalorder %s14, 1
      %s172 = scalar_select %p171, %s14, 1
      %s173 = smul.addr %s172, 32
      %s174 = smul.addr %s173, 8
      %s175 = scalar_lea.vmem %s3, %s174
      %p176 = scmp.lt.s32.totalorder %s14, 1
      %s177 = scalar_select %p176, %s14, 1
      %s178 = smul.addr %s177, 32
      %s179 = smul.addr %s178, 4
      %s180 = scalar_lea.vmem %s0, %s179
      %p181 = scmp.lt.s32.totalorder %s14, 1
      %s182 = scalar_select %p181, %s14, 1
      %s183 = smul.addr %s182, 128
      %s184 = smul.addr %s183, 4
      %s185 = scalar_lea.vmem %s1, %s184
      %p186 = scmp.lt.s32.totalorder %s14, 1
      %s187 = scalar_select %p186, %s14, 1
      %s188 = smul.addr %s187, 32
      %s189 = smul.addr %s188, 8
      %s190 = scalar_lea.vmem %s3, %s189
      %v192 = vld [vmem:[%s180] sm:$0xf]
      %v193 = vld [vmem:[%s180 + $0x4] sm:$0xf]
      %v194 = vld [vmem:[%s180 + $0x8] sm:$0xf]
      %v195 = vld [vmem:[%s180 + $0xc] sm:$0xf]
      %v196 = vld [vmem:[%s180 + $0x10] sm:$0xf]
      %v197 = vld [vmem:[%s180 + $0x14] sm:$0xf]
      %v198 = vld [vmem:[%s180 + $0x18] sm:$0xf]
      %v199 = vld [vmem:[%s180 + $0x1c] sm:$0xf]
      %v200 = vld [vmem:[%s180 + $0x20] sm:$0xf]
      %v201 = vld [vmem:[%s180 + $0x24] sm:$0xf]
      %v202 = vld [vmem:[%s180 + $0x28] sm:$0xf]
      %v203 = vld [vmem:[%s180 + $0x2c] sm:$0xf]
      %v204 = vld [vmem:[%s180 + $0x30] sm:$0xf]
      %v205 = vld [vmem:[%s180 + $0x34] sm:$0xf]
      %v206 = vld [vmem:[%s180 + $0x38] sm:$0xf]
      %v207 = vld [vmem:[%s180 + $0x3c] sm:$0xf]
      %v208 = vld [vmem:[%s180 + $0x40] sm:$0xf]
      %v209 = vld [vmem:[%s180 + $0x44] sm:$0xf]
      %v210 = vld [vmem:[%s180 + $0x48] sm:$0xf]
      %v211 = vld [vmem:[%s180 + $0x4c] sm:$0xf]
      %v212 = vld [vmem:[%s180 + $0x50] sm:$0xf]
      %v213 = vld [vmem:[%s180 + $0x54] sm:$0xf]
      %v214 = vld [vmem:[%s180 + $0x58] sm:$0xf]
      %v215 = vld [vmem:[%s180 + $0x5c] sm:$0xf]
      %v216 = vld [vmem:[%s180 + $0x60] sm:$0xf]
      %v217 = vld [vmem:[%s180 + $0x64] sm:$0xf]
      %v218 = vld [vmem:[%s180 + $0x68] sm:$0xf]
      %v219 = vld [vmem:[%s180 + $0x6c] sm:$0xf]
      %v220 = vld [vmem:[%s180 + $0x70] sm:$0xf]
      %v221 = vld [vmem:[%s180 + $0x74] sm:$0xf]
      %v222 = vld [vmem:[%s180 + $0x78] sm:$0xf]
      %v223 = vld [vmem:[%s180 + $0x7c] sm:$0xf]
      %v224 = vld [vmem:[%s185] sm:$0xf]
      %v225 = vld [vmem:[%s185 + $0x4] sm:$0xf]
      %v226 = vld [vmem:[%s185 + $0x8] sm:$0xf]
      %v227 = vld [vmem:[%s185 + $0xc] sm:$0xf]
      %v228 = vld [vmem:[%s185 + $0x10] sm:$0xf]
      %v229 = vld [vmem:[%s185 + $0x14] sm:$0xf]
      %v230 = vld [vmem:[%s185 + $0x18] sm:$0xf]
      %v231 = vld [vmem:[%s185 + $0x1c] sm:$0xf]
      %v232 = vld [vmem:[%s185 + $0x20] sm:$0xf]
      %v233 = vld [vmem:[%s185 + $0x24] sm:$0xf]
      %v234 = vld [vmem:[%s185 + $0x28] sm:$0xf]
      %v235 = vld [vmem:[%s185 + $0x2c] sm:$0xf]
      %v236 = vld [vmem:[%s185 + $0x30] sm:$0xf]
      %v237 = vld [vmem:[%s185 + $0x34] sm:$0xf]
      %v238 = vld [vmem:[%s185 + $0x38] sm:$0xf]
      %v239 = vld [vmem:[%s185 + $0x3c] sm:$0xf]
      %v240 = vld [vmem:[%s185 + $0x40] sm:$0xf]
      %v241 = vld [vmem:[%s185 + $0x44] sm:$0xf]
      %v242 = vld [vmem:[%s185 + $0x48] sm:$0xf]
      %v243 = vld [vmem:[%s185 + $0x4c] sm:$0xf]
      %v244 = vld [vmem:[%s185 + $0x50] sm:$0xf]
      %v245 = vld [vmem:[%s185 + $0x54] sm:$0xf]
      %v246 = vld [vmem:[%s185 + $0x58] sm:$0xf]
      %v247 = vld [vmem:[%s185 + $0x5c] sm:$0xf]
      %v248 = vld [vmem:[%s185 + $0x60] sm:$0xf]
      %v249 = vld [vmem:[%s185 + $0x64] sm:$0xf]
      %v250 = vld [vmem:[%s185 + $0x68] sm:$0xf]
      %v251 = vld [vmem:[%s185 + $0x6c] sm:$0xf]
      %v252 = vld [vmem:[%s185 + $0x70] sm:$0xf]
      %v253 = vld [vmem:[%s185 + $0x74] sm:$0xf]
      %v254 = vld [vmem:[%s185 + $0x78] sm:$0xf]
      %v255 = vld [vmem:[%s185 + $0x7c] sm:$0xf]
      %s256 = scalar_lea.vmem %s185, 128
      %v257 = vld [vmem:[%s256] sm:$0xf]
      %v258 = vld [vmem:[%s256 + $0x4] sm:$0xf]
      %v259 = vld [vmem:[%s256 + $0x8] sm:$0xf]
      %v260 = vld [vmem:[%s256 + $0xc] sm:$0xf]
      %v261 = vld [vmem:[%s256 + $0x10] sm:$0xf]
      %v262 = vld [vmem:[%s256 + $0x14] sm:$0xf]
      %v263 = vld [vmem:[%s256 + $0x18] sm:$0xf]
      %v264 = vld [vmem:[%s256 + $0x1c] sm:$0xf]
      %v265 = vld [vmem:[%s256 + $0x20] sm:$0xf]
      %v266 = vld [vmem:[%s256 + $0x24] sm:$0xf]
      %v267 = vld [vmem:[%s256 + $0x28] sm:$0xf]
      %v268 = vld [vmem:[%s256 + $0x2c] sm:$0xf]
      %v269 = vld [vmem:[%s256 + $0x30] sm:$0xf]
      %v270 = vld [vmem:[%s256 + $0x34] sm:$0xf]
      %v271 = vld [vmem:[%s256 + $0x38] sm:$0xf]
      %v272 = vld [vmem:[%s256 + $0x3c] sm:$0xf]
      %v273 = vld [vmem:[%s256 + $0x40] sm:$0xf]
      %v274 = vld [vmem:[%s256 + $0x44] sm:$0xf]
      %v275 = vld [vmem:[%s256 + $0x48] sm:$0xf]
      %v276 = vld [vmem:[%s256 + $0x4c] sm:$0xf]
      %v277 = vld [vmem:[%s256 + $0x50] sm:$0xf]
      %v278 = vld [vmem:[%s256 + $0x54] sm:$0xf]
      %v279 = vld [vmem:[%s256 + $0x58] sm:$0xf]
      %v280 = vld [vmem:[%s256 + $0x5c] sm:$0xf]
      %v281 = vld [vmem:[%s256 + $0x60] sm:$0xf]
      %v282 = vld [vmem:[%s256 + $0x64] sm:$0xf]
      %v283 = vld [vmem:[%s256 + $0x68] sm:$0xf]
      %v284 = vld [vmem:[%s256 + $0x6c] sm:$0xf]
      %v285 = vld [vmem:[%s256 + $0x70] sm:$0xf]
      %v286 = vld [vmem:[%s256 + $0x74] sm:$0xf]
      %v287 = vld [vmem:[%s256 + $0x78] sm:$0xf]
      %v288 = vld [vmem:[%s256 + $0x7c] sm:$0xf]
      %s289 = scalar_lea.vmem %s185, 256
      %v290 = vld [vmem:[%s289] sm:$0xf]
      %v291 = vld [vmem:[%s289 + $0x4] sm:$0xf]
      %v292 = vld [vmem:[%s289 + $0x8] sm:$0xf]
      %v293 = vld [vmem:[%s289 + $0xc] sm:$0xf]
      %v294 = vld [vmem:[%s289 + $0x10] sm:$0xf]
      %v295 = vld [vmem:[%s289 + $0x14] sm:$0xf]
      %v296 = vld [vmem:[%s289 + $0x18] sm:$0xf]
      %v297 = vld [vmem:[%s289 + $0x1c] sm:$0xf]
      %v298 = vld [vmem:[%s289 + $0x20] sm:$0xf]
      %v299 = vld [vmem:[%s289 + $0x24] sm:$0xf]
      %v300 = vld [vmem:[%s289 + $0x28] sm:$0xf]
      %v301 = vld [vmem:[%s289 + $0x2c] sm:$0xf]
      %v302 = vld [vmem:[%s289 + $0x30] sm:$0xf]
      %v303 = vld [vmem:[%s289 + $0x34] sm:$0xf]
      %v304 = vld [vmem:[%s289 + $0x38] sm:$0xf]
      %v305 = vld [vmem:[%s289 + $0x3c] sm:$0xf]
      %v306 = vld [vmem:[%s289 + $0x40] sm:$0xf]
      %v307 = vld [vmem:[%s289 + $0x44] sm:$0xf]
      %v308 = vld [vmem:[%s289 + $0x48] sm:$0xf]
      %v309 = vld [vmem:[%s289 + $0x4c] sm:$0xf]
      %v310 = vld [vmem:[%s289 + $0x50] sm:$0xf]
      %v311 = vld [vmem:[%s289 + $0x54] sm:$0xf]
      %v312 = vld [vmem:[%s289 + $0x58] sm:$0xf]
      %v313 = vld [vmem:[%s289 + $0x5c] sm:$0xf]
      %v314 = vld [vmem:[%s289 + $0x60] sm:$0xf]
      %v315 = vld [vmem:[%s289 + $0x64] sm:$0xf]
      %v316 = vld [vmem:[%s289 + $0x68] sm:$0xf]
      %v317 = vld [vmem:[%s289 + $0x6c] sm:$0xf]
      %v318 = vld [vmem:[%s289 + $0x70] sm:$0xf]
      %v319 = vld [vmem:[%s289 + $0x74] sm:$0xf]
      %v320 = vld [vmem:[%s289 + $0x78] sm:$0xf]
      %v321 = vld [vmem:[%s289 + $0x7c] sm:$0xf]
      %s322 = scalar_lea.vmem %s185, 384
      %v323 = vld [vmem:[%s322] sm:$0xf]
      %v324 = vld [vmem:[%s322 + $0x4] sm:$0xf]
      %v325 = vld [vmem:[%s322 + $0x8] sm:$0xf]
      %v326 = vld [vmem:[%s322 + $0xc] sm:$0xf]
      %v327 = vld [vmem:[%s322 + $0x10] sm:$0xf]
      %v328 = vld [vmem:[%s322 + $0x14] sm:$0xf]
      %v329 = vld [vmem:[%s322 + $0x18] sm:$0xf]
      %v330 = vld [vmem:[%s322 + $0x1c] sm:$0xf]
      %v331 = vld [vmem:[%s322 + $0x20] sm:$0xf]
      %v332 = vld [vmem:[%s322 + $0x24] sm:$0xf]
      %v333 = vld [vmem:[%s322 + $0x28] sm:$0xf]
      %v334 = vld [vmem:[%s322 + $0x2c] sm:$0xf]
      %v335 = vld [vmem:[%s322 + $0x30] sm:$0xf]
      %v336 = vld [vmem:[%s322 + $0x34] sm:$0xf]
      %v337 = vld [vmem:[%s322 + $0x38] sm:$0xf]
      %v338 = vld [vmem:[%s322 + $0x3c] sm:$0xf]
      %v339 = vld [vmem:[%s322 + $0x40] sm:$0xf]
      %v340 = vld [vmem:[%s322 + $0x44] sm:$0xf]
      %v341 = vld [vmem:[%s322 + $0x48] sm:$0xf]
      %v342 = vld [vmem:[%s322 + $0x4c] sm:$0xf]
      %v343 = vld [vmem:[%s322 + $0x50] sm:$0xf]
      %v344 = vld [vmem:[%s322 + $0x54] sm:$0xf]
      %v345 = vld [vmem:[%s322 + $0x58] sm:$0xf]
      %v346 = vld [vmem:[%s322 + $0x5c] sm:$0xf]
      %v347 = vld [vmem:[%s322 + $0x60] sm:$0xf]
      %v348 = vld [vmem:[%s322 + $0x64] sm:$0xf]
      %v349 = vld [vmem:[%s322 + $0x68] sm:$0xf]
      %v350 = vld [vmem:[%s322 + $0x6c] sm:$0xf]
      %v351 = vld [vmem:[%s322 + $0x70] sm:$0xf]
      %v352 = vld [vmem:[%s322 + $0x74] sm:$0xf]
      %v353 = vld [vmem:[%s322 + $0x78] sm:$0xf]
      %v354 = vld [vmem:[%s322 + $0x7c] sm:$0xf]
      %v355 = vadd.bf16 %v224, %v290
      %v356 = vadd.bf16 %v225, %v291
      %v357 = vadd.bf16 %v226, %v292
      %v358 = vadd.bf16 %v227, %v293
      %v359 = vadd.bf16 %v228, %v294
      %v360 = vadd.bf16 %v229, %v295
      %v361 = vadd.bf16 %v230, %v296
      %v362 = vadd.bf16 %v231, %v297
      %v363 = vadd.bf16 %v232, %v298
      %v364 = vadd.bf16 %v233, %v299
      %v365 = vadd.bf16 %v234, %v300
      %v366 = vadd.bf16 %v235, %v301
      %v367 = vadd.bf16 %v236, %v302
      %v368 = vadd.bf16 %v237, %v303
      %v369 = vadd.bf16 %v238, %v304
      %v370 = vadd.bf16 %v239, %v305
      %v371 = vadd.bf16 %v240, %v306
      %v372 = vadd.bf16 %v241, %v307
      %v373 = vadd.bf16 %v242, %v308
      %v374 = vadd.bf16 %v243, %v309
      %v375 = vadd.bf16 %v244, %v310
      %v376 = vadd.bf16 %v245, %v311
      %v377 = vadd.bf16 %v246, %v312
      %v378 = vadd.bf16 %v247, %v313
      %v379 = vadd.bf16 %v248, %v314
      %v380 = vadd.bf16 %v249, %v315
      %v381 = vadd.bf16 %v250, %v316
      %v382 = vadd.bf16 %v251, %v317
      %v383 = vadd.bf16 %v252, %v318
      %v384 = vadd.bf16 %v253, %v319
      %v385 = vadd.bf16 %v254, %v320
      %v386 = vadd.bf16 %v255, %v321
      %v387 = vadd.bf16 %v257, %v323
      %v388 = vadd.bf16 %v258, %v324
      %v389 = vadd.bf16 %v259, %v325
      %v390 = vadd.bf16 %v260, %v326
      %v391 = vadd.bf16 %v261, %v327
      %v392 = vadd.bf16 %v262, %v328
      %v393 = vadd.bf16 %v263, %v329
      %v394 = vadd.bf16 %v264, %v330
      %v395 = vadd.bf16 %v265, %v331
      %v396 = vadd.bf16 %v266, %v332
      %v397 = vadd.bf16 %v267, %v333
      %v398 = vadd.bf16 %v268, %v334
      %v399 = vadd.bf16 %v269, %v335
      %v400 = vadd.bf16 %v270, %v336
      %v401 = vadd.bf16 %v271, %v337
      %v402 = vadd.bf16 %v272, %v338
      %v403 = vadd.bf16 %v273, %v339
      %v404 = vadd.bf16 %v274, %v340
      %v405 = vadd.bf16 %v275, %v341
      %v406 = vadd.bf16 %v276, %v342
      %v407 = vadd.bf16 %v277, %v343
      %v408 = vadd.bf16 %v278, %v344
      %v409 = vadd.bf16 %v279, %v345
      %v410 = vadd.bf16 %v280, %v346
      %v411 = vadd.bf16 %v281, %v347
      %v412 = vadd.bf16 %v282, %v348
      %v413 = vadd.bf16 %v283, %v349
      %v414 = vadd.bf16 %v284, %v350
      %v415 = vadd.bf16 %v285, %v351
      %v416 = vadd.bf16 %v286, %v352
      %v417 = vadd.bf16 %v287, %v353
      %v418 = vadd.bf16 %v288, %v354
      %v419 = vsub.bf16 %v224, %v290
      %v420 = vsub.bf16 %v225, %v291
      %v421 = vsub.bf16 %v226, %v292
      %v422 = vsub.bf16 %v227, %v293
      %v423 = vsub.bf16 %v228, %v294
      %v424 = vsub.bf16 %v229, %v295
      %v425 = vsub.bf16 %v230, %v296
      %v426 = vsub.bf16 %v231, %v297
      %v427 = vsub.bf16 %v232, %v298
      %v428 = vsub.bf16 %v233, %v299
      %v429 = vsub.bf16 %v234, %v300
      %v430 = vsub.bf16 %v235, %v301
      %v431 = vsub.bf16 %v236, %v302
      %v432 = vsub.bf16 %v237, %v303
      %v433 = vsub.bf16 %v238, %v304
      %v434 = vsub.bf16 %v239, %v305
      %v435 = vsub.bf16 %v240, %v306
      %v436 = vsub.bf16 %v241, %v307
      %v437 = vsub.bf16 %v242, %v308
      %v438 = vsub.bf16 %v243, %v309
      %v439 = vsub.bf16 %v244, %v310
      %v440 = vsub.bf16 %v245, %v311
      %v441 = vsub.bf16 %v246, %v312
      %v442 = vsub.bf16 %v247, %v313
      %v443 = vsub.bf16 %v248, %v314
      %v444 = vsub.bf16 %v249, %v315
      %v445 = vsub.bf16 %v250, %v316
      %v446 = vsub.bf16 %v251, %v317
      %v447 = vsub.bf16 %v252, %v318
      %v448 = vsub.bf16 %v253, %v319
      %v449 = vsub.bf16 %v254, %v320
      %v450 = vsub.bf16 %v255, %v321
      %v451 = vand.u32 2147450879, %v419
      %v452 = vand.u32 2147450879, %v420
      %v453 = vand.u32 2147450879, %v421
      %v454 = vand.u32 2147450879, %v422
      %v455 = vand.u32 2147450879, %v423
      %v456 = vand.u32 2147450879, %v424
      %v457 = vand.u32 2147450879, %v425
      %v458 = vand.u32 2147450879, %v426
      %v459 = vand.u32 2147450879, %v427
      %v460 = vand.u32 2147450879, %v428
      %v461 = vand.u32 2147450879, %v429
      %v462 = vand.u32 2147450879, %v430
      %v463 = vand.u32 2147450879, %v431
      %v464 = vand.u32 2147450879, %v432
      %v465 = vand.u32 2147450879, %v433
      %v466 = vand.u32 2147450879, %v434
      %v467 = vand.u32 2147450879, %v435
      %v468 = vand.u32 2147450879, %v436
      %v469 = vand.u32 2147450879, %v437
      %v470 = vand.u32 2147450879, %v438
      %v471 = vand.u32 2147450879, %v439
      %v472 = vand.u32 2147450879, %v440
      %v473 = vand.u32 2147450879, %v441
      %v474 = vand.u32 2147450879, %v442
      %v475 = vand.u32 2147450879, %v443
      %v476 = vand.u32 2147450879, %v444
      %v477 = vand.u32 2147450879, %v445
      %v478 = vand.u32 2147450879, %v446
      %v479 = vand.u32 2147450879, %v447
      %v480 = vand.u32 2147450879, %v448
      %v481 = vand.u32 2147450879, %v449
      %v482 = vand.u32 2147450879, %v450
      %v483 = vsub.bf16 %v257, %v323
      %v484 = vsub.bf16 %v258, %v324
      %v485 = vsub.bf16 %v259, %v325
      %v486 = vsub.bf16 %v260, %v326
      %v487 = vsub.bf16 %v261, %v327
      %v488 = vsub.bf16 %v262, %v328
      %v489 = vsub.bf16 %v263, %v329
      %v490 = vsub.bf16 %v264, %v330
      %v491 = vsub.bf16 %v265, %v331
      %v492 = vsub.bf16 %v266, %v332
      %v493 = vsub.bf16 %v267, %v333
      %v494 = vsub.bf16 %v268, %v334
      %v495 = vsub.bf16 %v269, %v335
      %v496 = vsub.bf16 %v270, %v336
      %v497 = vsub.bf16 %v271, %v337
      %v498 = vsub.bf16 %v272, %v338
      %v499 = vsub.bf16 %v273, %v339
      %v500 = vsub.bf16 %v274, %v340
      %v501 = vsub.bf16 %v275, %v341
      %v502 = vsub.bf16 %v276, %v342
      %v503 = vsub.bf16 %v277, %v343
      %v504 = vsub.bf16 %v278, %v344
      %v505 = vsub.bf16 %v279, %v345
      %v506 = vsub.bf16 %v280, %v346
      %v507 = vsub.bf16 %v281, %v347
      %v508 = vsub.bf16 %v282, %v348
      %v509 = vsub.bf16 %v283, %v349
      %v510 = vsub.bf16 %v284, %v350
      %v511 = vsub.bf16 %v285, %v351
      %v512 = vsub.bf16 %v286, %v352
      %v513 = vsub.bf16 %v287, %v353
      %v514 = vsub.bf16 %v288, %v354
      %v515 = vand.u32 2147450879, %v483
      %v516 = vand.u32 2147450879, %v484
      %v517 = vand.u32 2147450879, %v485
      %v518 = vand.u32 2147450879, %v486
      %v519 = vand.u32 2147450879, %v487
      %v520 = vand.u32 2147450879, %v488
      %v521 = vand.u32 2147450879, %v489
      %v522 = vand.u32 2147450879, %v490
      %v523 = vand.u32 2147450879, %v491
      %v524 = vand.u32 2147450879, %v492
      %v525 = vand.u32 2147450879, %v493
      %v526 = vand.u32 2147450879, %v494
      %v527 = vand.u32 2147450879, %v495
      %v528 = vand.u32 2147450879, %v496
      %v529 = vand.u32 2147450879, %v497
      %v530 = vand.u32 2147450879, %v498
      %v531 = vand.u32 2147450879, %v499
      %v532 = vand.u32 2147450879, %v500
      %v533 = vand.u32 2147450879, %v501
      %v534 = vand.u32 2147450879, %v502
      %v535 = vand.u32 2147450879, %v503
      %v536 = vand.u32 2147450879, %v504
      %v537 = vand.u32 2147450879, %v505
      %v538 = vand.u32 2147450879, %v506
      %v539 = vand.u32 2147450879, %v507
      %v540 = vand.u32 2147450879, %v508
      %v541 = vand.u32 2147450879, %v509
      %v542 = vand.u32 2147450879, %v510
      %v543 = vand.u32 2147450879, %v511
      %v544 = vand.u32 2147450879, %v512
      %v545 = vand.u32 2147450879, %v513
      %v546 = vand.u32 2147450879, %v514
      %v547 = vld [vmem:[%s2] sm:$0xf]
      %v548 = vld [vmem:[%s2 + $0x4] sm:$0xf]
      %v549 = vld [vmem:[%s2 + $0x8] sm:$0xf]
      %v550 = vld [vmem:[%s2 + $0xc] sm:$0xf]
      %s551 = scalar_lea.vmem %s2, 16
      %v552 = vld [vmem:[%s551] sm:$0xf]
      %v553 = vld [vmem:[%s551 + $0x4] sm:$0xf]
      %v554 = vld [vmem:[%s551 + $0x8] sm:$0xf]
      %v555 = vld [vmem:[%s551 + $0xc] sm:$0xf]
      %v588 = vunpack.c.l.b16 %v355
      %v589 = vunpack.c.l.b16 %v356
      %v590 = vunpack.c.l.b16 %v357
      %v591 = vunpack.c.l.b16 %v358
      %v592 = vunpack.c.l.b16 %v359
      %v593 = vunpack.c.l.b16 %v360
      %v594 = vunpack.c.l.b16 %v361
      %v595 = vunpack.c.l.b16 %v362
      %v596 = vunpack.c.l.b16 %v363
      %v597 = vunpack.c.l.b16 %v364
      %v598 = vunpack.c.l.b16 %v365
      %v599 = vunpack.c.l.b16 %v366
      %v600 = vunpack.c.l.b16 %v367
      %v601 = vunpack.c.l.b16 %v368
      %v602 = vunpack.c.l.b16 %v369
      %v603 = vunpack.c.l.b16 %v370
      %v604 = vunpack.c.l.b16 %v371
      %v605 = vunpack.c.l.b16 %v372
      %v606 = vunpack.c.l.b16 %v373
      %v607 = vunpack.c.l.b16 %v374
      %v608 = vunpack.c.l.b16 %v375
      %v609 = vunpack.c.l.b16 %v376
      %v610 = vunpack.c.l.b16 %v377
      %v611 = vunpack.c.l.b16 %v378
      %v612 = vunpack.c.l.b16 %v379
      %v613 = vunpack.c.l.b16 %v380
      %v614 = vunpack.c.l.b16 %v381
      %v615 = vunpack.c.l.b16 %v382
      %v616 = vunpack.c.l.b16 %v383
      %v617 = vunpack.c.l.b16 %v384
      %v618 = vunpack.c.l.b16 %v385
      %v619 = vunpack.c.l.b16 %v386
      %v620 = vpack.c.b16 %v589, %v588
      %v621 = vpack.c.b16 %v591, %v590
      %v622 = vpack.c.b16 %v593, %v592
      %v623 = vpack.c.b16 %v595, %v594
      %v624 = vpack.c.b16 %v597, %v596
      %v625 = vpack.c.b16 %v599, %v598
      %v626 = vpack.c.b16 %v601, %v600
      %v627 = vpack.c.b16 %v603, %v602
      %v628 = vpack.c.b16 %v605, %v604
      %v629 = vpack.c.b16 %v607, %v606
      %v630 = vpack.c.b16 %v609, %v608
      %v631 = vpack.c.b16 %v611, %v610
      %v632 = vpack.c.b16 %v613, %v612
      %v633 = vpack.c.b16 %v615, %v614
      %v634 = vpack.c.b16 %v617, %v616
      %v635 = vpack.c.b16 %v619, %v618
      %v640 = vunpack.c.l.b16 %v552
      %v641 = vunpack.c.l.b16 %v553
      %v642 = vunpack.c.l.b16 %v554
      %v643 = vunpack.c.l.b16 %v555
      %v644 = vpack.c.b16 %v641, %v640
      %v645 = vpack.c.b16 %v643, %v642
      %vm648 = vcmask 261120
      %v650 = vsel %vm648, %v620, 0
      %v653 = vsel %vm648, %v621, 0
      %v656 = vsel %vm648, %v622, 0
      %v659 = vsel %vm648, %v623, 0
      %v662 = vsel %vm648, %v624, 0
      %v665 = vsel %vm648, %v625, 0
      %v668 = vsel %vm648, %v626, 0
      %v671 = vsel %vm648, %v627, 0
      %v674 = vsel %vm648, %v628, 0
      %v677 = vsel %vm648, %v629, 0
      %v680 = vsel %vm648, %v630, 0
      %v683 = vsel %vm648, %v631, 0
      %v686 = vsel %vm648, %v632, 0
      %v689 = vsel %vm648, %v633, 0
      %v692 = vsel %vm648, %v634, 0
      %v695 = vsel %vm648, %v635, 0
      %697 = vmatprep.subr.bf16.mxu0 0
      %698 = vmatpush1.bf16.msra.mxu0 0
      %699 = vmatprep.subr.bf16.mxu0 0
      %700 = vmatpush1.bf16.msra.mxu0 0
      %701 = vmatprep.subr.bf16.mxu0 0
      %702 = vmatpush1.bf16.msra.mxu0 0
      %703 = vmatprep.subr.bf16.mxu0 0
      %704 = vmatpush1.bf16.msra.mxu0 0
      %705 = vmatprep.subr.bf16.mxu0 0
      %706 = vmatpush1.bf16.msra.mxu0 0
      %707 = vmatprep.subr.bf16.mxu0 0
      %708 = vmatpush1.bf16.msra.mxu0 0
      %709 = vmatprep.subr.bf16.mxu0 0
      %710 = vmatpush1.bf16.msra.mxu0 %v645
      %711 = vmatprep.subr.bf16.mxu0 0
      %712 = vmatpush1.bf16.msra.mxu0 %v644
      %713 = vmatprep.subr.bf16.mxu0 0
      %714 = vmatpush2.bf16.msra.mxu0 0
      %715 = vmatprep.subr.bf16.mxu0 0
      %716 = vmatpush2.bf16.msra.mxu0 0
      %717 = vmatprep.subr.bf16.mxu0 0
      %718 = vmatpush2.bf16.msra.mxu0 0
      %719 = vmatprep.subr.bf16.mxu0 0
      %720 = vmatpush2.bf16.msra.mxu0 0
      %721 = vmatprep.subr.bf16.mxu0 0
      %722 = vmatpush2.bf16.msra.mxu0 0
      %723 = vmatprep.subr.bf16.mxu0 0
      %724 = vmatpush2.bf16.msra.mxu0 0
      %725 = vmatprep.subr.bf16.mxu0 0
      %726 = vmatpush2.bf16.msra.mxu0 0
      %727 = vmatprep.subr.bf16.mxu0 0
      %728 = vmatpush2.bf16.msra.mxu0 0
      %729 = vmatprep.mubr.bf16.mxu0 0
      %730 = vmatmul.mubr.bf16.gmra.mxu0 %v650
      %v731 = vpop.f32.mrf.mxu0
      %v732 = vadd.f32 0.0, %v731
      %v733 = vpop.f32.mrf.mxu0
      %v734 = vpop.f32.mrf.mxu0
      %v735 = vadd.f32 0.0, %v734
      %v736 = vpop.f32.mrf.mxu0
      %737 = vmatprep.mubr.bf16.mxu0 0
      %738 = vmatmul.mubr.bf16.gmra.mxu0 %v653
      %v739 = vpop.f32.mrf.mxu0
      %v740 = vadd.f32 0.0, %v739
      %v741 = vpop.f32.mrf.mxu0
      %v742 = vpop.f32.mrf.mxu0
      %v743 = vadd.f32 0.0, %v742
      %v744 = vpop.f32.mrf.mxu0
      %745 = vmatprep.mubr.bf16.mxu0 0
      %746 = vmatmul.mubr.bf16.gmra.mxu0 %v656
      %v747 = vpop.f32.mrf.mxu0
      %v748 = vadd.f32 0.0, %v747
      %v749 = vpop.f32.mrf.mxu0
      %v750 = vpop.f32.mrf.mxu0
      %v751 = vadd.f32 0.0, %v750
      %v752 = vpop.f32.mrf.mxu0
      %753 = vmatprep.mubr.bf16.mxu0 0
      %754 = vmatmul.mubr.bf16.gmra.mxu0 %v659
      %v755 = vpop.f32.mrf.mxu0
      %v756 = vadd.f32 0.0, %v755
      %v757 = vpop.f32.mrf.mxu0
      %v758 = vpop.f32.mrf.mxu0
      %v759 = vadd.f32 0.0, %v758
      %v760 = vpop.f32.mrf.mxu0
      %761 = vmatprep.mubr.bf16.mxu0 0
      %762 = vmatmul.mubr.bf16.gmra.mxu0 %v662
      %v763 = vpop.f32.mrf.mxu0
      %v764 = vadd.f32 0.0, %v763
      %v765 = vpop.f32.mrf.mxu0
      %v766 = vpop.f32.mrf.mxu0
      %v767 = vadd.f32 0.0, %v766
      %v768 = vpop.f32.mrf.mxu0
      %769 = vmatprep.mubr.bf16.mxu0 0
      %770 = vmatmul.mubr.bf16.gmra.mxu0 %v665
      %v771 = vpop.f32.mrf.mxu0
      %v772 = vadd.f32 0.0, %v771
      %v773 = vpop.f32.mrf.mxu0
      %v774 = vpop.f32.mrf.mxu0
      %v775 = vadd.f32 0.0, %v774
      %v776 = vpop.f32.mrf.mxu0
      %777 = vmatprep.mubr.bf16.mxu0 0
      %778 = vmatmul.mubr.bf16.gmra.mxu0 %v668
      %v779 = vpop.f32.mrf.mxu0
      %v780 = vadd.f32 0.0, %v779
      %v781 = vpop.f32.mrf.mxu0
      %v782 = vpop.f32.mrf.mxu0
      %v783 = vadd.f32 0.0, %v782
      %v784 = vpop.f32.mrf.mxu0
      %785 = vmatprep.mubr.bf16.mxu0 0
      %786 = vmatmul.mubr.bf16.gmra.mxu0 %v671
      %v787 = vpop.f32.mrf.mxu0
      %v788 = vadd.f32 0.0, %v787
      %v789 = vpop.f32.mrf.mxu0
      %v790 = vpop.f32.mrf.mxu0
      %v791 = vadd.f32 0.0, %v790
      %v792 = vpop.f32.mrf.mxu0
      %793 = vmatprep.mubr.bf16.mxu0 0
      %794 = vmatmul.mubr.bf16.gmra.mxu0 %v674
      %v795 = vpop.f32.mrf.mxu0
      %v796 = vadd.f32 0.0, %v795
      %v797 = vpop.f32.mrf.mxu0
      %v798 = vpop.f32.mrf.mxu0
      %v799 = vadd.f32 0.0, %v798
      %v800 = vpop.f32.mrf.mxu0
      %801 = vmatprep.mubr.bf16.mxu0 0
      %802 = vmatmul.mubr.bf16.gmra.mxu0 %v677
      %v803 = vpop.f32.mrf.mxu0
      %v804 = vadd.f32 0.0, %v803
      %v805 = vpop.f32.mrf.mxu0
      %v806 = vpop.f32.mrf.mxu0
      %v807 = vadd.f32 0.0, %v806
      %v808 = vpop.f32.mrf.mxu0
      %809 = vmatprep.mubr.bf16.mxu0 0
      %810 = vmatmul.mubr.bf16.gmra.mxu0 %v680
      %v811 = vpop.f32.mrf.mxu0
      %v812 = vadd.f32 0.0, %v811
      %v813 = vpop.f32.mrf.mxu0
      %v814 = vpop.f32.mrf.mxu0
      %v815 = vadd.f32 0.0, %v814
      %v816 = vpop.f32.mrf.mxu0
      %817 = vmatprep.mubr.bf16.mxu0 0
      %818 = vmatmul.mubr.bf16.gmra.mxu0 %v683
      %v819 = vpop.f32.mrf.mxu0
      %v820 = vadd.f32 0.0, %v819
      %v821 = vpop.f32.mrf.mxu0
      %v822 = vpop.f32.mrf.mxu0
      %v823 = vadd.f32 0.0, %v822
      %v824 = vpop.f32.mrf.mxu0
      %825 = vmatprep.mubr.bf16.mxu0 0
      %826 = vmatmul.mubr.bf16.gmra.mxu0 %v686
      %v827 = vpop.f32.mrf.mxu0
      %v828 = vadd.f32 0.0, %v827
      %v829 = vpop.f32.mrf.mxu0
      %v830 = vpop.f32.mrf.mxu0
      %v831 = vadd.f32 0.0, %v830
      %v832 = vpop.f32.mrf.mxu0
      %833 = vmatprep.mubr.bf16.mxu0 0
      %834 = vmatmul.mubr.bf16.gmra.mxu0 %v689
      %v835 = vpop.f32.mrf.mxu0
      %v836 = vadd.f32 0.0, %v835
      %v837 = vpop.f32.mrf.mxu0
      %v838 = vpop.f32.mrf.mxu0
      %v839 = vadd.f32 0.0, %v838
      %v840 = vpop.f32.mrf.mxu0
      %841 = vmatprep.mubr.bf16.mxu0 0
      %842 = vmatmul.mubr.bf16.gmra.mxu0 %v692
      %v843 = vpop.f32.mrf.mxu0
      %v844 = vadd.f32 0.0, %v843
      %v845 = vpop.f32.mrf.mxu0
      %v846 = vpop.f32.mrf.mxu0
      %v847 = vadd.f32 0.0, %v846
      %v848 = vpop.f32.mrf.mxu0
      %849 = vmatprep.mubr.bf16.mxu0 0
      %850 = vmatmul.mubr.bf16.gmra.mxu0 %v695
      %v851 = vpop.f32.mrf.mxu0
      %v852 = vadd.f32 0.0, %v851
      %v853 = vpop.f32.mrf.mxu0
      %v854 = vpop.f32.mrf.mxu0
      %v855 = vadd.f32 0.0, %v854
      %v856 = vpop.f32.mrf.mxu0
      %857 = vdwg.mxu0
      %v890 = vunpack.c.l.b16 %v192
      %v891 = vunpack.c.l.b16 %v193
      %v892 = vunpack.c.l.b16 %v194
      %v893 = vunpack.c.l.b16 %v195
      %v894 = vunpack.c.l.b16 %v196
      %v895 = vunpack.c.l.b16 %v197
      %v896 = vunpack.c.l.b16 %v198
      %v897 = vunpack.c.l.b16 %v199
      %v898 = vunpack.c.l.b16 %v200
      %v899 = vunpack.c.l.b16 %v201
      %v900 = vunpack.c.l.b16 %v202
      %v901 = vunpack.c.l.b16 %v203
      %v902 = vunpack.c.l.b16 %v204
      %v903 = vunpack.c.l.b16 %v205
      %v904 = vunpack.c.l.b16 %v206
      %v905 = vunpack.c.l.b16 %v207
      %v906 = vunpack.c.l.b16 %v208
      %v907 = vunpack.c.l.b16 %v209
      %v908 = vunpack.c.l.b16 %v210
      %v909 = vunpack.c.l.b16 %v211
      %v910 = vunpack.c.l.b16 %v212
      %v911 = vunpack.c.l.b16 %v213
      %v912 = vunpack.c.l.b16 %v214
      %v913 = vunpack.c.l.b16 %v215
      %v914 = vunpack.c.l.b16 %v216
      %v915 = vunpack.c.l.b16 %v217
      %v916 = vunpack.c.l.b16 %v218
      %v917 = vunpack.c.l.b16 %v219
      %v918 = vunpack.c.l.b16 %v220
      %v919 = vunpack.c.l.b16 %v221
      %v920 = vunpack.c.l.b16 %v222
      %v921 = vunpack.c.l.b16 %v223
      %v922 = vpack.c.b16 %v891, %v890
      %v923 = vpack.c.b16 %v893, %v892
      %v924 = vpack.c.b16 %v895, %v894
      %v925 = vpack.c.b16 %v897, %v896
      %v926 = vpack.c.b16 %v899, %v898
      %v927 = vpack.c.b16 %v901, %v900
      %v928 = vpack.c.b16 %v903, %v902
      %v929 = vpack.c.b16 %v905, %v904
      %v930 = vpack.c.b16 %v907, %v906
      %v931 = vpack.c.b16 %v909, %v908
      %v932 = vpack.c.b16 %v911, %v910
      %v933 = vpack.c.b16 %v913, %v912
      %v934 = vpack.c.b16 %v915, %v914
      %v935 = vpack.c.b16 %v917, %v916
      %v936 = vpack.c.b16 %v919, %v918
      %v937 = vpack.c.b16 %v921, %v920
      %v942 = vunpack.c.l.b16 %v547
      %v943 = vunpack.c.l.b16 %v548
      %v944 = vunpack.c.l.b16 %v549
      %v945 = vunpack.c.l.b16 %v550
      %v946 = vpack.c.b16 %v943, %v942
      %v947 = vpack.c.b16 %v945, %v944
      %v951 = vsel %vm648, %v922, 0
      %v954 = vsel %vm648, %v923, 0
      %v957 = vsel %vm648, %v924, 0
      %v960 = vsel %vm648, %v925, 0
      %v963 = vsel %vm648, %v926, 0
      %v966 = vsel %vm648, %v927, 0
      %v969 = vsel %vm648, %v928, 0
      %v972 = vsel %vm648, %v929, 0
      %v975 = vsel %vm648, %v930, 0
      %v978 = vsel %vm648, %v931, 0
      %v981 = vsel %vm648, %v932, 0
      %v984 = vsel %vm648, %v933, 0
      %v987 = vsel %vm648, %v934, 0
      %v990 = vsel %vm648, %v935, 0
      %v993 = vsel %vm648, %v936, 0
      %v996 = vsel %vm648, %v937, 0
      %998 = vmatprep.subr.bf16.mxu0 0
      %999 = vmatpush1.bf16.msra.mxu0 0
      %1000 = vmatprep.subr.bf16.mxu0 0
      %1001 = vmatpush1.bf16.msra.mxu0 0
      %1002 = vmatprep.subr.bf16.mxu0 0
      %1003 = vmatpush1.bf16.msra.mxu0 0
      %1004 = vmatprep.subr.bf16.mxu0 0
      %1005 = vmatpush1.bf16.msra.mxu0 0
      %1006 = vmatprep.subr.bf16.mxu0 0
      %1007 = vmatpush1.bf16.msra.mxu0 0
      %1008 = vmatprep.subr.bf16.mxu0 0
      %1009 = vmatpush1.bf16.msra.mxu0 0
      %1010 = vmatprep.subr.bf16.mxu0 0
      %1011 = vmatpush1.bf16.msra.mxu0 %v947
      %1012 = vmatprep.subr.bf16.mxu0 0
      %1013 = vmatpush1.bf16.msra.mxu0 %v946
      %1014 = vmatprep.subr.bf16.mxu0 0
      %1015 = vmatpush2.bf16.msra.mxu0 0
      %1016 = vmatprep.subr.bf16.mxu0 0
      %1017 = vmatpush2.bf16.msra.mxu0 0
      %1018 = vmatprep.subr.bf16.mxu0 0
      %1019 = vmatpush2.bf16.msra.mxu0 0
      %1020 = vmatprep.subr.bf16.mxu0 0
      %1021 = vmatpush2.bf16.msra.mxu0 0
      %1022 = vmatprep.subr.bf16.mxu0 0
      %1023 = vmatpush2.bf16.msra.mxu0 0
      %1024 = vmatprep.subr.bf16.mxu0 0
      %1025 = vmatpush2.bf16.msra.mxu0 0
      %1026 = vmatprep.subr.bf16.mxu0 0
      %1027 = vmatpush2.bf16.msra.mxu0 0
      %1028 = vmatprep.subr.bf16.mxu0 0
      %1029 = vmatpush2.bf16.msra.mxu0 0
      %1030 = vmatprep.mubr.bf16.mxu0 0
      %1031 = vmatmul.mubr.bf16.gmra.mxu0 %v951
      %v1032 = vpop.f32.mrf.mxu0
      %v1033 = vadd.f32 %v732, %v1032
      %v1034 = vpop.f32.mrf.mxu0
      %v1035 = vpop.f32.mrf.mxu0
      %v1036 = vadd.f32 %v735, %v1035
      %v1037 = vpop.f32.mrf.mxu0
      %1038 = vmatprep.mubr.bf16.mxu0 0
      %1039 = vmatmul.mubr.bf16.gmra.mxu0 %v954
      %v1040 = vpop.f32.mrf.mxu0
      %v1041 = vadd.f32 %v740, %v1040
      %v1042 = vpop.f32.mrf.mxu0
      %v1043 = vpop.f32.mrf.mxu0
      %v1044 = vadd.f32 %v743, %v1043
      %v1045 = vpop.f32.mrf.mxu0
      %1046 = vmatprep.mubr.bf16.mxu0 0
      %1047 = vmatmul.mubr.bf16.gmra.mxu0 %v957
      %v1048 = vpop.f32.mrf.mxu0
      %v1049 = vadd.f32 %v748, %v1048
      %v1050 = vpop.f32.mrf.mxu0
      %v1051 = vpop.f32.mrf.mxu0
      %v1052 = vadd.f32 %v751, %v1051
      %v1053 = vpop.f32.mrf.mxu0
      %1054 = vmatprep.mubr.bf16.mxu0 0
      %1055 = vmatmul.mubr.bf16.gmra.mxu0 %v960
      %v1056 = vpop.f32.mrf.mxu0
      %v1057 = vadd.f32 %v756, %v1056
      %v1058 = vpop.f32.mrf.mxu0
      %v1059 = vpop.f32.mrf.mxu0
      %v1060 = vadd.f32 %v759, %v1059
      %v1061 = vpop.f32.mrf.mxu0
      %1062 = vmatprep.mubr.bf16.mxu0 0
      %1063 = vmatmul.mubr.bf16.gmra.mxu0 %v963
      %v1064 = vpop.f32.mrf.mxu0
      %v1065 = vadd.f32 %v764, %v1064
      %v1066 = vpop.f32.mrf.mxu0
      %v1067 = vpop.f32.mrf.mxu0
      %v1068 = vadd.f32 %v767, %v1067
      %v1069 = vpop.f32.mrf.mxu0
      %1070 = vmatprep.mubr.bf16.mxu0 0
      %1071 = vmatmul.mubr.bf16.gmra.mxu0 %v966
      %v1072 = vpop.f32.mrf.mxu0
      %v1073 = vadd.f32 %v772, %v1072
      %v1074 = vpop.f32.mrf.mxu0
      %v1075 = vpop.f32.mrf.mxu0
      %v1076 = vadd.f32 %v775, %v1075
      %v1077 = vpop.f32.mrf.mxu0
      %1078 = vmatprep.mubr.bf16.mxu0 0
      %1079 = vmatmul.mubr.bf16.gmra.mxu0 %v969
      %v1080 = vpop.f32.mrf.mxu0
      %v1081 = vadd.f32 %v780, %v1080
      %v1082 = vpop.f32.mrf.mxu0
      %v1083 = vpop.f32.mrf.mxu0
      %v1084 = vadd.f32 %v783, %v1083
      %v1085 = vpop.f32.mrf.mxu0
      %1086 = vmatprep.mubr.bf16.mxu0 0
      %1087 = vmatmul.mubr.bf16.gmra.mxu0 %v972
      %v1088 = vpop.f32.mrf.mxu0
      %v1089 = vadd.f32 %v788, %v1088
      %v1090 = vpop.f32.mrf.mxu0
      %v1091 = vpop.f32.mrf.mxu0
      %v1092 = vadd.f32 %v791, %v1091
      %v1093 = vpop.f32.mrf.mxu0
      %1094 = vmatprep.mubr.bf16.mxu0 0
      %1095 = vmatmul.mubr.bf16.gmra.mxu0 %v975
      %v1096 = vpop.f32.mrf.mxu0
      %v1097 = vadd.f32 %v796, %v1096
      %v1098 = vpop.f32.mrf.mxu0
      %v1099 = vpop.f32.mrf.mxu0
      %v1100 = vadd.f32 %v799, %v1099
      %v1101 = vpop.f32.mrf.mxu0
      %1102 = vmatprep.mubr.bf16.mxu0 0
      %1103 = vmatmul.mubr.bf16.gmra.mxu0 %v978
      %v1104 = vpop.f32.mrf.mxu0
      %v1105 = vadd.f32 %v804, %v1104
      %v1106 = vpop.f32.mrf.mxu0
      %v1107 = vpop.f32.mrf.mxu0
      %v1108 = vadd.f32 %v807, %v1107
      %v1109 = vpop.f32.mrf.mxu0
      %1110 = vmatprep.mubr.bf16.mxu0 0
      %1111 = vmatmul.mubr.bf16.gmra.mxu0 %v981
      %v1112 = vpop.f32.mrf.mxu0
      %v1113 = vadd.f32 %v812, %v1112
      %v1114 = vpop.f32.mrf.mxu0
      %v1115 = vpop.f32.mrf.mxu0
      %v1116 = vadd.f32 %v815, %v1115
      %v1117 = vpop.f32.mrf.mxu0
      %1118 = vmatprep.mubr.bf16.mxu0 0
      %1119 = vmatmul.mubr.bf16.gmra.mxu0 %v984
      %v1120 = vpop.f32.mrf.mxu0
      %v1121 = vadd.f32 %v820, %v1120
      %v1122 = vpop.f32.mrf.mxu0
      %v1123 = vpop.f32.mrf.mxu0
      %v1124 = vadd.f32 %v823, %v1123
      %v1125 = vpop.f32.mrf.mxu0
      %1126 = vmatprep.mubr.bf16.mxu0 0
      %1127 = vmatmul.mubr.bf16.gmra.mxu0 %v987
      %v1128 = vpop.f32.mrf.mxu0
      %v1129 = vadd.f32 %v828, %v1128
      %v1130 = vpop.f32.mrf.mxu0
      %v1131 = vpop.f32.mrf.mxu0
      %v1132 = vadd.f32 %v831, %v1131
      %v1133 = vpop.f32.mrf.mxu0
      %1134 = vmatprep.mubr.bf16.mxu0 0
      %1135 = vmatmul.mubr.bf16.gmra.mxu0 %v990
      %v1136 = vpop.f32.mrf.mxu0
      %v1137 = vadd.f32 %v836, %v1136
      %v1138 = vpop.f32.mrf.mxu0
      %v1139 = vpop.f32.mrf.mxu0
      %v1140 = vadd.f32 %v839, %v1139
      %v1141 = vpop.f32.mrf.mxu0
      %1142 = vmatprep.mubr.bf16.mxu0 0
      %1143 = vmatmul.mubr.bf16.gmra.mxu0 %v993
      %v1144 = vpop.f32.mrf.mxu0
      %v1145 = vadd.f32 %v844, %v1144
      %v1146 = vpop.f32.mrf.mxu0
      %v1147 = vpop.f32.mrf.mxu0
      %v1148 = vadd.f32 %v847, %v1147
      %v1149 = vpop.f32.mrf.mxu0
      %1150 = vmatprep.mubr.bf16.mxu0 0
      %1151 = vmatmul.mubr.bf16.gmra.mxu0 %v996
      %v1152 = vpop.f32.mrf.mxu0
      %v1153 = vadd.f32 %v852, %v1152
      %v1154 = vpop.f32.mrf.mxu0
      %v1155 = vpop.f32.mrf.mxu0
      %v1156 = vadd.f32 %v855, %v1155
      %v1157 = vpop.f32.mrf.mxu0
      %1158 = vdwg.mxu0
      %s1159 = scalar_lea.vmem %s2, 32
      %v1160 = vld [vmem:[%s1159] sm:$0xf]
      %v1161 = vld [vmem:[%s1159 + $0x4] sm:$0xf]
      %v1162 = vld [vmem:[%s1159 + $0x8] sm:$0xf]
      %v1163 = vld [vmem:[%s1159 + $0xc] sm:$0xf]
      %v1196 = vunpack.c.l.b16 %v387
      %v1197 = vunpack.c.l.b16 %v388
      %v1198 = vunpack.c.l.b16 %v389
      %v1199 = vunpack.c.l.b16 %v390
      %v1200 = vunpack.c.l.b16 %v391
      %v1201 = vunpack.c.l.b16 %v392
      %v1202 = vunpack.c.l.b16 %v393
      %v1203 = vunpack.c.l.b16 %v394
      %v1204 = vunpack.c.l.b16 %v395
      %v1205 = vunpack.c.l.b16 %v396
      %v1206 = vunpack.c.l.b16 %v397
      %v1207 = vunpack.c.l.b16 %v398
      %v1208 = vunpack.c.l.b16 %v399
      %v1209 = vunpack.c.l.b16 %v400
      %v1210 = vunpack.c.l.b16 %v401
      %v1211 = vunpack.c.l.b16 %v402
      %v1212 = vunpack.c.l.b16 %v403
      %v1213 = vunpack.c.l.b16 %v404
      %v1214 = vunpack.c.l.b16 %v405
      %v1215 = vunpack.c.l.b16 %v406
      %v1216 = vunpack.c.l.b16 %v407
      %v1217 = vunpack.c.l.b16 %v408
      %v1218 = vunpack.c.l.b16 %v409
      %v1219 = vunpack.c.l.b16 %v410
      %v1220 = vunpack.c.l.b16 %v411
      %v1221 = vunpack.c.l.b16 %v412
      %v1222 = vunpack.c.l.b16 %v413
      %v1223 = vunpack.c.l.b16 %v414
      %v1224 = vunpack.c.l.b16 %v415
      %v1225 = vunpack.c.l.b16 %v416
      %v1226 = vunpack.c.l.b16 %v417
      %v1227 = vunpack.c.l.b16 %v418
      %v1228 = vpack.c.b16 %v1197, %v1196
      %v1229 = vpack.c.b16 %v1199, %v1198
      %v1230 = vpack.c.b16 %v1201, %v1200
      %v1231 = vpack.c.b16 %v1203, %v1202
      %v1232 = vpack.c.b16 %v1205, %v1204
      %v1233 = vpack.c.b16 %v1207, %v1206
      %v1234 = vpack.c.b16 %v1209, %v1208
      %v1235 = vpack.c.b16 %v1211, %v1210
      %v1236 = vpack.c.b16 %v1213, %v1212
      %v1237 = vpack.c.b16 %v1215, %v1214
      %v1238 = vpack.c.b16 %v1217, %v1216
      %v1239 = vpack.c.b16 %v1219, %v1218
      %v1240 = vpack.c.b16 %v1221, %v1220
      %v1241 = vpack.c.b16 %v1223, %v1222
      %v1242 = vpack.c.b16 %v1225, %v1224
      %v1243 = vpack.c.b16 %v1227, %v1226
      %v1248 = vunpack.c.l.b16 %v1160
      %v1249 = vunpack.c.l.b16 %v1161
      %v1250 = vunpack.c.l.b16 %v1162
      %v1251 = vunpack.c.l.b16 %v1163
      %v1252 = vpack.c.b16 %v1249, %v1248
      %v1253 = vpack.c.b16 %v1251, %v1250
      %v1257 = vsel %vm648, %v1228, 0
      %v1260 = vsel %vm648, %v1229, 0
      %v1263 = vsel %vm648, %v1230, 0
      %v1266 = vsel %vm648, %v1231, 0
      %v1269 = vsel %vm648, %v1232, 0
      %v1272 = vsel %vm648, %v1233, 0
      %v1275 = vsel %vm648, %v1234, 0
      %v1278 = vsel %vm648, %v1235, 0
      %v1281 = vsel %vm648, %v1236, 0
      %v1284 = vsel %vm648, %v1237, 0
      %v1287 = vsel %vm648, %v1238, 0
      %v1290 = vsel %vm648, %v1239, 0
      %v1293 = vsel %vm648, %v1240, 0
      %v1296 = vsel %vm648, %v1241, 0
      %v1299 = vsel %vm648, %v1242, 0
      %v1302 = vsel %vm648, %v1243, 0
      %1304 = vmatprep.subr.bf16.mxu0 0
      %1305 = vmatpush1.bf16.msra.mxu0 0
      %1306 = vmatprep.subr.bf16.mxu0 0
      %1307 = vmatpush1.bf16.msra.mxu0 0
      %1308 = vmatprep.subr.bf16.mxu0 0
      %1309 = vmatpush1.bf16.msra.mxu0 0
      %1310 = vmatprep.subr.bf16.mxu0 0
      %1311 = vmatpush1.bf16.msra.mxu0 0
      %1312 = vmatprep.subr.bf16.mxu0 0
      %1313 = vmatpush1.bf16.msra.mxu0 0
      %1314 = vmatprep.subr.bf16.mxu0 0
      %1315 = vmatpush1.bf16.msra.mxu0 0
      %1316 = vmatprep.subr.bf16.mxu0 0
      %1317 = vmatpush1.bf16.msra.mxu0 %v1253
      %1318 = vmatprep.subr.bf16.mxu0 0
      %1319 = vmatpush1.bf16.msra.mxu0 %v1252
      %1320 = vmatprep.subr.bf16.mxu0 0
      %1321 = vmatpush2.bf16.msra.mxu0 0
      %1322 = vmatprep.subr.bf16.mxu0 0
      %1323 = vmatpush2.bf16.msra.mxu0 0
      %1324 = vmatprep.subr.bf16.mxu0 0
      %1325 = vmatpush2.bf16.msra.mxu0 0
      %1326 = vmatprep.subr.bf16.mxu0 0
      %1327 = vmatpush2.bf16.msra.mxu0 0
      %1328 = vmatprep.subr.bf16.mxu0 0
      %1329 = vmatpush2.bf16.msra.mxu0 0
      %1330 = vmatprep.subr.bf16.mxu0 0
      %1331 = vmatpush2.bf16.msra.mxu0 0
      %1332 = vmatprep.subr.bf16.mxu0 0
      %1333 = vmatpush2.bf16.msra.mxu0 0
      %1334 = vmatprep.subr.bf16.mxu0 0
      %1335 = vmatpush2.bf16.msra.mxu0 0
      %1336 = vmatprep.mubr.bf16.mxu0 0
      %1337 = vmatmul.mubr.bf16.gmra.mxu0 %v1257
      %v1338 = vpop.f32.mrf.mxu0
      %v1339 = vadd.f32 0.0, %v1338
      %v1340 = vpop.f32.mrf.mxu0
      %v1341 = vpop.f32.mrf.mxu0
      %v1342 = vadd.f32 0.0, %v1341
      %v1343 = vpop.f32.mrf.mxu0
      %1344 = vmatprep.mubr.bf16.mxu0 0
      %1345 = vmatmul.mubr.bf16.gmra.mxu0 %v1260
      %v1346 = vpop.f32.mrf.mxu0
      %v1347 = vadd.f32 0.0, %v1346
      %v1348 = vpop.f32.mrf.mxu0
      %v1349 = vpop.f32.mrf.mxu0
      %v1350 = vadd.f32 0.0, %v1349
      %v1351 = vpop.f32.mrf.mxu0
      %1352 = vmatprep.mubr.bf16.mxu0 0
      %1353 = vmatmul.mubr.bf16.gmra.mxu0 %v1263
      %v1354 = vpop.f32.mrf.mxu0
      %v1355 = vadd.f32 0.0, %v1354
      %v1356 = vpop.f32.mrf.mxu0
      %v1357 = vpop.f32.mrf.mxu0
      %v1358 = vadd.f32 0.0, %v1357
      %v1359 = vpop.f32.mrf.mxu0
      %1360 = vmatprep.mubr.bf16.mxu0 0
      %1361 = vmatmul.mubr.bf16.gmra.mxu0 %v1266
      %v1362 = vpop.f32.mrf.mxu0
      %v1363 = vadd.f32 0.0, %v1362
      %v1364 = vpop.f32.mrf.mxu0
      %v1365 = vpop.f32.mrf.mxu0
      %v1366 = vadd.f32 0.0, %v1365
      %v1367 = vpop.f32.mrf.mxu0
      %1368 = vmatprep.mubr.bf16.mxu0 0
      %1369 = vmatmul.mubr.bf16.gmra.mxu0 %v1269
      %v1370 = vpop.f32.mrf.mxu0
      %v1371 = vadd.f32 0.0, %v1370
      %v1372 = vpop.f32.mrf.mxu0
      %v1373 = vpop.f32.mrf.mxu0
      %v1374 = vadd.f32 0.0, %v1373
      %v1375 = vpop.f32.mrf.mxu0
      %1376 = vmatprep.mubr.bf16.mxu0 0
      %1377 = vmatmul.mubr.bf16.gmra.mxu0 %v1272
      %v1378 = vpop.f32.mrf.mxu0
      %v1379 = vadd.f32 0.0, %v1378
      %v1380 = vpop.f32.mrf.mxu0
      %v1381 = vpop.f32.mrf.mxu0
      %v1382 = vadd.f32 0.0, %v1381
      %v1383 = vpop.f32.mrf.mxu0
      %1384 = vmatprep.mubr.bf16.mxu0 0
      %1385 = vmatmul.mubr.bf16.gmra.mxu0 %v1275
      %v1386 = vpop.f32.mrf.mxu0
      %v1387 = vadd.f32 0.0, %v1386
      %v1388 = vpop.f32.mrf.mxu0
      %v1389 = vpop.f32.mrf.mxu0
      %v1390 = vadd.f32 0.0, %v1389
      %v1391 = vpop.f32.mrf.mxu0
      %1392 = vmatprep.mubr.bf16.mxu0 0
      %1393 = vmatmul.mubr.bf16.gmra.mxu0 %v1278
      %v1394 = vpop.f32.mrf.mxu0
      %v1395 = vadd.f32 0.0, %v1394
      %v1396 = vpop.f32.mrf.mxu0
      %v1397 = vpop.f32.mrf.mxu0
      %v1398 = vadd.f32 0.0, %v1397
      %v1399 = vpop.f32.mrf.mxu0
      %1400 = vmatprep.mubr.bf16.mxu0 0
      %1401 = vmatmul.mubr.bf16.gmra.mxu0 %v1281
      %v1402 = vpop.f32.mrf.mxu0
      %v1403 = vadd.f32 0.0, %v1402
      %v1404 = vpop.f32.mrf.mxu0
      %v1405 = vpop.f32.mrf.mxu0
      %v1406 = vadd.f32 0.0, %v1405
      %v1407 = vpop.f32.mrf.mxu0
      %1408 = vmatprep.mubr.bf16.mxu0 0
      %1409 = vmatmul.mubr.bf16.gmra.mxu0 %v1284
      %v1410 = vpop.f32.mrf.mxu0
      %v1411 = vadd.f32 0.0, %v1410
      %v1412 = vpop.f32.mrf.mxu0
      %v1413 = vpop.f32.mrf.mxu0
      %v1414 = vadd.f32 0.0, %v1413
      %v1415 = vpop.f32.mrf.mxu0
      %1416 = vmatprep.mubr.bf16.mxu0 0
      %1417 = vmatmul.mubr.bf16.gmra.mxu0 %v1287
      %v1418 = vpop.f32.mrf.mxu0
      %v1419 = vadd.f32 0.0, %v1418
      %v1420 = vpop.f32.mrf.mxu0
      %v1421 = vpop.f32.mrf.mxu0
      %v1422 = vadd.f32 0.0, %v1421
      %v1423 = vpop.f32.mrf.mxu0
      %1424 = vmatprep.mubr.bf16.mxu0 0
      %1425 = vmatmul.mubr.bf16.gmra.mxu0 %v1290
      %v1426 = vpop.f32.mrf.mxu0
      %v1427 = vadd.f32 0.0, %v1426
      %v1428 = vpop.f32.mrf.mxu0
      %v1429 = vpop.f32.mrf.mxu0
      %v1430 = vadd.f32 0.0, %v1429
      %v1431 = vpop.f32.mrf.mxu0
      %1432 = vmatprep.mubr.bf16.mxu0 0
      %1433 = vmatmul.mubr.bf16.gmra.mxu0 %v1293
      %v1434 = vpop.f32.mrf.mxu0
      %v1435 = vadd.f32 0.0, %v1434
      %v1436 = vpop.f32.mrf.mxu0
      %v1437 = vpop.f32.mrf.mxu0
      %v1438 = vadd.f32 0.0, %v1437
      %v1439 = vpop.f32.mrf.mxu0
      %1440 = vmatprep.mubr.bf16.mxu0 0
      %1441 = vmatmul.mubr.bf16.gmra.mxu0 %v1296
      %v1442 = vpop.f32.mrf.mxu0
      %v1443 = vadd.f32 0.0, %v1442
      %v1444 = vpop.f32.mrf.mxu0
      %v1445 = vpop.f32.mrf.mxu0
      %v1446 = vadd.f32 0.0, %v1445
      %v1447 = vpop.f32.mrf.mxu0
      %1448 = vmatprep.mubr.bf16.mxu0 0
      %1449 = vmatmul.mubr.bf16.gmra.mxu0 %v1299
      %v1450 = vpop.f32.mrf.mxu0
      %v1451 = vadd.f32 0.0, %v1450
      %v1452 = vpop.f32.mrf.mxu0
      %v1453 = vpop.f32.mrf.mxu0
      %v1454 = vadd.f32 0.0, %v1453
      %v1455 = vpop.f32.mrf.mxu0
      %1456 = vmatprep.mubr.bf16.mxu0 0
      %1457 = vmatmul.mubr.bf16.gmra.mxu0 %v1302
      %v1458 = vpop.f32.mrf.mxu0
      %v1459 = vadd.f32 0.0, %v1458
      %v1460 = vpop.f32.mrf.mxu0
      %v1461 = vpop.f32.mrf.mxu0
      %v1462 = vadd.f32 0.0, %v1461
      %v1463 = vpop.f32.mrf.mxu0
      %1464 = vdwg.mxu0
      %v1465 = vadd.f32 %v1033, %v1339
      %v1466 = vadd.f32 %v1036, %v1342
      %v1467 = vadd.f32 %v1041, %v1347
      %v1468 = vadd.f32 %v1044, %v1350
      %v1469 = vadd.f32 %v1049, %v1355
      %v1470 = vadd.f32 %v1052, %v1358
      %v1471 = vadd.f32 %v1057, %v1363
      %v1472 = vadd.f32 %v1060, %v1366
      %v1473 = vadd.f32 %v1065, %v1371
      %v1474 = vadd.f32 %v1068, %v1374
      %v1475 = vadd.f32 %v1073, %v1379
      %v1476 = vadd.f32 %v1076, %v1382
      %v1477 = vadd.f32 %v1081, %v1387
      %v1478 = vadd.f32 %v1084, %v1390
      %v1479 = vadd.f32 %v1089, %v1395
      %v1480 = vadd.f32 %v1092, %v1398
      %v1481 = vadd.f32 %v1097, %v1403
      %v1482 = vadd.f32 %v1100, %v1406
      %v1483 = vadd.f32 %v1105, %v1411
      %v1484 = vadd.f32 %v1108, %v1414
      %v1485 = vadd.f32 %v1113, %v1419
      %v1486 = vadd.f32 %v1116, %v1422
      %v1487 = vadd.f32 %v1121, %v1427
      %v1488 = vadd.f32 %v1124, %v1430
      %v1489 = vadd.f32 %v1129, %v1435
      %v1490 = vadd.f32 %v1132, %v1438
      %v1491 = vadd.f32 %v1137, %v1443
      %v1492 = vadd.f32 %v1140, %v1446
      %v1493 = vadd.f32 %v1145, %v1451
      %v1494 = vadd.f32 %v1148, %v1454
      %v1495 = vadd.f32 %v1153, %v1459
      %v1496 = vadd.f32 %v1156, %v1462
      %s1497 = scalar_lea.vmem %s2, 48
      %v1498 = vld [vmem:[%s1497] sm:$0xf]
      %v1499 = vld [vmem:[%s1497 + $0x4] sm:$0xf]
      %v1500 = vld [vmem:[%s1497 + $0x8] sm:$0xf]
      %v1501 = vld [vmem:[%s1497 + $0xc] sm:$0xf]
      %v1534 = vunpack.c.l.b16 %v451
      %v1535 = vunpack.c.l.b16 %v452
      %v1536 = vunpack.c.l.b16 %v453
      %v1537 = vunpack.c.l.b16 %v454
      %v1538 = vunpack.c.l.b16 %v455
      %v1539 = vunpack.c.l.b16 %v456
      %v1540 = vunpack.c.l.b16 %v457
      %v1541 = vunpack.c.l.b16 %v458
      %v1542 = vunpack.c.l.b16 %v459
      %v1543 = vunpack.c.l.b16 %v460
      %v1544 = vunpack.c.l.b16 %v461
      %v1545 = vunpack.c.l.b16 %v462
      %v1546 = vunpack.c.l.b16 %v463
      %v1547 = vunpack.c.l.b16 %v464
      %v1548 = vunpack.c.l.b16 %v465
      %v1549 = vunpack.c.l.b16 %v466
      %v1550 = vunpack.c.l.b16 %v467
      %v1551 = vunpack.c.l.b16 %v468
      %v1552 = vunpack.c.l.b16 %v469
      %v1553 = vunpack.c.l.b16 %v470
      %v1554 = vunpack.c.l.b16 %v471
      %v1555 = vunpack.c.l.b16 %v472
      %v1556 = vunpack.c.l.b16 %v473
      %v1557 = vunpack.c.l.b16 %v474
      %v1558 = vunpack.c.l.b16 %v475
      %v1559 = vunpack.c.l.b16 %v476
      %v1560 = vunpack.c.l.b16 %v477
      %v1561 = vunpack.c.l.b16 %v478
      %v1562 = vunpack.c.l.b16 %v479
      %v1563 = vunpack.c.l.b16 %v480
      %v1564 = vunpack.c.l.b16 %v481
      %v1565 = vunpack.c.l.b16 %v482
      %v1566 = vpack.c.b16 %v1535, %v1534
      %v1567 = vpack.c.b16 %v1537, %v1536
      %v1568 = vpack.c.b16 %v1539, %v1538
      %v1569 = vpack.c.b16 %v1541, %v1540
      %v1570 = vpack.c.b16 %v1543, %v1542
      %v1571 = vpack.c.b16 %v1545, %v1544
      %v1572 = vpack.c.b16 %v1547, %v1546
      %v1573 = vpack.c.b16 %v1549, %v1548
      %v1574 = vpack.c.b16 %v1551, %v1550
      %v1575 = vpack.c.b16 %v1553, %v1552
      %v1576 = vpack.c.b16 %v1555, %v1554
      %v1577 = vpack.c.b16 %v1557, %v1556
      %v1578 = vpack.c.b16 %v1559, %v1558
      %v1579 = vpack.c.b16 %v1561, %v1560
      %v1580 = vpack.c.b16 %v1563, %v1562
      %v1581 = vpack.c.b16 %v1565, %v1564
      %v1586 = vunpack.c.l.b16 %v1498
      %v1587 = vunpack.c.l.b16 %v1499
      %v1588 = vunpack.c.l.b16 %v1500
      %v1589 = vunpack.c.l.b16 %v1501
      %v1590 = vpack.c.b16 %v1587, %v1586
      %v1591 = vpack.c.b16 %v1589, %v1588
      %v1595 = vsel %vm648, %v1566, 0
      %v1598 = vsel %vm648, %v1567, 0
      %v1601 = vsel %vm648, %v1568, 0
      %v1604 = vsel %vm648, %v1569, 0
      %v1607 = vsel %vm648, %v1570, 0
      %v1610 = vsel %vm648, %v1571, 0
      %v1613 = vsel %vm648, %v1572, 0
      %v1616 = vsel %vm648, %v1573, 0
      %v1619 = vsel %vm648, %v1574, 0
      %v1622 = vsel %vm648, %v1575, 0
      %v1625 = vsel %vm648, %v1576, 0
      %v1628 = vsel %vm648, %v1577, 0
      %v1631 = vsel %vm648, %v1578, 0
      %v1634 = vsel %vm648, %v1579, 0
      %v1637 = vsel %vm648, %v1580, 0
      %v1640 = vsel %vm648, %v1581, 0
      %1642 = vmatprep.subr.bf16.mxu0 0
      %1643 = vmatpush1.bf16.msra.mxu0 0
      %1644 = vmatprep.subr.bf16.mxu0 0
      %1645 = vmatpush1.bf16.msra.mxu0 0
      %1646 = vmatprep.subr.bf16.mxu0 0
      %1647 = vmatpush1.bf16.msra.mxu0 0
      %1648 = vmatprep.subr.bf16.mxu0 0
      %1649 = vmatpush1.bf16.msra.mxu0 0
      %1650 = vmatprep.subr.bf16.mxu0 0
      %1651 = vmatpush1.bf16.msra.mxu0 0
      %1652 = vmatprep.subr.bf16.mxu0 0
      %1653 = vmatpush1.bf16.msra.mxu0 0
      %1654 = vmatprep.subr.bf16.mxu0 0
      %1655 = vmatpush1.bf16.msra.mxu0 %v1591
      %1656 = vmatprep.subr.bf16.mxu0 0
      %1657 = vmatpush1.bf16.msra.mxu0 %v1590
      %1658 = vmatprep.subr.bf16.mxu0 0
      %1659 = vmatpush2.bf16.msra.mxu0 0
      %1660 = vmatprep.subr.bf16.mxu0 0
      %1661 = vmatpush2.bf16.msra.mxu0 0
      %1662 = vmatprep.subr.bf16.mxu0 0
      %1663 = vmatpush2.bf16.msra.mxu0 0
      %1664 = vmatprep.subr.bf16.mxu0 0
      %1665 = vmatpush2.bf16.msra.mxu0 0
      %1666 = vmatprep.subr.bf16.mxu0 0
      %1667 = vmatpush2.bf16.msra.mxu0 0
      %1668 = vmatprep.subr.bf16.mxu0 0
      %1669 = vmatpush2.bf16.msra.mxu0 0
      %1670 = vmatprep.subr.bf16.mxu0 0
      %1671 = vmatpush2.bf16.msra.mxu0 0
      %1672 = vmatprep.subr.bf16.mxu0 0
      %1673 = vmatpush2.bf16.msra.mxu0 0
      %1674 = vmatprep.mubr.bf16.mxu0 0
      %1675 = vmatmul.mubr.bf16.gmra.mxu0 %v1595
      %v1676 = vpop.f32.mrf.mxu0
      %v1677 = vadd.f32 0.0, %v1676
      %v1678 = vpop.f32.mrf.mxu0
      %v1679 = vpop.f32.mrf.mxu0
      %v1680 = vadd.f32 0.0, %v1679
      %v1681 = vpop.f32.mrf.mxu0
      %1682 = vmatprep.mubr.bf16.mxu0 0
      %1683 = vmatmul.mubr.bf16.gmra.mxu0 %v1598
      %v1684 = vpop.f32.mrf.mxu0
      %v1685 = vadd.f32 0.0, %v1684
      %v1686 = vpop.f32.mrf.mxu0
      %v1687 = vpop.f32.mrf.mxu0
      %v1688 = vadd.f32 0.0, %v1687
      %v1689 = vpop.f32.mrf.mxu0
      %1690 = vmatprep.mubr.bf16.mxu0 0
      %1691 = vmatmul.mubr.bf16.gmra.mxu0 %v1601
      %v1692 = vpop.f32.mrf.mxu0
      %v1693 = vadd.f32 0.0, %v1692
      %v1694 = vpop.f32.mrf.mxu0
      %v1695 = vpop.f32.mrf.mxu0
      %v1696 = vadd.f32 0.0, %v1695
      %v1697 = vpop.f32.mrf.mxu0
      %1698 = vmatprep.mubr.bf16.mxu0 0
      %1699 = vmatmul.mubr.bf16.gmra.mxu0 %v1604
      %v1700 = vpop.f32.mrf.mxu0
      %v1701 = vadd.f32 0.0, %v1700
      %v1702 = vpop.f32.mrf.mxu0
      %v1703 = vpop.f32.mrf.mxu0
      %v1704 = vadd.f32 0.0, %v1703
      %v1705 = vpop.f32.mrf.mxu0
      %1706 = vmatprep.mubr.bf16.mxu0 0
      %1707 = vmatmul.mubr.bf16.gmra.mxu0 %v1607
      %v1708 = vpop.f32.mrf.mxu0
      %v1709 = vadd.f32 0.0, %v1708
      %v1710 = vpop.f32.mrf.mxu0
      %v1711 = vpop.f32.mrf.mxu0
      %v1712 = vadd.f32 0.0, %v1711
      %v1713 = vpop.f32.mrf.mxu0
      %1714 = vmatprep.mubr.bf16.mxu0 0
      %1715 = vmatmul.mubr.bf16.gmra.mxu0 %v1610
      %v1716 = vpop.f32.mrf.mxu0
      %v1717 = vadd.f32 0.0, %v1716
      %v1718 = vpop.f32.mrf.mxu0
      %v1719 = vpop.f32.mrf.mxu0
      %v1720 = vadd.f32 0.0, %v1719
      %v1721 = vpop.f32.mrf.mxu0
      %1722 = vmatprep.mubr.bf16.mxu0 0
      %1723 = vmatmul.mubr.bf16.gmra.mxu0 %v1613
      %v1724 = vpop.f32.mrf.mxu0
      %v1725 = vadd.f32 0.0, %v1724
      %v1726 = vpop.f32.mrf.mxu0
      %v1727 = vpop.f32.mrf.mxu0
      %v1728 = vadd.f32 0.0, %v1727
      %v1729 = vpop.f32.mrf.mxu0
      %1730 = vmatprep.mubr.bf16.mxu0 0
      %1731 = vmatmul.mubr.bf16.gmra.mxu0 %v1616
      %v1732 = vpop.f32.mrf.mxu0
      %v1733 = vadd.f32 0.0, %v1732
      %v1734 = vpop.f32.mrf.mxu0
      %v1735 = vpop.f32.mrf.mxu0
      %v1736 = vadd.f32 0.0, %v1735
      %v1737 = vpop.f32.mrf.mxu0
      %1738 = vmatprep.mubr.bf16.mxu0 0
      %1739 = vmatmul.mubr.bf16.gmra.mxu0 %v1619
      %v1740 = vpop.f32.mrf.mxu0
      %v1741 = vadd.f32 0.0, %v1740
      %v1742 = vpop.f32.mrf.mxu0
      %v1743 = vpop.f32.mrf.mxu0
      %v1744 = vadd.f32 0.0, %v1743
      %v1745 = vpop.f32.mrf.mxu0
      %1746 = vmatprep.mubr.bf16.mxu0 0
      %1747 = vmatmul.mubr.bf16.gmra.mxu0 %v1622
      %v1748 = vpop.f32.mrf.mxu0
      %v1749 = vadd.f32 0.0, %v1748
      %v1750 = vpop.f32.mrf.mxu0
      %v1751 = vpop.f32.mrf.mxu0
      %v1752 = vadd.f32 0.0, %v1751
      %v1753 = vpop.f32.mrf.mxu0
      %1754 = vmatprep.mubr.bf16.mxu0 0
      %1755 = vmatmul.mubr.bf16.gmra.mxu0 %v1625
      %v1756 = vpop.f32.mrf.mxu0
      %v1757 = vadd.f32 0.0, %v1756
      %v1758 = vpop.f32.mrf.mxu0
      %v1759 = vpop.f32.mrf.mxu0
      %v1760 = vadd.f32 0.0, %v1759
      %v1761 = vpop.f32.mrf.mxu0
      %1762 = vmatprep.mubr.bf16.mxu0 0
      %1763 = vmatmul.mubr.bf16.gmra.mxu0 %v1628
      %v1764 = vpop.f32.mrf.mxu0
      %v1765 = vadd.f32 0.0, %v1764
      %v1766 = vpop.f32.mrf.mxu0
      %v1767 = vpop.f32.mrf.mxu0
      %v1768 = vadd.f32 0.0, %v1767
      %v1769 = vpop.f32.mrf.mxu0
      %1770 = vmatprep.mubr.bf16.mxu0 0
      %1771 = vmatmul.mubr.bf16.gmra.mxu0 %v1631
      %v1772 = vpop.f32.mrf.mxu0
      %v1773 = vadd.f32 0.0, %v1772
      %v1774 = vpop.f32.mrf.mxu0
      %v1775 = vpop.f32.mrf.mxu0
      %v1776 = vadd.f32 0.0, %v1775
      %v1777 = vpop.f32.mrf.mxu0
      %1778 = vmatprep.mubr.bf16.mxu0 0
      %1779 = vmatmul.mubr.bf16.gmra.mxu0 %v1634
      %v1780 = vpop.f32.mrf.mxu0
      %v1781 = vadd.f32 0.0, %v1780
      %v1782 = vpop.f32.mrf.mxu0
      %v1783 = vpop.f32.mrf.mxu0
      %v1784 = vadd.f32 0.0, %v1783
      %v1785 = vpop.f32.mrf.mxu0
      %1786 = vmatprep.mubr.bf16.mxu0 0
      %1787 = vmatmul.mubr.bf16.gmra.mxu0 %v1637
      %v1788 = vpop.f32.mrf.mxu0
      %v1789 = vadd.f32 0.0, %v1788
      %v1790 = vpop.f32.mrf.mxu0
      %v1791 = vpop.f32.mrf.mxu0
      %v1792 = vadd.f32 0.0, %v1791
      %v1793 = vpop.f32.mrf.mxu0
      %1794 = vmatprep.mubr.bf16.mxu0 0
      %1795 = vmatmul.mubr.bf16.gmra.mxu0 %v1640
      %v1796 = vpop.f32.mrf.mxu0
      %v1797 = vadd.f32 0.0, %v1796
      %v1798 = vpop.f32.mrf.mxu0
      %v1799 = vpop.f32.mrf.mxu0
      %v1800 = vadd.f32 0.0, %v1799
      %v1801 = vpop.f32.mrf.mxu0
      %1802 = vdwg.mxu0
      %v1803 = vadd.f32 %v1465, %v1677
      %v1804 = vadd.f32 %v1466, %v1680
      %v1805 = vadd.f32 %v1467, %v1685
      %v1806 = vadd.f32 %v1468, %v1688
      %v1807 = vadd.f32 %v1469, %v1693
      %v1808 = vadd.f32 %v1470, %v1696
      %v1809 = vadd.f32 %v1471, %v1701
      %v1810 = vadd.f32 %v1472, %v1704
      %v1811 = vadd.f32 %v1473, %v1709
      %v1812 = vadd.f32 %v1474, %v1712
      %v1813 = vadd.f32 %v1475, %v1717
      %v1814 = vadd.f32 %v1476, %v1720
      %v1815 = vadd.f32 %v1477, %v1725
      %v1816 = vadd.f32 %v1478, %v1728
      %v1817 = vadd.f32 %v1479, %v1733
      %v1818 = vadd.f32 %v1480, %v1736
      %v1819 = vadd.f32 %v1481, %v1741
      %v1820 = vadd.f32 %v1482, %v1744
      %v1821 = vadd.f32 %v1483, %v1749
      %v1822 = vadd.f32 %v1484, %v1752
      %v1823 = vadd.f32 %v1485, %v1757
      %v1824 = vadd.f32 %v1486, %v1760
      %v1825 = vadd.f32 %v1487, %v1765
      %v1826 = vadd.f32 %v1488, %v1768
      %v1827 = vadd.f32 %v1489, %v1773
      %v1828 = vadd.f32 %v1490, %v1776
      %v1829 = vadd.f32 %v1491, %v1781
      %v1830 = vadd.f32 %v1492, %v1784
      %v1831 = vadd.f32 %v1493, %v1789
      %v1832 = vadd.f32 %v1494, %v1792
      %v1833 = vadd.f32 %v1495, %v1797
      %v1834 = vadd.f32 %v1496, %v1800
      %s1835 = scalar_lea.vmem %s2, 64
      %v1836 = vld [vmem:[%s1835] sm:$0xf]
      %v1837 = vld [vmem:[%s1835 + $0x4] sm:$0xf]
      %v1838 = vld [vmem:[%s1835 + $0x8] sm:$0xf]
      %v1839 = vld [vmem:[%s1835 + $0xc] sm:$0xf]
      %v1872 = vunpack.c.l.b16 %v515
      %v1873 = vunpack.c.l.b16 %v516
      %v1874 = vunpack.c.l.b16 %v517
      %v1875 = vunpack.c.l.b16 %v518
      %v1876 = vunpack.c.l.b16 %v519
      %v1877 = vunpack.c.l.b16 %v520
      %v1878 = vunpack.c.l.b16 %v521
      %v1879 = vunpack.c.l.b16 %v522
      %v1880 = vunpack.c.l.b16 %v523
      %v1881 = vunpack.c.l.b16 %v524
      %v1882 = vunpack.c.l.b16 %v525
      %v1883 = vunpack.c.l.b16 %v526
      %v1884 = vunpack.c.l.b16 %v527
      %v1885 = vunpack.c.l.b16 %v528
      %v1886 = vunpack.c.l.b16 %v529
      %v1887 = vunpack.c.l.b16 %v530
      %v1888 = vunpack.c.l.b16 %v531
      %v1889 = vunpack.c.l.b16 %v532
      %v1890 = vunpack.c.l.b16 %v533
      %v1891 = vunpack.c.l.b16 %v534
      %v1892 = vunpack.c.l.b16 %v535
      %v1893 = vunpack.c.l.b16 %v536
      %v1894 = vunpack.c.l.b16 %v537
      %v1895 = vunpack.c.l.b16 %v538
      %v1896 = vunpack.c.l.b16 %v539
      %v1897 = vunpack.c.l.b16 %v540
      %v1898 = vunpack.c.l.b16 %v541
      %v1899 = vunpack.c.l.b16 %v542
      %v1900 = vunpack.c.l.b16 %v543
      %v1901 = vunpack.c.l.b16 %v544
      %v1902 = vunpack.c.l.b16 %v545
      %v1903 = vunpack.c.l.b16 %v546
      %v1904 = vpack.c.b16 %v1873, %v1872
      %v1905 = vpack.c.b16 %v1875, %v1874
      %v1906 = vpack.c.b16 %v1877, %v1876
      %v1907 = vpack.c.b16 %v1879, %v1878
      %v1908 = vpack.c.b16 %v1881, %v1880
      %v1909 = vpack.c.b16 %v1883, %v1882
      %v1910 = vpack.c.b16 %v1885, %v1884
      %v1911 = vpack.c.b16 %v1887, %v1886
      %v1912 = vpack.c.b16 %v1889, %v1888
      %v1913 = vpack.c.b16 %v1891, %v1890
      %v1914 = vpack.c.b16 %v1893, %v1892
      %v1915 = vpack.c.b16 %v1895, %v1894
      %v1916 = vpack.c.b16 %v1897, %v1896
      %v1917 = vpack.c.b16 %v1899, %v1898
      %v1918 = vpack.c.b16 %v1901, %v1900
      %v1919 = vpack.c.b16 %v1903, %v1902
      %v1924 = vunpack.c.l.b16 %v1836
      %v1925 = vunpack.c.l.b16 %v1837
      %v1926 = vunpack.c.l.b16 %v1838
      %v1927 = vunpack.c.l.b16 %v1839
      %v1928 = vpack.c.b16 %v1925, %v1924
      %v1929 = vpack.c.b16 %v1927, %v1926
      %v1933 = vsel %vm648, %v1904, 0
      %v1936 = vsel %vm648, %v1905, 0
      %v1939 = vsel %vm648, %v1906, 0
      %v1942 = vsel %vm648, %v1907, 0
      %v1945 = vsel %vm648, %v1908, 0
      %v1948 = vsel %vm648, %v1909, 0
      %v1951 = vsel %vm648, %v1910, 0
      %v1954 = vsel %vm648, %v1911, 0
      %v1957 = vsel %vm648, %v1912, 0
      %v1960 = vsel %vm648, %v1913, 0
      %v1963 = vsel %vm648, %v1914, 0
      %v1966 = vsel %vm648, %v1915, 0
      %v1969 = vsel %vm648, %v1916, 0
      %v1972 = vsel %vm648, %v1917, 0
      %v1975 = vsel %vm648, %v1918, 0
      %v1978 = vsel %vm648, %v1919, 0
      %1980 = vmatprep.subr.bf16.mxu0 0
      %1981 = vmatpush1.bf16.msra.mxu0 0
      %1982 = vmatprep.subr.bf16.mxu0 0
      %1983 = vmatpush1.bf16.msra.mxu0 0
      %1984 = vmatprep.subr.bf16.mxu0 0
      %1985 = vmatpush1.bf16.msra.mxu0 0
      %1986 = vmatprep.subr.bf16.mxu0 0
      %1987 = vmatpush1.bf16.msra.mxu0 0
      %1988 = vmatprep.subr.bf16.mxu0 0
      %1989 = vmatpush1.bf16.msra.mxu0 0
      %1990 = vmatprep.subr.bf16.mxu0 0
      %1991 = vmatpush1.bf16.msra.mxu0 0
      %1992 = vmatprep.subr.bf16.mxu0 0
      %1993 = vmatpush1.bf16.msra.mxu0 %v1929
      %1994 = vmatprep.subr.bf16.mxu0 0
      %1995 = vmatpush1.bf16.msra.mxu0 %v1928
      %1996 = vmatprep.subr.bf16.mxu0 0
      %1997 = vmatpush2.bf16.msra.mxu0 0
      %1998 = vmatprep.subr.bf16.mxu0 0
      %1999 = vmatpush2.bf16.msra.mxu0 0
      %2000 = vmatprep.subr.bf16.mxu0 0
      %2001 = vmatpush2.bf16.msra.mxu0 0
      %2002 = vmatprep.subr.bf16.mxu0 0
      %2003 = vmatpush2.bf16.msra.mxu0 0
      %2004 = vmatprep.subr.bf16.mxu0 0
      %2005 = vmatpush2.bf16.msra.mxu0 0
      %2006 = vmatprep.subr.bf16.mxu0 0
      %2007 = vmatpush2.bf16.msra.mxu0 0
      %2008 = vmatprep.subr.bf16.mxu0 0
      %2009 = vmatpush2.bf16.msra.mxu0 0
      %2010 = vmatprep.subr.bf16.mxu0 0
      %2011 = vmatpush2.bf16.msra.mxu0 0
      %2012 = vmatprep.mubr.bf16.mxu0 0
      %2013 = vmatmul.mubr.bf16.gmra.mxu0 %v1933
      %v2014 = vpop.f32.mrf.mxu0
      %v2015 = vadd.f32 0.0, %v2014
      %v2016 = vpop.f32.mrf.mxu0
      %v2017 = vpop.f32.mrf.mxu0
      %v2018 = vadd.f32 0.0, %v2017
      %v2019 = vpop.f32.mrf.mxu0
      %2020 = vmatprep.mubr.bf16.mxu0 0
      %2021 = vmatmul.mubr.bf16.gmra.mxu0 %v1936
      %v2022 = vpop.f32.mrf.mxu0
      %v2023 = vadd.f32 0.0, %v2022
      %v2024 = vpop.f32.mrf.mxu0
      %v2025 = vpop.f32.mrf.mxu0
      %v2026 = vadd.f32 0.0, %v2025
      %v2027 = vpop.f32.mrf.mxu0
      %2028 = vmatprep.mubr.bf16.mxu0 0
      %2029 = vmatmul.mubr.bf16.gmra.mxu0 %v1939
      %v2030 = vpop.f32.mrf.mxu0
      %v2031 = vadd.f32 0.0, %v2030
      %v2032 = vpop.f32.mrf.mxu0
      %v2033 = vpop.f32.mrf.mxu0
      %v2034 = vadd.f32 0.0, %v2033
      %v2035 = vpop.f32.mrf.mxu0
      %2036 = vmatprep.mubr.bf16.mxu0 0
      %2037 = vmatmul.mubr.bf16.gmra.mxu0 %v1942
      %v2038 = vpop.f32.mrf.mxu0
      %v2039 = vadd.f32 0.0, %v2038
      %v2040 = vpop.f32.mrf.mxu0
      %v2041 = vpop.f32.mrf.mxu0
      %v2042 = vadd.f32 0.0, %v2041
      %v2043 = vpop.f32.mrf.mxu0
      %2044 = vmatprep.mubr.bf16.mxu0 0
      %2045 = vmatmul.mubr.bf16.gmra.mxu0 %v1945
      %v2046 = vpop.f32.mrf.mxu0
      %v2047 = vadd.f32 0.0, %v2046
      %v2048 = vpop.f32.mrf.mxu0
      %v2049 = vpop.f32.mrf.mxu0
      %v2050 = vadd.f32 0.0, %v2049
      %v2051 = vpop.f32.mrf.mxu0
      %2052 = vmatprep.mubr.bf16.mxu0 0
      %2053 = vmatmul.mubr.bf16.gmra.mxu0 %v1948
      %v2054 = vpop.f32.mrf.mxu0
      %v2055 = vadd.f32 0.0, %v2054
      %v2056 = vpop.f32.mrf.mxu0
      %v2057 = vpop.f32.mrf.mxu0
      %v2058 = vadd.f32 0.0, %v2057
      %v2059 = vpop.f32.mrf.mxu0
      %2060 = vmatprep.mubr.bf16.mxu0 0
      %2061 = vmatmul.mubr.bf16.gmra.mxu0 %v1951
      %v2062 = vpop.f32.mrf.mxu0
      %v2063 = vadd.f32 0.0, %v2062
      %v2064 = vpop.f32.mrf.mxu0
      %v2065 = vpop.f32.mrf.mxu0
      %v2066 = vadd.f32 0.0, %v2065
      %v2067 = vpop.f32.mrf.mxu0
      %2068 = vmatprep.mubr.bf16.mxu0 0
      %2069 = vmatmul.mubr.bf16.gmra.mxu0 %v1954
      %v2070 = vpop.f32.mrf.mxu0
      %v2071 = vadd.f32 0.0, %v2070
      %v2072 = vpop.f32.mrf.mxu0
      %v2073 = vpop.f32.mrf.mxu0
      %v2074 = vadd.f32 0.0, %v2073
      %v2075 = vpop.f32.mrf.mxu0
      %2076 = vmatprep.mubr.bf16.mxu0 0
      %2077 = vmatmul.mubr.bf16.gmra.mxu0 %v1957
      %v2078 = vpop.f32.mrf.mxu0
      %v2079 = vadd.f32 0.0, %v2078
      %v2080 = vpop.f32.mrf.mxu0
      %v2081 = vpop.f32.mrf.mxu0
      %v2082 = vadd.f32 0.0, %v2081
      %v2083 = vpop.f32.mrf.mxu0
      %2084 = vmatprep.mubr.bf16.mxu0 0
      %2085 = vmatmul.mubr.bf16.gmra.mxu0 %v1960
      %v2086 = vpop.f32.mrf.mxu0
      %v2087 = vadd.f32 0.0, %v2086
      %v2088 = vpop.f32.mrf.mxu0
      %v2089 = vpop.f32.mrf.mxu0
      %v2090 = vadd.f32 0.0, %v2089
      %v2091 = vpop.f32.mrf.mxu0
      %2092 = vmatprep.mubr.bf16.mxu0 0
      %2093 = vmatmul.mubr.bf16.gmra.mxu0 %v1963
      %v2094 = vpop.f32.mrf.mxu0
      %v2095 = vadd.f32 0.0, %v2094
      %v2096 = vpop.f32.mrf.mxu0
      %v2097 = vpop.f32.mrf.mxu0
      %v2098 = vadd.f32 0.0, %v2097
      %v2099 = vpop.f32.mrf.mxu0
      %2100 = vmatprep.mubr.bf16.mxu0 0
      %2101 = vmatmul.mubr.bf16.gmra.mxu0 %v1966
      %v2102 = vpop.f32.mrf.mxu0
      %v2103 = vadd.f32 0.0, %v2102
      %v2104 = vpop.f32.mrf.mxu0
      %v2105 = vpop.f32.mrf.mxu0
      %v2106 = vadd.f32 0.0, %v2105
      %v2107 = vpop.f32.mrf.mxu0
      %2108 = vmatprep.mubr.bf16.mxu0 0
      %2109 = vmatmul.mubr.bf16.gmra.mxu0 %v1969
      %v2110 = vpop.f32.mrf.mxu0
      %v2111 = vadd.f32 0.0, %v2110
      %v2112 = vpop.f32.mrf.mxu0
      %v2113 = vpop.f32.mrf.mxu0
      %v2114 = vadd.f32 0.0, %v2113
      %v2115 = vpop.f32.mrf.mxu0
      %2116 = vmatprep.mubr.bf16.mxu0 0
      %2117 = vmatmul.mubr.bf16.gmra.mxu0 %v1972
      %v2118 = vpop.f32.mrf.mxu0
      %v2119 = vadd.f32 0.0, %v2118
      %v2120 = vpop.f32.mrf.mxu0
      %v2121 = vpop.f32.mrf.mxu0
      %v2122 = vadd.f32 0.0, %v2121
      %v2123 = vpop.f32.mrf.mxu0
      %2124 = vmatprep.mubr.bf16.mxu0 0
      %2125 = vmatmul.mubr.bf16.gmra.mxu0 %v1975
      %v2126 = vpop.f32.mrf.mxu0
      %v2127 = vadd.f32 0.0, %v2126
      %v2128 = vpop.f32.mrf.mxu0
      %v2129 = vpop.f32.mrf.mxu0
      %v2130 = vadd.f32 0.0, %v2129
      %v2131 = vpop.f32.mrf.mxu0
      %2132 = vmatprep.mubr.bf16.mxu0 0
      %2133 = vmatmul.mubr.bf16.gmra.mxu0 %v1978
      %v2134 = vpop.f32.mrf.mxu0
      %v2135 = vadd.f32 0.0, %v2134
      %v2136 = vpop.f32.mrf.mxu0
      %v2137 = vpop.f32.mrf.mxu0
      %v2138 = vadd.f32 0.0, %v2137
      %v2139 = vpop.f32.mrf.mxu0
      %2140 = vdwg.mxu0
      %v2141 = vadd.f32 %v1803, %v2015
      %v2142 = vadd.f32 %v1804, %v2018
      %v2143 = vadd.f32 %v1805, %v2023
      %v2144 = vadd.f32 %v1806, %v2026
      %v2145 = vadd.f32 %v1807, %v2031
      %v2146 = vadd.f32 %v1808, %v2034
      %v2147 = vadd.f32 %v1809, %v2039
      %v2148 = vadd.f32 %v1810, %v2042
      %v2149 = vadd.f32 %v1811, %v2047
      %v2150 = vadd.f32 %v1812, %v2050
      %v2151 = vadd.f32 %v1813, %v2055
      %v2152 = vadd.f32 %v1814, %v2058
      %v2153 = vadd.f32 %v1815, %v2063
      %v2154 = vadd.f32 %v1816, %v2066
      %v2155 = vadd.f32 %v1817, %v2071
      %v2156 = vadd.f32 %v1818, %v2074
      %v2157 = vadd.f32 %v1819, %v2079
      %v2158 = vadd.f32 %v1820, %v2082
      %v2159 = vadd.f32 %v1821, %v2087
      %v2160 = vadd.f32 %v1822, %v2090
      %v2161 = vadd.f32 %v1823, %v2095
      %v2162 = vadd.f32 %v1824, %v2098
      %v2163 = vadd.f32 %v1825, %v2103
      %v2164 = vadd.f32 %v1826, %v2106
      %v2165 = vadd.f32 %v1827, %v2111
      %v2166 = vadd.f32 %v1828, %v2114
      %v2167 = vadd.f32 %v1829, %v2119
      %v2168 = vadd.f32 %v1830, %v2122
      %v2169 = vadd.f32 %v1831, %v2127
      %v2170 = vadd.f32 %v1832, %v2130
      %v2171 = vadd.f32 %v1833, %v2135
      %v2172 = vadd.f32 %v1834, %v2138
      %v2173 = vmul.f32 %v2141, 2.0
      %v2174 = vmul.f32 %v2142, 2.0
      %v2175 = vmul.f32 %v2143, 2.0
      %v2176 = vmul.f32 %v2144, 2.0
      %v2177 = vmul.f32 %v2145, 2.0
      %v2178 = vmul.f32 %v2146, 2.0
      %v2179 = vmul.f32 %v2147, 2.0
      %v2180 = vmul.f32 %v2148, 2.0
      %v2181 = vmul.f32 %v2149, 2.0
      %v2182 = vmul.f32 %v2150, 2.0
      %v2183 = vmul.f32 %v2151, 2.0
      %v2184 = vmul.f32 %v2152, 2.0
      %v2185 = vmul.f32 %v2153, 2.0
      %v2186 = vmul.f32 %v2154, 2.0
      %v2187 = vmul.f32 %v2155, 2.0
      %v2188 = vmul.f32 %v2156, 2.0
      %v2189 = vmul.f32 %v2157, 2.0
      %v2190 = vmul.f32 %v2158, 2.0
      %v2191 = vmul.f32 %v2159, 2.0
      %v2192 = vmul.f32 %v2160, 2.0
      %v2193 = vmul.f32 %v2161, 2.0
      %v2194 = vmul.f32 %v2162, 2.0
      %v2195 = vmul.f32 %v2163, 2.0
      %v2196 = vmul.f32 %v2164, 2.0
      %v2197 = vmul.f32 %v2165, 2.0
      %v2198 = vmul.f32 %v2166, 2.0
      %v2199 = vmul.f32 %v2167, 2.0
      %v2200 = vmul.f32 %v2168, 2.0
      %v2201 = vmul.f32 %v2169, 2.0
      %v2202 = vmul.f32 %v2170, 2.0
      %v2203 = vmul.f32 %v2171, 2.0
      %v2204 = vmul.f32 %v2172, 2.0
      %v2205 = vmax.f32 %v2173, 0.0
      %v2206 = vmax.f32 %v2174, 0.0
      %v2207 = vmax.f32 %v2175, 0.0
      %v2208 = vmax.f32 %v2176, 0.0
      %v2209 = vmax.f32 %v2177, 0.0
      %v2210 = vmax.f32 %v2178, 0.0
      %v2211 = vmax.f32 %v2179, 0.0
      %v2212 = vmax.f32 %v2180, 0.0
      %v2213 = vmax.f32 %v2181, 0.0
      %v2214 = vmax.f32 %v2182, 0.0
      %v2215 = vmax.f32 %v2183, 0.0
      %v2216 = vmax.f32 %v2184, 0.0
      %v2217 = vmax.f32 %v2185, 0.0
      %v2218 = vmax.f32 %v2186, 0.0
      %v2219 = vmax.f32 %v2187, 0.0
      %v2220 = vmax.f32 %v2188, 0.0
      %v2221 = vmax.f32 %v2189, 0.0
      %v2222 = vmax.f32 %v2190, 0.0
      %v2223 = vmax.f32 %v2191, 0.0
      %v2224 = vmax.f32 %v2192, 0.0
      %v2225 = vmax.f32 %v2193, 0.0
      %v2226 = vmax.f32 %v2194, 0.0
      %v2227 = vmax.f32 %v2195, 0.0
      %v2228 = vmax.f32 %v2196, 0.0
      %v2229 = vmax.f32 %v2197, 0.0
      %v2230 = vmax.f32 %v2198, 0.0
      %v2231 = vmax.f32 %v2199, 0.0
      %v2232 = vmax.f32 %v2200, 0.0
      %v2233 = vmax.f32 %v2201, 0.0
      %v2234 = vmax.f32 %v2202, 0.0
      %v2235 = vmax.f32 %v2203, 0.0
      %v2236 = vmax.f32 %v2204, 0.0
      %2237 = vst.msk [vmem:[%s190] sm:$0xff] %vm648, %v2205
      %2238 = vst.msk [vmem:[%s190 + $0x8] sm:$0xff] %vm648, %v2206
      %2239 = vst.msk [vmem:[%s190 + $0x10] sm:$0xff] %vm648, %v2207
      %2240 = vst.msk [vmem:[%s190 + $0x18] sm:$0xff] %vm648, %v2208
      %2241 = vst.msk [vmem:[%s190 + $0x20] sm:$0xff] %vm648, %v2209
      %2242 = vst.msk [vmem:[%s190 + $0x28] sm:$0xff] %vm648, %v2210
      %2243 = vst.msk [vmem:[%s190 + $0x30] sm:$0xff] %vm648, %v2211
      %2244 = vst.msk [vmem:[%s190 + $0x38] sm:$0xff] %vm648, %v2212
      %2245 = vst.msk [vmem:[%s190 + $0x40] sm:$0xff] %vm648, %v2213
      %2246 = vst.msk [vmem:[%s190 + $0x48] sm:$0xff] %vm648, %v2214
      %2247 = vst.msk [vmem:[%s190 + $0x50] sm:$0xff] %vm648, %v2215
      %2248 = vst.msk [vmem:[%s190 + $0x58] sm:$0xff] %vm648, %v2216
      %2249 = vst.msk [vmem:[%s190 + $0x60] sm:$0xff] %vm648, %v2217
      %2250 = vst.msk [vmem:[%s190 + $0x68] sm:$0xff] %vm648, %v2218
      %2251 = vst.msk [vmem:[%s190 + $0x70] sm:$0xff] %vm648, %v2219
      %2252 = vst.msk [vmem:[%s190 + $0x78] sm:$0xff] %vm648, %v2220
      %2253 = vst.msk [vmem:[%s190 + $0x80] sm:$0xff] %vm648, %v2221
      %2254 = vst.msk [vmem:[%s190 + $0x88] sm:$0xff] %vm648, %v2222
      %2255 = vst.msk [vmem:[%s190 + $0x90] sm:$0xff] %vm648, %v2223
      %2256 = vst.msk [vmem:[%s190 + $0x98] sm:$0xff] %vm648, %v2224
      %2257 = vst.msk [vmem:[%s190 + $0xa0] sm:$0xff] %vm648, %v2225
      %2258 = vst.msk [vmem:[%s190 + $0xa8] sm:$0xff] %vm648, %v2226
      %2259 = vst.msk [vmem:[%s190 + $0xb0] sm:$0xff] %vm648, %v2227
      %2260 = vst.msk [vmem:[%s190 + $0xb8] sm:$0xff] %vm648, %v2228
      %2261 = vst.msk [vmem:[%s190 + $0xc0] sm:$0xff] %vm648, %v2229
      %2262 = vst.msk [vmem:[%s190 + $0xc8] sm:$0xff] %vm648, %v2230
      %2263 = vst.msk [vmem:[%s190 + $0xd0] sm:$0xff] %vm648, %v2231
      %2264 = vst.msk [vmem:[%s190 + $0xd8] sm:$0xff] %vm648, %v2232
      %2265 = vst.msk [vmem:[%s190 + $0xe0] sm:$0xff] %vm648, %v2233
      %2266 = vst.msk [vmem:[%s190 + $0xe8] sm:$0xff] %vm648, %v2234
      %2267 = vst.msk [vmem:[%s190 + $0xf0] sm:$0xff] %vm648, %v2235
      %2268 = vst.msk [vmem:[%s190 + $0xf8] sm:$0xff] %vm648, %v2236
      %p2269 = scmp.lt.s32.totalorder %s14, 1
      %s2270 = scalar_select %p2269, %s14, 1
      %s2271 = smul.addr %s2270, 32
      %s2272 = smul.addr %s2271, 8
      %s2273 = scalar_lea.vmem %s3, %s2272
      // Predicated region
      $region33: #{mesh_cnn_forward.5} parent=31 // pred_check
        %p2274 = pneg %p105
      $region34: #{mesh_cnn_forward.5} parent=31 // pred_check_branch
        %2276 = sbr.rel (%p2274) target = $region36
      $region35: #{mesh_cnn_forward.5} parent=31 // pred_region
        _
      $region36: #{mesh_cnn_forward.5} parent=31 // pred_fallthru
        _
    $region32: #{mesh_cnn_forward.5} parent=5 // pred_fallthru
      _
    %p2277 = scmp.le.s32.totalorder 2, %s9
    // Predicated region
    $region37: #{mesh_cnn_forward.5} parent=5 // pred_check
      %p2278 = pneg %p2277
    $region38: #{mesh_cnn_forward.5} parent=5 // pred_check_branch
      %2280 = sbr.rel (%p2278) target = $region40
    $region39: #{mesh_cnn_forward.5} parent=5 // pred_region
      %s2281 = ssub.s32 %s9, 2
      // Predicated region
      $region41: #{mesh_cnn_forward.5} parent=39 // pred_check
        %p2282 = pneg %p111
      $region42: #{mesh_cnn_forward.5} parent=39 // pred_check_branch
        %2284 = sbr.rel (%p2282) target = $region44
      $region43: #{mesh_cnn_forward.5} parent=39 // pred_region
        %p2285 = scmp.lt.s32.totalorder %s15, 1
        %s2286 = scalar_select %p2285, %s15, 1
        %s2287 = smul.addr %s2286, 32
        %s2288 = smul.addr %s2287, 8
        %s2289 = scalar_lea.vmem %s3, %s2288
      $region44: #{mesh_cnn_forward.5} parent=39 // pred_fallthru
        _
    $region40: #{mesh_cnn_forward.5} parent=5 // pred_fallthru
      _
  $region6: #{mesh_cnn_forward.5} parent=0 // loop_footer
    %s13 = sadd.s32 1, %s9
  $region7: #{mesh_cnn_forward.5} parent=0 // loop_footer_branch
    %8 = sbr.rel target = $region3
  $region8: #{mesh_cnn_forward.5} parent=0 // loop_exit
    _

</llo_original>
